<compile_context>
chip_gen: v5e
topology: v5e:2x2
jax: 0.10.0
libtpu: 0.0.40
codegen_flags: <defaults>
</compile_context>

<pallas_src>
import jax
import jax.numpy as jnp
from jax.experimental import pallas as pl
from jax.experimental.pallas import tpu as pltpu

# Module constants (from the PyTorch script)
NUM_FEATURES = 784
HIDDEN_SIZES = [1000, 750, 500]
NUM_CLASSES = 10

LANE = 128
SUBLANE = 8


def _round_up(n, m):
    return ((n + m - 1) // m) * m


def _sigmoid(z):
    # exact logistic (matches torch.sigmoid in f32). exp lands on the EUP.
    # If this kernel ever becomes VALU-bound (very large batch), swap the divide
    # for pl.reciprocal(1.0 + jnp.exp(-z), approx=True) to move it to the EUP too.
    return 1.0 / (1.0 + jnp.exp(-z))


def dnn_forward_kernel(x_ref, *refs):
    """Fused MLP forward for one batch tile.

    refs = (w1, b1, w2, b2, ..., wL, bL, y_ref).  Weights are (in_pad, out_pad)
    bf16, biases are (1, out_pad) f32, activations are (tile_b, feat) with
    features on lanes.  All matmuls are bf16 x bf16 -> f32 on the MXU.
    """
    y_ref = refs[-1]
    wb = refs[:-1]
    n_layers = len(wb) // 2

    h = x_ref[...].astype(jnp.bfloat16)
    for l in range(n_layers):
        w_ref, b_ref = wb[2 * l], wb[2 * l + 1]
        z = jnp.dot(h, w_ref[...], preferred_element_type=jnp.float32) + b_ref[...]
        if l < n_layers - 1:
            h = _sigmoid(z).astype(jnp.bfloat16)
        else:
            y_ref[...] = z  # final classifier layer: no activation, f32 out


def prepare_params(params):
    """One-time weight prep (do NOT call per forward pass).

    params: list of (W, b) in PyTorch layout (W is (out, in), b is (out,)).
    Returns list of (W_t_padded_bf16 (in_pad, out_pad), b_padded_f32 (1, out_pad)).
    Zero padding keeps the math exact: padded input rows of every weight are zero,
    so the sigmoid(0)=0.5 values living in padded lanes contribute nothing.
    """
    prepared = []
    for w, b in params:
        w = jnp.asarray(w, jnp.float32)
        b = jnp.asarray(b, jnp.float32)
        out_d, in_d = w.shape
        in_p, out_p = _round_up(in_d, LANE), _round_up(out_d, LANE)
        wt = jnp.pad(w.T, ((0, in_p - in_d), (0, out_p - out_d))).astype(jnp.bfloat16)
        bp = jnp.pad(b, (0, out_p - out_d))[None, :]  # (1, out_pad) f32
        prepared.append((wt, bp))
    return prepared


def dnn_forward(x, prepared_params, *, batch_tile=256):
    """x: (B, NUM_FEATURES) f32.  prepared_params: output of prepare_params."""
    batch = x.shape[0]
    in_p = _round_up(NUM_FEATURES, LANE)
    out_p = prepared_params[-1][0].shape[1]

    # Batch tiling: tile is a sublane multiple, batch padded to a tile multiple.
    bt = min(batch_tile, _round_up(batch, SUBLANE))
    padded_batch = _round_up(batch, bt)
    x_p = jnp.pad(x.astype(jnp.float32),
                  ((0, padded_batch - batch), (0, in_p - NUM_FEATURES)))

    kernel_args = [x_p]
    in_specs = [pl.BlockSpec((bt, in_p), lambda i: (i, 0))]
    for w, b in prepared_params:
        kernel_args += [w, b]
        # Constant index_map -> weights/biases fetched once, resident across tiles.
        in_specs += [pl.BlockSpec(w.shape, lambda i: (0, 0)),
                     pl.BlockSpec(b.shape, lambda i: (0, 0))]

    flops = 2 * padded_batch * sum(int(w.shape[0]) * int(w.shape[1])
                                   for w, _ in prepared_params)
    transcendentals = padded_batch * sum(int(w.shape[1])
                                         for w, _ in prepared_params[:-1])
    bytes_accessed = (sum(w.size * w.dtype.itemsize + b.size * b.dtype.itemsize
                          for w, b in prepared_params)
                      + x_p.size * 4 + padded_batch * out_p * 4)

    y_pad = pl.pallas_call(
        dnn_forward_kernel,
        out_shape=jax.ShapeDtypeStruct((padded_batch, out_p), jnp.float32),
        grid=(padded_batch // bt,),
        in_specs=in_specs,
        out_specs=pl.BlockSpec((bt, out_p), lambda i: (i, 0)),
        compiler_params=pltpu.CompilerParams(
            dimension_semantics=("parallel",),
            vmem_limit_bytes=24 << 20,
        ),
        cost_estimate=pl.CostEstimate(
            flops=int(flops),
            transcendentals=int(transcendentals),
            bytes_accessed=int(bytes_accessed),
        ),
    )(*kernel_args)

    return y_pad[:batch, :NUM_CLASSES]


def init_linear_params(key, in_features, out_features):
    """Deterministic init mimicking torch.nn.Linear default (uniform +/- 1/sqrt(in))."""
    kw, kb = jax.random.split(key)
    bound = 1.0 / jnp.sqrt(jnp.float32(in_features))
    w = jax.random.uniform(kw, (out_features, in_features), jnp.float32,
                           minval=-bound, maxval=bound)
    b = jax.random.uniform(kb, (out_features,), jnp.float32,
                           minval=-bound, maxval=bound)
    return w, b


def reference_forward(x, params):
    """Pure-JAX reference mirroring the kernel's bf16-input / f32-accumulate numerics."""
    h = jnp.asarray(x, jnp.float32)
    n_hidden = len(params) - 1
    for i, (w, b) in enumerate(params):
        w_bf = jnp.asarray(w, jnp.float32).astype(jnp.bfloat16)
        z = jnp.dot(h.astype(jnp.bfloat16), w_bf.T,
                    preferred_element_type=jnp.float32) + jnp.asarray(b, jnp.float32)
        h = _sigmoid(z) if i < n_hidden else z
    return h


if __name__ == "__main__":
    key = jax.random.PRNGKey(0)
    k_x, k1, k2, k3, kc = jax.random.split(key, 5)

    batch = 8
    x = jax.random.uniform(k_x, (batch, NUM_FEATURES), jnp.float32)

    # Parameters: 3 RBM hidden layers + final classifier, PyTorch (out, in) layout.
    params = [
        init_linear_params(k1, NUM_FEATURES, HIDDEN_SIZES[0]),
        init_linear_params(k2, HIDDEN_SIZES[0], HIDDEN_SIZES[1]),
        init_linear_params(k3, HIDDEN_SIZES[1], HIDDEN_SIZES[2]),
        init_linear_params(kc, HIDDEN_SIZES[2], NUM_CLASSES),
    ]

    # One-time weight prep (transpose + pad + bf16 cast), hoisted out of the call path.
    prepared = prepare_params(params)

    y = dnn_forward(x, prepared)
    y = jax.block_until_ready(y)

    y_ref = reference_forward(x, params)
    assert y.shape == (batch, NUM_CLASSES)
    assert jnp.allclose(y, y_ref, atol=2e-3, rtol=2e-3), "mismatch vs JAX reference"

    print("KERNEL_OK")
</pallas_src>

<mosaic_0001>
module attributes {stable_mosaic.version = 11 : i64} {
  func.func @dnn_forward_kernel(%arg0: i32, %arg1: memref<8x896xf32, #tpu.memory_space<vmem>>, %arg2: memref<896x1024xbf16, #tpu.memory_space<vmem>>, %arg3: memref<1x1024xf32, #tpu.memory_space<vmem>>, %arg4: memref<1024x768xbf16, #tpu.memory_space<vmem>>, %arg5: memref<1x768xf32, #tpu.memory_space<vmem>>, %arg6: memref<768x512xbf16, #tpu.memory_space<vmem>>, %arg7: memref<1x512xf32, #tpu.memory_space<vmem>>, %arg8: memref<512x128xbf16, #tpu.memory_space<vmem>>, %arg9: memref<1x128xf32, #tpu.memory_space<vmem>>, %arg10: memref<8x128xf32, #tpu.memory_space<vmem>>) attributes {dimension_semantics = [#tpu.dimension_semantics<parallel>], iteration_bounds = array<i64: 1>, scalar_prefetch = 0 : i64, scratch_operands = 0 : i64, tpu.core_type = #tpu.core_type<tc>, window_params = [{transform_indices = @transform_0, window_bounds = array<i64: 8, 896>}, {pipeline_mode = #tpu.pipeline_mode<synchronous>, transform_indices = @transform_1, window_bounds = array<i64: 896, 1024>}, {pipeline_mode = #tpu.pipeline_mode<synchronous>, transform_indices = @transform_2, window_bounds = array<i64: 1, 1024>}, {pipeline_mode = #tpu.pipeline_mode<synchronous>, transform_indices = @transform_3, window_bounds = array<i64: 1024, 768>}, {pipeline_mode = #tpu.pipeline_mode<synchronous>, transform_indices = @transform_4, window_bounds = array<i64: 1, 768>}, {pipeline_mode = #tpu.pipeline_mode<synchronous>, transform_indices = @transform_5, window_bounds = array<i64: 768, 512>}, {pipeline_mode = #tpu.pipeline_mode<synchronous>, transform_indices = @transform_6, window_bounds = array<i64: 1, 512>}, {pipeline_mode = #tpu.pipeline_mode<synchronous>, transform_indices = @transform_7, window_bounds = array<i64: 512, 128>}, {pipeline_mode = #tpu.pipeline_mode<synchronous>, transform_indices = @transform_8, window_bounds = array<i64: 1, 128>}, {transform_indices = @transform_9, window_bounds = array<i64: 8, 128>}]} {
    %c0 = arith.constant 0 : index
    %c0_0 = arith.constant 0 : index
    %0 = vector.load %arg1[%c0, %c0_0] : memref<8x896xf32, #tpu.memory_space<vmem>>, vector<8x896xf32>
    %1 = arith.truncf %0 : vector<8x896xf32> to vector<8x896xbf16>
    %c0_1 = arith.constant 0 : index
    %c0_2 = arith.constant 0 : index
    %2 = vector.load %arg2[%c0_1, %c0_2] : memref<896x1024xbf16, #tpu.memory_space<vmem>>, vector<896x1024xbf16>
    %cst = arith.constant dense<0.000000e+00> : vector<8x1024xf32>
    %3 = tpu.matmul %1, %2, %cst {dimension_numbers = #tpu.dot_dimension_numbers<[1], [0], [0], [1], [0, 0, 1, 1], [], []>} : vector<8x896xbf16>, vector<896x1024xbf16>, vector<8x1024xf32> -> vector<8x1024xf32>
    %c0_3 = arith.constant 0 : index
    %c0_4 = arith.constant 0 : index
    %4 = vector.load %arg3[%c0_3, %c0_4] : memref<1x1024xf32, #tpu.memory_space<vmem>>, vector<1x1024xf32>
    %5 = vector.broadcast %4 : vector<1x1024xf32> to vector<8x1024xf32>
    %6 = arith.addf %3, %5 : vector<8x1024xf32>
    %cst_5 = arith.constant 0.000000e+00 : f32
    %7 = vector.broadcast %cst_5 : f32 to vector<8x1024xf32>
    %8 = arith.subf %7, %6 : vector<8x1024xf32>
    %9 = math.exp %8 : vector<8x1024xf32>
    %cst_6 = arith.constant 1.000000e+00 : f32
    %10 = vector.broadcast %cst_6 : f32 to vector<8x1024xf32>
    %11 = arith.addf %10, %9 : vector<8x1024xf32>
    %cst_7 = arith.constant 1.000000e+00 : f32
    %12 = vector.broadcast %cst_7 : f32 to vector<8x1024xf32>
    %13 = arith.divf %12, %11 : vector<8x1024xf32>
    %14 = arith.truncf %13 : vector<8x1024xf32> to vector<8x1024xbf16>
    %c0_8 = arith.constant 0 : index
    %c0_9 = arith.constant 0 : index
    %15 = vector.load %arg4[%c0_8, %c0_9] : memref<1024x768xbf16, #tpu.memory_space<vmem>>, vector<1024x768xbf16>
    %cst_10 = arith.constant dense<0.000000e+00> : vector<8x768xf32>
    %16 = tpu.matmul %14, %15, %cst_10 {dimension_numbers = #tpu.dot_dimension_numbers<[1], [0], [0], [1], [0, 0, 1, 1], [], []>} : vector<8x1024xbf16>, vector<1024x768xbf16>, vector<8x768xf32> -> vector<8x768xf32>
    %c0_11 = arith.constant 0 : index
    %c0_12 = arith.constant 0 : index
    %17 = vector.load %arg5[%c0_11, %c0_12] : memref<1x768xf32, #tpu.memory_space<vmem>>, vector<1x768xf32>
    %18 = vector.broadcast %17 : vector<1x768xf32> to vector<8x768xf32>
    %19 = arith.addf %16, %18 : vector<8x768xf32>
    %cst_13 = arith.constant 0.000000e+00 : f32
    %20 = vector.broadcast %cst_13 : f32 to vector<8x768xf32>
    %21 = arith.subf %20, %19 : vector<8x768xf32>
    %22 = math.exp %21 : vector<8x768xf32>
    %cst_14 = arith.constant 1.000000e+00 : f32
    %23 = vector.broadcast %cst_14 : f32 to vector<8x768xf32>
    %24 = arith.addf %23, %22 : vector<8x768xf32>
    %cst_15 = arith.constant 1.000000e+00 : f32
    %25 = vector.broadcast %cst_15 : f32 to vector<8x768xf32>
    %26 = arith.divf %25, %24 : vector<8x768xf32>
    %27 = arith.truncf %26 : vector<8x768xf32> to vector<8x768xbf16>
    %c0_16 = arith.constant 0 : index
    %c0_17 = arith.constant 0 : index
    %28 = vector.load %arg6[%c0_16, %c0_17] : memref<768x512xbf16, #tpu.memory_space<vmem>>, vector<768x512xbf16>
    %cst_18 = arith.constant dense<0.000000e+00> : vector<8x512xf32>
    %29 = tpu.matmul %27, %28, %cst_18 {dimension_numbers = #tpu.dot_dimension_numbers<[1], [0], [0], [1], [0, 0, 1, 1], [], []>} : vector<8x768xbf16>, vector<768x512xbf16>, vector<8x512xf32> -> vector<8x512xf32>
    %c0_19 = arith.constant 0 : index
    %c0_20 = arith.constant 0 : index
    %30 = vector.load %arg7[%c0_19, %c0_20] : memref<1x512xf32, #tpu.memory_space<vmem>>, vector<1x512xf32>
    %31 = vector.broadcast %30 : vector<1x512xf32> to vector<8x512xf32>
    %32 = arith.addf %29, %31 : vector<8x512xf32>
    %cst_21 = arith.constant 0.000000e+00 : f32
    %33 = vector.broadcast %cst_21 : f32 to vector<8x512xf32>
    %34 = arith.subf %33, %32 : vector<8x512xf32>
    %35 = math.exp %34 : vector<8x512xf32>
    %cst_22 = arith.constant 1.000000e+00 : f32
    %36 = vector.broadcast %cst_22 : f32 to vector<8x512xf32>
    %37 = arith.addf %36, %35 : vector<8x512xf32>
    %cst_23 = arith.constant 1.000000e+00 : f32
    %38 = vector.broadcast %cst_23 : f32 to vector<8x512xf32>
    %39 = arith.divf %38, %37 : vector<8x512xf32>
    %40 = arith.truncf %39 : vector<8x512xf32> to vector<8x512xbf16>
    %c0_24 = arith.constant 0 : index
    %c0_25 = arith.constant 0 : index
    %41 = vector.load %arg8[%c0_24, %c0_25] : memref<512x128xbf16, #tpu.memory_space<vmem>>, vector<512x128xbf16>
    %cst_26 = arith.constant dense<0.000000e+00> : vector<8x128xf32>
    %42 = tpu.matmul %40, %41, %cst_26 {dimension_numbers = #tpu.dot_dimension_numbers<[1], [0], [0], [1], [0, 0, 1, 1], [], []>} : vector<8x512xbf16>, vector<512x128xbf16>, vector<8x128xf32> -> vector<8x128xf32>
    %c0_27 = arith.constant 0 : index
    %c0_28 = arith.constant 0 : index
    %43 = vector.load %arg9[%c0_27, %c0_28] : memref<1x128xf32, #tpu.memory_space<vmem>>, vector<1x128xf32>
    %44 = vector.broadcast %43 : vector<1x128xf32> to vector<8x128xf32>
    %45 = arith.addf %42, %44 : vector<8x128xf32>
    %c0_29 = arith.constant 0 : index
    %c0_30 = arith.constant 0 : index
    %46 = vector.load %arg10[%c0_29, %c0_30] : memref<8x128xf32, #tpu.memory_space<vmem>>, vector<8x128xf32>
    tpu.vector_store %arg10[%c0_29, %c0_30], %45 {strides = array<i32>} : memref<8x128xf32, #tpu.memory_space<vmem>>, vector<8x128xf32>,
    return
  }
  func.func @transform_0(%arg0: i32) -> (i32, i32) {
    %c0_i32 = arith.constant 0 : i32
    %c0_i32_0 = arith.constant 0 : i32
    return %arg0, %c0_i32 : i32, i32
  }
  func.func @transform_1(%arg0: i32) -> (i32, i32) {
    %c0_i32 = arith.constant 0 : i32
    %c0_i32_0 = arith.constant 0 : i32
    %c0_i32_1 = arith.constant 0 : i32
    return %c0_i32, %c0_i32_0 : i32, i32
  }
  func.func @transform_2(%arg0: i32) -> (i32, i32) {
    %c0_i32 = arith.constant 0 : i32
    %c0_i32_0 = arith.constant 0 : i32
    %c0_i32_1 = arith.constant 0 : i32
    return %c0_i32, %c0_i32_0 : i32, i32
  }
  func.func @transform_3(%arg0: i32) -> (i32, i32) {
    %c0_i32 = arith.constant 0 : i32
    %c0_i32_0 = arith.constant 0 : i32
    %c0_i32_1 = arith.constant 0 : i32
    return %c0_i32, %c0_i32_0 : i32, i32
  }
  func.func @transform_4(%arg0: i32) -> (i32, i32) {
    %c0_i32 = arith.constant 0 : i32
    %c0_i32_0 = arith.constant 0 : i32
    %c0_i32_1 = arith.constant 0 : i32
    return %c0_i32, %c0_i32_0 : i32, i32
  }
  func.func @transform_5(%arg0: i32) -> (i32, i32) {
    %c0_i32 = arith.constant 0 : i32
    %c0_i32_0 = arith.constant 0 : i32
    %c0_i32_1 = arith.constant 0 : i32
    return %c0_i32, %c0_i32_0 : i32, i32
  }
  func.func @transform_6(%arg0: i32) -> (i32, i32) {
    %c0_i32 = arith.constant 0 : i32
    %c0_i32_0 = arith.constant 0 : i32
    %c0_i32_1 = arith.constant 0 : i32
    return %c0_i32, %c0_i32_0 : i32, i32
  }
  func.func @transform_7(%arg0: i32) -> (i32, i32) {
    %c0_i32 = arith.constant 0 : i32
    %c0_i32_0 = arith.constant 0 : i32
    %c0_i32_1 = arith.constant 0 : i32
    return %c0_i32, %c0_i32_0 : i32, i32
  }
  func.func @transform_8(%arg0: i32) -> (i32, i32) {
    %c0_i32 = arith.constant 0 : i32
    %c0_i32_0 = arith.constant 0 : i32
    %c0_i32_1 = arith.constant 0 : i32
    return %c0_i32, %c0_i32_0 : i32, i32
  }
  func.func @transform_9(%arg0: i32) -> (i32, i32) {
    %c0_i32 = arith.constant 0 : i32
    %c0_i32_0 = arith.constant 0 : i32
    return %arg0, %c0_i32 : i32, i32
  }
}

</mosaic_0001>

<llo_original>
// kernel: tpu_custom_call.1
$region0: #{tpu_custom_call.1}
  #allocation0 [shape = 'u32[]', space=smem, size = 0x4, offset = 0x4, fixed_abs, tag = 'smem constant byte address 0x4 - core index']
  #allocation1 [shape = 'u32[72,128]{1,0:T(1,128)}', space=vmem, size = 0x9000, scoped, tag = 'internal scratch']
  %s0 = inlined_call_operand.hbm [shape: f32[8,896], index: 0, kind: input, shape index: {}]
  %s1 = inlined_call_operand.hbm [shape: bf16[896,1024], index: 1, kind: input, shape index: {}]
  %s2 = inlined_call_operand.hbm [shape: f32[1,1024], index: 2, kind: input, shape index: {}]
  %s3 = inlined_call_operand.hbm [shape: bf16[1024,768], index: 3, kind: input, shape index: {}]
  %s4 = inlined_call_operand.hbm [shape: f32[1,768], index: 4, kind: input, shape index: {}]
  %s5 = inlined_call_operand.hbm [shape: bf16[768,512], index: 5, kind: input, shape index: {}]
  %s6 = inlined_call_operand.hbm [shape: f32[1,512], index: 6, kind: input, shape index: {}]
  %s7 = inlined_call_operand.hbm [shape: bf16[512,128], index: 7, kind: input, shape index: {}]
  %s8 = inlined_call_operand.hbm [shape: f32[1,128], index: 8, kind: input, shape index: {}]
  %s9 = inlined_call_operand.hbm [shape: f32[8,128], index: 9, kind: output, shape index: {}]
  %s10 = sld [smem:[#allocation0]]
  $region82: #{tpu_custom_call.1} parent=0
    _
  %s12 = ssub.s32 1, %s10
  %s13 = scalar_select 0, %s12, %s10
  $region1: #{tpu_custom_call.1} parent=0
    #allocation2 [shape = 'u8[28672]{0}', space=vmem, size = 0x7000, scoped, tag = 'input window, operand 0, single buffered']
    #allocation3 [shape = 's32[1]{0}', space=sflag, size = 0x4, scoped, tag = 'scoped memory for tpu_custom_call.1']
    #allocation4 [shape = 's32[1]{0}', space=sflag, size = 0x4, scoped, tag = 'scoped memory for tpu_custom_call.1']
    #allocation5 [shape = 'u8[1835008]{0}', space=vmem, size = 0x1c0000, scoped, tag = 'input window, operand 1, single buffered']
    #allocation6 [shape = 's32[1]{0}', space=sflag, size = 0x4, scoped, tag = 'scoped memory for tpu_custom_call.1']
    #allocation7 [shape = 'u8[4096]{0}', space=vmem, size = 0x1000, scoped, tag = 'input window, operand 2, single buffered']
    #allocation8 [shape = 'u8[1572864]{0}', space=vmem, size = 0x180000, scoped, tag = 'input window, operand 3, single buffered']
    #allocation9 [shape = 's32[1]{0}', space=sflag, size = 0x4, scoped, tag = 'scoped memory for tpu_custom_call.1']
    #allocation10 [shape = 'u8[3072]{0}', space=vmem, size = 0xc00, scoped, tag = 'input window, operand 4, single buffered']
    #allocation11 [shape = 'u8[786432]{0}', space=vmem, size = 0xc0000, scoped, tag = 'input window, operand 5, single buffered']
    #allocation12 [shape = 's32[1]{0}', space=sflag, size = 0x4, scoped, tag = 'scoped memory for tpu_custom_call.1']
    #allocation13 [shape = 'u8[2048]{0}', space=vmem, size = 0x800, scoped, tag = 'input window, operand 6, single buffered']
    #allocation14 [shape = 'u8[131072]{0}', space=vmem, size = 0x20000, scoped, tag = 'input window, operand 7, single buffered']
    #allocation15 [shape = 's32[1]{0}', space=sflag, size = 0x4, scoped, tag = 'scoped memory for tpu_custom_call.1']
    #allocation16 [shape = 'u8[512]{0}', space=vmem, size = 0x400, scoped, tag = 'input window, operand 8, single buffered']
    #allocation17 [shape = 'u8[4096]{0}', space=vmem, size = 0x1000, scoped, tag = 'output window, operand 0, single buffered']
    %14 = vsyncpa [#allocation3], 0
    %15 = vsyncpa [#allocation6], 0
    %16 = vsyncpa [#allocation9], 0
    %17 = vsyncpa [#allocation12], 0
    %18 = vsyncpa [#allocation15], 0
    %19 = vsyncpa [#allocation4], 0
    // Predicated region
    $region2: #{tpu_custom_call.1} parent=1 // pred_check
      _
    $region3: #{tpu_custom_call.1} parent=1 // pred_check_branch
      %21 = sbr.rel (0) target = $region5
    $region4: #{tpu_custom_call.1} parent=1 // pred_region
      %23 = vsyncadd [#allocation3], 0
      %s25 = sshll.u32 %s0, 4
      %s26 = int_to_ptr.hbm [resolvable:$true] %s25
      %s27 = sshll.u32 [#allocation2], 4
      %s28 = int_to_ptr.vmem [resolvable:$true] %s27
      %30 = dma.hbm_to_vmem [thread:$0]  %s26, 896, %s28, [#allocation3]
    $region5: #{tpu_custom_call.1} parent=1 // pred_fallthru
      _
    // Predicated region
    $region6: #{tpu_custom_call.1} parent=1 // pred_check
      _
    $region7: #{tpu_custom_call.1} parent=1 // pred_check_branch
      %32 = sbr.rel (0) target = $region9
    $region8: #{tpu_custom_call.1} parent=1 // pred_region
      %34 = vsyncadd [#allocation6], 0
      %s35 = sshll.u32 %s1, 4
      %s36 = int_to_ptr.hbm [resolvable:$true] %s35
      %s37 = sshll.u32 [#allocation5], 4
      %s38 = int_to_ptr.vmem [resolvable:$true] %s37
      %43 = dma.hbm_to_vmem [thread:$0]  %s36, 57344, %s38, [#allocation6], 512, 512, 32
    $region9: #{tpu_custom_call.1} parent=1 // pred_fallthru
      _
    // Predicated region
    $region10: #{tpu_custom_call.1} parent=1 // pred_check
      _
    $region11: #{tpu_custom_call.1} parent=1 // pred_check_branch
      %45 = sbr.rel (0) target = $region13
    $region12: #{tpu_custom_call.1} parent=1 // pred_region
      %47 = vsyncadd [#allocation6], 0
      %s49 = sshll.u32 %s2, 4
      %s50 = int_to_ptr.hbm [resolvable:$true] %s49
      %s51 = sshll.u32 [#allocation7], 4
      %s52 = int_to_ptr.vmem [resolvable:$true] %s51
      %54 = dma.hbm_to_vmem [thread:$0]  %s50, 128, %s52, [#allocation6]
    $region13: #{tpu_custom_call.1} parent=1 // pred_fallthru
      _
    // Predicated region
    $region14: #{tpu_custom_call.1} parent=1 // pred_check
      _
    $region15: #{tpu_custom_call.1} parent=1 // pred_check_branch
      %56 = sbr.rel (0) target = $region17
    $region16: #{tpu_custom_call.1} parent=1 // pred_region
      %58 = vsyncadd [#allocation9], 0
      %s59 = sshll.u32 %s3, 4
      %s60 = int_to_ptr.hbm [resolvable:$true] %s59
      %s61 = sshll.u32 [#allocation8], 4
      %s62 = int_to_ptr.vmem [resolvable:$true] %s61
      %67 = dma.hbm_to_vmem [thread:$0]  %s60, 49152, %s62, [#allocation9], 384, 384, 24
    $region17: #{tpu_custom_call.1} parent=1 // pred_fallthru
      _
    // Predicated region
    $region18: #{tpu_custom_call.1} parent=1 // pred_check
      _
    $region19: #{tpu_custom_call.1} parent=1 // pred_check_branch
      %69 = sbr.rel (0) target = $region21
    $region20: #{tpu_custom_call.1} parent=1 // pred_region
      %71 = vsyncadd [#allocation9], 0
      %s73 = sshll.u32 %s4, 4
      %s74 = int_to_ptr.hbm [resolvable:$true] %s73
      %s75 = sshll.u32 [#allocation10], 4
      %s76 = int_to_ptr.vmem [resolvable:$true] %s75
      %78 = dma.hbm_to_vmem [thread:$0]  %s74, 96, %s76, [#allocation9]
    $region21: #{tpu_custom_call.1} parent=1 // pred_fallthru
      _
    // Predicated region
    $region22: #{tpu_custom_call.1} parent=1 // pred_check
      _
    $region23: #{tpu_custom_call.1} parent=1 // pred_check_branch
      %80 = sbr.rel (0) target = $region25
    $region24: #{tpu_custom_call.1} parent=1 // pred_region
      %82 = vsyncadd [#allocation12], 0
      %s83 = sshll.u32 %s5, 4
      %s84 = int_to_ptr.hbm [resolvable:$true] %s83
      %s85 = sshll.u32 [#allocation11], 4
      %s86 = int_to_ptr.vmem [resolvable:$true] %s85
      %91 = dma.hbm_to_vmem [thread:$0]  %s84, 24576, %s86, [#allocation12], 256, 256, 16
    $region25: #{tpu_custom_call.1} parent=1 // pred_fallthru
      _
    // Predicated region
    $region26: #{tpu_custom_call.1} parent=1 // pred_check
      _
    $region27: #{tpu_custom_call.1} parent=1 // pred_check_branch
      %93 = sbr.rel (0) target = $region29
    $region28: #{tpu_custom_call.1} parent=1 // pred_region
      %95 = vsyncadd [#allocation12], 0
      %s97 = sshll.u32 %s6, 4
      %s98 = int_to_ptr.hbm [resolvable:$true] %s97
      %s99 = sshll.u32 [#allocation13], 4
      %s100 = int_to_ptr.vmem [resolvable:$true] %s99
      %102 = dma.hbm_to_vmem [thread:$0]  %s98, 64, %s100, [#allocation12]
    $region29: #{tpu_custom_call.1} parent=1 // pred_fallthru
      _
    // Predicated region
    $region30: #{tpu_custom_call.1} parent=1 // pred_check
      _
    $region31: #{tpu_custom_call.1} parent=1 // pred_check_branch
      %104 = sbr.rel (0) target = $region33
    $region32: #{tpu_custom_call.1} parent=1 // pred_region
      %106 = vsyncadd [#allocation15], 0
      %s107 = sshll.u32 %s7, 4
      %s108 = int_to_ptr.hbm [resolvable:$true] %s107
      %s109 = sshll.u32 [#allocation14], 4
      %s110 = int_to_ptr.vmem [resolvable:$true] %s109
      %115 = dma.hbm_to_vmem [thread:$0]  %s108, 4096, %s110, [#allocation15], 64, 64, 4
    $region33: #{tpu_custom_call.1} parent=1 // pred_fallthru
      _
    // Predicated region
    $region34: #{tpu_custom_call.1} parent=1 // pred_check
      _
    $region35: #{tpu_custom_call.1} parent=1 // pred_check_branch
      %117 = sbr.rel (0) target = $region37
    $region36: #{tpu_custom_call.1} parent=1 // pred_region
      %119 = vsyncadd [#allocation15], 0
      %s121 = sshll.u32 %s8, 4
      %s122 = int_to_ptr.hbm [resolvable:$true] %s121
      %s123 = sshll.u32 [#allocation16], 4
      %s124 = int_to_ptr.vmem [resolvable:$true] %s123
      %126 = dma.hbm_to_vmem [thread:$0]  %s122, 16, %s124, [#allocation15]
    $region37: #{tpu_custom_call.1} parent=1 // pred_fallthru
      _
    // Predicated region
    $region38: #{tpu_custom_call.1} parent=1 // pred_check
      _
    $region39: #{tpu_custom_call.1} parent=1 // pred_check_branch
      %128 = sbr.rel (0) target = $region41
    $region40: #{tpu_custom_call.1} parent=1 // pred_region
      %130 = dma.done [#allocation3], 896
    $region41: #{tpu_custom_call.1} parent=1 // pred_fallthru
      _
    // Predicated region
    $region42: #{tpu_custom_call.1} parent=1 // pred_check
      _
    $region43: #{tpu_custom_call.1} parent=1 // pred_check_branch
      %132 = sbr.rel (0) target = $region45
    $region44: #{tpu_custom_call.1} parent=1 // pred_region
      %134 = dma.done [#allocation6], 57344
    $region45: #{tpu_custom_call.1} parent=1 // pred_fallthru
      _
    // Predicated region
    $region46: #{tpu_custom_call.1} parent=1 // pred_check
      _
    $region47: #{tpu_custom_call.1} parent=1 // pred_check_branch
      %136 = sbr.rel (0) target = $region49
    $region48: #{tpu_custom_call.1} parent=1 // pred_region
      %138 = dma.done [#allocation6], 128
    $region49: #{tpu_custom_call.1} parent=1 // pred_fallthru
      _
    // Predicated region
    $region50: #{tpu_custom_call.1} parent=1 // pred_check
      _
    $region51: #{tpu_custom_call.1} parent=1 // pred_check_branch
      %140 = sbr.rel (0) target = $region53
    $region52: #{tpu_custom_call.1} parent=1 // pred_region
      %142 = dma.done [#allocation9], 49152
    $region53: #{tpu_custom_call.1} parent=1 // pred_fallthru
      _
    // Predicated region
    $region54: #{tpu_custom_call.1} parent=1 // pred_check
      _
    $region55: #{tpu_custom_call.1} parent=1 // pred_check_branch
      %144 = sbr.rel (0) target = $region57
    $region56: #{tpu_custom_call.1} parent=1 // pred_region
      %146 = dma.done [#allocation9], 96
    $region57: #{tpu_custom_call.1} parent=1 // pred_fallthru
      _
    // Predicated region
    $region58: #{tpu_custom_call.1} parent=1 // pred_check
      _
    $region59: #{tpu_custom_call.1} parent=1 // pred_check_branch
      %148 = sbr.rel (0) target = $region61
    $region60: #{tpu_custom_call.1} parent=1 // pred_region
      %150 = dma.done [#allocation12], 24576
    $region61: #{tpu_custom_call.1} parent=1 // pred_fallthru
      _
    // Predicated region
    $region62: #{tpu_custom_call.1} parent=1 // pred_check
      _
    $region63: #{tpu_custom_call.1} parent=1 // pred_check_branch
      %152 = sbr.rel (0) target = $region65
    $region64: #{tpu_custom_call.1} parent=1 // pred_region
      %154 = dma.done [#allocation12], 64
    $region65: #{tpu_custom_call.1} parent=1 // pred_fallthru
      _
    // Predicated region
    $region66: #{tpu_custom_call.1} parent=1 // pred_check
      _
    $region67: #{tpu_custom_call.1} parent=1 // pred_check_branch
      %156 = sbr.rel (0) target = $region69
    $region68: #{tpu_custom_call.1} parent=1 // pred_region
      %158 = dma.done [#allocation15], 4096
    $region69: #{tpu_custom_call.1} parent=1 // pred_fallthru
      _
    // Predicated region
    $region70: #{tpu_custom_call.1} parent=1 // pred_check
      _
    $region71: #{tpu_custom_call.1} parent=1 // pred_check_branch
      %160 = sbr.rel (0) target = $region73
    $region72: #{tpu_custom_call.1} parent=1 // pred_region
      %162 = dma.done [#allocation15], 16
    $region73: #{tpu_custom_call.1} parent=1 // pred_fallthru
      _
    %v163 = vld [vmem:[#allocation2] sm:$0xff]
    %v164 = vld [vmem:[#allocation2 + $0x8] sm:$0xff]
    %v165 = vld [vmem:[#allocation2 + $0x10] sm:$0xff]
    %v166 = vld [vmem:[#allocation2 + $0x18] sm:$0xff]
    %v167 = vld [vmem:[#allocation2 + $0x20] sm:$0xff]
    %v168 = vld [vmem:[#allocation2 + $0x28] sm:$0xff]
    %v169 = vld [vmem:[#allocation2 + $0x30] sm:$0xff]
    %v170 = vpack.c.bf16 %v163, %v163
    %v171 = vpack.c.bf16 %v164, %v164
    %v172 = vpack.c.bf16 %v165, %v165
    %v173 = vpack.c.bf16 %v166, %v166
    %v174 = vpack.c.bf16 %v167, %v167
    %v175 = vpack.c.bf16 %v168, %v168
    %v176 = vpack.c.bf16 %v169, %v169
    %v177 = vld [vmem:[#allocation5] sm:$0xff]
    %v178 = vld [vmem:[#allocation5 + $0x8] sm:$0xff]
    %v179 = vld [vmem:[#allocation5 + $0x10] sm:$0xff]
    %v180 = vld [vmem:[#allocation5 + $0x18] sm:$0xff]
    %v181 = vld [vmem:[#allocation5 + $0x20] sm:$0xff]
    %v182 = vld [vmem:[#allocation5 + $0x28] sm:$0xff]
    %v183 = vld [vmem:[#allocation5 + $0x30] sm:$0xff]
    %v184 = vld [vmem:[#allocation5 + $0x38] sm:$0xff]
    %v185 = vld [vmem:[#allocation5 + $0x40] sm:$0xff]
    %v186 = vld [vmem:[#allocation5 + $0x48] sm:$0xff]
    %v187 = vld [vmem:[#allocation5 + $0x50] sm:$0xff]
    %v188 = vld [vmem:[#allocation5 + $0x58] sm:$0xff]
    %v189 = vld [vmem:[#allocation5 + $0x60] sm:$0xff]
    %v190 = vld [vmem:[#allocation5 + $0x68] sm:$0xff]
    %v191 = vld [vmem:[#allocation5 + $0x70] sm:$0xff]
    %v192 = vld [vmem:[#allocation5 + $0x78] sm:$0xff]
    %v193 = vld [vmem:[#allocation5 + $0x80] sm:$0xff]
    %v194 = vld [vmem:[#allocation5 + $0x88] sm:$0xff]
    %v195 = vld [vmem:[#allocation5 + $0x90] sm:$0xff]
    %v196 = vld [vmem:[#allocation5 + $0x98] sm:$0xff]
    %v197 = vld [vmem:[#allocation5 + $0xa0] sm:$0xff]
    %v198 = vld [vmem:[#allocation5 + $0xa8] sm:$0xff]
    %v199 = vld [vmem:[#allocation5 + $0xb0] sm:$0xff]
    %v200 = vld [vmem:[#allocation5 + $0xb8] sm:$0xff]
    %v201 = vld [vmem:[#allocation5 + $0xc0] sm:$0xff]
    %v202 = vld [vmem:[#allocation5 + $0xc8] sm:$0xff]
    %v203 = vld [vmem:[#allocation5 + $0xd0] sm:$0xff]
    %v204 = vld [vmem:[#allocation5 + $0xd8] sm:$0xff]
    %v205 = vld [vmem:[#allocation5 + $0xe0] sm:$0xff]
    %v206 = vld [vmem:[#allocation5 + $0xe8] sm:$0xff]
    %v207 = vld [vmem:[#allocation5 + $0xf0] sm:$0xff]
    %v208 = vld [vmem:[#allocation5 + $0xf8] sm:$0xff]
    %v209 = vld [vmem:[#allocation5 + $0x100] sm:$0xff]
    %v210 = vld [vmem:[#allocation5 + $0x108] sm:$0xff]
    %v211 = vld [vmem:[#allocation5 + $0x110] sm:$0xff]
    %v212 = vld [vmem:[#allocation5 + $0x118] sm:$0xff]
    %v213 = vld [vmem:[#allocation5 + $0x120] sm:$0xff]
    %v214 = vld [vmem:[#allocation5 + $0x128] sm:$0xff]
    %v215 = vld [vmem:[#allocation5 + $0x130] sm:$0xff]
    %v216 = vld [vmem:[#allocation5 + $0x138] sm:$0xff]
    %v217 = vld [vmem:[#allocation5 + $0x140] sm:$0xff]
    %v218 = vld [vmem:[#allocation5 + $0x148] sm:$0xff]
    %v219 = vld [vmem:[#allocation5 + $0x150] sm:$0xff]
    %v220 = vld [vmem:[#allocation5 + $0x158] sm:$0xff]
    %v221 = vld [vmem:[#allocation5 + $0x160] sm:$0xff]
    %v222 = vld [vmem:[#allocation5 + $0x168] sm:$0xff]
    %v223 = vld [vmem:[#allocation5 + $0x170] sm:$0xff]
    %v224 = vld [vmem:[#allocation5 + $0x178] sm:$0xff]
    %v225 = vld [vmem:[#allocation5 + $0x180] sm:$0xff]
    %v226 = vld [vmem:[#allocation5 + $0x188] sm:$0xff]
    %v227 = vld [vmem:[#allocation5 + $0x190] sm:$0xff]
    %v228 = vld [vmem:[#allocation5 + $0x198] sm:$0xff]
    %v229 = vld [vmem:[#allocation5 + $0x1a0] sm:$0xff]
    %v230 = vld [vmem:[#allocation5 + $0x1a8] sm:$0xff]
    %v231 = vld [vmem:[#allocation5 + $0x1b0] sm:$0xff]
    %v232 = vld [vmem:[#allocation5 + $0x1b8] sm:$0xff]
    %v233 = vld [vmem:[#allocation5 + $0x1c0] sm:$0xff]
    %v234 = vld [vmem:[#allocation5 + $0x1c8] sm:$0xff]
    %v235 = vld [vmem:[#allocation5 + $0x1d0] sm:$0xff]
    %v236 = vld [vmem:[#allocation5 + $0x1d8] sm:$0xff]
    %v237 = vld [vmem:[#allocation5 + $0x1e0] sm:$0xff]
    %v238 = vld [vmem:[#allocation5 + $0x1e8] sm:$0xff]
    %v239 = vld [vmem:[#allocation5 + $0x1f0] sm:$0xff]
    %v240 = vld [vmem:[#allocation5 + $0x1f8] sm:$0xff]
    %v241 = vld [vmem:[#allocation5 + $0x200] sm:$0xff]
    %v242 = vld [vmem:[#allocation5 + $0x208] sm:$0xff]
    %v243 = vld [vmem:[#allocation5 + $0x210] sm:$0xff]
    %v244 = vld [vmem:[#allocation5 + $0x218] sm:$0xff]
    %v245 = vld [vmem:[#allocation5 + $0x220] sm:$0xff]
    %v246 = vld [vmem:[#allocation5 + $0x228] sm:$0xff]
    %v247 = vld [vmem:[#allocation5 + $0x230] sm:$0xff]
    %v248 = vld [vmem:[#allocation5 + $0x238] sm:$0xff]
    %v249 = vld [vmem:[#allocation5 + $0x240] sm:$0xff]
    %v250 = vld [vmem:[#allocation5 + $0x248] sm:$0xff]
    %v251 = vld [vmem:[#allocation5 + $0x250] sm:$0xff]
    %v252 = vld [vmem:[#allocation5 + $0x258] sm:$0xff]
    %v253 = vld [vmem:[#allocation5 + $0x260] sm:$0xff]
    %v254 = vld [vmem:[#allocation5 + $0x268] sm:$0xff]
    %v255 = vld [vmem:[#allocation5 + $0x270] sm:$0xff]
    %v256 = vld [vmem:[#allocation5 + $0x278] sm:$0xff]
    %v257 = vld [vmem:[#allocation5 + $0x280] sm:$0xff]
    %v258 = vld [vmem:[#allocation5 + $0x288] sm:$0xff]
    %v259 = vld [vmem:[#allocation5 + $0x290] sm:$0xff]
    %v260 = vld [vmem:[#allocation5 + $0x298] sm:$0xff]
    %v261 = vld [vmem:[#allocation5 + $0x2a0] sm:$0xff]
    %v262 = vld [vmem:[#allocation5 + $0x2a8] sm:$0xff]
    %v263 = vld [vmem:[#allocation5 + $0x2b0] sm:$0xff]
    %v264 = vld [vmem:[#allocation5 + $0x2b8] sm:$0xff]
    %v265 = vld [vmem:[#allocation5 + $0x2c0] sm:$0xff]
    %v266 = vld [vmem:[#allocation5 + $0x2c8] sm:$0xff]
    %v267 = vld [vmem:[#allocation5 + $0x2d0] sm:$0xff]
    %v268 = vld [vmem:[#allocation5 + $0x2d8] sm:$0xff]
    %v269 = vld [vmem:[#allocation5 + $0x2e0] sm:$0xff]
    %v270 = vld [vmem:[#allocation5 + $0x2e8] sm:$0xff]
    %v271 = vld [vmem:[#allocation5 + $0x2f0] sm:$0xff]
    %v272 = vld [vmem:[#allocation5 + $0x2f8] sm:$0xff]
    %v273 = vld [vmem:[#allocation5 + $0x300] sm:$0xff]
    %v274 = vld [vmem:[#allocation5 + $0x308] sm:$0xff]
    %v275 = vld [vmem:[#allocation5 + $0x310] sm:$0xff]
    %v276 = vld [vmem:[#allocation5 + $0x318] sm:$0xff]
    %v277 = vld [vmem:[#allocation5 + $0x320] sm:$0xff]
    %v278 = vld [vmem:[#allocation5 + $0x328] sm:$0xff]
    %v279 = vld [vmem:[#allocation5 + $0x330] sm:$0xff]
    %v280 = vld [vmem:[#allocation5 + $0x338] sm:$0xff]
    %v281 = vld [vmem:[#allocation5 + $0x340] sm:$0xff]
    %v282 = vld [vmem:[#allocation5 + $0x348] sm:$0xff]
    %v283 = vld [vmem:[#allocation5 + $0x350] sm:$0xff]
    %v284 = vld [vmem:[#allocation5 + $0x358] sm:$0xff]
    %v285 = vld [vmem:[#allocation5 + $0x360] sm:$0xff]
    %v286 = vld [vmem:[#allocation5 + $0x368] sm:$0xff]
    %v287 = vld [vmem:[#allocation5 + $0x370] sm:$0xff]
    %v288 = vld [vmem:[#allocation5 + $0x378] sm:$0xff]
    %v289 = vld [vmem:[#allocation5 + $0x380] sm:$0xff]
    %v290 = vld [vmem:[#allocation5 + $0x388] sm:$0xff]
    %v291 = vld [vmem:[#allocation5 + $0x390] sm:$0xff]
    %v292 = vld [vmem:[#allocation5 + $0x398] sm:$0xff]
    %v293 = vld [vmem:[#allocation5 + $0x3a0] sm:$0xff]
    %v294 = vld [vmem:[#allocation5 + $0x3a8] sm:$0xff]
    %v295 = vld [vmem:[#allocation5 + $0x3b0] sm:$0xff]
    %v296 = vld [vmem:[#allocation5 + $0x3b8] sm:$0xff]
    %v297 = vld [vmem:[#allocation5 + $0x3c0] sm:$0xff]
    %v298 = vld [vmem:[#allocation5 + $0x3c8] sm:$0xff]
    %v299 = vld [vmem:[#allocation5 + $0x3d0] sm:$0xff]
    %v300 = vld [vmem:[#allocation5 + $0x3d8] sm:$0xff]
    %v301 = vld [vmem:[#allocation5 + $0x3e0] sm:$0xff]
    %v302 = vld [vmem:[#allocation5 + $0x3e8] sm:$0xff]
    %v303 = vld [vmem:[#allocation5 + $0x3f0] sm:$0xff]
    %v304 = vld [vmem:[#allocation5 + $0x3f8] sm:$0xff]
    %v305 = vld [vmem:[#allocation5 + $0x400] sm:$0xff]
    %v306 = vld [vmem:[#allocation5 + $0x408] sm:$0xff]
    %v307 = vld [vmem:[#allocation5 + $0x410] sm:$0xff]
    %v308 = vld [vmem:[#allocation5 + $0x418] sm:$0xff]
    %v309 = vld [vmem:[#allocation5 + $0x420] sm:$0xff]
    %v310 = vld [vmem:[#allocation5 + $0x428] sm:$0xff]
    %v311 = vld [vmem:[#allocation5 + $0x430] sm:$0xff]
    %v312 = vld [vmem:[#allocation5 + $0x438] sm:$0xff]
    %v313 = vld [vmem:[#allocation5 + $0x440] sm:$0xff]
    %v314 = vld [vmem:[#allocation5 + $0x448] sm:$0xff]
    %v315 = vld [vmem:[#allocation5 + $0x450] sm:$0xff]
    %v316 = vld [vmem:[#allocation5 + $0x458] sm:$0xff]
    %v317 = vld [vmem:[#allocation5 + $0x460] sm:$0xff]
    %v318 = vld [vmem:[#allocation5 + $0x468] sm:$0xff]
    %v319 = vld [vmem:[#allocation5 + $0x470] sm:$0xff]
    %v320 = vld [vmem:[#allocation5 + $0x478] sm:$0xff]
    %v321 = vld [vmem:[#allocation5 + $0x480] sm:$0xff]
    %v322 = vld [vmem:[#allocation5 + $0x488] sm:$0xff]
    %v323 = vld [vmem:[#allocation5 + $0x490] sm:$0xff]
    %v324 = vld [vmem:[#allocation5 + $0x498] sm:$0xff]
    %v325 = vld [vmem:[#allocation5 + $0x4a0] sm:$0xff]
    %v326 = vld [vmem:[#allocation5 + $0x4a8] sm:$0xff]
    %v327 = vld [vmem:[#allocation5 + $0x4b0] sm:$0xff]
    %v328 = vld [vmem:[#allocation5 + $0x4b8] sm:$0xff]
    %v329 = vld [vmem:[#allocation5 + $0x4c0] sm:$0xff]
    %v330 = vld [vmem:[#allocation5 + $0x4c8] sm:$0xff]
    %v331 = vld [vmem:[#allocation5 + $0x4d0] sm:$0xff]
    %v332 = vld [vmem:[#allocation5 + $0x4d8] sm:$0xff]
    %v333 = vld [vmem:[#allocation5 + $0x4e0] sm:$0xff]
    %v334 = vld [vmem:[#allocation5 + $0x4e8] sm:$0xff]
    %v335 = vld [vmem:[#allocation5 + $0x4f0] sm:$0xff]
    %v336 = vld [vmem:[#allocation5 + $0x4f8] sm:$0xff]
    %v337 = vld [vmem:[#allocation5 + $0x500] sm:$0xff]
    %v338 = vld [vmem:[#allocation5 + $0x508] sm:$0xff]
    %v339 = vld [vmem:[#allocation5 + $0x510] sm:$0xff]
    %v340 = vld [vmem:[#allocation5 + $0x518] sm:$0xff]
    %v341 = vld [vmem:[#allocation5 + $0x520] sm:$0xff]
    %v342 = vld [vmem:[#allocation5 + $0x528] sm:$0xff]
    %v343 = vld [vmem:[#allocation5 + $0x530] sm:$0xff]
    %v344 = vld [vmem:[#allocation5 + $0x538] sm:$0xff]
    %v345 = vld [vmem:[#allocation5 + $0x540] sm:$0xff]
    %v346 = vld [vmem:[#allocation5 + $0x548] sm:$0xff]
    %v347 = vld [vmem:[#allocation5 + $0x550] sm:$0xff]
    %v348 = vld [vmem:[#allocation5 + $0x558] sm:$0xff]
    %v349 = vld [vmem:[#allocation5 + $0x560] sm:$0xff]
    %v350 = vld [vmem:[#allocation5 + $0x568] sm:$0xff]
    %v351 = vld [vmem:[#allocation5 + $0x570] sm:$0xff]
    %v352 = vld [vmem:[#allocation5 + $0x578] sm:$0xff]
    %v353 = vld [vmem:[#allocation5 + $0x580] sm:$0xff]
    %v354 = vld [vmem:[#allocation5 + $0x588] sm:$0xff]
    %v355 = vld [vmem:[#allocation5 + $0x590] sm:$0xff]
    %v356 = vld [vmem:[#allocation5 + $0x598] sm:$0xff]
    %v357 = vld [vmem:[#allocation5 + $0x5a0] sm:$0xff]
    %v358 = vld [vmem:[#allocation5 + $0x5a8] sm:$0xff]
    %v359 = vld [vmem:[#allocation5 + $0x5b0] sm:$0xff]
    %v360 = vld [vmem:[#allocation5 + $0x5b8] sm:$0xff]
    %v361 = vld [vmem:[#allocation5 + $0x5c0] sm:$0xff]
    %v362 = vld [vmem:[#allocation5 + $0x5c8] sm:$0xff]
    %v363 = vld [vmem:[#allocation5 + $0x5d0] sm:$0xff]
    %v364 = vld [vmem:[#allocation5 + $0x5d8] sm:$0xff]
    %v365 = vld [vmem:[#allocation5 + $0x5e0] sm:$0xff]
    %v366 = vld [vmem:[#allocation5 + $0x5e8] sm:$0xff]
    %v367 = vld [vmem:[#allocation5 + $0x5f0] sm:$0xff]
    %v368 = vld [vmem:[#allocation5 + $0x5f8] sm:$0xff]
    %v369 = vld [vmem:[#allocation5 + $0x600] sm:$0xff]
    %v370 = vld [vmem:[#allocation5 + $0x608] sm:$0xff]
    %v371 = vld [vmem:[#allocation5 + $0x610] sm:$0xff]
    %v372 = vld [vmem:[#allocation5 + $0x618] sm:$0xff]
    %v373 = vld [vmem:[#allocation5 + $0x620] sm:$0xff]
    %v374 = vld [vmem:[#allocation5 + $0x628] sm:$0xff]
    %v375 = vld [vmem:[#allocation5 + $0x630] sm:$0xff]
    %v376 = vld [vmem:[#allocation5 + $0x638] sm:$0xff]
    %v377 = vld [vmem:[#allocation5 + $0x640] sm:$0xff]
    %v378 = vld [vmem:[#allocation5 + $0x648] sm:$0xff]
    %v379 = vld [vmem:[#allocation5 + $0x650] sm:$0xff]
    %v380 = vld [vmem:[#allocation5 + $0x658] sm:$0xff]
    %v381 = vld [vmem:[#allocation5 + $0x660] sm:$0xff]
    %v382 = vld [vmem:[#allocation5 + $0x668] sm:$0xff]
    %v383 = vld [vmem:[#allocation5 + $0x670] sm:$0xff]
    %v384 = vld [vmem:[#allocation5 + $0x678] sm:$0xff]
    %v385 = vld [vmem:[#allocation5 + $0x680] sm:$0xff]
    %v386 = vld [vmem:[#allocation5 + $0x688] sm:$0xff]
    %v387 = vld [vmem:[#allocation5 + $0x690] sm:$0xff]
    %v388 = vld [vmem:[#allocation5 + $0x698] sm:$0xff]
    %v389 = vld [vmem:[#allocation5 + $0x6a0] sm:$0xff]
    %v390 = vld [vmem:[#allocation5 + $0x6a8] sm:$0xff]
    %v391 = vld [vmem:[#allocation5 + $0x6b0] sm:$0xff]
    %v392 = vld [vmem:[#allocation5 + $0x6b8] sm:$0xff]
    %v393 = vld [vmem:[#allocation5 + $0x6c0] sm:$0xff]
    %v394 = vld [vmem:[#allocation5 + $0x6c8] sm:$0xff]
    %v395 = vld [vmem:[#allocation5 + $0x6d0] sm:$0xff]
    %v396 = vld [vmem:[#allocation5 + $0x6d8] sm:$0xff]
    %v397 = vld [vmem:[#allocation5 + $0x6e0] sm:$0xff]
    %v398 = vld [vmem:[#allocation5 + $0x6e8] sm:$0xff]
    %v399 = vld [vmem:[#allocation5 + $0x6f0] sm:$0xff]
    %v400 = vld [vmem:[#allocation5 + $0x6f8] sm:$0xff]
    %v401 = vld [vmem:[#allocation5 + $0x700] sm:$0xff]
    %v402 = vld [vmem:[#allocation5 + $0x708] sm:$0xff]
    %v403 = vld [vmem:[#allocation5 + $0x710] sm:$0xff]
    %v404 = vld [vmem:[#allocation5 + $0x718] sm:$0xff]
    %v405 = vld [vmem:[#allocation5 + $0x720] sm:$0xff]
    %v406 = vld [vmem:[#allocation5 + $0x728] sm:$0xff]
    %v407 = vld [vmem:[#allocation5 + $0x730] sm:$0xff]
    %v408 = vld [vmem:[#allocation5 + $0x738] sm:$0xff]
    %v409 = vld [vmem:[#allocation5 + $0x740] sm:$0xff]
    %v410 = vld [vmem:[#allocation5 + $0x748] sm:$0xff]
    %v411 = vld [vmem:[#allocation5 + $0x750] sm:$0xff]
    %v412 = vld [vmem:[#allocation5 + $0x758] sm:$0xff]
    %v413 = vld [vmem:[#allocation5 + $0x760] sm:$0xff]
    %v414 = vld [vmem:[#allocation5 + $0x768] sm:$0xff]
    %v415 = vld [vmem:[#allocation5 + $0x770] sm:$0xff]
    %v416 = vld [vmem:[#allocation5 + $0x778] sm:$0xff]
    %v417 = vld [vmem:[#allocation5 + $0x780] sm:$0xff]
    %v418 = vld [vmem:[#allocation5 + $0x788] sm:$0xff]
    %v419 = vld [vmem:[#allocation5 + $0x790] sm:$0xff]
    %v420 = vld [vmem:[#allocation5 + $0x798] sm:$0xff]
    %v421 = vld [vmem:[#allocation5 + $0x7a0] sm:$0xff]
    %v422 = vld [vmem:[#allocation5 + $0x7a8] sm:$0xff]
    %v423 = vld [vmem:[#allocation5 + $0x7b0] sm:$0xff]
    %v424 = vld [vmem:[#allocation5 + $0x7b8] sm:$0xff]
    %v425 = vld [vmem:[#allocation5 + $0x7c0] sm:$0xff]
    %v426 = vld [vmem:[#allocation5 + $0x7c8] sm:$0xff]
    %v427 = vld [vmem:[#allocation5 + $0x7d0] sm:$0xff]
    %v428 = vld [vmem:[#allocation5 + $0x7d8] sm:$0xff]
    %v429 = vld [vmem:[#allocation5 + $0x7e0] sm:$0xff]
    %v430 = vld [vmem:[#allocation5 + $0x7e8] sm:$0xff]
    %v431 = vld [vmem:[#allocation5 + $0x7f0] sm:$0xff]
    %v432 = vld [vmem:[#allocation5 + $0x7f8] sm:$0xff]
    %v433 = vld [vmem:[#allocation5 + $0x800] sm:$0xff]
    %v434 = vld [vmem:[#allocation5 + $0x808] sm:$0xff]
    %v435 = vld [vmem:[#allocation5 + $0x810] sm:$0xff]
    %v436 = vld [vmem:[#allocation5 + $0x818] sm:$0xff]
    %v437 = vld [vmem:[#allocation5 + $0x820] sm:$0xff]
    %v438 = vld [vmem:[#allocation5 + $0x828] sm:$0xff]
    %v439 = vld [vmem:[#allocation5 + $0x830] sm:$0xff]
    %v440 = vld [vmem:[#allocation5 + $0x838] sm:$0xff]
    %v441 = vld [vmem:[#allocation5 + $0x840] sm:$0xff]
    %v442 = vld [vmem:[#allocation5 + $0x848] sm:$0xff]
    %v443 = vld [vmem:[#allocation5 + $0x850] sm:$0xff]
    %v444 = vld [vmem:[#allocation5 + $0x858] sm:$0xff]
    %v445 = vld [vmem:[#allocation5 + $0x860] sm:$0xff]
    %v446 = vld [vmem:[#allocation5 + $0x868] sm:$0xff]
    %v447 = vld [vmem:[#allocation5 + $0x870] sm:$0xff]
    %v448 = vld [vmem:[#allocation5 + $0x878] sm:$0xff]
    %v449 = vld [vmem:[#allocation5 + $0x880] sm:$0xff]
    %v450 = vld [vmem:[#allocation5 + $0x888] sm:$0xff]
    %v451 = vld [vmem:[#allocation5 + $0x890] sm:$0xff]
    %v452 = vld [vmem:[#allocation5 + $0x898] sm:$0xff]
    %v453 = vld [vmem:[#allocation5 + $0x8a0] sm:$0xff]
    %v454 = vld [vmem:[#allocation5 + $0x8a8] sm:$0xff]
    %v455 = vld [vmem:[#allocation5 + $0x8b0] sm:$0xff]
    %v456 = vld [vmem:[#allocation5 + $0x8b8] sm:$0xff]
    %v457 = vld [vmem:[#allocation5 + $0x8c0] sm:$0xff]
    %v458 = vld [vmem:[#allocation5 + $0x8c8] sm:$0xff]
    %v459 = vld [vmem:[#allocation5 + $0x8d0] sm:$0xff]
    %v460 = vld [vmem:[#allocation5 + $0x8d8] sm:$0xff]
    %v461 = vld [vmem:[#allocation5 + $0x8e0] sm:$0xff]
    %v462 = vld [vmem:[#allocation5 + $0x8e8] sm:$0xff]
    %v463 = vld [vmem:[#allocation5 + $0x8f0] sm:$0xff]
    %v464 = vld [vmem:[#allocation5 + $0x8f8] sm:$0xff]
    %v465 = vld [vmem:[#allocation5 + $0x900] sm:$0xff]
    %v466 = vld [vmem:[#allocation5 + $0x908] sm:$0xff]
    %v467 = vld [vmem:[#allocation5 + $0x910] sm:$0xff]
    %v468 = vld [vmem:[#allocation5 + $0x918] sm:$0xff]
    %v469 = vld [vmem:[#allocation5 + $0x920] sm:$0xff]
    %v470 = vld [vmem:[#allocation5 + $0x928] sm:$0xff]
    %v471 = vld [vmem:[#allocation5 + $0x930] sm:$0xff]
    %v472 = vld [vmem:[#allocation5 + $0x938] sm:$0xff]
    %v473 = vld [vmem:[#allocation5 + $0x940] sm:$0xff]
    %v474 = vld [vmem:[#allocation5 + $0x948] sm:$0xff]
    %v475 = vld [vmem:[#allocation5 + $0x950] sm:$0xff]
    %v476 = vld [vmem:[#allocation5 + $0x958] sm:$0xff]
    %v477 = vld [vmem:[#allocation5 + $0x960] sm:$0xff]
    %v478 = vld [vmem:[#allocation5 + $0x968] sm:$0xff]
    %v479 = vld [vmem:[#allocation5 + $0x970] sm:$0xff]
    %v480 = vld [vmem:[#allocation5 + $0x978] sm:$0xff]
    %v481 = vld [vmem:[#allocation5 + $0x980] sm:$0xff]
    %v482 = vld [vmem:[#allocation5 + $0x988] sm:$0xff]
    %v483 = vld [vmem:[#allocation5 + $0x990] sm:$0xff]
    %v484 = vld [vmem:[#allocation5 + $0x998] sm:$0xff]
    %v485 = vld [vmem:[#allocation5 + $0x9a0] sm:$0xff]
    %v486 = vld [vmem:[#allocation5 + $0x9a8] sm:$0xff]
    %v487 = vld [vmem:[#allocation5 + $0x9b0] sm:$0xff]
    %v488 = vld [vmem:[#allocation5 + $0x9b8] sm:$0xff]
    %v489 = vld [vmem:[#allocation5 + $0x9c0] sm:$0xff]
    %v490 = vld [vmem:[#allocation5 + $0x9c8] sm:$0xff]
    %v491 = vld [vmem:[#allocation5 + $0x9d0] sm:$0xff]
    %v492 = vld [vmem:[#allocation5 + $0x9d8] sm:$0xff]
    %v493 = vld [vmem:[#allocation5 + $0x9e0] sm:$0xff]
    %v494 = vld [vmem:[#allocation5 + $0x9e8] sm:$0xff]
    %v495 = vld [vmem:[#allocation5 + $0x9f0] sm:$0xff]
    %v496 = vld [vmem:[#allocation5 + $0x9f8] sm:$0xff]
    %v497 = vld [vmem:[#allocation5 + $0xa00] sm:$0xff]
    %v498 = vld [vmem:[#allocation5 + $0xa08] sm:$0xff]
    %v499 = vld [vmem:[#allocation5 + $0xa10] sm:$0xff]
    %v500 = vld [vmem:[#allocation5 + $0xa18] sm:$0xff]
    %v501 = vld [vmem:[#allocation5 + $0xa20] sm:$0xff]
    %v502 = vld [vmem:[#allocation5 + $0xa28] sm:$0xff]
    %v503 = vld [vmem:[#allocation5 + $0xa30] sm:$0xff]
    %v504 = vld [vmem:[#allocation5 + $0xa38] sm:$0xff]
    %v505 = vld [vmem:[#allocation5 + $0xa40] sm:$0xff]
    %v506 = vld [vmem:[#allocation5 + $0xa48] sm:$0xff]
    %v507 = vld [vmem:[#allocation5 + $0xa50] sm:$0xff]
    %v508 = vld [vmem:[#allocation5 + $0xa58] sm:$0xff]
    %v509 = vld [vmem:[#allocation5 + $0xa60] sm:$0xff]
    %v510 = vld [vmem:[#allocation5 + $0xa68] sm:$0xff]
    %v511 = vld [vmem:[#allocation5 + $0xa70] sm:$0xff]
    %v512 = vld [vmem:[#allocation5 + $0xa78] sm:$0xff]
    %v513 = vld [vmem:[#allocation5 + $0xa80] sm:$0xff]
    %v514 = vld [vmem:[#allocation5 + $0xa88] sm:$0xff]
    %v515 = vld [vmem:[#allocation5 + $0xa90] sm:$0xff]
    %v516 = vld [vmem:[#allocation5 + $0xa98] sm:$0xff]
    %v517 = vld [vmem:[#allocation5 + $0xaa0] sm:$0xff]
    %v518 = vld [vmem:[#allocation5 + $0xaa8] sm:$0xff]
    %v519 = vld [vmem:[#allocation5 + $0xab0] sm:$0xff]
    %v520 = vld [vmem:[#allocation5 + $0xab8] sm:$0xff]
    %v521 = vld [vmem:[#allocation5 + $0xac0] sm:$0xff]
    %v522 = vld [vmem:[#allocation5 + $0xac8] sm:$0xff]
    %v523 = vld [vmem:[#allocation5 + $0xad0] sm:$0xff]
    %v524 = vld [vmem:[#allocation5 + $0xad8] sm:$0xff]
    %v525 = vld [vmem:[#allocation5 + $0xae0] sm:$0xff]
    %v526 = vld [vmem:[#allocation5 + $0xae8] sm:$0xff]
    %v527 = vld [vmem:[#allocation5 + $0xaf0] sm:$0xff]
    %v528 = vld [vmem:[#allocation5 + $0xaf8] sm:$0xff]
    %v529 = vld [vmem:[#allocation5 + $0xb00] sm:$0xff]
    %v530 = vld [vmem:[#allocation5 + $0xb08] sm:$0xff]
    %v531 = vld [vmem:[#allocation5 + $0xb10] sm:$0xff]
    %v532 = vld [vmem:[#allocation5 + $0xb18] sm:$0xff]
    %v533 = vld [vmem:[#allocation5 + $0xb20] sm:$0xff]
    %v534 = vld [vmem:[#allocation5 + $0xb28] sm:$0xff]
    %v535 = vld [vmem:[#allocation5 + $0xb30] sm:$0xff]
    %v536 = vld [vmem:[#allocation5 + $0xb38] sm:$0xff]
    %v537 = vld [vmem:[#allocation5 + $0xb40] sm:$0xff]
    %v538 = vld [vmem:[#allocation5 + $0xb48] sm:$0xff]
    %v539 = vld [vmem:[#allocation5 + $0xb50] sm:$0xff]
    %v540 = vld [vmem:[#allocation5 + $0xb58] sm:$0xff]
    %v541 = vld [vmem:[#allocation5 + $0xb60] sm:$0xff]
    %v542 = vld [vmem:[#allocation5 + $0xb68] sm:$0xff]
    %v543 = vld [vmem:[#allocation5 + $0xb70] sm:$0xff]
    %v544 = vld [vmem:[#allocation5 + $0xb78] sm:$0xff]
    %v545 = vld [vmem:[#allocation5 + $0xb80] sm:$0xff]
    %v546 = vld [vmem:[#allocation5 + $0xb88] sm:$0xff]
    %v547 = vld [vmem:[#allocation5 + $0xb90] sm:$0xff]
    %v548 = vld [vmem:[#allocation5 + $0xb98] sm:$0xff]
    %v549 = vld [vmem:[#allocation5 + $0xba0] sm:$0xff]
    %v550 = vld [vmem:[#allocation5 + $0xba8] sm:$0xff]
    %v551 = vld [vmem:[#allocation5 + $0xbb0] sm:$0xff]
    %v552 = vld [vmem:[#allocation5 + $0xbb8] sm:$0xff]
    %v553 = vld [vmem:[#allocation5 + $0xbc0] sm:$0xff]
    %v554 = vld [vmem:[#allocation5 + $0xbc8] sm:$0xff]
    %v555 = vld [vmem:[#allocation5 + $0xbd0] sm:$0xff]
    %v556 = vld [vmem:[#allocation5 + $0xbd8] sm:$0xff]
    %v557 = vld [vmem:[#allocation5 + $0xbe0] sm:$0xff]
    %v558 = vld [vmem:[#allocation5 + $0xbe8] sm:$0xff]
    %v559 = vld [vmem:[#allocation5 + $0xbf0] sm:$0xff]
    %v560 = vld [vmem:[#allocation5 + $0xbf8] sm:$0xff]
    %v561 = vld [vmem:[#allocation5 + $0xc00] sm:$0xff]
    %v562 = vld [vmem:[#allocation5 + $0xc08] sm:$0xff]
    %v563 = vld [vmem:[#allocation5 + $0xc10] sm:$0xff]
    %v564 = vld [vmem:[#allocation5 + $0xc18] sm:$0xff]
    %v565 = vld [vmem:[#allocation5 + $0xc20] sm:$0xff]
    %v566 = vld [vmem:[#allocation5 + $0xc28] sm:$0xff]
    %v567 = vld [vmem:[#allocation5 + $0xc30] sm:$0xff]
    %v568 = vld [vmem:[#allocation5 + $0xc38] sm:$0xff]
    %v569 = vld [vmem:[#allocation5 + $0xc40] sm:$0xff]
    %v570 = vld [vmem:[#allocation5 + $0xc48] sm:$0xff]
    %v571 = vld [vmem:[#allocation5 + $0xc50] sm:$0xff]
    %v572 = vld [vmem:[#allocation5 + $0xc58] sm:$0xff]
    %v573 = vld [vmem:[#allocation5 + $0xc60] sm:$0xff]
    %v574 = vld [vmem:[#allocation5 + $0xc68] sm:$0xff]
    %v575 = vld [vmem:[#allocation5 + $0xc70] sm:$0xff]
    %v576 = vld [vmem:[#allocation5 + $0xc78] sm:$0xff]
    %v577 = vld [vmem:[#allocation5 + $0xc80] sm:$0xff]
    %v578 = vld [vmem:[#allocation5 + $0xc88] sm:$0xff]
    %v579 = vld [vmem:[#allocation5 + $0xc90] sm:$0xff]
    %v580 = vld [vmem:[#allocation5 + $0xc98] sm:$0xff]
    %v581 = vld [vmem:[#allocation5 + $0xca0] sm:$0xff]
    %v582 = vld [vmem:[#allocation5 + $0xca8] sm:$0xff]
    %v583 = vld [vmem:[#allocation5 + $0xcb0] sm:$0xff]
    %v584 = vld [vmem:[#allocation5 + $0xcb8] sm:$0xff]
    %v585 = vld [vmem:[#allocation5 + $0xcc0] sm:$0xff]
    %v586 = vld [vmem:[#allocation5 + $0xcc8] sm:$0xff]
    %v587 = vld [vmem:[#allocation5 + $0xcd0] sm:$0xff]
    %v588 = vld [vmem:[#allocation5 + $0xcd8] sm:$0xff]
    %v589 = vld [vmem:[#allocation5 + $0xce0] sm:$0xff]
    %v590 = vld [vmem:[#allocation5 + $0xce8] sm:$0xff]
    %v591 = vld [vmem:[#allocation5 + $0xcf0] sm:$0xff]
    %v592 = vld [vmem:[#allocation5 + $0xcf8] sm:$0xff]
    %v593 = vld [vmem:[#allocation5 + $0xd00] sm:$0xff]
    %v594 = vld [vmem:[#allocation5 + $0xd08] sm:$0xff]
    %v595 = vld [vmem:[#allocation5 + $0xd10] sm:$0xff]
    %v596 = vld [vmem:[#allocation5 + $0xd18] sm:$0xff]
    %v597 = vld [vmem:[#allocation5 + $0xd20] sm:$0xff]
    %v598 = vld [vmem:[#allocation5 + $0xd28] sm:$0xff]
    %v599 = vld [vmem:[#allocation5 + $0xd30] sm:$0xff]
    %v600 = vld [vmem:[#allocation5 + $0xd38] sm:$0xff]
    %v601 = vld [vmem:[#allocation5 + $0xd40] sm:$0xff]
    %v602 = vld [vmem:[#allocation5 + $0xd48] sm:$0xff]
    %v603 = vld [vmem:[#allocation5 + $0xd50] sm:$0xff]
    %v604 = vld [vmem:[#allocation5 + $0xd58] sm:$0xff]
    %v605 = vld [vmem:[#allocation5 + $0xd60] sm:$0xff]
    %v606 = vld [vmem:[#allocation5 + $0xd68] sm:$0xff]
    %v607 = vld [vmem:[#allocation5 + $0xd70] sm:$0xff]
    %v608 = vld [vmem:[#allocation5 + $0xd78] sm:$0xff]
    %v609 = vld [vmem:[#allocation5 + $0xd80] sm:$0xff]
    %v610 = vld [vmem:[#allocation5 + $0xd88] sm:$0xff]
    %v611 = vld [vmem:[#allocation5 + $0xd90] sm:$0xff]
    %v612 = vld [vmem:[#allocation5 + $0xd98] sm:$0xff]
    %v613 = vld [vmem:[#allocation5 + $0xda0] sm:$0xff]
    %v614 = vld [vmem:[#allocation5 + $0xda8] sm:$0xff]
    %v615 = vld [vmem:[#allocation5 + $0xdb0] sm:$0xff]
    %v616 = vld [vmem:[#allocation5 + $0xdb8] sm:$0xff]
    %v617 = vld [vmem:[#allocation5 + $0xdc0] sm:$0xff]
    %v618 = vld [vmem:[#allocation5 + $0xdc8] sm:$0xff]
    %v619 = vld [vmem:[#allocation5 + $0xdd0] sm:$0xff]
    %v620 = vld [vmem:[#allocation5 + $0xdd8] sm:$0xff]
    %v621 = vld [vmem:[#allocation5 + $0xde0] sm:$0xff]
    %v622 = vld [vmem:[#allocation5 + $0xde8] sm:$0xff]
    %v623 = vld [vmem:[#allocation5 + $0xdf0] sm:$0xff]
    %v624 = vld [vmem:[#allocation5 + $0xdf8] sm:$0xff]
    %v625 = vld [vmem:[#allocation7] sm:$0xff]
    %v627 = vperm.slane %v625, 0
    %v628 = vperm.slane %v625, 1
    %v629 = vperm.slane %v625, 2
    %v630 = vperm.slane %v625, 3
    %v631 = vperm.slane %v625, 4
    %v632 = vperm.slane %v625, 5
    %v633 = vperm.slane %v625, 6
    %v634 = vperm.slane %v625, 7
    %v1091 = vunpack.c.l.b16 %v177
    %v1092 = vunpack.c.h.b16 %v177
    %v1093 = vunpack.c.l.b16 %v178
    %v1094 = vunpack.c.h.b16 %v178
    %v1095 = vunpack.c.l.b16 %v179
    %v1096 = vunpack.c.h.b16 %v179
    %v1097 = vunpack.c.l.b16 %v180
    %v1098 = vunpack.c.h.b16 %v180
    %v1099 = vunpack.c.l.b16 %v181
    %v1100 = vunpack.c.h.b16 %v181
    %v1101 = vunpack.c.l.b16 %v182
    %v1102 = vunpack.c.h.b16 %v182
    %v1103 = vunpack.c.l.b16 %v183
    %v1104 = vunpack.c.h.b16 %v183
    %v1105 = vunpack.c.l.b16 %v184
    %v1106 = vunpack.c.h.b16 %v184
    %v1107 = vunpack.c.l.b16 %v185
    %v1108 = vunpack.c.h.b16 %v185
    %v1109 = vunpack.c.l.b16 %v186
    %v1110 = vunpack.c.h.b16 %v186
    %v1111 = vunpack.c.l.b16 %v187
    %v1112 = vunpack.c.h.b16 %v187
    %v1113 = vunpack.c.l.b16 %v188
    %v1114 = vunpack.c.h.b16 %v188
    %v1115 = vunpack.c.l.b16 %v189
    %v1116 = vunpack.c.h.b16 %v189
    %v1117 = vunpack.c.l.b16 %v190
    %v1118 = vunpack.c.h.b16 %v190
    %v1119 = vunpack.c.l.b16 %v191
    %v1120 = vunpack.c.h.b16 %v191
    %v1121 = vunpack.c.l.b16 %v192
    %v1122 = vunpack.c.h.b16 %v192
    %v1123 = vunpack.c.l.b16 %v193
    %v1124 = vunpack.c.h.b16 %v193
    %v1125 = vunpack.c.l.b16 %v194
    %v1126 = vunpack.c.h.b16 %v194
    %v1127 = vunpack.c.l.b16 %v195
    %v1128 = vunpack.c.h.b16 %v195
    %v1129 = vunpack.c.l.b16 %v196
    %v1130 = vunpack.c.h.b16 %v196
    %v1131 = vunpack.c.l.b16 %v197
    %v1132 = vunpack.c.h.b16 %v197
    %v1133 = vunpack.c.l.b16 %v198
    %v1134 = vunpack.c.h.b16 %v198
    %v1135 = vunpack.c.l.b16 %v199
    %v1136 = vunpack.c.h.b16 %v199
    %v1137 = vunpack.c.l.b16 %v200
    %v1138 = vunpack.c.h.b16 %v200
    %v1139 = vunpack.c.l.b16 %v201
    %v1140 = vunpack.c.h.b16 %v201
    %v1141 = vunpack.c.l.b16 %v202
    %v1142 = vunpack.c.h.b16 %v202
    %v1143 = vunpack.c.l.b16 %v203
    %v1144 = vunpack.c.h.b16 %v203
    %v1145 = vunpack.c.l.b16 %v204
    %v1146 = vunpack.c.h.b16 %v204
    %v1147 = vunpack.c.l.b16 %v205
    %v1148 = vunpack.c.h.b16 %v205
    %v1149 = vunpack.c.l.b16 %v206
    %v1150 = vunpack.c.h.b16 %v206
    %v1151 = vunpack.c.l.b16 %v207
    %v1152 = vunpack.c.h.b16 %v207
    %v1153 = vunpack.c.l.b16 %v208
    %v1154 = vunpack.c.h.b16 %v208
    %v1155 = vunpack.c.l.b16 %v209
    %v1156 = vunpack.c.h.b16 %v209
    %v1157 = vunpack.c.l.b16 %v210
    %v1158 = vunpack.c.h.b16 %v210
    %v1159 = vunpack.c.l.b16 %v211
    %v1160 = vunpack.c.h.b16 %v211
    %v1161 = vunpack.c.l.b16 %v212
    %v1162 = vunpack.c.h.b16 %v212
    %v1163 = vunpack.c.l.b16 %v213
    %v1164 = vunpack.c.h.b16 %v213
    %v1165 = vunpack.c.l.b16 %v214
    %v1166 = vunpack.c.h.b16 %v214
    %v1167 = vunpack.c.l.b16 %v215
    %v1168 = vunpack.c.h.b16 %v215
    %v1169 = vunpack.c.l.b16 %v216
    %v1170 = vunpack.c.h.b16 %v216
    %v1171 = vunpack.c.l.b16 %v217
    %v1172 = vunpack.c.h.b16 %v217
    %v1173 = vunpack.c.l.b16 %v218
    %v1174 = vunpack.c.h.b16 %v218
    %v1175 = vunpack.c.l.b16 %v219
    %v1176 = vunpack.c.h.b16 %v219
    %v1177 = vunpack.c.l.b16 %v220
    %v1178 = vunpack.c.h.b16 %v220
    %v1179 = vunpack.c.l.b16 %v221
    %v1180 = vunpack.c.h.b16 %v221
    %v1181 = vunpack.c.l.b16 %v222
    %v1182 = vunpack.c.h.b16 %v222
    %v1183 = vunpack.c.l.b16 %v223
    %v1184 = vunpack.c.h.b16 %v223
    %v1185 = vunpack.c.l.b16 %v224
    %v1186 = vunpack.c.h.b16 %v224
    %v1187 = vunpack.c.l.b16 %v225
    %v1188 = vunpack.c.h.b16 %v225
    %v1189 = vunpack.c.l.b16 %v226
    %v1190 = vunpack.c.h.b16 %v226
    %v1191 = vunpack.c.l.b16 %v227
    %v1192 = vunpack.c.h.b16 %v227
    %v1193 = vunpack.c.l.b16 %v228
    %v1194 = vunpack.c.h.b16 %v228
    %v1195 = vunpack.c.l.b16 %v229
    %v1196 = vunpack.c.h.b16 %v229
    %v1197 = vunpack.c.l.b16 %v230
    %v1198 = vunpack.c.h.b16 %v230
    %v1199 = vunpack.c.l.b16 %v231
    %v1200 = vunpack.c.h.b16 %v231
    %v1201 = vunpack.c.l.b16 %v232
    %v1202 = vunpack.c.h.b16 %v232
    %v1203 = vunpack.c.l.b16 %v233
    %v1204 = vunpack.c.h.b16 %v233
    %v1205 = vunpack.c.l.b16 %v234
    %v1206 = vunpack.c.h.b16 %v234
    %v1207 = vunpack.c.l.b16 %v235
    %v1208 = vunpack.c.h.b16 %v235
    %v1209 = vunpack.c.l.b16 %v236
    %v1210 = vunpack.c.h.b16 %v236
    %v1211 = vunpack.c.l.b16 %v237
    %v1212 = vunpack.c.h.b16 %v237
    %v1213 = vunpack.c.l.b16 %v238
    %v1214 = vunpack.c.h.b16 %v238
    %v1215 = vunpack.c.l.b16 %v239
    %v1216 = vunpack.c.h.b16 %v239
    %v1217 = vunpack.c.l.b16 %v240
    %v1218 = vunpack.c.h.b16 %v240
    %v1219 = vunpack.c.l.b16 %v241
    %v1220 = vunpack.c.h.b16 %v241
    %v1221 = vunpack.c.l.b16 %v242
    %v1222 = vunpack.c.h.b16 %v242
    %v1223 = vunpack.c.l.b16 %v243
    %v1224 = vunpack.c.h.b16 %v243
    %v1225 = vunpack.c.l.b16 %v244
    %v1226 = vunpack.c.h.b16 %v244
    %v1227 = vunpack.c.l.b16 %v245
    %v1228 = vunpack.c.h.b16 %v245
    %v1229 = vunpack.c.l.b16 %v246
    %v1230 = vunpack.c.h.b16 %v246
    %v1231 = vunpack.c.l.b16 %v247
    %v1232 = vunpack.c.h.b16 %v247
    %v1233 = vunpack.c.l.b16 %v248
    %v1234 = vunpack.c.h.b16 %v248
    %v1235 = vunpack.c.l.b16 %v249
    %v1236 = vunpack.c.h.b16 %v249
    %v1237 = vunpack.c.l.b16 %v250
    %v1238 = vunpack.c.h.b16 %v250
    %v1239 = vunpack.c.l.b16 %v251
    %v1240 = vunpack.c.h.b16 %v251
    %v1241 = vunpack.c.l.b16 %v252
    %v1242 = vunpack.c.h.b16 %v252
    %v1243 = vunpack.c.l.b16 %v253
    %v1244 = vunpack.c.h.b16 %v253
    %v1245 = vunpack.c.l.b16 %v254
    %v1246 = vunpack.c.h.b16 %v254
    %v1247 = vunpack.c.l.b16 %v255
    %v1248 = vunpack.c.h.b16 %v255
    %v1249 = vunpack.c.l.b16 %v256
    %v1250 = vunpack.c.h.b16 %v256
    %v1251 = vunpack.c.l.b16 %v257
    %v1252 = vunpack.c.h.b16 %v257
    %v1253 = vunpack.c.l.b16 %v258
    %v1254 = vunpack.c.h.b16 %v258
    %v1255 = vunpack.c.l.b16 %v259
    %v1256 = vunpack.c.h.b16 %v259
    %v1257 = vunpack.c.l.b16 %v260
    %v1258 = vunpack.c.h.b16 %v260
    %v1259 = vunpack.c.l.b16 %v261
    %v1260 = vunpack.c.h.b16 %v261
    %v1261 = vunpack.c.l.b16 %v262
    %v1262 = vunpack.c.h.b16 %v262
    %v1263 = vunpack.c.l.b16 %v263
    %v1264 = vunpack.c.h.b16 %v263
    %v1265 = vunpack.c.l.b16 %v264
    %v1266 = vunpack.c.h.b16 %v264
    %v1267 = vunpack.c.l.b16 %v265
    %v1268 = vunpack.c.h.b16 %v265
    %v1269 = vunpack.c.l.b16 %v266
    %v1270 = vunpack.c.h.b16 %v266
    %v1271 = vunpack.c.l.b16 %v267
    %v1272 = vunpack.c.h.b16 %v267
    %v1273 = vunpack.c.l.b16 %v268
    %v1274 = vunpack.c.h.b16 %v268
    %v1275 = vunpack.c.l.b16 %v269
    %v1276 = vunpack.c.h.b16 %v269
    %v1277 = vunpack.c.l.b16 %v270
    %v1278 = vunpack.c.h.b16 %v270
    %v1279 = vunpack.c.l.b16 %v271
    %v1280 = vunpack.c.h.b16 %v271
    %v1281 = vunpack.c.l.b16 %v272
    %v1282 = vunpack.c.h.b16 %v272
    %v1283 = vunpack.c.l.b16 %v273
    %v1284 = vunpack.c.h.b16 %v273
    %v1285 = vunpack.c.l.b16 %v274
    %v1286 = vunpack.c.h.b16 %v274
    %v1287 = vunpack.c.l.b16 %v275
    %v1288 = vunpack.c.h.b16 %v275
    %v1289 = vunpack.c.l.b16 %v276
    %v1290 = vunpack.c.h.b16 %v276
    %v1291 = vunpack.c.l.b16 %v277
    %v1292 = vunpack.c.h.b16 %v277
    %v1293 = vunpack.c.l.b16 %v278
    %v1294 = vunpack.c.h.b16 %v278
    %v1295 = vunpack.c.l.b16 %v279
    %v1296 = vunpack.c.h.b16 %v279
    %v1297 = vunpack.c.l.b16 %v280
    %v1298 = vunpack.c.h.b16 %v280
    %v1299 = vunpack.c.l.b16 %v281
    %v1300 = vunpack.c.h.b16 %v281
    %v1301 = vunpack.c.l.b16 %v282
    %v1302 = vunpack.c.h.b16 %v282
    %v1303 = vunpack.c.l.b16 %v283
    %v1304 = vunpack.c.h.b16 %v283
    %v1305 = vunpack.c.l.b16 %v284
    %v1306 = vunpack.c.h.b16 %v284
    %v1307 = vunpack.c.l.b16 %v285
    %v1308 = vunpack.c.h.b16 %v285
    %v1309 = vunpack.c.l.b16 %v286
    %v1310 = vunpack.c.h.b16 %v286
    %v1311 = vunpack.c.l.b16 %v287
    %v1312 = vunpack.c.h.b16 %v287
    %v1313 = vunpack.c.l.b16 %v288
    %v1314 = vunpack.c.h.b16 %v288
    %v1315 = vunpack.c.l.b16 %v289
    %v1316 = vunpack.c.h.b16 %v289
    %v1317 = vunpack.c.l.b16 %v290
    %v1318 = vunpack.c.h.b16 %v290
    %v1319 = vunpack.c.l.b16 %v291
    %v1320 = vunpack.c.h.b16 %v291
    %v1321 = vunpack.c.l.b16 %v292
    %v1322 = vunpack.c.h.b16 %v292
    %v1323 = vunpack.c.l.b16 %v293
    %v1324 = vunpack.c.h.b16 %v293
    %v1325 = vunpack.c.l.b16 %v294
    %v1326 = vunpack.c.h.b16 %v294
    %v1327 = vunpack.c.l.b16 %v295
    %v1328 = vunpack.c.h.b16 %v295
    %v1329 = vunpack.c.l.b16 %v296
    %v1330 = vunpack.c.h.b16 %v296
    %v1331 = vunpack.c.l.b16 %v297
    %v1332 = vunpack.c.h.b16 %v297
    %v1333 = vunpack.c.l.b16 %v298
    %v1334 = vunpack.c.h.b16 %v298
    %v1335 = vunpack.c.l.b16 %v299
    %v1336 = vunpack.c.h.b16 %v299
    %v1337 = vunpack.c.l.b16 %v300
    %v1338 = vunpack.c.h.b16 %v300
    %v1339 = vunpack.c.l.b16 %v301
    %v1340 = vunpack.c.h.b16 %v301
    %v1341 = vunpack.c.l.b16 %v302
    %v1342 = vunpack.c.h.b16 %v302
    %v1343 = vunpack.c.l.b16 %v303
    %v1344 = vunpack.c.h.b16 %v303
    %v1345 = vunpack.c.l.b16 %v304
    %v1346 = vunpack.c.h.b16 %v304
    %v1347 = vunpack.c.l.b16 %v305
    %v1348 = vunpack.c.h.b16 %v305
    %v1349 = vunpack.c.l.b16 %v306
    %v1350 = vunpack.c.h.b16 %v306
    %v1351 = vunpack.c.l.b16 %v307
    %v1352 = vunpack.c.h.b16 %v307
    %v1353 = vunpack.c.l.b16 %v308
    %v1354 = vunpack.c.h.b16 %v308
    %v1355 = vunpack.c.l.b16 %v309
    %v1356 = vunpack.c.h.b16 %v309
    %v1357 = vunpack.c.l.b16 %v310
    %v1358 = vunpack.c.h.b16 %v310
    %v1359 = vunpack.c.l.b16 %v311
    %v1360 = vunpack.c.h.b16 %v311
    %v1361 = vunpack.c.l.b16 %v312
    %v1362 = vunpack.c.h.b16 %v312
    %v1363 = vunpack.c.l.b16 %v313
    %v1364 = vunpack.c.h.b16 %v313
    %v1365 = vunpack.c.l.b16 %v314
    %v1366 = vunpack.c.h.b16 %v314
    %v1367 = vunpack.c.l.b16 %v315
    %v1368 = vunpack.c.h.b16 %v315
    %v1369 = vunpack.c.l.b16 %v316
    %v1370 = vunpack.c.h.b16 %v316
    %v1371 = vunpack.c.l.b16 %v317
    %v1372 = vunpack.c.h.b16 %v317
    %v1373 = vunpack.c.l.b16 %v318
    %v1374 = vunpack.c.h.b16 %v318
    %v1375 = vunpack.c.l.b16 %v319
    %v1376 = vunpack.c.h.b16 %v319
    %v1377 = vunpack.c.l.b16 %v320
    %v1378 = vunpack.c.h.b16 %v320
    %v1379 = vunpack.c.l.b16 %v321
    %v1380 = vunpack.c.h.b16 %v321
    %v1381 = vunpack.c.l.b16 %v322
    %v1382 = vunpack.c.h.b16 %v322
    %v1383 = vunpack.c.l.b16 %v323
    %v1384 = vunpack.c.h.b16 %v323
    %v1385 = vunpack.c.l.b16 %v324
    %v1386 = vunpack.c.h.b16 %v324
    %v1387 = vunpack.c.l.b16 %v325
    %v1388 = vunpack.c.h.b16 %v325
    %v1389 = vunpack.c.l.b16 %v326
    %v1390 = vunpack.c.h.b16 %v326
    %v1391 = vunpack.c.l.b16 %v327
    %v1392 = vunpack.c.h.b16 %v327
    %v1393 = vunpack.c.l.b16 %v328
    %v1394 = vunpack.c.h.b16 %v328
    %v1395 = vunpack.c.l.b16 %v329
    %v1396 = vunpack.c.h.b16 %v329
    %v1397 = vunpack.c.l.b16 %v330
    %v1398 = vunpack.c.h.b16 %v330
    %v1399 = vunpack.c.l.b16 %v331
    %v1400 = vunpack.c.h.b16 %v331
    %v1401 = vunpack.c.l.b16 %v332
    %v1402 = vunpack.c.h.b16 %v332
    %v1403 = vunpack.c.l.b16 %v333
    %v1404 = vunpack.c.h.b16 %v333
    %v1405 = vunpack.c.l.b16 %v334
    %v1406 = vunpack.c.h.b16 %v334
    %v1407 = vunpack.c.l.b16 %v335
    %v1408 = vunpack.c.h.b16 %v335
    %v1409 = vunpack.c.l.b16 %v336
    %v1410 = vunpack.c.h.b16 %v336
    %v1411 = vunpack.c.l.b16 %v337
    %v1412 = vunpack.c.h.b16 %v337
    %v1413 = vunpack.c.l.b16 %v338
    %v1414 = vunpack.c.h.b16 %v338
    %v1415 = vunpack.c.l.b16 %v339
    %v1416 = vunpack.c.h.b16 %v339
    %v1417 = vunpack.c.l.b16 %v340
    %v1418 = vunpack.c.h.b16 %v340
    %v1419 = vunpack.c.l.b16 %v341
    %v1420 = vunpack.c.h.b16 %v341
    %v1421 = vunpack.c.l.b16 %v342
    %v1422 = vunpack.c.h.b16 %v342
    %v1423 = vunpack.c.l.b16 %v343
    %v1424 = vunpack.c.h.b16 %v343
    %v1425 = vunpack.c.l.b16 %v344
    %v1426 = vunpack.c.h.b16 %v344
    %v1427 = vunpack.c.l.b16 %v345
    %v1428 = vunpack.c.h.b16 %v345
    %v1429 = vunpack.c.l.b16 %v346
    %v1430 = vunpack.c.h.b16 %v346
    %v1431 = vunpack.c.l.b16 %v347
    %v1432 = vunpack.c.h.b16 %v347
    %v1433 = vunpack.c.l.b16 %v348
    %v1434 = vunpack.c.h.b16 %v348
    %v1435 = vunpack.c.l.b16 %v349
    %v1436 = vunpack.c.h.b16 %v349
    %v1437 = vunpack.c.l.b16 %v350
    %v1438 = vunpack.c.h.b16 %v350
    %v1439 = vunpack.c.l.b16 %v351
    %v1440 = vunpack.c.h.b16 %v351
    %v1441 = vunpack.c.l.b16 %v352
    %v1442 = vunpack.c.h.b16 %v352
    %v1443 = vunpack.c.l.b16 %v353
    %v1444 = vunpack.c.h.b16 %v353
    %v1445 = vunpack.c.l.b16 %v354
    %v1446 = vunpack.c.h.b16 %v354
    %v1447 = vunpack.c.l.b16 %v355
    %v1448 = vunpack.c.h.b16 %v355
    %v1449 = vunpack.c.l.b16 %v356
    %v1450 = vunpack.c.h.b16 %v356
    %v1451 = vunpack.c.l.b16 %v357
    %v1452 = vunpack.c.h.b16 %v357
    %v1453 = vunpack.c.l.b16 %v358
    %v1454 = vunpack.c.h.b16 %v358
    %v1455 = vunpack.c.l.b16 %v359
    %v1456 = vunpack.c.h.b16 %v359
    %v1457 = vunpack.c.l.b16 %v360
    %v1458 = vunpack.c.h.b16 %v360
    %v1459 = vunpack.c.l.b16 %v361
    %v1460 = vunpack.c.h.b16 %v361
    %v1461 = vunpack.c.l.b16 %v362
    %v1462 = vunpack.c.h.b16 %v362
    %v1463 = vunpack.c.l.b16 %v363
    %v1464 = vunpack.c.h.b16 %v363
    %v1465 = vunpack.c.l.b16 %v364
    %v1466 = vunpack.c.h.b16 %v364
    %v1467 = vunpack.c.l.b16 %v365
    %v1468 = vunpack.c.h.b16 %v365
    %v1469 = vunpack.c.l.b16 %v366
    %v1470 = vunpack.c.h.b16 %v366
    %v1471 = vunpack.c.l.b16 %v367
    %v1472 = vunpack.c.h.b16 %v367
    %v1473 = vunpack.c.l.b16 %v368
    %v1474 = vunpack.c.h.b16 %v368
    %v1475 = vunpack.c.l.b16 %v369
    %v1476 = vunpack.c.h.b16 %v369
    %v1477 = vunpack.c.l.b16 %v370
    %v1478 = vunpack.c.h.b16 %v370
    %v1479 = vunpack.c.l.b16 %v371
    %v1480 = vunpack.c.h.b16 %v371
    %v1481 = vunpack.c.l.b16 %v372
    %v1482 = vunpack.c.h.b16 %v372
    %v1483 = vunpack.c.l.b16 %v373
    %v1484 = vunpack.c.h.b16 %v373
    %v1485 = vunpack.c.l.b16 %v374
    %v1486 = vunpack.c.h.b16 %v374
    %v1487 = vunpack.c.l.b16 %v375
    %v1488 = vunpack.c.h.b16 %v375
    %v1489 = vunpack.c.l.b16 %v376
    %v1490 = vunpack.c.h.b16 %v376
    %v1491 = vunpack.c.l.b16 %v377
    %v1492 = vunpack.c.h.b16 %v377
    %v1493 = vunpack.c.l.b16 %v378
    %v1494 = vunpack.c.h.b16 %v378
    %v1495 = vunpack.c.l.b16 %v379
    %v1496 = vunpack.c.h.b16 %v379
    %v1497 = vunpack.c.l.b16 %v380
    %v1498 = vunpack.c.h.b16 %v380
    %v1499 = vunpack.c.l.b16 %v381
    %v1500 = vunpack.c.h.b16 %v381
    %v1501 = vunpack.c.l.b16 %v382
    %v1502 = vunpack.c.h.b16 %v382
    %v1503 = vunpack.c.l.b16 %v383
    %v1504 = vunpack.c.h.b16 %v383
    %v1505 = vunpack.c.l.b16 %v384
    %v1506 = vunpack.c.h.b16 %v384
    %v1507 = vunpack.c.l.b16 %v385
    %v1508 = vunpack.c.h.b16 %v385
    %v1509 = vunpack.c.l.b16 %v386
    %v1510 = vunpack.c.h.b16 %v386
    %v1511 = vunpack.c.l.b16 %v387
    %v1512 = vunpack.c.h.b16 %v387
    %v1513 = vunpack.c.l.b16 %v388
    %v1514 = vunpack.c.h.b16 %v388
    %v1515 = vunpack.c.l.b16 %v389
    %v1516 = vunpack.c.h.b16 %v389
    %v1517 = vunpack.c.l.b16 %v390
    %v1518 = vunpack.c.h.b16 %v390
    %v1519 = vunpack.c.l.b16 %v391
    %v1520 = vunpack.c.h.b16 %v391
    %v1521 = vunpack.c.l.b16 %v392
    %v1522 = vunpack.c.h.b16 %v392
    %v1523 = vunpack.c.l.b16 %v393
    %v1524 = vunpack.c.h.b16 %v393
    %v1525 = vunpack.c.l.b16 %v394
    %v1526 = vunpack.c.h.b16 %v394
    %v1527 = vunpack.c.l.b16 %v395
    %v1528 = vunpack.c.h.b16 %v395
    %v1529 = vunpack.c.l.b16 %v396
    %v1530 = vunpack.c.h.b16 %v396
    %v1531 = vunpack.c.l.b16 %v397
    %v1532 = vunpack.c.h.b16 %v397
    %v1533 = vunpack.c.l.b16 %v398
    %v1534 = vunpack.c.h.b16 %v398
    %v1535 = vunpack.c.l.b16 %v399
    %v1536 = vunpack.c.h.b16 %v399
    %v1537 = vunpack.c.l.b16 %v400
    %v1538 = vunpack.c.h.b16 %v400
    %v1539 = vunpack.c.l.b16 %v401
    %v1540 = vunpack.c.h.b16 %v401
    %v1541 = vunpack.c.l.b16 %v402
    %v1542 = vunpack.c.h.b16 %v402
    %v1543 = vunpack.c.l.b16 %v403
    %v1544 = vunpack.c.h.b16 %v403
    %v1545 = vunpack.c.l.b16 %v404
    %v1546 = vunpack.c.h.b16 %v404
    %v1547 = vunpack.c.l.b16 %v405
    %v1548 = vunpack.c.h.b16 %v405
    %v1549 = vunpack.c.l.b16 %v406
    %v1550 = vunpack.c.h.b16 %v406
    %v1551 = vunpack.c.l.b16 %v407
    %v1552 = vunpack.c.h.b16 %v407
    %v1553 = vunpack.c.l.b16 %v408
    %v1554 = vunpack.c.h.b16 %v408
    %v1555 = vunpack.c.l.b16 %v409
    %v1556 = vunpack.c.h.b16 %v409
    %v1557 = vunpack.c.l.b16 %v410
    %v1558 = vunpack.c.h.b16 %v410
    %v1559 = vunpack.c.l.b16 %v411
    %v1560 = vunpack.c.h.b16 %v411
    %v1561 = vunpack.c.l.b16 %v412
    %v1562 = vunpack.c.h.b16 %v412
    %v1563 = vunpack.c.l.b16 %v413
    %v1564 = vunpack.c.h.b16 %v413
    %v1565 = vunpack.c.l.b16 %v414
    %v1566 = vunpack.c.h.b16 %v414
    %v1567 = vunpack.c.l.b16 %v415
    %v1568 = vunpack.c.h.b16 %v415
    %v1569 = vunpack.c.l.b16 %v416
    %v1570 = vunpack.c.h.b16 %v416
    %v1571 = vunpack.c.l.b16 %v417
    %v1572 = vunpack.c.h.b16 %v417
    %v1573 = vunpack.c.l.b16 %v418
    %v1574 = vunpack.c.h.b16 %v418
    %v1575 = vunpack.c.l.b16 %v419
    %v1576 = vunpack.c.h.b16 %v419
    %v1577 = vunpack.c.l.b16 %v420
    %v1578 = vunpack.c.h.b16 %v420
    %v1579 = vunpack.c.l.b16 %v421
    %v1580 = vunpack.c.h.b16 %v421
    %v1581 = vunpack.c.l.b16 %v422
    %v1582 = vunpack.c.h.b16 %v422
    %v1583 = vunpack.c.l.b16 %v423
    %v1584 = vunpack.c.h.b16 %v423
    %v1585 = vunpack.c.l.b16 %v424
    %v1586 = vunpack.c.h.b16 %v424
    %v1587 = vunpack.c.l.b16 %v425
    %v1588 = vunpack.c.h.b16 %v425
    %v1589 = vunpack.c.l.b16 %v426
    %v1590 = vunpack.c.h.b16 %v426
    %v1591 = vunpack.c.l.b16 %v427
    %v1592 = vunpack.c.h.b16 %v427
    %v1593 = vunpack.c.l.b16 %v428
    %v1594 = vunpack.c.h.b16 %v428
    %v1595 = vunpack.c.l.b16 %v429
    %v1596 = vunpack.c.h.b16 %v429
    %v1597 = vunpack.c.l.b16 %v430
    %v1598 = vunpack.c.h.b16 %v430
    %v1599 = vunpack.c.l.b16 %v431
    %v1600 = vunpack.c.h.b16 %v431
    %v1601 = vunpack.c.l.b16 %v432
    %v1602 = vunpack.c.h.b16 %v432
    %v1603 = vunpack.c.l.b16 %v433
    %v1604 = vunpack.c.h.b16 %v433
    %v1605 = vunpack.c.l.b16 %v434
    %v1606 = vunpack.c.h.b16 %v434
    %v1607 = vunpack.c.l.b16 %v435
    %v1608 = vunpack.c.h.b16 %v435
    %v1609 = vunpack.c.l.b16 %v436
    %v1610 = vunpack.c.h.b16 %v436
    %v1611 = vunpack.c.l.b16 %v437
    %v1612 = vunpack.c.h.b16 %v437
    %v1613 = vunpack.c.l.b16 %v438
    %v1614 = vunpack.c.h.b16 %v438
    %v1615 = vunpack.c.l.b16 %v439
    %v1616 = vunpack.c.h.b16 %v439
    %v1617 = vunpack.c.l.b16 %v440
    %v1618 = vunpack.c.h.b16 %v440
    %v1619 = vunpack.c.l.b16 %v441
    %v1620 = vunpack.c.h.b16 %v441
    %v1621 = vunpack.c.l.b16 %v442
    %v1622 = vunpack.c.h.b16 %v442
    %v1623 = vunpack.c.l.b16 %v443
    %v1624 = vunpack.c.h.b16 %v443
    %v1625 = vunpack.c.l.b16 %v444
    %v1626 = vunpack.c.h.b16 %v444
    %v1627 = vunpack.c.l.b16 %v445
    %v1628 = vunpack.c.h.b16 %v445
    %v1629 = vunpack.c.l.b16 %v446
    %v1630 = vunpack.c.h.b16 %v446
    %v1631 = vunpack.c.l.b16 %v447
    %v1632 = vunpack.c.h.b16 %v447
    %v1633 = vunpack.c.l.b16 %v448
    %v1634 = vunpack.c.h.b16 %v448
    %v1635 = vunpack.c.l.b16 %v449
    %v1636 = vunpack.c.h.b16 %v449
    %v1637 = vunpack.c.l.b16 %v450
    %v1638 = vunpack.c.h.b16 %v450
    %v1639 = vunpack.c.l.b16 %v451
    %v1640 = vunpack.c.h.b16 %v451
    %v1641 = vunpack.c.l.b16 %v452
    %v1642 = vunpack.c.h.b16 %v452
    %v1643 = vunpack.c.l.b16 %v453
    %v1644 = vunpack.c.h.b16 %v453
    %v1645 = vunpack.c.l.b16 %v454
    %v1646 = vunpack.c.h.b16 %v454
    %v1647 = vunpack.c.l.b16 %v455
    %v1648 = vunpack.c.h.b16 %v455
    %v1649 = vunpack.c.l.b16 %v456
    %v1650 = vunpack.c.h.b16 %v456
    %v1651 = vunpack.c.l.b16 %v457
    %v1652 = vunpack.c.h.b16 %v457
    %v1653 = vunpack.c.l.b16 %v458
    %v1654 = vunpack.c.h.b16 %v458
    %v1655 = vunpack.c.l.b16 %v459
    %v1656 = vunpack.c.h.b16 %v459
    %v1657 = vunpack.c.l.b16 %v460
    %v1658 = vunpack.c.h.b16 %v460
    %v1659 = vunpack.c.l.b16 %v461
    %v1660 = vunpack.c.h.b16 %v461
    %v1661 = vunpack.c.l.b16 %v462
    %v1662 = vunpack.c.h.b16 %v462
    %v1663 = vunpack.c.l.b16 %v463
    %v1664 = vunpack.c.h.b16 %v463
    %v1665 = vunpack.c.l.b16 %v464
    %v1666 = vunpack.c.h.b16 %v464
    %v1667 = vunpack.c.l.b16 %v465
    %v1668 = vunpack.c.h.b16 %v465
    %v1669 = vunpack.c.l.b16 %v466
    %v1670 = vunpack.c.h.b16 %v466
    %v1671 = vunpack.c.l.b16 %v467
    %v1672 = vunpack.c.h.b16 %v467
    %v1673 = vunpack.c.l.b16 %v468
    %v1674 = vunpack.c.h.b16 %v468
    %v1675 = vunpack.c.l.b16 %v469
    %v1676 = vunpack.c.h.b16 %v469
    %v1677 = vunpack.c.l.b16 %v470
    %v1678 = vunpack.c.h.b16 %v470
    %v1679 = vunpack.c.l.b16 %v471
    %v1680 = vunpack.c.h.b16 %v471
    %v1681 = vunpack.c.l.b16 %v472
    %v1682 = vunpack.c.h.b16 %v472
    %v1683 = vunpack.c.l.b16 %v473
    %v1684 = vunpack.c.h.b16 %v473
    %v1685 = vunpack.c.l.b16 %v474
    %v1686 = vunpack.c.h.b16 %v474
    %v1687 = vunpack.c.l.b16 %v475
    %v1688 = vunpack.c.h.b16 %v475
    %v1689 = vunpack.c.l.b16 %v476
    %v1690 = vunpack.c.h.b16 %v476
    %v1691 = vunpack.c.l.b16 %v477
    %v1692 = vunpack.c.h.b16 %v477
    %v1693 = vunpack.c.l.b16 %v478
    %v1694 = vunpack.c.h.b16 %v478
    %v1695 = vunpack.c.l.b16 %v479
    %v1696 = vunpack.c.h.b16 %v479
    %v1697 = vunpack.c.l.b16 %v480
    %v1698 = vunpack.c.h.b16 %v480
    %v1699 = vunpack.c.l.b16 %v481
    %v1700 = vunpack.c.h.b16 %v481
    %v1701 = vunpack.c.l.b16 %v482
    %v1702 = vunpack.c.h.b16 %v482
    %v1703 = vunpack.c.l.b16 %v483
    %v1704 = vunpack.c.h.b16 %v483
    %v1705 = vunpack.c.l.b16 %v484
    %v1706 = vunpack.c.h.b16 %v484
    %v1707 = vunpack.c.l.b16 %v485
    %v1708 = vunpack.c.h.b16 %v485
    %v1709 = vunpack.c.l.b16 %v486
    %v1710 = vunpack.c.h.b16 %v486
    %v1711 = vunpack.c.l.b16 %v487
    %v1712 = vunpack.c.h.b16 %v487
    %v1713 = vunpack.c.l.b16 %v488
    %v1714 = vunpack.c.h.b16 %v488
    %v1715 = vunpack.c.l.b16 %v489
    %v1716 = vunpack.c.h.b16 %v489
    %v1717 = vunpack.c.l.b16 %v490
    %v1718 = vunpack.c.h.b16 %v490
    %v1719 = vunpack.c.l.b16 %v491
    %v1720 = vunpack.c.h.b16 %v491
    %v1721 = vunpack.c.l.b16 %v492
    %v1722 = vunpack.c.h.b16 %v492
    %v1723 = vunpack.c.l.b16 %v493
    %v1724 = vunpack.c.h.b16 %v493
    %v1725 = vunpack.c.l.b16 %v494
    %v1726 = vunpack.c.h.b16 %v494
    %v1727 = vunpack.c.l.b16 %v495
    %v1728 = vunpack.c.h.b16 %v495
    %v1729 = vunpack.c.l.b16 %v496
    %v1730 = vunpack.c.h.b16 %v496
    %v1731 = vunpack.c.l.b16 %v497
    %v1732 = vunpack.c.h.b16 %v497
    %v1733 = vunpack.c.l.b16 %v498
    %v1734 = vunpack.c.h.b16 %v498
    %v1735 = vunpack.c.l.b16 %v499
    %v1736 = vunpack.c.h.b16 %v499
    %v1737 = vunpack.c.l.b16 %v500
    %v1738 = vunpack.c.h.b16 %v500
    %v1739 = vunpack.c.l.b16 %v501
    %v1740 = vunpack.c.h.b16 %v501
    %v1741 = vunpack.c.l.b16 %v502
    %v1742 = vunpack.c.h.b16 %v502
    %v1743 = vunpack.c.l.b16 %v503
    %v1744 = vunpack.c.h.b16 %v503
    %v1745 = vunpack.c.l.b16 %v504
    %v1746 = vunpack.c.h.b16 %v504
    %v1747 = vunpack.c.l.b16 %v505
    %v1748 = vunpack.c.h.b16 %v505
    %v1749 = vunpack.c.l.b16 %v506
    %v1750 = vunpack.c.h.b16 %v506
    %v1751 = vunpack.c.l.b16 %v507
    %v1752 = vunpack.c.h.b16 %v507
    %v1753 = vunpack.c.l.b16 %v508
    %v1754 = vunpack.c.h.b16 %v508
    %v1755 = vunpack.c.l.b16 %v509
    %v1756 = vunpack.c.h.b16 %v509
    %v1757 = vunpack.c.l.b16 %v510
    %v1758 = vunpack.c.h.b16 %v510
    %v1759 = vunpack.c.l.b16 %v511
    %v1760 = vunpack.c.h.b16 %v511
    %v1761 = vunpack.c.l.b16 %v512
    %v1762 = vunpack.c.h.b16 %v512
    %v1763 = vunpack.c.l.b16 %v513
    %v1764 = vunpack.c.h.b16 %v513
    %v1765 = vunpack.c.l.b16 %v514
    %v1766 = vunpack.c.h.b16 %v514
    %v1767 = vunpack.c.l.b16 %v515
    %v1768 = vunpack.c.h.b16 %v515
    %v1769 = vunpack.c.l.b16 %v516
    %v1770 = vunpack.c.h.b16 %v516
    %v1771 = vunpack.c.l.b16 %v517
    %v1772 = vunpack.c.h.b16 %v517
    %v1773 = vunpack.c.l.b16 %v518
    %v1774 = vunpack.c.h.b16 %v518
    %v1775 = vunpack.c.l.b16 %v519
    %v1776 = vunpack.c.h.b16 %v519
    %v1777 = vunpack.c.l.b16 %v520
    %v1778 = vunpack.c.h.b16 %v520
    %v1779 = vunpack.c.l.b16 %v521
    %v1780 = vunpack.c.h.b16 %v521
    %v1781 = vunpack.c.l.b16 %v522
    %v1782 = vunpack.c.h.b16 %v522
    %v1783 = vunpack.c.l.b16 %v523
    %v1784 = vunpack.c.h.b16 %v523
    %v1785 = vunpack.c.l.b16 %v524
    %v1786 = vunpack.c.h.b16 %v524
    %v1787 = vunpack.c.l.b16 %v525
    %v1788 = vunpack.c.h.b16 %v525
    %v1789 = vunpack.c.l.b16 %v526
    %v1790 = vunpack.c.h.b16 %v526
    %v1791 = vunpack.c.l.b16 %v527
    %v1792 = vunpack.c.h.b16 %v527
    %v1793 = vunpack.c.l.b16 %v528
    %v1794 = vunpack.c.h.b16 %v528
    %v1795 = vunpack.c.l.b16 %v529
    %v1796 = vunpack.c.h.b16 %v529
    %v1797 = vunpack.c.l.b16 %v530
    %v1798 = vunpack.c.h.b16 %v530
    %v1799 = vunpack.c.l.b16 %v531
    %v1800 = vunpack.c.h.b16 %v531
    %v1801 = vunpack.c.l.b16 %v532
    %v1802 = vunpack.c.h.b16 %v532
    %v1803 = vunpack.c.l.b16 %v533
    %v1804 = vunpack.c.h.b16 %v533
    %v1805 = vunpack.c.l.b16 %v534
    %v1806 = vunpack.c.h.b16 %v534
    %v1807 = vunpack.c.l.b16 %v535
    %v1808 = vunpack.c.h.b16 %v535
    %v1809 = vunpack.c.l.b16 %v536
    %v1810 = vunpack.c.h.b16 %v536
    %v1811 = vunpack.c.l.b16 %v537
    %v1812 = vunpack.c.h.b16 %v537
    %v1813 = vunpack.c.l.b16 %v538
    %v1814 = vunpack.c.h.b16 %v538
    %v1815 = vunpack.c.l.b16 %v539
    %v1816 = vunpack.c.h.b16 %v539
    %v1817 = vunpack.c.l.b16 %v540
    %v1818 = vunpack.c.h.b16 %v540
    %v1819 = vunpack.c.l.b16 %v541
    %v1820 = vunpack.c.h.b16 %v541
    %v1821 = vunpack.c.l.b16 %v542
    %v1822 = vunpack.c.h.b16 %v542
    %v1823 = vunpack.c.l.b16 %v543
    %v1824 = vunpack.c.h.b16 %v543
    %v1825 = vunpack.c.l.b16 %v544
    %v1826 = vunpack.c.h.b16 %v544
    %v1827 = vunpack.c.l.b16 %v545
    %v1828 = vunpack.c.h.b16 %v545
    %v1829 = vunpack.c.l.b16 %v546
    %v1830 = vunpack.c.h.b16 %v546
    %v1831 = vunpack.c.l.b16 %v547
    %v1832 = vunpack.c.h.b16 %v547
    %v1833 = vunpack.c.l.b16 %v548
    %v1834 = vunpack.c.h.b16 %v548
    %v1835 = vunpack.c.l.b16 %v549
    %v1836 = vunpack.c.h.b16 %v549
    %v1837 = vunpack.c.l.b16 %v550
    %v1838 = vunpack.c.h.b16 %v550
    %v1839 = vunpack.c.l.b16 %v551
    %v1840 = vunpack.c.h.b16 %v551
    %v1841 = vunpack.c.l.b16 %v552
    %v1842 = vunpack.c.h.b16 %v552
    %v1843 = vunpack.c.l.b16 %v553
    %v1844 = vunpack.c.h.b16 %v553
    %v1845 = vunpack.c.l.b16 %v554
    %v1846 = vunpack.c.h.b16 %v554
    %v1847 = vunpack.c.l.b16 %v555
    %v1848 = vunpack.c.h.b16 %v555
    %v1849 = vunpack.c.l.b16 %v556
    %v1850 = vunpack.c.h.b16 %v556
    %v1851 = vunpack.c.l.b16 %v557
    %v1852 = vunpack.c.h.b16 %v557
    %v1853 = vunpack.c.l.b16 %v558
    %v1854 = vunpack.c.h.b16 %v558
    %v1855 = vunpack.c.l.b16 %v559
    %v1856 = vunpack.c.h.b16 %v559
    %v1857 = vunpack.c.l.b16 %v560
    %v1858 = vunpack.c.h.b16 %v560
    %v1859 = vunpack.c.l.b16 %v561
    %v1860 = vunpack.c.h.b16 %v561
    %v1861 = vunpack.c.l.b16 %v562
    %v1862 = vunpack.c.h.b16 %v562
    %v1863 = vunpack.c.l.b16 %v563
    %v1864 = vunpack.c.h.b16 %v563
    %v1865 = vunpack.c.l.b16 %v564
    %v1866 = vunpack.c.h.b16 %v564
    %v1867 = vunpack.c.l.b16 %v565
    %v1868 = vunpack.c.h.b16 %v565
    %v1869 = vunpack.c.l.b16 %v566
    %v1870 = vunpack.c.h.b16 %v566
    %v1871 = vunpack.c.l.b16 %v567
    %v1872 = vunpack.c.h.b16 %v567
    %v1873 = vunpack.c.l.b16 %v568
    %v1874 = vunpack.c.h.b16 %v568
    %v1875 = vunpack.c.l.b16 %v569
    %v1876 = vunpack.c.h.b16 %v569
    %v1877 = vunpack.c.l.b16 %v570
    %v1878 = vunpack.c.h.b16 %v570
    %v1879 = vunpack.c.l.b16 %v571
    %v1880 = vunpack.c.h.b16 %v571
    %v1881 = vunpack.c.l.b16 %v572
    %v1882 = vunpack.c.h.b16 %v572
    %v1883 = vunpack.c.l.b16 %v573
    %v1884 = vunpack.c.h.b16 %v573
    %v1885 = vunpack.c.l.b16 %v574
    %v1886 = vunpack.c.h.b16 %v574
    %v1887 = vunpack.c.l.b16 %v575
    %v1888 = vunpack.c.h.b16 %v575
    %v1889 = vunpack.c.l.b16 %v576
    %v1890 = vunpack.c.h.b16 %v576
    %v1891 = vunpack.c.l.b16 %v577
    %v1892 = vunpack.c.h.b16 %v577
    %v1893 = vunpack.c.l.b16 %v578
    %v1894 = vunpack.c.h.b16 %v578
    %v1895 = vunpack.c.l.b16 %v579
    %v1896 = vunpack.c.h.b16 %v579
    %v1897 = vunpack.c.l.b16 %v580
    %v1898 = vunpack.c.h.b16 %v580
    %v1899 = vunpack.c.l.b16 %v581
    %v1900 = vunpack.c.h.b16 %v581
    %v1901 = vunpack.c.l.b16 %v582
    %v1902 = vunpack.c.h.b16 %v582
    %v1903 = vunpack.c.l.b16 %v583
    %v1904 = vunpack.c.h.b16 %v583
    %v1905 = vunpack.c.l.b16 %v584
    %v1906 = vunpack.c.h.b16 %v584
    %v1907 = vunpack.c.l.b16 %v585
    %v1908 = vunpack.c.h.b16 %v585
    %v1909 = vunpack.c.l.b16 %v586
    %v1910 = vunpack.c.h.b16 %v586
    %v1911 = vunpack.c.l.b16 %v587
    %v1912 = vunpack.c.h.b16 %v587
    %v1913 = vunpack.c.l.b16 %v588
    %v1914 = vunpack.c.h.b16 %v588
    %v1915 = vunpack.c.l.b16 %v589
    %v1916 = vunpack.c.h.b16 %v589
    %v1917 = vunpack.c.l.b16 %v590
    %v1918 = vunpack.c.h.b16 %v590
    %v1919 = vunpack.c.l.b16 %v591
    %v1920 = vunpack.c.h.b16 %v591
    %v1921 = vunpack.c.l.b16 %v592
    %v1922 = vunpack.c.h.b16 %v592
    %v1923 = vunpack.c.l.b16 %v593
    %v1924 = vunpack.c.h.b16 %v593
    %v1925 = vunpack.c.l.b16 %v594
    %v1926 = vunpack.c.h.b16 %v594
    %v1927 = vunpack.c.l.b16 %v595
    %v1928 = vunpack.c.h.b16 %v595
    %v1929 = vunpack.c.l.b16 %v596
    %v1930 = vunpack.c.h.b16 %v596
    %v1931 = vunpack.c.l.b16 %v597
    %v1932 = vunpack.c.h.b16 %v597
    %v1933 = vunpack.c.l.b16 %v598
    %v1934 = vunpack.c.h.b16 %v598
    %v1935 = vunpack.c.l.b16 %v599
    %v1936 = vunpack.c.h.b16 %v599
    %v1937 = vunpack.c.l.b16 %v600
    %v1938 = vunpack.c.h.b16 %v600
    %v1939 = vunpack.c.l.b16 %v601
    %v1940 = vunpack.c.h.b16 %v601
    %v1941 = vunpack.c.l.b16 %v602
    %v1942 = vunpack.c.h.b16 %v602
    %v1943 = vunpack.c.l.b16 %v603
    %v1944 = vunpack.c.h.b16 %v603
    %v1945 = vunpack.c.l.b16 %v604
    %v1946 = vunpack.c.h.b16 %v604
    %v1947 = vunpack.c.l.b16 %v605
    %v1948 = vunpack.c.h.b16 %v605
    %v1949 = vunpack.c.l.b16 %v606
    %v1950 = vunpack.c.h.b16 %v606
    %v1951 = vunpack.c.l.b16 %v607
    %v1952 = vunpack.c.h.b16 %v607
    %v1953 = vunpack.c.l.b16 %v608
    %v1954 = vunpack.c.h.b16 %v608
    %v1955 = vunpack.c.l.b16 %v609
    %v1956 = vunpack.c.h.b16 %v609
    %v1957 = vunpack.c.l.b16 %v610
    %v1958 = vunpack.c.h.b16 %v610
    %v1959 = vunpack.c.l.b16 %v611
    %v1960 = vunpack.c.h.b16 %v611
    %v1961 = vunpack.c.l.b16 %v612
    %v1962 = vunpack.c.h.b16 %v612
    %v1963 = vunpack.c.l.b16 %v613
    %v1964 = vunpack.c.h.b16 %v613
    %v1965 = vunpack.c.l.b16 %v614
    %v1966 = vunpack.c.h.b16 %v614
    %v1967 = vunpack.c.l.b16 %v615
    %v1968 = vunpack.c.h.b16 %v615
    %v1969 = vunpack.c.l.b16 %v616
    %v1970 = vunpack.c.h.b16 %v616
    %v1971 = vunpack.c.l.b16 %v617
    %v1972 = vunpack.c.h.b16 %v617
    %v1973 = vunpack.c.l.b16 %v618
    %v1974 = vunpack.c.h.b16 %v618
    %v1975 = vunpack.c.l.b16 %v619
    %v1976 = vunpack.c.h.b16 %v619
    %v1977 = vunpack.c.l.b16 %v620
    %v1978 = vunpack.c.h.b16 %v620
    %v1979 = vunpack.c.l.b16 %v621
    %v1980 = vunpack.c.h.b16 %v621
    %v1981 = vunpack.c.l.b16 %v622
    %v1982 = vunpack.c.h.b16 %v622
    %v1983 = vunpack.c.l.b16 %v623
    %v1984 = vunpack.c.h.b16 %v623
    %v1985 = vunpack.c.l.b16 %v624
    %v1986 = vunpack.c.h.b16 %v624
    %v1987 = vpack.c.b16 %v1099, %v1091
    %v1988 = vpack.c.b16 %v1100, %v1092
    %v1989 = vpack.c.b16 %v1101, %v1093
    %v1990 = vpack.c.b16 %v1102, %v1094
    %v1991 = vpack.c.b16 %v1103, %v1095
    %v1992 = vpack.c.b16 %v1104, %v1096
    %v1993 = vpack.c.b16 %v1105, %v1097
    %v1994 = vpack.c.b16 %v1106, %v1098
    %v1995 = vpack.c.b16 %v1115, %v1107
    %v1996 = vpack.c.b16 %v1116, %v1108
    %v1997 = vpack.c.b16 %v1117, %v1109
    %v1998 = vpack.c.b16 %v1118, %v1110
    %v1999 = vpack.c.b16 %v1119, %v1111
    %v2000 = vpack.c.b16 %v1120, %v1112
    %v2001 = vpack.c.b16 %v1121, %v1113
    %v2002 = vpack.c.b16 %v1122, %v1114
    %v2003 = vpack.c.b16 %v1131, %v1123
    %v2004 = vpack.c.b16 %v1132, %v1124
    %v2005 = vpack.c.b16 %v1133, %v1125
    %v2006 = vpack.c.b16 %v1134, %v1126
    %v2007 = vpack.c.b16 %v1135, %v1127
    %v2008 = vpack.c.b16 %v1136, %v1128
    %v2009 = vpack.c.b16 %v1137, %v1129
    %v2010 = vpack.c.b16 %v1138, %v1130
    %v2011 = vpack.c.b16 %v1147, %v1139
    %v2012 = vpack.c.b16 %v1148, %v1140
    %v2013 = vpack.c.b16 %v1149, %v1141
    %v2014 = vpack.c.b16 %v1150, %v1142
    %v2015 = vpack.c.b16 %v1151, %v1143
    %v2016 = vpack.c.b16 %v1152, %v1144
    %v2017 = vpack.c.b16 %v1153, %v1145
    %v2018 = vpack.c.b16 %v1154, %v1146
    %v2019 = vpack.c.b16 %v1163, %v1155
    %v2020 = vpack.c.b16 %v1164, %v1156
    %v2021 = vpack.c.b16 %v1165, %v1157
    %v2022 = vpack.c.b16 %v1166, %v1158
    %v2023 = vpack.c.b16 %v1167, %v1159
    %v2024 = vpack.c.b16 %v1168, %v1160
    %v2025 = vpack.c.b16 %v1169, %v1161
    %v2026 = vpack.c.b16 %v1170, %v1162
    %v2027 = vpack.c.b16 %v1179, %v1171
    %v2028 = vpack.c.b16 %v1180, %v1172
    %v2029 = vpack.c.b16 %v1181, %v1173
    %v2030 = vpack.c.b16 %v1182, %v1174
    %v2031 = vpack.c.b16 %v1183, %v1175
    %v2032 = vpack.c.b16 %v1184, %v1176
    %v2033 = vpack.c.b16 %v1185, %v1177
    %v2034 = vpack.c.b16 %v1186, %v1178
    %v2035 = vpack.c.b16 %v1195, %v1187
    %v2036 = vpack.c.b16 %v1196, %v1188
    %v2037 = vpack.c.b16 %v1197, %v1189
    %v2038 = vpack.c.b16 %v1198, %v1190
    %v2039 = vpack.c.b16 %v1199, %v1191
    %v2040 = vpack.c.b16 %v1200, %v1192
    %v2041 = vpack.c.b16 %v1201, %v1193
    %v2042 = vpack.c.b16 %v1202, %v1194
    %v2043 = vpack.c.b16 %v1211, %v1203
    %v2044 = vpack.c.b16 %v1212, %v1204
    %v2045 = vpack.c.b16 %v1213, %v1205
    %v2046 = vpack.c.b16 %v1214, %v1206
    %v2047 = vpack.c.b16 %v1215, %v1207
    %v2048 = vpack.c.b16 %v1216, %v1208
    %v2049 = vpack.c.b16 %v1217, %v1209
    %v2050 = vpack.c.b16 %v1218, %v1210
    %v2051 = vpack.c.b16 %v1227, %v1219
    %v2052 = vpack.c.b16 %v1228, %v1220
    %v2053 = vpack.c.b16 %v1229, %v1221
    %v2054 = vpack.c.b16 %v1230, %v1222
    %v2055 = vpack.c.b16 %v1231, %v1223
    %v2056 = vpack.c.b16 %v1232, %v1224
    %v2057 = vpack.c.b16 %v1233, %v1225
    %v2058 = vpack.c.b16 %v1234, %v1226
    %v2059 = vpack.c.b16 %v1243, %v1235
    %v2060 = vpack.c.b16 %v1244, %v1236
    %v2061 = vpack.c.b16 %v1245, %v1237
    %v2062 = vpack.c.b16 %v1246, %v1238
    %v2063 = vpack.c.b16 %v1247, %v1239
    %v2064 = vpack.c.b16 %v1248, %v1240
    %v2065 = vpack.c.b16 %v1249, %v1241
    %v2066 = vpack.c.b16 %v1250, %v1242
    %v2067 = vpack.c.b16 %v1259, %v1251
    %v2068 = vpack.c.b16 %v1260, %v1252
    %v2069 = vpack.c.b16 %v1261, %v1253
    %v2070 = vpack.c.b16 %v1262, %v1254
    %v2071 = vpack.c.b16 %v1263, %v1255
    %v2072 = vpack.c.b16 %v1264, %v1256
    %v2073 = vpack.c.b16 %v1265, %v1257
    %v2074 = vpack.c.b16 %v1266, %v1258
    %v2075 = vpack.c.b16 %v1275, %v1267
    %v2076 = vpack.c.b16 %v1276, %v1268
    %v2077 = vpack.c.b16 %v1277, %v1269
    %v2078 = vpack.c.b16 %v1278, %v1270
    %v2079 = vpack.c.b16 %v1279, %v1271
    %v2080 = vpack.c.b16 %v1280, %v1272
    %v2081 = vpack.c.b16 %v1281, %v1273
    %v2082 = vpack.c.b16 %v1282, %v1274
    %v2083 = vpack.c.b16 %v1291, %v1283
    %v2084 = vpack.c.b16 %v1292, %v1284
    %v2085 = vpack.c.b16 %v1293, %v1285
    %v2086 = vpack.c.b16 %v1294, %v1286
    %v2087 = vpack.c.b16 %v1295, %v1287
    %v2088 = vpack.c.b16 %v1296, %v1288
    %v2089 = vpack.c.b16 %v1297, %v1289
    %v2090 = vpack.c.b16 %v1298, %v1290
    %v2091 = vpack.c.b16 %v1307, %v1299
    %v2092 = vpack.c.b16 %v1308, %v1300
    %v2093 = vpack.c.b16 %v1309, %v1301
    %v2094 = vpack.c.b16 %v1310, %v1302
    %v2095 = vpack.c.b16 %v1311, %v1303
    %v2096 = vpack.c.b16 %v1312, %v1304
    %v2097 = vpack.c.b16 %v1313, %v1305
    %v2098 = vpack.c.b16 %v1314, %v1306
    %v2099 = vpack.c.b16 %v1323, %v1315
    %v2100 = vpack.c.b16 %v1324, %v1316
    %v2101 = vpack.c.b16 %v1325, %v1317
    %v2102 = vpack.c.b16 %v1326, %v1318
    %v2103 = vpack.c.b16 %v1327, %v1319
    %v2104 = vpack.c.b16 %v1328, %v1320
    %v2105 = vpack.c.b16 %v1329, %v1321
    %v2106 = vpack.c.b16 %v1330, %v1322
    %v2107 = vpack.c.b16 %v1339, %v1331
    %v2108 = vpack.c.b16 %v1340, %v1332
    %v2109 = vpack.c.b16 %v1341, %v1333
    %v2110 = vpack.c.b16 %v1342, %v1334
    %v2111 = vpack.c.b16 %v1343, %v1335
    %v2112 = vpack.c.b16 %v1344, %v1336
    %v2113 = vpack.c.b16 %v1345, %v1337
    %v2114 = vpack.c.b16 %v1346, %v1338
    %v2115 = vpack.c.b16 %v1355, %v1347
    %v2116 = vpack.c.b16 %v1356, %v1348
    %v2117 = vpack.c.b16 %v1357, %v1349
    %v2118 = vpack.c.b16 %v1358, %v1350
    %v2119 = vpack.c.b16 %v1359, %v1351
    %v2120 = vpack.c.b16 %v1360, %v1352
    %v2121 = vpack.c.b16 %v1361, %v1353
    %v2122 = vpack.c.b16 %v1362, %v1354
    %v2123 = vpack.c.b16 %v1371, %v1363
    %v2124 = vpack.c.b16 %v1372, %v1364
    %v2125 = vpack.c.b16 %v1373, %v1365
    %v2126 = vpack.c.b16 %v1374, %v1366
    %v2127 = vpack.c.b16 %v1375, %v1367
    %v2128 = vpack.c.b16 %v1376, %v1368
    %v2129 = vpack.c.b16 %v1377, %v1369
    %v2130 = vpack.c.b16 %v1378, %v1370
    %v2131 = vpack.c.b16 %v1387, %v1379
    %v2132 = vpack.c.b16 %v1388, %v1380
    %v2133 = vpack.c.b16 %v1389, %v1381
    %v2134 = vpack.c.b16 %v1390, %v1382
    %v2135 = vpack.c.b16 %v1391, %v1383
    %v2136 = vpack.c.b16 %v1392, %v1384
    %v2137 = vpack.c.b16 %v1393, %v1385
    %v2138 = vpack.c.b16 %v1394, %v1386
    %v2139 = vpack.c.b16 %v1403, %v1395
    %v2140 = vpack.c.b16 %v1404, %v1396
    %v2141 = vpack.c.b16 %v1405, %v1397
    %v2142 = vpack.c.b16 %v1406, %v1398
    %v2143 = vpack.c.b16 %v1407, %v1399
    %v2144 = vpack.c.b16 %v1408, %v1400
    %v2145 = vpack.c.b16 %v1409, %v1401
    %v2146 = vpack.c.b16 %v1410, %v1402
    %v2147 = vpack.c.b16 %v1419, %v1411
    %v2148 = vpack.c.b16 %v1420, %v1412
    %v2149 = vpack.c.b16 %v1421, %v1413
    %v2150 = vpack.c.b16 %v1422, %v1414
    %v2151 = vpack.c.b16 %v1423, %v1415
    %v2152 = vpack.c.b16 %v1424, %v1416
    %v2153 = vpack.c.b16 %v1425, %v1417
    %v2154 = vpack.c.b16 %v1426, %v1418
    %v2155 = vpack.c.b16 %v1435, %v1427
    %v2156 = vpack.c.b16 %v1436, %v1428
    %v2157 = vpack.c.b16 %v1437, %v1429
    %v2158 = vpack.c.b16 %v1438, %v1430
    %v2159 = vpack.c.b16 %v1439, %v1431
    %v2160 = vpack.c.b16 %v1440, %v1432
    %v2161 = vpack.c.b16 %v1441, %v1433
    %v2162 = vpack.c.b16 %v1442, %v1434
    %v2163 = vpack.c.b16 %v1451, %v1443
    %v2164 = vpack.c.b16 %v1452, %v1444
    %v2165 = vpack.c.b16 %v1453, %v1445
    %v2166 = vpack.c.b16 %v1454, %v1446
    %v2167 = vpack.c.b16 %v1455, %v1447
    %v2168 = vpack.c.b16 %v1456, %v1448
    %v2169 = vpack.c.b16 %v1457, %v1449
    %v2170 = vpack.c.b16 %v1458, %v1450
    %v2171 = vpack.c.b16 %v1467, %v1459
    %v2172 = vpack.c.b16 %v1468, %v1460
    %v2173 = vpack.c.b16 %v1469, %v1461
    %v2174 = vpack.c.b16 %v1470, %v1462
    %v2175 = vpack.c.b16 %v1471, %v1463
    %v2176 = vpack.c.b16 %v1472, %v1464
    %v2177 = vpack.c.b16 %v1473, %v1465
    %v2178 = vpack.c.b16 %v1474, %v1466
    %v2179 = vpack.c.b16 %v1483, %v1475
    %v2180 = vpack.c.b16 %v1484, %v1476
    %v2181 = vpack.c.b16 %v1485, %v1477
    %v2182 = vpack.c.b16 %v1486, %v1478
    %v2183 = vpack.c.b16 %v1487, %v1479
    %v2184 = vpack.c.b16 %v1488, %v1480
    %v2185 = vpack.c.b16 %v1489, %v1481
    %v2186 = vpack.c.b16 %v1490, %v1482
    %v2187 = vpack.c.b16 %v1499, %v1491
    %v2188 = vpack.c.b16 %v1500, %v1492
    %v2189 = vpack.c.b16 %v1501, %v1493
    %v2190 = vpack.c.b16 %v1502, %v1494
    %v2191 = vpack.c.b16 %v1503, %v1495
    %v2192 = vpack.c.b16 %v1504, %v1496
    %v2193 = vpack.c.b16 %v1505, %v1497
    %v2194 = vpack.c.b16 %v1506, %v1498
    %v2195 = vpack.c.b16 %v1515, %v1507
    %v2196 = vpack.c.b16 %v1516, %v1508
    %v2197 = vpack.c.b16 %v1517, %v1509
    %v2198 = vpack.c.b16 %v1518, %v1510
    %v2199 = vpack.c.b16 %v1519, %v1511
    %v2200 = vpack.c.b16 %v1520, %v1512
    %v2201 = vpack.c.b16 %v1521, %v1513
    %v2202 = vpack.c.b16 %v1522, %v1514
    %v2203 = vpack.c.b16 %v1531, %v1523
    %v2204 = vpack.c.b16 %v1532, %v1524
    %v2205 = vpack.c.b16 %v1533, %v1525
    %v2206 = vpack.c.b16 %v1534, %v1526
    %v2207 = vpack.c.b16 %v1535, %v1527
    %v2208 = vpack.c.b16 %v1536, %v1528
    %v2209 = vpack.c.b16 %v1537, %v1529
    %v2210 = vpack.c.b16 %v1538, %v1530
    %v2211 = vpack.c.b16 %v1547, %v1539
    %v2212 = vpack.c.b16 %v1548, %v1540
    %v2213 = vpack.c.b16 %v1549, %v1541
    %v2214 = vpack.c.b16 %v1550, %v1542
    %v2215 = vpack.c.b16 %v1551, %v1543
    %v2216 = vpack.c.b16 %v1552, %v1544
    %v2217 = vpack.c.b16 %v1553, %v1545
    %v2218 = vpack.c.b16 %v1554, %v1546
    %v2219 = vpack.c.b16 %v1563, %v1555
    %v2220 = vpack.c.b16 %v1564, %v1556
    %v2221 = vpack.c.b16 %v1565, %v1557
    %v2222 = vpack.c.b16 %v1566, %v1558
    %v2223 = vpack.c.b16 %v1567, %v1559
    %v2224 = vpack.c.b16 %v1568, %v1560
    %v2225 = vpack.c.b16 %v1569, %v1561
    %v2226 = vpack.c.b16 %v1570, %v1562
    %v2227 = vpack.c.b16 %v1579, %v1571
    %v2228 = vpack.c.b16 %v1580, %v1572
    %v2229 = vpack.c.b16 %v1581, %v1573
    %v2230 = vpack.c.b16 %v1582, %v1574
    %v2231 = vpack.c.b16 %v1583, %v1575
    %v2232 = vpack.c.b16 %v1584, %v1576
    %v2233 = vpack.c.b16 %v1585, %v1577
    %v2234 = vpack.c.b16 %v1586, %v1578
    %v2235 = vpack.c.b16 %v1595, %v1587
    %v2236 = vpack.c.b16 %v1596, %v1588
    %v2237 = vpack.c.b16 %v1597, %v1589
    %v2238 = vpack.c.b16 %v1598, %v1590
    %v2239 = vpack.c.b16 %v1599, %v1591
    %v2240 = vpack.c.b16 %v1600, %v1592
    %v2241 = vpack.c.b16 %v1601, %v1593
    %v2242 = vpack.c.b16 %v1602, %v1594
    %v2243 = vpack.c.b16 %v1611, %v1603
    %v2244 = vpack.c.b16 %v1612, %v1604
    %v2245 = vpack.c.b16 %v1613, %v1605
    %v2246 = vpack.c.b16 %v1614, %v1606
    %v2247 = vpack.c.b16 %v1615, %v1607
    %v2248 = vpack.c.b16 %v1616, %v1608
    %v2249 = vpack.c.b16 %v1617, %v1609
    %v2250 = vpack.c.b16 %v1618, %v1610
    %v2251 = vpack.c.b16 %v1627, %v1619
    %v2252 = vpack.c.b16 %v1628, %v1620
    %v2253 = vpack.c.b16 %v1629, %v1621
    %v2254 = vpack.c.b16 %v1630, %v1622
    %v2255 = vpack.c.b16 %v1631, %v1623
    %v2256 = vpack.c.b16 %v1632, %v1624
    %v2257 = vpack.c.b16 %v1633, %v1625
    %v2258 = vpack.c.b16 %v1634, %v1626
    %v2259 = vpack.c.b16 %v1643, %v1635
    %v2260 = vpack.c.b16 %v1644, %v1636
    %v2261 = vpack.c.b16 %v1645, %v1637
    %v2262 = vpack.c.b16 %v1646, %v1638
    %v2263 = vpack.c.b16 %v1647, %v1639
    %v2264 = vpack.c.b16 %v1648, %v1640
    %v2265 = vpack.c.b16 %v1649, %v1641
    %v2266 = vpack.c.b16 %v1650, %v1642
    %v2267 = vpack.c.b16 %v1659, %v1651
    %v2268 = vpack.c.b16 %v1660, %v1652
    %v2269 = vpack.c.b16 %v1661, %v1653
    %v2270 = vpack.c.b16 %v1662, %v1654
    %v2271 = vpack.c.b16 %v1663, %v1655
    %v2272 = vpack.c.b16 %v1664, %v1656
    %v2273 = vpack.c.b16 %v1665, %v1657
    %v2274 = vpack.c.b16 %v1666, %v1658
    %v2275 = vpack.c.b16 %v1675, %v1667
    %v2276 = vpack.c.b16 %v1676, %v1668
    %v2277 = vpack.c.b16 %v1677, %v1669
    %v2278 = vpack.c.b16 %v1678, %v1670
    %v2279 = vpack.c.b16 %v1679, %v1671
    %v2280 = vpack.c.b16 %v1680, %v1672
    %v2281 = vpack.c.b16 %v1681, %v1673
    %v2282 = vpack.c.b16 %v1682, %v1674
    %v2283 = vpack.c.b16 %v1691, %v1683
    %v2284 = vpack.c.b16 %v1692, %v1684
    %v2285 = vpack.c.b16 %v1693, %v1685
    %v2286 = vpack.c.b16 %v1694, %v1686
    %v2287 = vpack.c.b16 %v1695, %v1687
    %v2288 = vpack.c.b16 %v1696, %v1688
    %v2289 = vpack.c.b16 %v1697, %v1689
    %v2290 = vpack.c.b16 %v1698, %v1690
    %v2291 = vpack.c.b16 %v1707, %v1699
    %v2292 = vpack.c.b16 %v1708, %v1700
    %v2293 = vpack.c.b16 %v1709, %v1701
    %v2294 = vpack.c.b16 %v1710, %v1702
    %v2295 = vpack.c.b16 %v1711, %v1703
    %v2296 = vpack.c.b16 %v1712, %v1704
    %v2297 = vpack.c.b16 %v1713, %v1705
    %v2298 = vpack.c.b16 %v1714, %v1706
    %v2299 = vpack.c.b16 %v1723, %v1715
    %v2300 = vpack.c.b16 %v1724, %v1716
    %v2301 = vpack.c.b16 %v1725, %v1717
    %v2302 = vpack.c.b16 %v1726, %v1718
    %v2303 = vpack.c.b16 %v1727, %v1719
    %v2304 = vpack.c.b16 %v1728, %v1720
    %v2305 = vpack.c.b16 %v1729, %v1721
    %v2306 = vpack.c.b16 %v1730, %v1722
    %v2307 = vpack.c.b16 %v1739, %v1731
    %v2308 = vpack.c.b16 %v1740, %v1732
    %v2309 = vpack.c.b16 %v1741, %v1733
    %v2310 = vpack.c.b16 %v1742, %v1734
    %v2311 = vpack.c.b16 %v1743, %v1735
    %v2312 = vpack.c.b16 %v1744, %v1736
    %v2313 = vpack.c.b16 %v1745, %v1737
    %v2314 = vpack.c.b16 %v1746, %v1738
    %v2315 = vpack.c.b16 %v1755, %v1747
    %v2316 = vpack.c.b16 %v1756, %v1748
    %v2317 = vpack.c.b16 %v1757, %v1749
    %v2318 = vpack.c.b16 %v1758, %v1750
    %v2319 = vpack.c.b16 %v1759, %v1751
    %v2320 = vpack.c.b16 %v1760, %v1752
    %v2321 = vpack.c.b16 %v1761, %v1753
    %v2322 = vpack.c.b16 %v1762, %v1754
    %v2323 = vpack.c.b16 %v1771, %v1763
    %v2324 = vpack.c.b16 %v1772, %v1764
    %v2325 = vpack.c.b16 %v1773, %v1765
    %v2326 = vpack.c.b16 %v1774, %v1766
    %v2327 = vpack.c.b16 %v1775, %v1767
    %v2328 = vpack.c.b16 %v1776, %v1768
    %v2329 = vpack.c.b16 %v1777, %v1769
    %v2330 = vpack.c.b16 %v1778, %v1770
    %v2331 = vpack.c.b16 %v1787, %v1779
    %v2332 = vpack.c.b16 %v1788, %v1780
    %v2333 = vpack.c.b16 %v1789, %v1781
    %v2334 = vpack.c.b16 %v1790, %v1782
    %v2335 = vpack.c.b16 %v1791, %v1783
    %v2336 = vpack.c.b16 %v1792, %v1784
    %v2337 = vpack.c.b16 %v1793, %v1785
    %v2338 = vpack.c.b16 %v1794, %v1786
    %v2339 = vpack.c.b16 %v1803, %v1795
    %v2340 = vpack.c.b16 %v1804, %v1796
    %v2341 = vpack.c.b16 %v1805, %v1797
    %v2342 = vpack.c.b16 %v1806, %v1798
    %v2343 = vpack.c.b16 %v1807, %v1799
    %v2344 = vpack.c.b16 %v1808, %v1800
    %v2345 = vpack.c.b16 %v1809, %v1801
    %v2346 = vpack.c.b16 %v1810, %v1802
    %v2347 = vpack.c.b16 %v1819, %v1811
    %v2348 = vpack.c.b16 %v1820, %v1812
    %v2349 = vpack.c.b16 %v1821, %v1813
    %v2350 = vpack.c.b16 %v1822, %v1814
    %v2351 = vpack.c.b16 %v1823, %v1815
    %v2352 = vpack.c.b16 %v1824, %v1816
    %v2353 = vpack.c.b16 %v1825, %v1817
    %v2354 = vpack.c.b16 %v1826, %v1818
    %v2355 = vpack.c.b16 %v1835, %v1827
    %v2356 = vpack.c.b16 %v1836, %v1828
    %v2357 = vpack.c.b16 %v1837, %v1829
    %v2358 = vpack.c.b16 %v1838, %v1830
    %v2359 = vpack.c.b16 %v1839, %v1831
    %v2360 = vpack.c.b16 %v1840, %v1832
    %v2361 = vpack.c.b16 %v1841, %v1833
    %v2362 = vpack.c.b16 %v1842, %v1834
    %v2363 = vpack.c.b16 %v1851, %v1843
    %v2364 = vpack.c.b16 %v1852, %v1844
    %v2365 = vpack.c.b16 %v1853, %v1845
    %v2366 = vpack.c.b16 %v1854, %v1846
    %v2367 = vpack.c.b16 %v1855, %v1847
    %v2368 = vpack.c.b16 %v1856, %v1848
    %v2369 = vpack.c.b16 %v1857, %v1849
    %v2370 = vpack.c.b16 %v1858, %v1850
    %v2371 = vpack.c.b16 %v1867, %v1859
    %v2372 = vpack.c.b16 %v1868, %v1860
    %v2373 = vpack.c.b16 %v1869, %v1861
    %v2374 = vpack.c.b16 %v1870, %v1862
    %v2375 = vpack.c.b16 %v1871, %v1863
    %v2376 = vpack.c.b16 %v1872, %v1864
    %v2377 = vpack.c.b16 %v1873, %v1865
    %v2378 = vpack.c.b16 %v1874, %v1866
    %v2379 = vpack.c.b16 %v1883, %v1875
    %v2380 = vpack.c.b16 %v1884, %v1876
    %v2381 = vpack.c.b16 %v1885, %v1877
    %v2382 = vpack.c.b16 %v1886, %v1878
    %v2383 = vpack.c.b16 %v1887, %v1879
    %v2384 = vpack.c.b16 %v1888, %v1880
    %v2385 = vpack.c.b16 %v1889, %v1881
    %v2386 = vpack.c.b16 %v1890, %v1882
    %v2387 = vpack.c.b16 %v1899, %v1891
    %v2388 = vpack.c.b16 %v1900, %v1892
    %v2389 = vpack.c.b16 %v1901, %v1893
    %v2390 = vpack.c.b16 %v1902, %v1894
    %v2391 = vpack.c.b16 %v1903, %v1895
    %v2392 = vpack.c.b16 %v1904, %v1896
    %v2393 = vpack.c.b16 %v1905, %v1897
    %v2394 = vpack.c.b16 %v1906, %v1898
    %v2395 = vpack.c.b16 %v1915, %v1907
    %v2396 = vpack.c.b16 %v1916, %v1908
    %v2397 = vpack.c.b16 %v1917, %v1909
    %v2398 = vpack.c.b16 %v1918, %v1910
    %v2399 = vpack.c.b16 %v1919, %v1911
    %v2400 = vpack.c.b16 %v1920, %v1912
    %v2401 = vpack.c.b16 %v1921, %v1913
    %v2402 = vpack.c.b16 %v1922, %v1914
    %v2403 = vpack.c.b16 %v1931, %v1923
    %v2404 = vpack.c.b16 %v1932, %v1924
    %v2405 = vpack.c.b16 %v1933, %v1925
    %v2406 = vpack.c.b16 %v1934, %v1926
    %v2407 = vpack.c.b16 %v1935, %v1927
    %v2408 = vpack.c.b16 %v1936, %v1928
    %v2409 = vpack.c.b16 %v1937, %v1929
    %v2410 = vpack.c.b16 %v1938, %v1930
    %v2411 = vpack.c.b16 %v1947, %v1939
    %v2412 = vpack.c.b16 %v1948, %v1940
    %v2413 = vpack.c.b16 %v1949, %v1941
    %v2414 = vpack.c.b16 %v1950, %v1942
    %v2415 = vpack.c.b16 %v1951, %v1943
    %v2416 = vpack.c.b16 %v1952, %v1944
    %v2417 = vpack.c.b16 %v1953, %v1945
    %v2418 = vpack.c.b16 %v1954, %v1946
    %v2419 = vpack.c.b16 %v1963, %v1955
    %v2420 = vpack.c.b16 %v1964, %v1956
    %v2421 = vpack.c.b16 %v1965, %v1957
    %v2422 = vpack.c.b16 %v1966, %v1958
    %v2423 = vpack.c.b16 %v1967, %v1959
    %v2424 = vpack.c.b16 %v1968, %v1960
    %v2425 = vpack.c.b16 %v1969, %v1961
    %v2426 = vpack.c.b16 %v1970, %v1962
    %v2427 = vpack.c.b16 %v1979, %v1971
    %v2428 = vpack.c.b16 %v1980, %v1972
    %v2429 = vpack.c.b16 %v1981, %v1973
    %v2430 = vpack.c.b16 %v1982, %v1974
    %v2431 = vpack.c.b16 %v1983, %v1975
    %v2432 = vpack.c.b16 %v1984, %v1976
    %v2433 = vpack.c.b16 %v1985, %v1977
    %v2434 = vpack.c.b16 %v1986, %v1978
    %2883 = vmatpush.bf16.msra.mxu0 %v2043
    %2884 = vmatpush.bf16.msra.mxu0 %v2035
    %2885 = vmatpush.bf16.msra.mxu0 %v2027
    %2886 = vmatpush.bf16.msra.mxu0 %v2019
    %2887 = vmatpush.bf16.msra.mxu0 %v2011
    %2888 = vmatpush.bf16.msra.mxu0 %v2003
    %2889 = vmatpush.bf16.msra.mxu0 %v1995
    %2890 = vmatpush.bf16.msra.mxu0 %v1987
    %2891 = vmatmul.bf16.gmra.mxu0 %v170
    %v2892 = vpop.f32.mrf.mxu0
    %v2893 = vadd.f32 %v627, %v2892
    %v2894 = vpop.f32.mrf.mxu0
    %2895 = vdwg.mxu0
    %2896 = vmatpush.bf16.msra.mxu0 %v2107
    %2897 = vmatpush.bf16.msra.mxu0 %v2099
    %2898 = vmatpush.bf16.msra.mxu0 %v2091
    %2899 = vmatpush.bf16.msra.mxu0 %v2083
    %2900 = vmatpush.bf16.msra.mxu0 %v2075
    %2901 = vmatpush.bf16.msra.mxu0 %v2067
    %2902 = vmatpush.bf16.msra.mxu0 %v2059
    %2903 = vmatpush.bf16.msra.mxu0 %v2051
    %2904 = vmatmul.bf16.gmra.mxu0 %v171
    %v2905 = vpop.f32.mrf.mxu0
    %v2906 = vadd.f32 %v2893, %v2905
    %v2907 = vpop.f32.mrf.mxu0
    %2908 = vdwg.mxu0
    %2909 = vmatpush.bf16.msra.mxu0 %v2171
    %2910 = vmatpush.bf16.msra.mxu0 %v2163
    %2911 = vmatpush.bf16.msra.mxu0 %v2155
    %2912 = vmatpush.bf16.msra.mxu0 %v2147
    %2913 = vmatpush.bf16.msra.mxu0 %v2139
    %2914 = vmatpush.bf16.msra.mxu0 %v2131
    %2915 = vmatpush.bf16.msra.mxu0 %v2123
    %2916 = vmatpush.bf16.msra.mxu0 %v2115
    %2917 = vmatmul.bf16.gmra.mxu0 %v172
    %v2918 = vpop.f32.mrf.mxu0
    %v2919 = vadd.f32 %v2906, %v2918
    %v2920 = vpop.f32.mrf.mxu0
    %2921 = vdwg.mxu0
    %2922 = vmatpush.bf16.msra.mxu0 %v2235
    %2923 = vmatpush.bf16.msra.mxu0 %v2227
    %2924 = vmatpush.bf16.msra.mxu0 %v2219
    %2925 = vmatpush.bf16.msra.mxu0 %v2211
    %2926 = vmatpush.bf16.msra.mxu0 %v2203
    %2927 = vmatpush.bf16.msra.mxu0 %v2195
    %2928 = vmatpush.bf16.msra.mxu0 %v2187
    %2929 = vmatpush.bf16.msra.mxu0 %v2179
    %2930 = vmatmul.bf16.gmra.mxu0 %v173
    %v2931 = vpop.f32.mrf.mxu0
    %v2932 = vadd.f32 %v2919, %v2931
    %v2933 = vpop.f32.mrf.mxu0
    %2934 = vdwg.mxu0
    %2935 = vmatpush.bf16.msra.mxu0 %v2299
    %2936 = vmatpush.bf16.msra.mxu0 %v2291
    %2937 = vmatpush.bf16.msra.mxu0 %v2283
    %2938 = vmatpush.bf16.msra.mxu0 %v2275
    %2939 = vmatpush.bf16.msra.mxu0 %v2267
    %2940 = vmatpush.bf16.msra.mxu0 %v2259
    %2941 = vmatpush.bf16.msra.mxu0 %v2251
    %2942 = vmatpush.bf16.msra.mxu0 %v2243
    %2943 = vmatmul.bf16.gmra.mxu0 %v174
    %v2944 = vpop.f32.mrf.mxu0
    %v2945 = vadd.f32 %v2932, %v2944
    %v2946 = vpop.f32.mrf.mxu0
    %2947 = vdwg.mxu0
    %2948 = vmatpush.bf16.msra.mxu0 %v2363
    %2949 = vmatpush.bf16.msra.mxu0 %v2355
    %2950 = vmatpush.bf16.msra.mxu0 %v2347
    %2951 = vmatpush.bf16.msra.mxu0 %v2339
    %2952 = vmatpush.bf16.msra.mxu0 %v2331
    %2953 = vmatpush.bf16.msra.mxu0 %v2323
    %2954 = vmatpush.bf16.msra.mxu0 %v2315
    %2955 = vmatpush.bf16.msra.mxu0 %v2307
    %2956 = vmatmul.bf16.gmra.mxu0 %v175
    %v2957 = vpop.f32.mrf.mxu0
    %v2958 = vadd.f32 %v2945, %v2957
    %v2959 = vpop.f32.mrf.mxu0
    %2960 = vdwg.mxu0
    %2961 = vmatpush.bf16.msra.mxu0 %v2427
    %2962 = vmatpush.bf16.msra.mxu0 %v2419
    %2963 = vmatpush.bf16.msra.mxu0 %v2411
    %2964 = vmatpush.bf16.msra.mxu0 %v2403
    %2965 = vmatpush.bf16.msra.mxu0 %v2395
    %2966 = vmatpush.bf16.msra.mxu0 %v2387
    %2967 = vmatpush.bf16.msra.mxu0 %v2379
    %2968 = vmatpush.bf16.msra.mxu0 %v2371
    %2969 = vmatmul.bf16.gmra.mxu0 %v176
    %v2970 = vpop.f32.mrf.mxu0
    %v2971 = vadd.f32 %v2958, %v2970
    %v2972 = vpop.f32.mrf.mxu0
    %2973 = vdwg.mxu0
    %2974 = vmatpush.bf16.msra.mxu0 %v2044
    %2975 = vmatpush.bf16.msra.mxu0 %v2036
    %2976 = vmatpush.bf16.msra.mxu0 %v2028
    %2977 = vmatpush.bf16.msra.mxu0 %v2020
    %2978 = vmatpush.bf16.msra.mxu0 %v2012
    %2979 = vmatpush.bf16.msra.mxu0 %v2004
    %2980 = vmatpush.bf16.msra.mxu0 %v1996
    %2981 = vmatpush.bf16.msra.mxu0 %v1988
    %2982 = vmatmul.bf16.gmra.mxu0 %v170
    %v2983 = vpop.f32.mrf.mxu0
    %v2984 = vadd.f32 %v628, %v2983
    %v2985 = vpop.f32.mrf.mxu0
    %2986 = vdwg.mxu0
    %2987 = vmatpush.bf16.msra.mxu0 %v2108
    %2988 = vmatpush.bf16.msra.mxu0 %v2100
    %2989 = vmatpush.bf16.msra.mxu0 %v2092
    %2990 = vmatpush.bf16.msra.mxu0 %v2084
    %2991 = vmatpush.bf16.msra.mxu0 %v2076
    %2992 = vmatpush.bf16.msra.mxu0 %v2068
    %2993 = vmatpush.bf16.msra.mxu0 %v2060
    %2994 = vmatpush.bf16.msra.mxu0 %v2052
    %2995 = vmatmul.bf16.gmra.mxu0 %v171
    %v2996 = vpop.f32.mrf.mxu0
    %v2997 = vadd.f32 %v2984, %v2996
    %v2998 = vpop.f32.mrf.mxu0
    %2999 = vdwg.mxu0
    %3000 = vmatpush.bf16.msra.mxu0 %v2172
    %3001 = vmatpush.bf16.msra.mxu0 %v2164
    %3002 = vmatpush.bf16.msra.mxu0 %v2156
    %3003 = vmatpush.bf16.msra.mxu0 %v2148
    %3004 = vmatpush.bf16.msra.mxu0 %v2140
    %3005 = vmatpush.bf16.msra.mxu0 %v2132
    %3006 = vmatpush.bf16.msra.mxu0 %v2124
    %3007 = vmatpush.bf16.msra.mxu0 %v2116
    %3008 = vmatmul.bf16.gmra.mxu0 %v172
    %v3009 = vpop.f32.mrf.mxu0
    %v3010 = vadd.f32 %v2997, %v3009
    %v3011 = vpop.f32.mrf.mxu0
    %3012 = vdwg.mxu0
    %3013 = vmatpush.bf16.msra.mxu0 %v2236
    %3014 = vmatpush.bf16.msra.mxu0 %v2228
    %3015 = vmatpush.bf16.msra.mxu0 %v2220
    %3016 = vmatpush.bf16.msra.mxu0 %v2212
    %3017 = vmatpush.bf16.msra.mxu0 %v2204
    %3018 = vmatpush.bf16.msra.mxu0 %v2196
    %3019 = vmatpush.bf16.msra.mxu0 %v2188
    %3020 = vmatpush.bf16.msra.mxu0 %v2180
    %3021 = vmatmul.bf16.gmra.mxu0 %v173
    %v3022 = vpop.f32.mrf.mxu0
    %v3023 = vadd.f32 %v3010, %v3022
    %v3024 = vpop.f32.mrf.mxu0
    %3025 = vdwg.mxu0
    %3026 = vmatpush.bf16.msra.mxu0 %v2300
    %3027 = vmatpush.bf16.msra.mxu0 %v2292
    %3028 = vmatpush.bf16.msra.mxu0 %v2284
    %3029 = vmatpush.bf16.msra.mxu0 %v2276
    %3030 = vmatpush.bf16.msra.mxu0 %v2268
    %3031 = vmatpush.bf16.msra.mxu0 %v2260
    %3032 = vmatpush.bf16.msra.mxu0 %v2252
    %3033 = vmatpush.bf16.msra.mxu0 %v2244
    %3034 = vmatmul.bf16.gmra.mxu0 %v174
    %v3035 = vpop.f32.mrf.mxu0
    %v3036 = vadd.f32 %v3023, %v3035
    %v3037 = vpop.f32.mrf.mxu0
    %3038 = vdwg.mxu0
    %3039 = vmatpush.bf16.msra.mxu0 %v2364
    %3040 = vmatpush.bf16.msra.mxu0 %v2356
    %3041 = vmatpush.bf16.msra.mxu0 %v2348
    %3042 = vmatpush.bf16.msra.mxu0 %v2340
    %3043 = vmatpush.bf16.msra.mxu0 %v2332
    %3044 = vmatpush.bf16.msra.mxu0 %v2324
    %3045 = vmatpush.bf16.msra.mxu0 %v2316
    %3046 = vmatpush.bf16.msra.mxu0 %v2308
    %3047 = vmatmul.bf16.gmra.mxu0 %v175
    %v3048 = vpop.f32.mrf.mxu0
    %v3049 = vadd.f32 %v3036, %v3048
    %v3050 = vpop.f32.mrf.mxu0
    %3051 = vdwg.mxu0
    %3052 = vmatpush.bf16.msra.mxu0 %v2428
    %3053 = vmatpush.bf16.msra.mxu0 %v2420
    %3054 = vmatpush.bf16.msra.mxu0 %v2412
    %3055 = vmatpush.bf16.msra.mxu0 %v2404
    %3056 = vmatpush.bf16.msra.mxu0 %v2396
    %3057 = vmatpush.bf16.msra.mxu0 %v2388
    %3058 = vmatpush.bf16.msra.mxu0 %v2380
    %3059 = vmatpush.bf16.msra.mxu0 %v2372
    %3060 = vmatmul.bf16.gmra.mxu0 %v176
    %v3061 = vpop.f32.mrf.mxu0
    %v3062 = vadd.f32 %v3049, %v3061
    %v3063 = vpop.f32.mrf.mxu0
    %3064 = vdwg.mxu0
    %3065 = vmatpush.bf16.msra.mxu0 %v2045
    %3066 = vmatpush.bf16.msra.mxu0 %v2037
    %3067 = vmatpush.bf16.msra.mxu0 %v2029
    %3068 = vmatpush.bf16.msra.mxu0 %v2021
    %3069 = vmatpush.bf16.msra.mxu0 %v2013
    %3070 = vmatpush.bf16.msra.mxu0 %v2005
    %3071 = vmatpush.bf16.msra.mxu0 %v1997
    %3072 = vmatpush.bf16.msra.mxu0 %v1989
    %3073 = vmatmul.bf16.gmra.mxu0 %v170
    %v3074 = vpop.f32.mrf.mxu0
    %v3075 = vadd.f32 %v629, %v3074
    %v3076 = vpop.f32.mrf.mxu0
    %3077 = vdwg.mxu0
    %3078 = vmatpush.bf16.msra.mxu0 %v2109
    %3079 = vmatpush.bf16.msra.mxu0 %v2101
    %3080 = vmatpush.bf16.msra.mxu0 %v2093
    %3081 = vmatpush.bf16.msra.mxu0 %v2085
    %3082 = vmatpush.bf16.msra.mxu0 %v2077
    %3083 = vmatpush.bf16.msra.mxu0 %v2069
    %3084 = vmatpush.bf16.msra.mxu0 %v2061
    %3085 = vmatpush.bf16.msra.mxu0 %v2053
    %3086 = vmatmul.bf16.gmra.mxu0 %v171
    %v3087 = vpop.f32.mrf.mxu0
    %v3088 = vadd.f32 %v3075, %v3087
    %v3089 = vpop.f32.mrf.mxu0
    %3090 = vdwg.mxu0
    %3091 = vmatpush.bf16.msra.mxu0 %v2173
    %3092 = vmatpush.bf16.msra.mxu0 %v2165
    %3093 = vmatpush.bf16.msra.mxu0 %v2157
    %3094 = vmatpush.bf16.msra.mxu0 %v2149
    %3095 = vmatpush.bf16.msra.mxu0 %v2141
    %3096 = vmatpush.bf16.msra.mxu0 %v2133
    %3097 = vmatpush.bf16.msra.mxu0 %v2125
    %3098 = vmatpush.bf16.msra.mxu0 %v2117
    %3099 = vmatmul.bf16.gmra.mxu0 %v172
    %v3100 = vpop.f32.mrf.mxu0
    %v3101 = vadd.f32 %v3088, %v3100
    %v3102 = vpop.f32.mrf.mxu0
    %3103 = vdwg.mxu0
    %3104 = vmatpush.bf16.msra.mxu0 %v2237
    %3105 = vmatpush.bf16.msra.mxu0 %v2229
    %3106 = vmatpush.bf16.msra.mxu0 %v2221
    %3107 = vmatpush.bf16.msra.mxu0 %v2213
    %3108 = vmatpush.bf16.msra.mxu0 %v2205
    %3109 = vmatpush.bf16.msra.mxu0 %v2197
    %3110 = vmatpush.bf16.msra.mxu0 %v2189
    %3111 = vmatpush.bf16.msra.mxu0 %v2181
    %3112 = vmatmul.bf16.gmra.mxu0 %v173
    %v3113 = vpop.f32.mrf.mxu0
    %v3114 = vadd.f32 %v3101, %v3113
    %v3115 = vpop.f32.mrf.mxu0
    %3116 = vdwg.mxu0
    %3117 = vmatpush.bf16.msra.mxu0 %v2301
    %3118 = vmatpush.bf16.msra.mxu0 %v2293
    %3119 = vmatpush.bf16.msra.mxu0 %v2285
    %3120 = vmatpush.bf16.msra.mxu0 %v2277
    %3121 = vmatpush.bf16.msra.mxu0 %v2269
    %3122 = vmatpush.bf16.msra.mxu0 %v2261
    %3123 = vmatpush.bf16.msra.mxu0 %v2253
    %3124 = vmatpush.bf16.msra.mxu0 %v2245
    %3125 = vmatmul.bf16.gmra.mxu0 %v174
    %v3126 = vpop.f32.mrf.mxu0
    %v3127 = vadd.f32 %v3114, %v3126
    %v3128 = vpop.f32.mrf.mxu0
    %3129 = vdwg.mxu0
    %3130 = vmatpush.bf16.msra.mxu0 %v2365
    %3131 = vmatpush.bf16.msra.mxu0 %v2357
    %3132 = vmatpush.bf16.msra.mxu0 %v2349
    %3133 = vmatpush.bf16.msra.mxu0 %v2341
    %3134 = vmatpush.bf16.msra.mxu0 %v2333
    %3135 = vmatpush.bf16.msra.mxu0 %v2325
    %3136 = vmatpush.bf16.msra.mxu0 %v2317
    %3137 = vmatpush.bf16.msra.mxu0 %v2309
    %3138 = vmatmul.bf16.gmra.mxu0 %v175
    %v3139 = vpop.f32.mrf.mxu0
    %v3140 = vadd.f32 %v3127, %v3139
    %v3141 = vpop.f32.mrf.mxu0
    %3142 = vdwg.mxu0
    %3143 = vmatpush.bf16.msra.mxu0 %v2429
    %3144 = vmatpush.bf16.msra.mxu0 %v2421
    %3145 = vmatpush.bf16.msra.mxu0 %v2413
    %3146 = vmatpush.bf16.msra.mxu0 %v2405
    %3147 = vmatpush.bf16.msra.mxu0 %v2397
    %3148 = vmatpush.bf16.msra.mxu0 %v2389
    %3149 = vmatpush.bf16.msra.mxu0 %v2381
    %3150 = vmatpush.bf16.msra.mxu0 %v2373
    %3151 = vmatmul.bf16.gmra.mxu0 %v176
    %v3152 = vpop.f32.mrf.mxu0
    %v3153 = vadd.f32 %v3140, %v3152
    %v3154 = vpop.f32.mrf.mxu0
    %3155 = vdwg.mxu0
    %3156 = vmatpush.bf16.msra.mxu0 %v2046
    %3157 = vmatpush.bf16.msra.mxu0 %v2038
    %3158 = vmatpush.bf16.msra.mxu0 %v2030
    %3159 = vmatpush.bf16.msra.mxu0 %v2022
    %3160 = vmatpush.bf16.msra.mxu0 %v2014
    %3161 = vmatpush.bf16.msra.mxu0 %v2006
    %3162 = vmatpush.bf16.msra.mxu0 %v1998
    %3163 = vmatpush.bf16.msra.mxu0 %v1990
    %3164 = vmatmul.bf16.gmra.mxu0 %v170
    %v3165 = vpop.f32.mrf.mxu0
    %v3166 = vadd.f32 %v630, %v3165
    %v3167 = vpop.f32.mrf.mxu0
    %3168 = vdwg.mxu0
    %3169 = vmatpush.bf16.msra.mxu0 %v2110
    %3170 = vmatpush.bf16.msra.mxu0 %v2102
    %3171 = vmatpush.bf16.msra.mxu0 %v2094
    %3172 = vmatpush.bf16.msra.mxu0 %v2086
    %3173 = vmatpush.bf16.msra.mxu0 %v2078
    %3174 = vmatpush.bf16.msra.mxu0 %v2070
    %3175 = vmatpush.bf16.msra.mxu0 %v2062
    %3176 = vmatpush.bf16.msra.mxu0 %v2054
    %3177 = vmatmul.bf16.gmra.mxu0 %v171
    %v3178 = vpop.f32.mrf.mxu0
    %v3179 = vadd.f32 %v3166, %v3178
    %v3180 = vpop.f32.mrf.mxu0
    %3181 = vdwg.mxu0
    %3182 = vmatpush.bf16.msra.mxu0 %v2174
    %3183 = vmatpush.bf16.msra.mxu0 %v2166
    %3184 = vmatpush.bf16.msra.mxu0 %v2158
    %3185 = vmatpush.bf16.msra.mxu0 %v2150
    %3186 = vmatpush.bf16.msra.mxu0 %v2142
    %3187 = vmatpush.bf16.msra.mxu0 %v2134
    %3188 = vmatpush.bf16.msra.mxu0 %v2126
    %3189 = vmatpush.bf16.msra.mxu0 %v2118
    %3190 = vmatmul.bf16.gmra.mxu0 %v172
    %v3191 = vpop.f32.mrf.mxu0
    %v3192 = vadd.f32 %v3179, %v3191
    %v3193 = vpop.f32.mrf.mxu0
    %3194 = vdwg.mxu0
    %3195 = vmatpush.bf16.msra.mxu0 %v2238
    %3196 = vmatpush.bf16.msra.mxu0 %v2230
    %3197 = vmatpush.bf16.msra.mxu0 %v2222
    %3198 = vmatpush.bf16.msra.mxu0 %v2214
    %3199 = vmatpush.bf16.msra.mxu0 %v2206
    %3200 = vmatpush.bf16.msra.mxu0 %v2198
    %3201 = vmatpush.bf16.msra.mxu0 %v2190
    %3202 = vmatpush.bf16.msra.mxu0 %v2182
    %3203 = vmatmul.bf16.gmra.mxu0 %v173
    %v3204 = vpop.f32.mrf.mxu0
    %v3205 = vadd.f32 %v3192, %v3204
    %v3206 = vpop.f32.mrf.mxu0
    %3207 = vdwg.mxu0
    %3208 = vmatpush.bf16.msra.mxu0 %v2302
    %3209 = vmatpush.bf16.msra.mxu0 %v2294
    %3210 = vmatpush.bf16.msra.mxu0 %v2286
    %3211 = vmatpush.bf16.msra.mxu0 %v2278
    %3212 = vmatpush.bf16.msra.mxu0 %v2270
    %3213 = vmatpush.bf16.msra.mxu0 %v2262
    %3214 = vmatpush.bf16.msra.mxu0 %v2254
    %3215 = vmatpush.bf16.msra.mxu0 %v2246
    %3216 = vmatmul.bf16.gmra.mxu0 %v174
    %v3217 = vpop.f32.mrf.mxu0
    %v3218 = vadd.f32 %v3205, %v3217
    %v3219 = vpop.f32.mrf.mxu0
    %3220 = vdwg.mxu0
    %3221 = vmatpush.bf16.msra.mxu0 %v2366
    %3222 = vmatpush.bf16.msra.mxu0 %v2358
    %3223 = vmatpush.bf16.msra.mxu0 %v2350
    %3224 = vmatpush.bf16.msra.mxu0 %v2342
    %3225 = vmatpush.bf16.msra.mxu0 %v2334
    %3226 = vmatpush.bf16.msra.mxu0 %v2326
    %3227 = vmatpush.bf16.msra.mxu0 %v2318
    %3228 = vmatpush.bf16.msra.mxu0 %v2310
    %3229 = vmatmul.bf16.gmra.mxu0 %v175
    %v3230 = vpop.f32.mrf.mxu0
    %v3231 = vadd.f32 %v3218, %v3230
    %v3232 = vpop.f32.mrf.mxu0
    %3233 = vdwg.mxu0
    %3234 = vmatpush.bf16.msra.mxu0 %v2430
    %3235 = vmatpush.bf16.msra.mxu0 %v2422
    %3236 = vmatpush.bf16.msra.mxu0 %v2414
    %3237 = vmatpush.bf16.msra.mxu0 %v2406
    %3238 = vmatpush.bf16.msra.mxu0 %v2398
    %3239 = vmatpush.bf16.msra.mxu0 %v2390
    %3240 = vmatpush.bf16.msra.mxu0 %v2382
    %3241 = vmatpush.bf16.msra.mxu0 %v2374
    %3242 = vmatmul.bf16.gmra.mxu0 %v176
    %v3243 = vpop.f32.mrf.mxu0
    %v3244 = vadd.f32 %v3231, %v3243
    %v3245 = vpop.f32.mrf.mxu0
    %3246 = vdwg.mxu0
    %3247 = vmatpush.bf16.msra.mxu0 %v2047
    %3248 = vmatpush.bf16.msra.mxu0 %v2039
    %3249 = vmatpush.bf16.msra.mxu0 %v2031
    %3250 = vmatpush.bf16.msra.mxu0 %v2023
    %3251 = vmatpush.bf16.msra.mxu0 %v2015
    %3252 = vmatpush.bf16.msra.mxu0 %v2007
    %3253 = vmatpush.bf16.msra.mxu0 %v1999
    %3254 = vmatpush.bf16.msra.mxu0 %v1991
    %3255 = vmatmul.bf16.gmra.mxu0 %v170
    %v3256 = vpop.f32.mrf.mxu0
    %v3257 = vadd.f32 %v631, %v3256
    %v3258 = vpop.f32.mrf.mxu0
    %3259 = vdwg.mxu0
    %3260 = vmatpush.bf16.msra.mxu0 %v2111
    %3261 = vmatpush.bf16.msra.mxu0 %v2103
    %3262 = vmatpush.bf16.msra.mxu0 %v2095
    %3263 = vmatpush.bf16.msra.mxu0 %v2087
    %3264 = vmatpush.bf16.msra.mxu0 %v2079
    %3265 = vmatpush.bf16.msra.mxu0 %v2071
    %3266 = vmatpush.bf16.msra.mxu0 %v2063
    %3267 = vmatpush.bf16.msra.mxu0 %v2055
    %3268 = vmatmul.bf16.gmra.mxu0 %v171
    %v3269 = vpop.f32.mrf.mxu0
    %v3270 = vadd.f32 %v3257, %v3269
    %v3271 = vpop.f32.mrf.mxu0
    %3272 = vdwg.mxu0
    %3273 = vmatpush.bf16.msra.mxu0 %v2175
    %3274 = vmatpush.bf16.msra.mxu0 %v2167
    %3275 = vmatpush.bf16.msra.mxu0 %v2159
    %3276 = vmatpush.bf16.msra.mxu0 %v2151
    %3277 = vmatpush.bf16.msra.mxu0 %v2143
    %3278 = vmatpush.bf16.msra.mxu0 %v2135
    %3279 = vmatpush.bf16.msra.mxu0 %v2127
    %3280 = vmatpush.bf16.msra.mxu0 %v2119
    %3281 = vmatmul.bf16.gmra.mxu0 %v172
    %v3282 = vpop.f32.mrf.mxu0
    %v3283 = vadd.f32 %v3270, %v3282
    %v3284 = vpop.f32.mrf.mxu0
    %3285 = vdwg.mxu0
    %3286 = vmatpush.bf16.msra.mxu0 %v2239
    %3287 = vmatpush.bf16.msra.mxu0 %v2231
    %3288 = vmatpush.bf16.msra.mxu0 %v2223
    %3289 = vmatpush.bf16.msra.mxu0 %v2215
    %3290 = vmatpush.bf16.msra.mxu0 %v2207
    %3291 = vmatpush.bf16.msra.mxu0 %v2199
    %3292 = vmatpush.bf16.msra.mxu0 %v2191
    %3293 = vmatpush.bf16.msra.mxu0 %v2183
    %3294 = vmatmul.bf16.gmra.mxu0 %v173
    %v3295 = vpop.f32.mrf.mxu0
    %v3296 = vadd.f32 %v3283, %v3295
    %v3297 = vpop.f32.mrf.mxu0
    %3298 = vdwg.mxu0
    %3299 = vmatpush.bf16.msra.mxu0 %v2303
    %3300 = vmatpush.bf16.msra.mxu0 %v2295
    %3301 = vmatpush.bf16.msra.mxu0 %v2287
    %3302 = vmatpush.bf16.msra.mxu0 %v2279
    %3303 = vmatpush.bf16.msra.mxu0 %v2271
    %3304 = vmatpush.bf16.msra.mxu0 %v2263
    %3305 = vmatpush.bf16.msra.mxu0 %v2255
    %3306 = vmatpush.bf16.msra.mxu0 %v2247
    %3307 = vmatmul.bf16.gmra.mxu0 %v174
    %v3308 = vpop.f32.mrf.mxu0
    %v3309 = vadd.f32 %v3296, %v3308
    %v3310 = vpop.f32.mrf.mxu0
    %3311 = vdwg.mxu0
    %3312 = vmatpush.bf16.msra.mxu0 %v2367
    %3313 = vmatpush.bf16.msra.mxu0 %v2359
    %3314 = vmatpush.bf16.msra.mxu0 %v2351
    %3315 = vmatpush.bf16.msra.mxu0 %v2343
    %3316 = vmatpush.bf16.msra.mxu0 %v2335
    %3317 = vmatpush.bf16.msra.mxu0 %v2327
    %3318 = vmatpush.bf16.msra.mxu0 %v2319
    %3319 = vmatpush.bf16.msra.mxu0 %v2311
    %3320 = vmatmul.bf16.gmra.mxu0 %v175
    %v3321 = vpop.f32.mrf.mxu0
    %v3322 = vadd.f32 %v3309, %v3321
    %v3323 = vpop.f32.mrf.mxu0
    %3324 = vdwg.mxu0
    %3325 = vmatpush.bf16.msra.mxu0 %v2431
    %3326 = vmatpush.bf16.msra.mxu0 %v2423
    %3327 = vmatpush.bf16.msra.mxu0 %v2415
    %3328 = vmatpush.bf16.msra.mxu0 %v2407
    %3329 = vmatpush.bf16.msra.mxu0 %v2399
    %3330 = vmatpush.bf16.msra.mxu0 %v2391
    %3331 = vmatpush.bf16.msra.mxu0 %v2383
    %3332 = vmatpush.bf16.msra.mxu0 %v2375
    %3333 = vmatmul.bf16.gmra.mxu0 %v176
    %v3334 = vpop.f32.mrf.mxu0
    %v3335 = vadd.f32 %v3322, %v3334
    %v3336 = vpop.f32.mrf.mxu0
    %3337 = vdwg.mxu0
    %3338 = vmatpush.bf16.msra.mxu0 %v2048
    %3339 = vmatpush.bf16.msra.mxu0 %v2040
    %3340 = vmatpush.bf16.msra.mxu0 %v2032
    %3341 = vmatpush.bf16.msra.mxu0 %v2024
    %3342 = vmatpush.bf16.msra.mxu0 %v2016
    %3343 = vmatpush.bf16.msra.mxu0 %v2008
    %3344 = vmatpush.bf16.msra.mxu0 %v2000
    %3345 = vmatpush.bf16.msra.mxu0 %v1992
    %3346 = vmatmul.bf16.gmra.mxu0 %v170
    %v3347 = vpop.f32.mrf.mxu0
    %v3348 = vadd.f32 %v632, %v3347
    %v3349 = vpop.f32.mrf.mxu0
    %3350 = vdwg.mxu0
    %3351 = vmatpush.bf16.msra.mxu0 %v2112
    %3352 = vmatpush.bf16.msra.mxu0 %v2104
    %3353 = vmatpush.bf16.msra.mxu0 %v2096
    %3354 = vmatpush.bf16.msra.mxu0 %v2088
    %3355 = vmatpush.bf16.msra.mxu0 %v2080
    %3356 = vmatpush.bf16.msra.mxu0 %v2072
    %3357 = vmatpush.bf16.msra.mxu0 %v2064
    %3358 = vmatpush.bf16.msra.mxu0 %v2056
    %3359 = vmatmul.bf16.gmra.mxu0 %v171
    %v3360 = vpop.f32.mrf.mxu0
    %v3361 = vadd.f32 %v3348, %v3360
    %v3362 = vpop.f32.mrf.mxu0
    %3363 = vdwg.mxu0
    %3364 = vmatpush.bf16.msra.mxu0 %v2176
    %3365 = vmatpush.bf16.msra.mxu0 %v2168
    %3366 = vmatpush.bf16.msra.mxu0 %v2160
    %3367 = vmatpush.bf16.msra.mxu0 %v2152
    %3368 = vmatpush.bf16.msra.mxu0 %v2144
    %3369 = vmatpush.bf16.msra.mxu0 %v2136
    %3370 = vmatpush.bf16.msra.mxu0 %v2128
    %3371 = vmatpush.bf16.msra.mxu0 %v2120
    %3372 = vmatmul.bf16.gmra.mxu0 %v172
    %v3373 = vpop.f32.mrf.mxu0
    %v3374 = vadd.f32 %v3361, %v3373
    %v3375 = vpop.f32.mrf.mxu0
    %3376 = vdwg.mxu0
    %3377 = vmatpush.bf16.msra.mxu0 %v2240
    %3378 = vmatpush.bf16.msra.mxu0 %v2232
    %3379 = vmatpush.bf16.msra.mxu0 %v2224
    %3380 = vmatpush.bf16.msra.mxu0 %v2216
    %3381 = vmatpush.bf16.msra.mxu0 %v2208
    %3382 = vmatpush.bf16.msra.mxu0 %v2200
    %3383 = vmatpush.bf16.msra.mxu0 %v2192
    %3384 = vmatpush.bf16.msra.mxu0 %v2184
    %3385 = vmatmul.bf16.gmra.mxu0 %v173
    %v3386 = vpop.f32.mrf.mxu0
    %v3387 = vadd.f32 %v3374, %v3386
    %v3388 = vpop.f32.mrf.mxu0
    %3389 = vdwg.mxu0
    %3390 = vmatpush.bf16.msra.mxu0 %v2304
    %3391 = vmatpush.bf16.msra.mxu0 %v2296
    %3392 = vmatpush.bf16.msra.mxu0 %v2288
    %3393 = vmatpush.bf16.msra.mxu0 %v2280
    %3394 = vmatpush.bf16.msra.mxu0 %v2272
    %3395 = vmatpush.bf16.msra.mxu0 %v2264
    %3396 = vmatpush.bf16.msra.mxu0 %v2256
    %3397 = vmatpush.bf16.msra.mxu0 %v2248
    %3398 = vmatmul.bf16.gmra.mxu0 %v174
    %v3399 = vpop.f32.mrf.mxu0
    %v3400 = vadd.f32 %v3387, %v3399
    %v3401 = vpop.f32.mrf.mxu0
    %3402 = vdwg.mxu0
    %3403 = vmatpush.bf16.msra.mxu0 %v2368
    %3404 = vmatpush.bf16.msra.mxu0 %v2360
    %3405 = vmatpush.bf16.msra.mxu0 %v2352
    %3406 = vmatpush.bf16.msra.mxu0 %v2344
    %3407 = vmatpush.bf16.msra.mxu0 %v2336
    %3408 = vmatpush.bf16.msra.mxu0 %v2328
    %3409 = vmatpush.bf16.msra.mxu0 %v2320
    %3410 = vmatpush.bf16.msra.mxu0 %v2312
    %3411 = vmatmul.bf16.gmra.mxu0 %v175
    %v3412 = vpop.f32.mrf.mxu0
    %v3413 = vadd.f32 %v3400, %v3412
    %v3414 = vpop.f32.mrf.mxu0
    %3415 = vdwg.mxu0
    %3416 = vmatpush.bf16.msra.mxu0 %v2432
    %3417 = vmatpush.bf16.msra.mxu0 %v2424
    %3418 = vmatpush.bf16.msra.mxu0 %v2416
    %3419 = vmatpush.bf16.msra.mxu0 %v2408
    %3420 = vmatpush.bf16.msra.mxu0 %v2400
    %3421 = vmatpush.bf16.msra.mxu0 %v2392
    %3422 = vmatpush.bf16.msra.mxu0 %v2384
    %3423 = vmatpush.bf16.msra.mxu0 %v2376
    %3424 = vmatmul.bf16.gmra.mxu0 %v176
    %v3425 = vpop.f32.mrf.mxu0
    %v3426 = vadd.f32 %v3413, %v3425
    %v3427 = vpop.f32.mrf.mxu0
    %3428 = vdwg.mxu0
    %3429 = vmatpush.bf16.msra.mxu0 %v2049
    %3430 = vmatpush.bf16.msra.mxu0 %v2041
    %3431 = vmatpush.bf16.msra.mxu0 %v2033
    %3432 = vmatpush.bf16.msra.mxu0 %v2025
    %3433 = vmatpush.bf16.msra.mxu0 %v2017
    %3434 = vmatpush.bf16.msra.mxu0 %v2009
    %3435 = vmatpush.bf16.msra.mxu0 %v2001
    %3436 = vmatpush.bf16.msra.mxu0 %v1993
    %3437 = vmatmul.bf16.gmra.mxu0 %v170
    %v3438 = vpop.f32.mrf.mxu0
    %v3439 = vadd.f32 %v633, %v3438
    %v3440 = vpop.f32.mrf.mxu0
    %3441 = vdwg.mxu0
    %3442 = vmatpush.bf16.msra.mxu0 %v2113
    %3443 = vmatpush.bf16.msra.mxu0 %v2105
    %3444 = vmatpush.bf16.msra.mxu0 %v2097
    %3445 = vmatpush.bf16.msra.mxu0 %v2089
    %3446 = vmatpush.bf16.msra.mxu0 %v2081
    %3447 = vmatpush.bf16.msra.mxu0 %v2073
    %3448 = vmatpush.bf16.msra.mxu0 %v2065
    %3449 = vmatpush.bf16.msra.mxu0 %v2057
    %3450 = vmatmul.bf16.gmra.mxu0 %v171
    %v3451 = vpop.f32.mrf.mxu0
    %v3452 = vadd.f32 %v3439, %v3451
    %v3453 = vpop.f32.mrf.mxu0
    %3454 = vdwg.mxu0
    %3455 = vmatpush.bf16.msra.mxu0 %v2177
    %3456 = vmatpush.bf16.msra.mxu0 %v2169
    %3457 = vmatpush.bf16.msra.mxu0 %v2161
    %3458 = vmatpush.bf16.msra.mxu0 %v2153
    %3459 = vmatpush.bf16.msra.mxu0 %v2145
    %3460 = vmatpush.bf16.msra.mxu0 %v2137
    %3461 = vmatpush.bf16.msra.mxu0 %v2129
    %3462 = vmatpush.bf16.msra.mxu0 %v2121
    %3463 = vmatmul.bf16.gmra.mxu0 %v172
    %v3464 = vpop.f32.mrf.mxu0
    %v3465 = vadd.f32 %v3452, %v3464
    %v3466 = vpop.f32.mrf.mxu0
    %3467 = vdwg.mxu0
    %3468 = vmatpush.bf16.msra.mxu0 %v2241
    %3469 = vmatpush.bf16.msra.mxu0 %v2233
    %3470 = vmatpush.bf16.msra.mxu0 %v2225
    %3471 = vmatpush.bf16.msra.mxu0 %v2217
    %3472 = vmatpush.bf16.msra.mxu0 %v2209
    %3473 = vmatpush.bf16.msra.mxu0 %v2201
    %3474 = vmatpush.bf16.msra.mxu0 %v2193
    %3475 = vmatpush.bf16.msra.mxu0 %v2185
    %3476 = vmatmul.bf16.gmra.mxu0 %v173
    %v3477 = vpop.f32.mrf.mxu0
    %v3478 = vadd.f32 %v3465, %v3477
    %v3479 = vpop.f32.mrf.mxu0
    %3480 = vdwg.mxu0
    %3481 = vmatpush.bf16.msra.mxu0 %v2305
    %3482 = vmatpush.bf16.msra.mxu0 %v2297
    %3483 = vmatpush.bf16.msra.mxu0 %v2289
    %3484 = vmatpush.bf16.msra.mxu0 %v2281
    %3485 = vmatpush.bf16.msra.mxu0 %v2273
    %3486 = vmatpush.bf16.msra.mxu0 %v2265
    %3487 = vmatpush.bf16.msra.mxu0 %v2257
    %3488 = vmatpush.bf16.msra.mxu0 %v2249
    %3489 = vmatmul.bf16.gmra.mxu0 %v174
    %v3490 = vpop.f32.mrf.mxu0
    %v3491 = vadd.f32 %v3478, %v3490
    %v3492 = vpop.f32.mrf.mxu0
    %3493 = vdwg.mxu0
    %3494 = vmatpush.bf16.msra.mxu0 %v2369
    %3495 = vmatpush.bf16.msra.mxu0 %v2361
    %3496 = vmatpush.bf16.msra.mxu0 %v2353
    %3497 = vmatpush.bf16.msra.mxu0 %v2345
    %3498 = vmatpush.bf16.msra.mxu0 %v2337
    %3499 = vmatpush.bf16.msra.mxu0 %v2329
    %3500 = vmatpush.bf16.msra.mxu0 %v2321
    %3501 = vmatpush.bf16.msra.mxu0 %v2313
    %3502 = vmatmul.bf16.gmra.mxu0 %v175
    %v3503 = vpop.f32.mrf.mxu0
    %v3504 = vadd.f32 %v3491, %v3503
    %v3505 = vpop.f32.mrf.mxu0
    %3506 = vdwg.mxu0
    %3507 = vmatpush.bf16.msra.mxu0 %v2433
    %3508 = vmatpush.bf16.msra.mxu0 %v2425
    %3509 = vmatpush.bf16.msra.mxu0 %v2417
    %3510 = vmatpush.bf16.msra.mxu0 %v2409
    %3511 = vmatpush.bf16.msra.mxu0 %v2401
    %3512 = vmatpush.bf16.msra.mxu0 %v2393
    %3513 = vmatpush.bf16.msra.mxu0 %v2385
    %3514 = vmatpush.bf16.msra.mxu0 %v2377
    %3515 = vmatmul.bf16.gmra.mxu0 %v176
    %v3516 = vpop.f32.mrf.mxu0
    %v3517 = vadd.f32 %v3504, %v3516
    %v3518 = vpop.f32.mrf.mxu0
    %3519 = vdwg.mxu0
    %3520 = vmatpush.bf16.msra.mxu0 %v2050
    %3521 = vmatpush.bf16.msra.mxu0 %v2042
    %3522 = vmatpush.bf16.msra.mxu0 %v2034
    %3523 = vmatpush.bf16.msra.mxu0 %v2026
    %3524 = vmatpush.bf16.msra.mxu0 %v2018
    %3525 = vmatpush.bf16.msra.mxu0 %v2010
    %3526 = vmatpush.bf16.msra.mxu0 %v2002
    %3527 = vmatpush.bf16.msra.mxu0 %v1994
    %3528 = vmatmul.bf16.gmra.mxu0 %v170
    %v3529 = vpop.f32.mrf.mxu0
    %v3530 = vadd.f32 %v634, %v3529
    %v3531 = vpop.f32.mrf.mxu0
    %3532 = vdwg.mxu0
    %3533 = vmatpush.bf16.msra.mxu0 %v2114
    %3534 = vmatpush.bf16.msra.mxu0 %v2106
    %3535 = vmatpush.bf16.msra.mxu0 %v2098
    %3536 = vmatpush.bf16.msra.mxu0 %v2090
    %3537 = vmatpush.bf16.msra.mxu0 %v2082
    %3538 = vmatpush.bf16.msra.mxu0 %v2074
    %3539 = vmatpush.bf16.msra.mxu0 %v2066
    %3540 = vmatpush.bf16.msra.mxu0 %v2058
    %3541 = vmatmul.bf16.gmra.mxu0 %v171
    %v3542 = vpop.f32.mrf.mxu0
    %v3543 = vadd.f32 %v3530, %v3542
    %v3544 = vpop.f32.mrf.mxu0
    %3545 = vdwg.mxu0
    %3546 = vmatpush.bf16.msra.mxu0 %v2178
    %3547 = vmatpush.bf16.msra.mxu0 %v2170
    %3548 = vmatpush.bf16.msra.mxu0 %v2162
    %3549 = vmatpush.bf16.msra.mxu0 %v2154
    %3550 = vmatpush.bf16.msra.mxu0 %v2146
    %3551 = vmatpush.bf16.msra.mxu0 %v2138
    %3552 = vmatpush.bf16.msra.mxu0 %v2130
    %3553 = vmatpush.bf16.msra.mxu0 %v2122
    %3554 = vmatmul.bf16.gmra.mxu0 %v172
    %v3555 = vpop.f32.mrf.mxu0
    %v3556 = vadd.f32 %v3543, %v3555
    %v3557 = vpop.f32.mrf.mxu0
    %3558 = vdwg.mxu0
    %3559 = vmatpush.bf16.msra.mxu0 %v2242
    %3560 = vmatpush.bf16.msra.mxu0 %v2234
    %3561 = vmatpush.bf16.msra.mxu0 %v2226
    %3562 = vmatpush.bf16.msra.mxu0 %v2218
    %3563 = vmatpush.bf16.msra.mxu0 %v2210
    %3564 = vmatpush.bf16.msra.mxu0 %v2202
    %3565 = vmatpush.bf16.msra.mxu0 %v2194
    %3566 = vmatpush.bf16.msra.mxu0 %v2186
    %3567 = vmatmul.bf16.gmra.mxu0 %v173
    %v3568 = vpop.f32.mrf.mxu0
    %v3569 = vadd.f32 %v3556, %v3568
    %v3570 = vpop.f32.mrf.mxu0
    %3571 = vdwg.mxu0
    %3572 = vmatpush.bf16.msra.mxu0 %v2306
    %3573 = vmatpush.bf16.msra.mxu0 %v2298
    %3574 = vmatpush.bf16.msra.mxu0 %v2290
    %3575 = vmatpush.bf16.msra.mxu0 %v2282
    %3576 = vmatpush.bf16.msra.mxu0 %v2274
    %3577 = vmatpush.bf16.msra.mxu0 %v2266
    %3578 = vmatpush.bf16.msra.mxu0 %v2258
    %3579 = vmatpush.bf16.msra.mxu0 %v2250
    %3580 = vmatmul.bf16.gmra.mxu0 %v174
    %v3581 = vpop.f32.mrf.mxu0
    %v3582 = vadd.f32 %v3569, %v3581
    %v3583 = vpop.f32.mrf.mxu0
    %3584 = vdwg.mxu0
    %3585 = vmatpush.bf16.msra.mxu0 %v2370
    %3586 = vmatpush.bf16.msra.mxu0 %v2362
    %3587 = vmatpush.bf16.msra.mxu0 %v2354
    %3588 = vmatpush.bf16.msra.mxu0 %v2346
    %3589 = vmatpush.bf16.msra.mxu0 %v2338
    %3590 = vmatpush.bf16.msra.mxu0 %v2330
    %3591 = vmatpush.bf16.msra.mxu0 %v2322
    %3592 = vmatpush.bf16.msra.mxu0 %v2314
    %3593 = vmatmul.bf16.gmra.mxu0 %v175
    %v3594 = vpop.f32.mrf.mxu0
    %v3595 = vadd.f32 %v3582, %v3594
    %v3596 = vpop.f32.mrf.mxu0
    %3597 = vdwg.mxu0
    %3598 = vmatpush.bf16.msra.mxu0 %v2434
    %3599 = vmatpush.bf16.msra.mxu0 %v2426
    %3600 = vmatpush.bf16.msra.mxu0 %v2418
    %3601 = vmatpush.bf16.msra.mxu0 %v2410
    %3602 = vmatpush.bf16.msra.mxu0 %v2402
    %3603 = vmatpush.bf16.msra.mxu0 %v2394
    %3604 = vmatpush.bf16.msra.mxu0 %v2386
    %3605 = vmatpush.bf16.msra.mxu0 %v2378
    %3606 = vmatmul.bf16.gmra.mxu0 %v176
    %v3607 = vpop.f32.mrf.mxu0
    %v3608 = vadd.f32 %v3595, %v3607
    %v3609 = vpop.f32.mrf.mxu0
    %3610 = vdwg.mxu0
    %v3611 = vsub.f32 0.0, %v2971
    %v3612 = vsub.f32 0.0, %v3062
    %v3613 = vsub.f32 0.0, %v3153
    %v3614 = vsub.f32 0.0, %v3244
    %v3615 = vsub.f32 0.0, %v3335
    %v3616 = vsub.f32 0.0, %v3426
    %v3617 = vsub.f32 0.0, %v3517
    %v3618 = vsub.f32 0.0, %v3608
    %v3619 = vmul.f32 %v3611, 1.442695
    %v3620 = vpow.pop %v3619
    %v3621 = vmul.f32 %v3612, 1.442695
    %v3622 = vpow.pop %v3621
    %v3623 = vmul.f32 %v3613, 1.442695
    %v3624 = vpow.pop %v3623
    %v3625 = vmul.f32 %v3614, 1.442695
    %v3626 = vpow.pop %v3625
    %v3627 = vmul.f32 %v3615, 1.442695
    %v3628 = vpow.pop %v3627
    %v3629 = vmul.f32 %v3616, 1.442695
    %v3630 = vpow.pop %v3629
    %v3631 = vmul.f32 %v3617, 1.442695
    %v3632 = vpow.pop %v3631
    %v3633 = vmul.f32 %v3618, 1.442695
    %v3634 = vpow.pop %v3633
    %v3635 = vadd.f32 %v3620, 1.0
    %v3636 = vadd.f32 %v3622, 1.0
    %v3637 = vadd.f32 %v3624, 1.0
    %v3638 = vadd.f32 %v3626, 1.0
    %v3639 = vadd.f32 %v3628, 1.0
    %v3640 = vadd.f32 %v3630, 1.0
    %v3641 = vadd.f32 %v3632, 1.0
    %v3642 = vadd.f32 %v3634, 1.0
    %v3643 = vrcp.pop %v3635
    %v3644 = vmul.f32 %v3635, %v3643
    %v3645 = vsub.f32 1.0, %v3644
    %v3646 = vmul.f32 %v3643, %v3645
    %v3647 = vadd.f32 %v3643, %v3646
    %vm3648 = vweird.f32 %v3635
    %vm3649 = vweird.f32 %v3643
    %vm3650 = vmor %vm3648, %vm3649
    %v3651 = vsel %vm3650, %v3643, %v3647
    %v3652 = vand.u32 2147483647, %v3635
    %vm3653 = vcmp.eq.f32.partialorder %v3652, 8.507059e+37
    %v3654 = vand.u32 %v3635, 2147483648
    %v3655 = vor.u32 1.1754944e-38, %v3654
    %v3656 = vsel %vm3653, %v3655, %v3651
    %v3657 = vmul.f32 1.0, %v3656
    %v3658 = vrcp.pop %v3636
    %v3659 = vmul.f32 %v3636, %v3658
    %v3660 = vsub.f32 1.0, %v3659
    %v3661 = vmul.f32 %v3658, %v3660
    %v3662 = vadd.f32 %v3658, %v3661
    %vm3663 = vweird.f32 %v3636
    %vm3664 = vweird.f32 %v3658
    %vm3665 = vmor %vm3663, %vm3664
    %v3666 = vsel %vm3665, %v3658, %v3662
    %v3667 = vand.u32 2147483647, %v3636
    %vm3668 = vcmp.eq.f32.partialorder %v3667, 8.507059e+37
    %v3669 = vand.u32 %v3636, 2147483648
    %v3670 = vor.u32 1.1754944e-38, %v3669
    %v3671 = vsel %vm3668, %v3670, %v3666
    %v3672 = vmul.f32 1.0, %v3671
    %v3673 = vrcp.pop %v3637
    %v3674 = vmul.f32 %v3637, %v3673
    %v3675 = vsub.f32 1.0, %v3674
    %v3676 = vmul.f32 %v3673, %v3675
    %v3677 = vadd.f32 %v3673, %v3676
    %vm3678 = vweird.f32 %v3637
    %vm3679 = vweird.f32 %v3673
    %vm3680 = vmor %vm3678, %vm3679
    %v3681 = vsel %vm3680, %v3673, %v3677
    %v3682 = vand.u32 2147483647, %v3637
    %vm3683 = vcmp.eq.f32.partialorder %v3682, 8.507059e+37
    %v3684 = vand.u32 %v3637, 2147483648
    %v3685 = vor.u32 1.1754944e-38, %v3684
    %v3686 = vsel %vm3683, %v3685, %v3681
    %v3687 = vmul.f32 1.0, %v3686
    %v3688 = vrcp.pop %v3638
    %v3689 = vmul.f32 %v3638, %v3688
    %v3690 = vsub.f32 1.0, %v3689
    %v3691 = vmul.f32 %v3688, %v3690
    %v3692 = vadd.f32 %v3688, %v3691
    %vm3693 = vweird.f32 %v3638
    %vm3694 = vweird.f32 %v3688
    %vm3695 = vmor %vm3693, %vm3694
    %v3696 = vsel %vm3695, %v3688, %v3692
    %v3697 = vand.u32 2147483647, %v3638
    %vm3698 = vcmp.eq.f32.partialorder %v3697, 8.507059e+37
    %v3699 = vand.u32 %v3638, 2147483648
    %v3700 = vor.u32 1.1754944e-38, %v3699
    %v3701 = vsel %vm3698, %v3700, %v3696
    %v3702 = vmul.f32 1.0, %v3701
    %v3703 = vrcp.pop %v3639
    %v3704 = vmul.f32 %v3639, %v3703
    %v3705 = vsub.f32 1.0, %v3704
    %v3706 = vmul.f32 %v3703, %v3705
    %v3707 = vadd.f32 %v3703, %v3706
    %vm3708 = vweird.f32 %v3639
    %vm3709 = vweird.f32 %v3703
    %vm3710 = vmor %vm3708, %vm3709
    %v3711 = vsel %vm3710, %v3703, %v3707
    %v3712 = vand.u32 2147483647, %v3639
    %vm3713 = vcmp.eq.f32.partialorder %v3712, 8.507059e+37
    %v3714 = vand.u32 %v3639, 2147483648
    %v3715 = vor.u32 1.1754944e-38, %v3714
    %v3716 = vsel %vm3713, %v3715, %v3711
    %v3717 = vmul.f32 1.0, %v3716
    %v3718 = vrcp.pop %v3640
    %v3719 = vmul.f32 %v3640, %v3718
    %v3720 = vsub.f32 1.0, %v3719
    %v3721 = vmul.f32 %v3718, %v3720
    %v3722 = vadd.f32 %v3718, %v3721
    %vm3723 = vweird.f32 %v3640
    %vm3724 = vweird.f32 %v3718
    %vm3725 = vmor %vm3723, %vm3724
    %v3726 = vsel %vm3725, %v3718, %v3722
    %v3727 = vand.u32 2147483647, %v3640
    %vm3728 = vcmp.eq.f32.partialorder %v3727, 8.507059e+37
    %v3729 = vand.u32 %v3640, 2147483648
    %v3730 = vor.u32 1.1754944e-38, %v3729
    %v3731 = vsel %vm3728, %v3730, %v3726
    %v3732 = vmul.f32 1.0, %v3731
    %v3733 = vrcp.pop %v3641
    %v3734 = vmul.f32 %v3641, %v3733
    %v3735 = vsub.f32 1.0, %v3734
    %v3736 = vmul.f32 %v3733, %v3735
    %v3737 = vadd.f32 %v3733, %v3736
    %vm3738 = vweird.f32 %v3641
    %vm3739 = vweird.f32 %v3733
    %vm3740 = vmor %vm3738, %vm3739
    %v3741 = vsel %vm3740, %v3733, %v3737
    %v3742 = vand.u32 2147483647, %v3641
    %vm3743 = vcmp.eq.f32.partialorder %v3742, 8.507059e+37
    %v3744 = vand.u32 %v3641, 2147483648
    %v3745 = vor.u32 1.1754944e-38, %v3744
    %v3746 = vsel %vm3743, %v3745, %v3741
    %v3747 = vmul.f32 1.0, %v3746
    %v3748 = vrcp.pop %v3642
    %v3749 = vmul.f32 %v3642, %v3748
    %v3750 = vsub.f32 1.0, %v3749
    %v3751 = vmul.f32 %v3748, %v3750
    %v3752 = vadd.f32 %v3748, %v3751
    %vm3753 = vweird.f32 %v3642
    %vm3754 = vweird.f32 %v3748
    %vm3755 = vmor %vm3753, %vm3754
    %v3756 = vsel %vm3755, %v3748, %v3752
    %v3757 = vand.u32 2147483647, %v3642
    %vm3758 = vcmp.eq.f32.partialorder %v3757, 8.507059e+37
    %v3759 = vand.u32 %v3642, 2147483648
    %v3760 = vor.u32 1.1754944e-38, %v3759
    %v3761 = vsel %vm3758, %v3760, %v3756
    %v3762 = vmul.f32 1.0, %v3761
    %v3763 = vpack.c.bf16 %v3657, %v3657
    %v3764 = vpack.c.bf16 %v3672, %v3672
    %v3765 = vpack.c.bf16 %v3687, %v3687
    %v3766 = vpack.c.bf16 %v3702, %v3702
    %v3767 = vpack.c.bf16 %v3717, %v3717
    %v3768 = vpack.c.bf16 %v3732, %v3732
    %v3769 = vpack.c.bf16 %v3747, %v3747
    %v3770 = vpack.c.bf16 %v3762, %v3762
    %v3771 = vld [vmem:[#allocation8] sm:$0xff]
    %v3772 = vld [vmem:[#allocation8 + $0x8] sm:$0xff]
    %v3773 = vld [vmem:[#allocation8 + $0x10] sm:$0xff]
    %v3774 = vld [vmem:[#allocation8 + $0x18] sm:$0xff]
    %v3775 = vld [vmem:[#allocation8 + $0x20] sm:$0xff]
    %v3776 = vld [vmem:[#allocation8 + $0x28] sm:$0xff]
    %v3777 = vld [vmem:[#allocation8 + $0x30] sm:$0xff]
    %v3778 = vld [vmem:[#allocation8 + $0x38] sm:$0xff]
    %v3779 = vld [vmem:[#allocation8 + $0x40] sm:$0xff]
    %v3780 = vld [vmem:[#allocation8 + $0x48] sm:$0xff]
    %v3781 = vld [vmem:[#allocation8 + $0x50] sm:$0xff]
    %v3782 = vld [vmem:[#allocation8 + $0x58] sm:$0xff]
    %v3783 = vld [vmem:[#allocation8 + $0x60] sm:$0xff]
    %v3784 = vld [vmem:[#allocation8 + $0x68] sm:$0xff]
    %v3785 = vld [vmem:[#allocation8 + $0x70] sm:$0xff]
    %v3786 = vld [vmem:[#allocation8 + $0x78] sm:$0xff]
    %v3787 = vld [vmem:[#allocation8 + $0x80] sm:$0xff]
    %v3788 = vld [vmem:[#allocation8 + $0x88] sm:$0xff]
    %v3789 = vld [vmem:[#allocation8 + $0x90] sm:$0xff]
    %v3790 = vld [vmem:[#allocation8 + $0x98] sm:$0xff]
    %v3791 = vld [vmem:[#allocation8 + $0xa0] sm:$0xff]
    %v3792 = vld [vmem:[#allocation8 + $0xa8] sm:$0xff]
    %v3793 = vld [vmem:[#allocation8 + $0xb0] sm:$0xff]
    %v3794 = vld [vmem:[#allocation8 + $0xb8] sm:$0xff]
    %v3795 = vld [vmem:[#allocation8 + $0xc0] sm:$0xff]
    %v3796 = vld [vmem:[#allocation8 + $0xc8] sm:$0xff]
    %v3797 = vld [vmem:[#allocation8 + $0xd0] sm:$0xff]
    %v3798 = vld [vmem:[#allocation8 + $0xd8] sm:$0xff]
    %v3799 = vld [vmem:[#allocation8 + $0xe0] sm:$0xff]
    %v3800 = vld [vmem:[#allocation8 + $0xe8] sm:$0xff]
    %v3801 = vld [vmem:[#allocation8 + $0xf0] sm:$0xff]
    %v3802 = vld [vmem:[#allocation8 + $0xf8] sm:$0xff]
    %v3803 = vld [vmem:[#allocation8 + $0x100] sm:$0xff]
    %v3804 = vld [vmem:[#allocation8 + $0x108] sm:$0xff]
    %v3805 = vld [vmem:[#allocation8 + $0x110] sm:$0xff]
    %v3806 = vld [vmem:[#allocation8 + $0x118] sm:$0xff]
    %v3807 = vld [vmem:[#allocation8 + $0x120] sm:$0xff]
    %v3808 = vld [vmem:[#allocation8 + $0x128] sm:$0xff]
    %v3809 = vld [vmem:[#allocation8 + $0x130] sm:$0xff]
    %v3810 = vld [vmem:[#allocation8 + $0x138] sm:$0xff]
    %v3811 = vld [vmem:[#allocation8 + $0x140] sm:$0xff]
    %v3812 = vld [vmem:[#allocation8 + $0x148] sm:$0xff]
    %v3813 = vld [vmem:[#allocation8 + $0x150] sm:$0xff]
    %v3814 = vld [vmem:[#allocation8 + $0x158] sm:$0xff]
    %v3815 = vld [vmem:[#allocation8 + $0x160] sm:$0xff]
    %v3816 = vld [vmem:[#allocation8 + $0x168] sm:$0xff]
    %v3817 = vld [vmem:[#allocation8 + $0x170] sm:$0xff]
    %v3818 = vld [vmem:[#allocation8 + $0x178] sm:$0xff]
    %v3819 = vld [vmem:[#allocation8 + $0x180] sm:$0xff]
    %v3820 = vld [vmem:[#allocation8 + $0x188] sm:$0xff]
    %v3821 = vld [vmem:[#allocation8 + $0x190] sm:$0xff]
    %v3822 = vld [vmem:[#allocation8 + $0x198] sm:$0xff]
    %v3823 = vld [vmem:[#allocation8 + $0x1a0] sm:$0xff]
    %v3824 = vld [vmem:[#allocation8 + $0x1a8] sm:$0xff]
    %v3825 = vld [vmem:[#allocation8 + $0x1b0] sm:$0xff]
    %v3826 = vld [vmem:[#allocation8 + $0x1b8] sm:$0xff]
    %v3827 = vld [vmem:[#allocation8 + $0x1c0] sm:$0xff]
    %v3828 = vld [vmem:[#allocation8 + $0x1c8] sm:$0xff]
    %v3829 = vld [vmem:[#allocation8 + $0x1d0] sm:$0xff]
    %v3830 = vld [vmem:[#allocation8 + $0x1d8] sm:$0xff]
    %v3831 = vld [vmem:[#allocation8 + $0x1e0] sm:$0xff]
    %v3832 = vld [vmem:[#allocation8 + $0x1e8] sm:$0xff]
    %v3833 = vld [vmem:[#allocation8 + $0x1f0] sm:$0xff]
    %v3834 = vld [vmem:[#allocation8 + $0x1f8] sm:$0xff]
    %v3835 = vld [vmem:[#allocation8 + $0x200] sm:$0xff]
    %v3836 = vld [vmem:[#allocation8 + $0x208] sm:$0xff]
    %v3837 = vld [vmem:[#allocation8 + $0x210] sm:$0xff]
    %v3838 = vld [vmem:[#allocation8 + $0x218] sm:$0xff]
    %v3839 = vld [vmem:[#allocation8 + $0x220] sm:$0xff]
    %v3840 = vld [vmem:[#allocation8 + $0x228] sm:$0xff]
    %v3841 = vld [vmem:[#allocation8 + $0x230] sm:$0xff]
    %v3842 = vld [vmem:[#allocation8 + $0x238] sm:$0xff]
    %v3843 = vld [vmem:[#allocation8 + $0x240] sm:$0xff]
    %v3844 = vld [vmem:[#allocation8 + $0x248] sm:$0xff]
    %v3845 = vld [vmem:[#allocation8 + $0x250] sm:$0xff]
    %v3846 = vld [vmem:[#allocation8 + $0x258] sm:$0xff]
    %v3847 = vld [vmem:[#allocation8 + $0x260] sm:$0xff]
    %v3848 = vld [vmem:[#allocation8 + $0x268] sm:$0xff]
    %v3849 = vld [vmem:[#allocation8 + $0x270] sm:$0xff]
    %v3850 = vld [vmem:[#allocation8 + $0x278] sm:$0xff]
    %v3851 = vld [vmem:[#allocation8 + $0x280] sm:$0xff]
    %v3852 = vld [vmem:[#allocation8 + $0x288] sm:$0xff]
    %v3853 = vld [vmem:[#allocation8 + $0x290] sm:$0xff]
    %v3854 = vld [vmem:[#allocation8 + $0x298] sm:$0xff]
    %v3855 = vld [vmem:[#allocation8 + $0x2a0] sm:$0xff]
    %v3856 = vld [vmem:[#allocation8 + $0x2a8] sm:$0xff]
    %v3857 = vld [vmem:[#allocation8 + $0x2b0] sm:$0xff]
    %v3858 = vld [vmem:[#allocation8 + $0x2b8] sm:$0xff]
    %v3859 = vld [vmem:[#allocation8 + $0x2c0] sm:$0xff]
    %v3860 = vld [vmem:[#allocation8 + $0x2c8] sm:$0xff]
    %v3861 = vld [vmem:[#allocation8 + $0x2d0] sm:$0xff]
    %v3862 = vld [vmem:[#allocation8 + $0x2d8] sm:$0xff]
    %v3863 = vld [vmem:[#allocation8 + $0x2e0] sm:$0xff]
    %v3864 = vld [vmem:[#allocation8 + $0x2e8] sm:$0xff]
    %v3865 = vld [vmem:[#allocation8 + $0x2f0] sm:$0xff]
    %v3866 = vld [vmem:[#allocation8 + $0x2f8] sm:$0xff]
    %v3867 = vld [vmem:[#allocation8 + $0x300] sm:$0xff]
    %v3868 = vld [vmem:[#allocation8 + $0x308] sm:$0xff]
    %v3869 = vld [vmem:[#allocation8 + $0x310] sm:$0xff]
    %v3870 = vld [vmem:[#allocation8 + $0x318] sm:$0xff]
    %v3871 = vld [vmem:[#allocation8 + $0x320] sm:$0xff]
    %v3872 = vld [vmem:[#allocation8 + $0x328] sm:$0xff]
    %v3873 = vld [vmem:[#allocation8 + $0x330] sm:$0xff]
    %v3874 = vld [vmem:[#allocation8 + $0x338] sm:$0xff]
    %v3875 = vld [vmem:[#allocation8 + $0x340] sm:$0xff]
    %v3876 = vld [vmem:[#allocation8 + $0x348] sm:$0xff]
    %v3877 = vld [vmem:[#allocation8 + $0x350] sm:$0xff]
    %v3878 = vld [vmem:[#allocation8 + $0x358] sm:$0xff]
    %v3879 = vld [vmem:[#allocation8 + $0x360] sm:$0xff]
    %v3880 = vld [vmem:[#allocation8 + $0x368] sm:$0xff]
    %v3881 = vld [vmem:[#allocation8 + $0x370] sm:$0xff]
    %v3882 = vld [vmem:[#allocation8 + $0x378] sm:$0xff]
    %v3883 = vld [vmem:[#allocation8 + $0x380] sm:$0xff]
    %v3884 = vld [vmem:[#allocation8 + $0x388] sm:$0xff]
    %v3885 = vld [vmem:[#allocation8 + $0x390] sm:$0xff]
    %v3886 = vld [vmem:[#allocation8 + $0x398] sm:$0xff]
    %v3887 = vld [vmem:[#allocation8 + $0x3a0] sm:$0xff]
    %v3888 = vld [vmem:[#allocation8 + $0x3a8] sm:$0xff]
    %v3889 = vld [vmem:[#allocation8 + $0x3b0] sm:$0xff]
    %v3890 = vld [vmem:[#allocation8 + $0x3b8] sm:$0xff]
    %v3891 = vld [vmem:[#allocation8 + $0x3c0] sm:$0xff]
    %v3892 = vld [vmem:[#allocation8 + $0x3c8] sm:$0xff]
    %v3893 = vld [vmem:[#allocation8 + $0x3d0] sm:$0xff]
    %v3894 = vld [vmem:[#allocation8 + $0x3d8] sm:$0xff]
    %v3895 = vld [vmem:[#allocation8 + $0x3e0] sm:$0xff]
    %v3896 = vld [vmem:[#allocation8 + $0x3e8] sm:$0xff]
    %v3897 = vld [vmem:[#allocation8 + $0x3f0] sm:$0xff]
    %v3898 = vld [vmem:[#allocation8 + $0x3f8] sm:$0xff]
    %v3899 = vld [vmem:[#allocation8 + $0x400] sm:$0xff]
    %v3900 = vld [vmem:[#allocation8 + $0x408] sm:$0xff]
    %v3901 = vld [vmem:[#allocation8 + $0x410] sm:$0xff]
    %v3902 = vld [vmem:[#allocation8 + $0x418] sm:$0xff]
    %v3903 = vld [vmem:[#allocation8 + $0x420] sm:$0xff]
    %v3904 = vld [vmem:[#allocation8 + $0x428] sm:$0xff]
    %v3905 = vld [vmem:[#allocation8 + $0x430] sm:$0xff]
    %v3906 = vld [vmem:[#allocation8 + $0x438] sm:$0xff]
    %v3907 = vld [vmem:[#allocation8 + $0x440] sm:$0xff]
    %v3908 = vld [vmem:[#allocation8 + $0x448] sm:$0xff]
    %v3909 = vld [vmem:[#allocation8 + $0x450] sm:$0xff]
    %v3910 = vld [vmem:[#allocation8 + $0x458] sm:$0xff]
    %v3911 = vld [vmem:[#allocation8 + $0x460] sm:$0xff]
    %v3912 = vld [vmem:[#allocation8 + $0x468] sm:$0xff]
    %v3913 = vld [vmem:[#allocation8 + $0x470] sm:$0xff]
    %v3914 = vld [vmem:[#allocation8 + $0x478] sm:$0xff]
    %v3915 = vld [vmem:[#allocation8 + $0x480] sm:$0xff]
    %v3916 = vld [vmem:[#allocation8 + $0x488] sm:$0xff]
    %v3917 = vld [vmem:[#allocation8 + $0x490] sm:$0xff]
    %v3918 = vld [vmem:[#allocation8 + $0x498] sm:$0xff]
    %v3919 = vld [vmem:[#allocation8 + $0x4a0] sm:$0xff]
    %v3920 = vld [vmem:[#allocation8 + $0x4a8] sm:$0xff]
    %v3921 = vld [vmem:[#allocation8 + $0x4b0] sm:$0xff]
    %v3922 = vld [vmem:[#allocation8 + $0x4b8] sm:$0xff]
    %v3923 = vld [vmem:[#allocation8 + $0x4c0] sm:$0xff]
    %v3924 = vld [vmem:[#allocation8 + $0x4c8] sm:$0xff]
    %v3925 = vld [vmem:[#allocation8 + $0x4d0] sm:$0xff]
    %v3926 = vld [vmem:[#allocation8 + $0x4d8] sm:$0xff]
    %v3927 = vld [vmem:[#allocation8 + $0x4e0] sm:$0xff]
    %v3928 = vld [vmem:[#allocation8 + $0x4e8] sm:$0xff]
    %v3929 = vld [vmem:[#allocation8 + $0x4f0] sm:$0xff]
    %v3930 = vld [vmem:[#allocation8 + $0x4f8] sm:$0xff]
    %v3931 = vld [vmem:[#allocation8 + $0x500] sm:$0xff]
    %v3932 = vld [vmem:[#allocation8 + $0x508] sm:$0xff]
    %v3933 = vld [vmem:[#allocation8 + $0x510] sm:$0xff]
    %v3934 = vld [vmem:[#allocation8 + $0x518] sm:$0xff]
    %v3935 = vld [vmem:[#allocation8 + $0x520] sm:$0xff]
    %v3936 = vld [vmem:[#allocation8 + $0x528] sm:$0xff]
    %v3937 = vld [vmem:[#allocation8 + $0x530] sm:$0xff]
    %v3938 = vld [vmem:[#allocation8 + $0x538] sm:$0xff]
    %v3939 = vld [vmem:[#allocation8 + $0x540] sm:$0xff]
    %v3940 = vld [vmem:[#allocation8 + $0x548] sm:$0xff]
    %v3941 = vld [vmem:[#allocation8 + $0x550] sm:$0xff]
    %v3942 = vld [vmem:[#allocation8 + $0x558] sm:$0xff]
    %v3943 = vld [vmem:[#allocation8 + $0x560] sm:$0xff]
    %v3944 = vld [vmem:[#allocation8 + $0x568] sm:$0xff]
    %v3945 = vld [vmem:[#allocation8 + $0x570] sm:$0xff]
    %v3946 = vld [vmem:[#allocation8 + $0x578] sm:$0xff]
    %v3947 = vld [vmem:[#allocation8 + $0x580] sm:$0xff]
    %v3948 = vld [vmem:[#allocation8 + $0x588] sm:$0xff]
    %v3949 = vld [vmem:[#allocation8 + $0x590] sm:$0xff]
    %v3950 = vld [vmem:[#allocation8 + $0x598] sm:$0xff]
    %v3951 = vld [vmem:[#allocation8 + $0x5a0] sm:$0xff]
    %v3952 = vld [vmem:[#allocation8 + $0x5a8] sm:$0xff]
    %v3953 = vld [vmem:[#allocation8 + $0x5b0] sm:$0xff]
    %v3954 = vld [vmem:[#allocation8 + $0x5b8] sm:$0xff]
    %v3955 = vld [vmem:[#allocation8 + $0x5c0] sm:$0xff]
    %v3956 = vld [vmem:[#allocation8 + $0x5c8] sm:$0xff]
    %v3957 = vld [vmem:[#allocation8 + $0x5d0] sm:$0xff]
    %v3958 = vld [vmem:[#allocation8 + $0x5d8] sm:$0xff]
    %v3959 = vld [vmem:[#allocation8 + $0x5e0] sm:$0xff]
    %v3960 = vld [vmem:[#allocation8 + $0x5e8] sm:$0xff]
    %v3961 = vld [vmem:[#allocation8 + $0x5f0] sm:$0xff]
    %v3962 = vld [vmem:[#allocation8 + $0x5f8] sm:$0xff]
    %v3963 = vld [vmem:[#allocation8 + $0x600] sm:$0xff]
    %v3964 = vld [vmem:[#allocation8 + $0x608] sm:$0xff]
    %v3965 = vld [vmem:[#allocation8 + $0x610] sm:$0xff]
    %v3966 = vld [vmem:[#allocation8 + $0x618] sm:$0xff]
    %v3967 = vld [vmem:[#allocation8 + $0x620] sm:$0xff]
    %v3968 = vld [vmem:[#allocation8 + $0x628] sm:$0xff]
    %v3969 = vld [vmem:[#allocation8 + $0x630] sm:$0xff]
    %v3970 = vld [vmem:[#allocation8 + $0x638] sm:$0xff]
    %v3971 = vld [vmem:[#allocation8 + $0x640] sm:$0xff]
    %v3972 = vld [vmem:[#allocation8 + $0x648] sm:$0xff]
    %v3973 = vld [vmem:[#allocation8 + $0x650] sm:$0xff]
    %v3974 = vld [vmem:[#allocation8 + $0x658] sm:$0xff]
    %v3975 = vld [vmem:[#allocation8 + $0x660] sm:$0xff]
    %v3976 = vld [vmem:[#allocation8 + $0x668] sm:$0xff]
    %v3977 = vld [vmem:[#allocation8 + $0x670] sm:$0xff]
    %v3978 = vld [vmem:[#allocation8 + $0x678] sm:$0xff]
    %v3979 = vld [vmem:[#allocation8 + $0x680] sm:$0xff]
    %v3980 = vld [vmem:[#allocation8 + $0x688] sm:$0xff]
    %v3981 = vld [vmem:[#allocation8 + $0x690] sm:$0xff]
    %v3982 = vld [vmem:[#allocation8 + $0x698] sm:$0xff]
    %v3983 = vld [vmem:[#allocation8 + $0x6a0] sm:$0xff]
    %v3984 = vld [vmem:[#allocation8 + $0x6a8] sm:$0xff]
    %v3985 = vld [vmem:[#allocation8 + $0x6b0] sm:$0xff]
    %v3986 = vld [vmem:[#allocation8 + $0x6b8] sm:$0xff]
    %v3987 = vld [vmem:[#allocation8 + $0x6c0] sm:$0xff]
    %v3988 = vld [vmem:[#allocation8 + $0x6c8] sm:$0xff]
    %v3989 = vld [vmem:[#allocation8 + $0x6d0] sm:$0xff]
    %v3990 = vld [vmem:[#allocation8 + $0x6d8] sm:$0xff]
    %v3991 = vld [vmem:[#allocation8 + $0x6e0] sm:$0xff]
    %v3992 = vld [vmem:[#allocation8 + $0x6e8] sm:$0xff]
    %v3993 = vld [vmem:[#allocation8 + $0x6f0] sm:$0xff]
    %v3994 = vld [vmem:[#allocation8 + $0x6f8] sm:$0xff]
    %v3995 = vld [vmem:[#allocation8 + $0x700] sm:$0xff]
    %v3996 = vld [vmem:[#allocation8 + $0x708] sm:$0xff]
    %v3997 = vld [vmem:[#allocation8 + $0x710] sm:$0xff]
    %v3998 = vld [vmem:[#allocation8 + $0x718] sm:$0xff]
    %v3999 = vld [vmem:[#allocation8 + $0x720] sm:$0xff]
    %v4000 = vld [vmem:[#allocation8 + $0x728] sm:$0xff]
    %v4001 = vld [vmem:[#allocation8 + $0x730] sm:$0xff]
    %v4002 = vld [vmem:[#allocation8 + $0x738] sm:$0xff]
    %v4003 = vld [vmem:[#allocation8 + $0x740] sm:$0xff]
    %v4004 = vld [vmem:[#allocation8 + $0x748] sm:$0xff]
    %v4005 = vld [vmem:[#allocation8 + $0x750] sm:$0xff]
    %v4006 = vld [vmem:[#allocation8 + $0x758] sm:$0xff]
    %v4007 = vld [vmem:[#allocation8 + $0x760] sm:$0xff]
    %v4008 = vld [vmem:[#allocation8 + $0x768] sm:$0xff]
    %v4009 = vld [vmem:[#allocation8 + $0x770] sm:$0xff]
    %v4010 = vld [vmem:[#allocation8 + $0x778] sm:$0xff]
    %v4011 = vld [vmem:[#allocation8 + $0x780] sm:$0xff]
    %v4012 = vld [vmem:[#allocation8 + $0x788] sm:$0xff]
    %v4013 = vld [vmem:[#allocation8 + $0x790] sm:$0xff]
    %v4014 = vld [vmem:[#allocation8 + $0x798] sm:$0xff]
    %v4015 = vld [vmem:[#allocation8 + $0x7a0] sm:$0xff]
    %v4016 = vld [vmem:[#allocation8 + $0x7a8] sm:$0xff]
    %v4017 = vld [vmem:[#allocation8 + $0x7b0] sm:$0xff]
    %v4018 = vld [vmem:[#allocation8 + $0x7b8] sm:$0xff]
    %v4019 = vld [vmem:[#allocation8 + $0x7c0] sm:$0xff]
    %v4020 = vld [vmem:[#allocation8 + $0x7c8] sm:$0xff]
    %v4021 = vld [vmem:[#allocation8 + $0x7d0] sm:$0xff]
    %v4022 = vld [vmem:[#allocation8 + $0x7d8] sm:$0xff]
    %v4023 = vld [vmem:[#allocation8 + $0x7e0] sm:$0xff]
    %v4024 = vld [vmem:[#allocation8 + $0x7e8] sm:$0xff]
    %v4025 = vld [vmem:[#allocation8 + $0x7f0] sm:$0xff]
    %v4026 = vld [vmem:[#allocation8 + $0x7f8] sm:$0xff]
    %v4027 = vld [vmem:[#allocation8 + $0x800] sm:$0xff]
    %v4028 = vld [vmem:[#allocation8 + $0x808] sm:$0xff]
    %v4029 = vld [vmem:[#allocation8 + $0x810] sm:$0xff]
    %v4030 = vld [vmem:[#allocation8 + $0x818] sm:$0xff]
    %v4031 = vld [vmem:[#allocation8 + $0x820] sm:$0xff]
    %v4032 = vld [vmem:[#allocation8 + $0x828] sm:$0xff]
    %v4033 = vld [vmem:[#allocation8 + $0x830] sm:$0xff]
    %v4034 = vld [vmem:[#allocation8 + $0x838] sm:$0xff]
    %v4035 = vld [vmem:[#allocation8 + $0x840] sm:$0xff]
    %v4036 = vld [vmem:[#allocation8 + $0x848] sm:$0xff]
    %v4037 = vld [vmem:[#allocation8 + $0x850] sm:$0xff]
    %v4038 = vld [vmem:[#allocation8 + $0x858] sm:$0xff]
    %v4039 = vld [vmem:[#allocation8 + $0x860] sm:$0xff]
    %v4040 = vld [vmem:[#allocation8 + $0x868] sm:$0xff]
    %v4041 = vld [vmem:[#allocation8 + $0x870] sm:$0xff]
    %v4042 = vld [vmem:[#allocation8 + $0x878] sm:$0xff]
    %v4043 = vld [vmem:[#allocation8 + $0x880] sm:$0xff]
    %v4044 = vld [vmem:[#allocation8 + $0x888] sm:$0xff]
    %v4045 = vld [vmem:[#allocation8 + $0x890] sm:$0xff]
    %v4046 = vld [vmem:[#allocation8 + $0x898] sm:$0xff]
    %v4047 = vld [vmem:[#allocation8 + $0x8a0] sm:$0xff]
    %v4048 = vld [vmem:[#allocation8 + $0x8a8] sm:$0xff]
    %v4049 = vld [vmem:[#allocation8 + $0x8b0] sm:$0xff]
    %v4050 = vld [vmem:[#allocation8 + $0x8b8] sm:$0xff]
    %v4051 = vld [vmem:[#allocation8 + $0x8c0] sm:$0xff]
    %v4052 = vld [vmem:[#allocation8 + $0x8c8] sm:$0xff]
    %v4053 = vld [vmem:[#allocation8 + $0x8d0] sm:$0xff]
    %v4054 = vld [vmem:[#allocation8 + $0x8d8] sm:$0xff]
    %v4055 = vld [vmem:[#allocation8 + $0x8e0] sm:$0xff]
    %v4056 = vld [vmem:[#allocation8 + $0x8e8] sm:$0xff]
    %v4057 = vld [vmem:[#allocation8 + $0x8f0] sm:$0xff]
    %v4058 = vld [vmem:[#allocation8 + $0x8f8] sm:$0xff]
    %v4059 = vld [vmem:[#allocation8 + $0x900] sm:$0xff]
    %v4060 = vld [vmem:[#allocation8 + $0x908] sm:$0xff]
    %v4061 = vld [vmem:[#allocation8 + $0x910] sm:$0xff]
    %v4062 = vld [vmem:[#allocation8 + $0x918] sm:$0xff]
    %v4063 = vld [vmem:[#allocation8 + $0x920] sm:$0xff]
    %v4064 = vld [vmem:[#allocation8 + $0x928] sm:$0xff]
    %v4065 = vld [vmem:[#allocation8 + $0x930] sm:$0xff]
    %v4066 = vld [vmem:[#allocation8 + $0x938] sm:$0xff]
    %v4067 = vld [vmem:[#allocation8 + $0x940] sm:$0xff]
    %v4068 = vld [vmem:[#allocation8 + $0x948] sm:$0xff]
    %v4069 = vld [vmem:[#allocation8 + $0x950] sm:$0xff]
    %v4070 = vld [vmem:[#allocation8 + $0x958] sm:$0xff]
    %v4071 = vld [vmem:[#allocation8 + $0x960] sm:$0xff]
    %v4072 = vld [vmem:[#allocation8 + $0x968] sm:$0xff]
    %v4073 = vld [vmem:[#allocation8 + $0x970] sm:$0xff]
    %v4074 = vld [vmem:[#allocation8 + $0x978] sm:$0xff]
    %v4075 = vld [vmem:[#allocation8 + $0x980] sm:$0xff]
    %v4076 = vld [vmem:[#allocation8 + $0x988] sm:$0xff]
    %v4077 = vld [vmem:[#allocation8 + $0x990] sm:$0xff]
    %v4078 = vld [vmem:[#allocation8 + $0x998] sm:$0xff]
    %v4079 = vld [vmem:[#allocation8 + $0x9a0] sm:$0xff]
    %v4080 = vld [vmem:[#allocation8 + $0x9a8] sm:$0xff]
    %v4081 = vld [vmem:[#allocation8 + $0x9b0] sm:$0xff]
    %v4082 = vld [vmem:[#allocation8 + $0x9b8] sm:$0xff]
    %v4083 = vld [vmem:[#allocation8 + $0x9c0] sm:$0xff]
    %v4084 = vld [vmem:[#allocation8 + $0x9c8] sm:$0xff]
    %v4085 = vld [vmem:[#allocation8 + $0x9d0] sm:$0xff]
    %v4086 = vld [vmem:[#allocation8 + $0x9d8] sm:$0xff]
    %v4087 = vld [vmem:[#allocation8 + $0x9e0] sm:$0xff]
    %v4088 = vld [vmem:[#allocation8 + $0x9e8] sm:$0xff]
    %v4089 = vld [vmem:[#allocation8 + $0x9f0] sm:$0xff]
    %v4090 = vld [vmem:[#allocation8 + $0x9f8] sm:$0xff]
    %v4091 = vld [vmem:[#allocation8 + $0xa00] sm:$0xff]
    %v4092 = vld [vmem:[#allocation8 + $0xa08] sm:$0xff]
    %v4093 = vld [vmem:[#allocation8 + $0xa10] sm:$0xff]
    %v4094 = vld [vmem:[#allocation8 + $0xa18] sm:$0xff]
    %v4095 = vld [vmem:[#allocation8 + $0xa20] sm:$0xff]
    %v4096 = vld [vmem:[#allocation8 + $0xa28] sm:$0xff]
    %v4097 = vld [vmem:[#allocation8 + $0xa30] sm:$0xff]
    %v4098 = vld [vmem:[#allocation8 + $0xa38] sm:$0xff]
    %v4099 = vld [vmem:[#allocation8 + $0xa40] sm:$0xff]
    %v4100 = vld [vmem:[#allocation8 + $0xa48] sm:$0xff]
    %v4101 = vld [vmem:[#allocation8 + $0xa50] sm:$0xff]
    %v4102 = vld [vmem:[#allocation8 + $0xa58] sm:$0xff]
    %v4103 = vld [vmem:[#allocation8 + $0xa60] sm:$0xff]
    %v4104 = vld [vmem:[#allocation8 + $0xa68] sm:$0xff]
    %v4105 = vld [vmem:[#allocation8 + $0xa70] sm:$0xff]
    %v4106 = vld [vmem:[#allocation8 + $0xa78] sm:$0xff]
    %v4107 = vld [vmem:[#allocation8 + $0xa80] sm:$0xff]
    %v4108 = vld [vmem:[#allocation8 + $0xa88] sm:$0xff]
    %v4109 = vld [vmem:[#allocation8 + $0xa90] sm:$0xff]
    %v4110 = vld [vmem:[#allocation8 + $0xa98] sm:$0xff]
    %v4111 = vld [vmem:[#allocation8 + $0xaa0] sm:$0xff]
    %v4112 = vld [vmem:[#allocation8 + $0xaa8] sm:$0xff]
    %v4113 = vld [vmem:[#allocation8 + $0xab0] sm:$0xff]
    %v4114 = vld [vmem:[#allocation8 + $0xab8] sm:$0xff]
    %v4115 = vld [vmem:[#allocation8 + $0xac0] sm:$0xff]
    %v4116 = vld [vmem:[#allocation8 + $0xac8] sm:$0xff]
    %v4117 = vld [vmem:[#allocation8 + $0xad0] sm:$0xff]
    %v4118 = vld [vmem:[#allocation8 + $0xad8] sm:$0xff]
    %v4119 = vld [vmem:[#allocation8 + $0xae0] sm:$0xff]
    %v4120 = vld [vmem:[#allocation8 + $0xae8] sm:$0xff]
    %v4121 = vld [vmem:[#allocation8 + $0xaf0] sm:$0xff]
    %v4122 = vld [vmem:[#allocation8 + $0xaf8] sm:$0xff]
    %v4123 = vld [vmem:[#allocation8 + $0xb00] sm:$0xff]
    %v4124 = vld [vmem:[#allocation8 + $0xb08] sm:$0xff]
    %v4125 = vld [vmem:[#allocation8 + $0xb10] sm:$0xff]
    %v4126 = vld [vmem:[#allocation8 + $0xb18] sm:$0xff]
    %v4127 = vld [vmem:[#allocation8 + $0xb20] sm:$0xff]
    %v4128 = vld [vmem:[#allocation8 + $0xb28] sm:$0xff]
    %v4129 = vld [vmem:[#allocation8 + $0xb30] sm:$0xff]
    %v4130 = vld [vmem:[#allocation8 + $0xb38] sm:$0xff]
    %v4131 = vld [vmem:[#allocation8 + $0xb40] sm:$0xff]
    %v4132 = vld [vmem:[#allocation8 + $0xb48] sm:$0xff]
    %v4133 = vld [vmem:[#allocation8 + $0xb50] sm:$0xff]
    %v4134 = vld [vmem:[#allocation8 + $0xb58] sm:$0xff]
    %v4135 = vld [vmem:[#allocation8 + $0xb60] sm:$0xff]
    %v4136 = vld [vmem:[#allocation8 + $0xb68] sm:$0xff]
    %v4137 = vld [vmem:[#allocation8 + $0xb70] sm:$0xff]
    %v4138 = vld [vmem:[#allocation8 + $0xb78] sm:$0xff]
    %v4139 = vld [vmem:[#allocation8 + $0xb80] sm:$0xff]
    %v4140 = vld [vmem:[#allocation8 + $0xb88] sm:$0xff]
    %v4141 = vld [vmem:[#allocation8 + $0xb90] sm:$0xff]
    %v4142 = vld [vmem:[#allocation8 + $0xb98] sm:$0xff]
    %v4143 = vld [vmem:[#allocation8 + $0xba0] sm:$0xff]
    %v4144 = vld [vmem:[#allocation8 + $0xba8] sm:$0xff]
    %v4145 = vld [vmem:[#allocation8 + $0xbb0] sm:$0xff]
    %v4146 = vld [vmem:[#allocation8 + $0xbb8] sm:$0xff]
    %v4147 = vld [vmem:[#allocation8 + $0xbc0] sm:$0xff]
    %v4148 = vld [vmem:[#allocation8 + $0xbc8] sm:$0xff]
    %v4149 = vld [vmem:[#allocation8 + $0xbd0] sm:$0xff]
    %v4150 = vld [vmem:[#allocation8 + $0xbd8] sm:$0xff]
    %v4151 = vld [vmem:[#allocation8 + $0xbe0] sm:$0xff]
    %v4152 = vld [vmem:[#allocation8 + $0xbe8] sm:$0xff]
    %v4153 = vld [vmem:[#allocation8 + $0xbf0] sm:$0xff]
    %v4154 = vld [vmem:[#allocation8 + $0xbf8] sm:$0xff]
    %v4155 = vld [vmem:[#allocation10] sm:$0x3f]
    %v4157 = vperm.slane %v4155, 0
    %v4158 = vperm.slane %v4155, 1
    %v4159 = vperm.slane %v4155, 2
    %v4160 = vperm.slane %v4155, 3
    %v4161 = vperm.slane %v4155, 4
    %v4162 = vperm.slane %v4155, 5
    %v4553 = vunpack.c.l.b16 %v3771
    %v4554 = vunpack.c.h.b16 %v3771
    %v4555 = vunpack.c.l.b16 %v3772
    %v4556 = vunpack.c.h.b16 %v3772
    %v4557 = vunpack.c.l.b16 %v3773
    %v4558 = vunpack.c.h.b16 %v3773
    %v4559 = vunpack.c.l.b16 %v3774
    %v4560 = vunpack.c.h.b16 %v3774
    %v4561 = vunpack.c.l.b16 %v3775
    %v4562 = vunpack.c.h.b16 %v3775
    %v4563 = vunpack.c.l.b16 %v3776
    %v4564 = vunpack.c.h.b16 %v3776
    %v4565 = vunpack.c.l.b16 %v3777
    %v4566 = vunpack.c.h.b16 %v3777
    %v4567 = vunpack.c.l.b16 %v3778
    %v4568 = vunpack.c.h.b16 %v3778
    %v4569 = vunpack.c.l.b16 %v3779
    %v4570 = vunpack.c.h.b16 %v3779
    %v4571 = vunpack.c.l.b16 %v3780
    %v4572 = vunpack.c.h.b16 %v3780
    %v4573 = vunpack.c.l.b16 %v3781
    %v4574 = vunpack.c.h.b16 %v3781
    %v4575 = vunpack.c.l.b16 %v3782
    %v4576 = vunpack.c.h.b16 %v3782
    %v4577 = vunpack.c.l.b16 %v3783
    %v4578 = vunpack.c.h.b16 %v3783
    %v4579 = vunpack.c.l.b16 %v3784
    %v4580 = vunpack.c.h.b16 %v3784
    %v4581 = vunpack.c.l.b16 %v3785
    %v4582 = vunpack.c.h.b16 %v3785
    %v4583 = vunpack.c.l.b16 %v3786
    %v4584 = vunpack.c.h.b16 %v3786
    %v4585 = vunpack.c.l.b16 %v3787
    %v4586 = vunpack.c.h.b16 %v3787
    %v4587 = vunpack.c.l.b16 %v3788
    %v4588 = vunpack.c.h.b16 %v3788
    %v4589 = vunpack.c.l.b16 %v3789
    %v4590 = vunpack.c.h.b16 %v3789
    %v4591 = vunpack.c.l.b16 %v3790
    %v4592 = vunpack.c.h.b16 %v3790
    %v4593 = vunpack.c.l.b16 %v3791
    %v4594 = vunpack.c.h.b16 %v3791
    %v4595 = vunpack.c.l.b16 %v3792
    %v4596 = vunpack.c.h.b16 %v3792
    %v4597 = vunpack.c.l.b16 %v3793
    %v4598 = vunpack.c.h.b16 %v3793
    %v4599 = vunpack.c.l.b16 %v3794
    %v4600 = vunpack.c.h.b16 %v3794
    %v4601 = vunpack.c.l.b16 %v3795
    %v4602 = vunpack.c.h.b16 %v3795
    %v4603 = vunpack.c.l.b16 %v3796
    %v4604 = vunpack.c.h.b16 %v3796
    %v4605 = vunpack.c.l.b16 %v3797
    %v4606 = vunpack.c.h.b16 %v3797
    %v4607 = vunpack.c.l.b16 %v3798
    %v4608 = vunpack.c.h.b16 %v3798
    %v4609 = vunpack.c.l.b16 %v3799
    %v4610 = vunpack.c.h.b16 %v3799
    %v4611 = vunpack.c.l.b16 %v3800
    %v4612 = vunpack.c.h.b16 %v3800
    %v4613 = vunpack.c.l.b16 %v3801
    %v4614 = vunpack.c.h.b16 %v3801
    %v4615 = vunpack.c.l.b16 %v3802
    %v4616 = vunpack.c.h.b16 %v3802
    %v4617 = vunpack.c.l.b16 %v3803
    %v4618 = vunpack.c.h.b16 %v3803
    %v4619 = vunpack.c.l.b16 %v3804
    %v4620 = vunpack.c.h.b16 %v3804
    %v4621 = vunpack.c.l.b16 %v3805
    %v4622 = vunpack.c.h.b16 %v3805
    %v4623 = vunpack.c.l.b16 %v3806
    %v4624 = vunpack.c.h.b16 %v3806
    %v4625 = vunpack.c.l.b16 %v3807
    %v4626 = vunpack.c.h.b16 %v3807
    %v4627 = vunpack.c.l.b16 %v3808
    %v4628 = vunpack.c.h.b16 %v3808
    %v4629 = vunpack.c.l.b16 %v3809
    %v4630 = vunpack.c.h.b16 %v3809
    %v4631 = vunpack.c.l.b16 %v3810
    %v4632 = vunpack.c.h.b16 %v3810
    %v4633 = vunpack.c.l.b16 %v3811
    %v4634 = vunpack.c.h.b16 %v3811
    %v4635 = vunpack.c.l.b16 %v3812
    %v4636 = vunpack.c.h.b16 %v3812
    %v4637 = vunpack.c.l.b16 %v3813
    %v4638 = vunpack.c.h.b16 %v3813
    %v4639 = vunpack.c.l.b16 %v3814
    %v4640 = vunpack.c.h.b16 %v3814
    %v4641 = vunpack.c.l.b16 %v3815
    %v4642 = vunpack.c.h.b16 %v3815
    %v4643 = vunpack.c.l.b16 %v3816
    %v4644 = vunpack.c.h.b16 %v3816
    %v4645 = vunpack.c.l.b16 %v3817
    %v4646 = vunpack.c.h.b16 %v3817
    %v4647 = vunpack.c.l.b16 %v3818
    %v4648 = vunpack.c.h.b16 %v3818
    %v4649 = vunpack.c.l.b16 %v3819
    %v4650 = vunpack.c.h.b16 %v3819
    %v4651 = vunpack.c.l.b16 %v3820
    %v4652 = vunpack.c.h.b16 %v3820
    %v4653 = vunpack.c.l.b16 %v3821
    %v4654 = vunpack.c.h.b16 %v3821
    %v4655 = vunpack.c.l.b16 %v3822
    %v4656 = vunpack.c.h.b16 %v3822
    %v4657 = vunpack.c.l.b16 %v3823
    %v4658 = vunpack.c.h.b16 %v3823
    %v4659 = vunpack.c.l.b16 %v3824
    %v4660 = vunpack.c.h.b16 %v3824
    %v4661 = vunpack.c.l.b16 %v3825
    %v4662 = vunpack.c.h.b16 %v3825
    %v4663 = vunpack.c.l.b16 %v3826
    %v4664 = vunpack.c.h.b16 %v3826
    %v4665 = vunpack.c.l.b16 %v3827
    %v4666 = vunpack.c.h.b16 %v3827
    %v4667 = vunpack.c.l.b16 %v3828
    %v4668 = vunpack.c.h.b16 %v3828
    %v4669 = vunpack.c.l.b16 %v3829
    %v4670 = vunpack.c.h.b16 %v3829
    %v4671 = vunpack.c.l.b16 %v3830
    %v4672 = vunpack.c.h.b16 %v3830
    %v4673 = vunpack.c.l.b16 %v3831
    %v4674 = vunpack.c.h.b16 %v3831
    %v4675 = vunpack.c.l.b16 %v3832
    %v4676 = vunpack.c.h.b16 %v3832
    %v4677 = vunpack.c.l.b16 %v3833
    %v4678 = vunpack.c.h.b16 %v3833
    %v4679 = vunpack.c.l.b16 %v3834
    %v4680 = vunpack.c.h.b16 %v3834
    %v4681 = vunpack.c.l.b16 %v3835
    %v4682 = vunpack.c.h.b16 %v3835
    %v4683 = vunpack.c.l.b16 %v3836
    %v4684 = vunpack.c.h.b16 %v3836
    %v4685 = vunpack.c.l.b16 %v3837
    %v4686 = vunpack.c.h.b16 %v3837
    %v4687 = vunpack.c.l.b16 %v3838
    %v4688 = vunpack.c.h.b16 %v3838
    %v4689 = vunpack.c.l.b16 %v3839
    %v4690 = vunpack.c.h.b16 %v3839
    %v4691 = vunpack.c.l.b16 %v3840
    %v4692 = vunpack.c.h.b16 %v3840
    %v4693 = vunpack.c.l.b16 %v3841
    %v4694 = vunpack.c.h.b16 %v3841
    %v4695 = vunpack.c.l.b16 %v3842
    %v4696 = vunpack.c.h.b16 %v3842
    %v4697 = vunpack.c.l.b16 %v3843
    %v4698 = vunpack.c.h.b16 %v3843
    %v4699 = vunpack.c.l.b16 %v3844
    %v4700 = vunpack.c.h.b16 %v3844
    %v4701 = vunpack.c.l.b16 %v3845
    %v4702 = vunpack.c.h.b16 %v3845
    %v4703 = vunpack.c.l.b16 %v3846
    %v4704 = vunpack.c.h.b16 %v3846
    %v4705 = vunpack.c.l.b16 %v3847
    %v4706 = vunpack.c.h.b16 %v3847
    %v4707 = vunpack.c.l.b16 %v3848
    %v4708 = vunpack.c.h.b16 %v3848
    %v4709 = vunpack.c.l.b16 %v3849
    %v4710 = vunpack.c.h.b16 %v3849
    %v4711 = vunpack.c.l.b16 %v3850
    %v4712 = vunpack.c.h.b16 %v3850
    %v4713 = vunpack.c.l.b16 %v3851
    %v4714 = vunpack.c.h.b16 %v3851
    %v4715 = vunpack.c.l.b16 %v3852
    %v4716 = vunpack.c.h.b16 %v3852
    %v4717 = vunpack.c.l.b16 %v3853
    %v4718 = vunpack.c.h.b16 %v3853
    %v4719 = vunpack.c.l.b16 %v3854
    %v4720 = vunpack.c.h.b16 %v3854
    %v4721 = vunpack.c.l.b16 %v3855
    %v4722 = vunpack.c.h.b16 %v3855
    %v4723 = vunpack.c.l.b16 %v3856
    %v4724 = vunpack.c.h.b16 %v3856
    %v4725 = vunpack.c.l.b16 %v3857
    %v4726 = vunpack.c.h.b16 %v3857
    %v4727 = vunpack.c.l.b16 %v3858
    %v4728 = vunpack.c.h.b16 %v3858
    %v4729 = vunpack.c.l.b16 %v3859
    %v4730 = vunpack.c.h.b16 %v3859
    %v4731 = vunpack.c.l.b16 %v3860
    %v4732 = vunpack.c.h.b16 %v3860
    %v4733 = vunpack.c.l.b16 %v3861
    %v4734 = vunpack.c.h.b16 %v3861
    %v4735 = vunpack.c.l.b16 %v3862
    %v4736 = vunpack.c.h.b16 %v3862
    %v4737 = vunpack.c.l.b16 %v3863
    %v4738 = vunpack.c.h.b16 %v3863
    %v4739 = vunpack.c.l.b16 %v3864
    %v4740 = vunpack.c.h.b16 %v3864
    %v4741 = vunpack.c.l.b16 %v3865
    %v4742 = vunpack.c.h.b16 %v3865
    %v4743 = vunpack.c.l.b16 %v3866
    %v4744 = vunpack.c.h.b16 %v3866
    %v4745 = vunpack.c.l.b16 %v3867
    %v4746 = vunpack.c.h.b16 %v3867
    %v4747 = vunpack.c.l.b16 %v3868
    %v4748 = vunpack.c.h.b16 %v3868
    %v4749 = vunpack.c.l.b16 %v3869
    %v4750 = vunpack.c.h.b16 %v3869
    %v4751 = vunpack.c.l.b16 %v3870
    %v4752 = vunpack.c.h.b16 %v3870
    %v4753 = vunpack.c.l.b16 %v3871
    %v4754 = vunpack.c.h.b16 %v3871
    %v4755 = vunpack.c.l.b16 %v3872
    %v4756 = vunpack.c.h.b16 %v3872
    %v4757 = vunpack.c.l.b16 %v3873
    %v4758 = vunpack.c.h.b16 %v3873
    %v4759 = vunpack.c.l.b16 %v3874
    %v4760 = vunpack.c.h.b16 %v3874
    %v4761 = vunpack.c.l.b16 %v3875
    %v4762 = vunpack.c.h.b16 %v3875
    %v4763 = vunpack.c.l.b16 %v3876
    %v4764 = vunpack.c.h.b16 %v3876
    %v4765 = vunpack.c.l.b16 %v3877
    %v4766 = vunpack.c.h.b16 %v3877
    %v4767 = vunpack.c.l.b16 %v3878
    %v4768 = vunpack.c.h.b16 %v3878
    %v4769 = vunpack.c.l.b16 %v3879
    %v4770 = vunpack.c.h.b16 %v3879
    %v4771 = vunpack.c.l.b16 %v3880
    %v4772 = vunpack.c.h.b16 %v3880
    %v4773 = vunpack.c.l.b16 %v3881
    %v4774 = vunpack.c.h.b16 %v3881
    %v4775 = vunpack.c.l.b16 %v3882
    %v4776 = vunpack.c.h.b16 %v3882
    %v4777 = vunpack.c.l.b16 %v3883
    %v4778 = vunpack.c.h.b16 %v3883
    %v4779 = vunpack.c.l.b16 %v3884
    %v4780 = vunpack.c.h.b16 %v3884
    %v4781 = vunpack.c.l.b16 %v3885
    %v4782 = vunpack.c.h.b16 %v3885
    %v4783 = vunpack.c.l.b16 %v3886
    %v4784 = vunpack.c.h.b16 %v3886
    %v4785 = vunpack.c.l.b16 %v3887
    %v4786 = vunpack.c.h.b16 %v3887
    %v4787 = vunpack.c.l.b16 %v3888
    %v4788 = vunpack.c.h.b16 %v3888
    %v4789 = vunpack.c.l.b16 %v3889
    %v4790 = vunpack.c.h.b16 %v3889
    %v4791 = vunpack.c.l.b16 %v3890
    %v4792 = vunpack.c.h.b16 %v3890
    %v4793 = vunpack.c.l.b16 %v3891
    %v4794 = vunpack.c.h.b16 %v3891
    %v4795 = vunpack.c.l.b16 %v3892
    %v4796 = vunpack.c.h.b16 %v3892
    %v4797 = vunpack.c.l.b16 %v3893
    %v4798 = vunpack.c.h.b16 %v3893
    %v4799 = vunpack.c.l.b16 %v3894
    %v4800 = vunpack.c.h.b16 %v3894
    %v4801 = vunpack.c.l.b16 %v3895
    %v4802 = vunpack.c.h.b16 %v3895
    %v4803 = vunpack.c.l.b16 %v3896
    %v4804 = vunpack.c.h.b16 %v3896
    %v4805 = vunpack.c.l.b16 %v3897
    %v4806 = vunpack.c.h.b16 %v3897
    %v4807 = vunpack.c.l.b16 %v3898
    %v4808 = vunpack.c.h.b16 %v3898
    %v4809 = vunpack.c.l.b16 %v3899
    %v4810 = vunpack.c.h.b16 %v3899
    %v4811 = vunpack.c.l.b16 %v3900
    %v4812 = vunpack.c.h.b16 %v3900
    %v4813 = vunpack.c.l.b16 %v3901
    %v4814 = vunpack.c.h.b16 %v3901
    %v4815 = vunpack.c.l.b16 %v3902
    %v4816 = vunpack.c.h.b16 %v3902
    %v4817 = vunpack.c.l.b16 %v3903
    %v4818 = vunpack.c.h.b16 %v3903
    %v4819 = vunpack.c.l.b16 %v3904
    %v4820 = vunpack.c.h.b16 %v3904
    %v4821 = vunpack.c.l.b16 %v3905
    %v4822 = vunpack.c.h.b16 %v3905
    %v4823 = vunpack.c.l.b16 %v3906
    %v4824 = vunpack.c.h.b16 %v3906
    %v4825 = vunpack.c.l.b16 %v3907
    %v4826 = vunpack.c.h.b16 %v3907
    %v4827 = vunpack.c.l.b16 %v3908
    %v4828 = vunpack.c.h.b16 %v3908
    %v4829 = vunpack.c.l.b16 %v3909
    %v4830 = vunpack.c.h.b16 %v3909
    %v4831 = vunpack.c.l.b16 %v3910
    %v4832 = vunpack.c.h.b16 %v3910
    %v4833 = vunpack.c.l.b16 %v3911
    %v4834 = vunpack.c.h.b16 %v3911
    %v4835 = vunpack.c.l.b16 %v3912
    %v4836 = vunpack.c.h.b16 %v3912
    %v4837 = vunpack.c.l.b16 %v3913
    %v4838 = vunpack.c.h.b16 %v3913
    %v4839 = vunpack.c.l.b16 %v3914
    %v4840 = vunpack.c.h.b16 %v3914
    %v4841 = vunpack.c.l.b16 %v3915
    %v4842 = vunpack.c.h.b16 %v3915
    %v4843 = vunpack.c.l.b16 %v3916
    %v4844 = vunpack.c.h.b16 %v3916
    %v4845 = vunpack.c.l.b16 %v3917
    %v4846 = vunpack.c.h.b16 %v3917
    %v4847 = vunpack.c.l.b16 %v3918
    %v4848 = vunpack.c.h.b16 %v3918
    %v4849 = vunpack.c.l.b16 %v3919
    %v4850 = vunpack.c.h.b16 %v3919
    %v4851 = vunpack.c.l.b16 %v3920
    %v4852 = vunpack.c.h.b16 %v3920
    %v4853 = vunpack.c.l.b16 %v3921
    %v4854 = vunpack.c.h.b16 %v3921
    %v4855 = vunpack.c.l.b16 %v3922
    %v4856 = vunpack.c.h.b16 %v3922
    %v4857 = vunpack.c.l.b16 %v3923
    %v4858 = vunpack.c.h.b16 %v3923
    %v4859 = vunpack.c.l.b16 %v3924
    %v4860 = vunpack.c.h.b16 %v3924
    %v4861 = vunpack.c.l.b16 %v3925
    %v4862 = vunpack.c.h.b16 %v3925
    %v4863 = vunpack.c.l.b16 %v3926
    %v4864 = vunpack.c.h.b16 %v3926
    %v4865 = vunpack.c.l.b16 %v3927
    %v4866 = vunpack.c.h.b16 %v3927
    %v4867 = vunpack.c.l.b16 %v3928
    %v4868 = vunpack.c.h.b16 %v3928
    %v4869 = vunpack.c.l.b16 %v3929
    %v4870 = vunpack.c.h.b16 %v3929
    %v4871 = vunpack.c.l.b16 %v3930
    %v4872 = vunpack.c.h.b16 %v3930
    %v4873 = vunpack.c.l.b16 %v3931
    %v4874 = vunpack.c.h.b16 %v3931
    %v4875 = vunpack.c.l.b16 %v3932
    %v4876 = vunpack.c.h.b16 %v3932
    %v4877 = vunpack.c.l.b16 %v3933
    %v4878 = vunpack.c.h.b16 %v3933
    %v4879 = vunpack.c.l.b16 %v3934
    %v4880 = vunpack.c.h.b16 %v3934
    %v4881 = vunpack.c.l.b16 %v3935
    %v4882 = vunpack.c.h.b16 %v3935
    %v4883 = vunpack.c.l.b16 %v3936
    %v4884 = vunpack.c.h.b16 %v3936
    %v4885 = vunpack.c.l.b16 %v3937
    %v4886 = vunpack.c.h.b16 %v3937
    %v4887 = vunpack.c.l.b16 %v3938
    %v4888 = vunpack.c.h.b16 %v3938
    %v4889 = vunpack.c.l.b16 %v3939
    %v4890 = vunpack.c.h.b16 %v3939
    %v4891 = vunpack.c.l.b16 %v3940
    %v4892 = vunpack.c.h.b16 %v3940
    %v4893 = vunpack.c.l.b16 %v3941
    %v4894 = vunpack.c.h.b16 %v3941
    %v4895 = vunpack.c.l.b16 %v3942
    %v4896 = vunpack.c.h.b16 %v3942
    %v4897 = vunpack.c.l.b16 %v3943
    %v4898 = vunpack.c.h.b16 %v3943
    %v4899 = vunpack.c.l.b16 %v3944
    %v4900 = vunpack.c.h.b16 %v3944
    %v4901 = vunpack.c.l.b16 %v3945
    %v4902 = vunpack.c.h.b16 %v3945
    %v4903 = vunpack.c.l.b16 %v3946
    %v4904 = vunpack.c.h.b16 %v3946
    %v4905 = vunpack.c.l.b16 %v3947
    %v4906 = vunpack.c.h.b16 %v3947
    %v4907 = vunpack.c.l.b16 %v3948
    %v4908 = vunpack.c.h.b16 %v3948
    %v4909 = vunpack.c.l.b16 %v3949
    %v4910 = vunpack.c.h.b16 %v3949
    %v4911 = vunpack.c.l.b16 %v3950
    %v4912 = vunpack.c.h.b16 %v3950
    %v4913 = vunpack.c.l.b16 %v3951
    %v4914 = vunpack.c.h.b16 %v3951
    %v4915 = vunpack.c.l.b16 %v3952
    %v4916 = vunpack.c.h.b16 %v3952
    %v4917 = vunpack.c.l.b16 %v3953
    %v4918 = vunpack.c.h.b16 %v3953
    %v4919 = vunpack.c.l.b16 %v3954
    %v4920 = vunpack.c.h.b16 %v3954
    %v4921 = vunpack.c.l.b16 %v3955
    %v4922 = vunpack.c.h.b16 %v3955
    %v4923 = vunpack.c.l.b16 %v3956
    %v4924 = vunpack.c.h.b16 %v3956
    %v4925 = vunpack.c.l.b16 %v3957
    %v4926 = vunpack.c.h.b16 %v3957
    %v4927 = vunpack.c.l.b16 %v3958
    %v4928 = vunpack.c.h.b16 %v3958
    %v4929 = vunpack.c.l.b16 %v3959
    %v4930 = vunpack.c.h.b16 %v3959
    %v4931 = vunpack.c.l.b16 %v3960
    %v4932 = vunpack.c.h.b16 %v3960
    %v4933 = vunpack.c.l.b16 %v3961
    %v4934 = vunpack.c.h.b16 %v3961
    %v4935 = vunpack.c.l.b16 %v3962
    %v4936 = vunpack.c.h.b16 %v3962
    %v4937 = vunpack.c.l.b16 %v3963
    %v4938 = vunpack.c.h.b16 %v3963
    %v4939 = vunpack.c.l.b16 %v3964
    %v4940 = vunpack.c.h.b16 %v3964
    %v4941 = vunpack.c.l.b16 %v3965
    %v4942 = vunpack.c.h.b16 %v3965
    %v4943 = vunpack.c.l.b16 %v3966
    %v4944 = vunpack.c.h.b16 %v3966
    %v4945 = vunpack.c.l.b16 %v3967
    %v4946 = vunpack.c.h.b16 %v3967
    %v4947 = vunpack.c.l.b16 %v3968
    %v4948 = vunpack.c.h.b16 %v3968
    %v4949 = vunpack.c.l.b16 %v3969
    %v4950 = vunpack.c.h.b16 %v3969
    %v4951 = vunpack.c.l.b16 %v3970
    %v4952 = vunpack.c.h.b16 %v3970
    %v4953 = vunpack.c.l.b16 %v3971
    %v4954 = vunpack.c.h.b16 %v3971
    %v4955 = vunpack.c.l.b16 %v3972
    %v4956 = vunpack.c.h.b16 %v3972
    %v4957 = vunpack.c.l.b16 %v3973
    %v4958 = vunpack.c.h.b16 %v3973
    %v4959 = vunpack.c.l.b16 %v3974
    %v4960 = vunpack.c.h.b16 %v3974
    %v4961 = vunpack.c.l.b16 %v3975
    %v4962 = vunpack.c.h.b16 %v3975
    %v4963 = vunpack.c.l.b16 %v3976
    %v4964 = vunpack.c.h.b16 %v3976
    %v4965 = vunpack.c.l.b16 %v3977
    %v4966 = vunpack.c.h.b16 %v3977
    %v4967 = vunpack.c.l.b16 %v3978
    %v4968 = vunpack.c.h.b16 %v3978
    %v4969 = vunpack.c.l.b16 %v3979
    %v4970 = vunpack.c.h.b16 %v3979
    %v4971 = vunpack.c.l.b16 %v3980
    %v4972 = vunpack.c.h.b16 %v3980
    %v4973 = vunpack.c.l.b16 %v3981
    %v4974 = vunpack.c.h.b16 %v3981
    %v4975 = vunpack.c.l.b16 %v3982
    %v4976 = vunpack.c.h.b16 %v3982
    %v4977 = vunpack.c.l.b16 %v3983
    %v4978 = vunpack.c.h.b16 %v3983
    %v4979 = vunpack.c.l.b16 %v3984
    %v4980 = vunpack.c.h.b16 %v3984
    %v4981 = vunpack.c.l.b16 %v3985
    %v4982 = vunpack.c.h.b16 %v3985
    %v4983 = vunpack.c.l.b16 %v3986
    %v4984 = vunpack.c.h.b16 %v3986
    %v4985 = vunpack.c.l.b16 %v3987
    %v4986 = vunpack.c.h.b16 %v3987
    %v4987 = vunpack.c.l.b16 %v3988
    %v4988 = vunpack.c.h.b16 %v3988
    %v4989 = vunpack.c.l.b16 %v3989
    %v4990 = vunpack.c.h.b16 %v3989
    %v4991 = vunpack.c.l.b16 %v3990
    %v4992 = vunpack.c.h.b16 %v3990
    %v4993 = vunpack.c.l.b16 %v3991
    %v4994 = vunpack.c.h.b16 %v3991
    %v4995 = vunpack.c.l.b16 %v3992
    %v4996 = vunpack.c.h.b16 %v3992
    %v4997 = vunpack.c.l.b16 %v3993
    %v4998 = vunpack.c.h.b16 %v3993
    %v4999 = vunpack.c.l.b16 %v3994
    %v5000 = vunpack.c.h.b16 %v3994
    %v5001 = vunpack.c.l.b16 %v3995
    %v5002 = vunpack.c.h.b16 %v3995
    %v5003 = vunpack.c.l.b16 %v3996
    %v5004 = vunpack.c.h.b16 %v3996
    %v5005 = vunpack.c.l.b16 %v3997
    %v5006 = vunpack.c.h.b16 %v3997
    %v5007 = vunpack.c.l.b16 %v3998
    %v5008 = vunpack.c.h.b16 %v3998
    %v5009 = vunpack.c.l.b16 %v3999
    %v5010 = vunpack.c.h.b16 %v3999
    %v5011 = vunpack.c.l.b16 %v4000
    %v5012 = vunpack.c.h.b16 %v4000
    %v5013 = vunpack.c.l.b16 %v4001
    %v5014 = vunpack.c.h.b16 %v4001
    %v5015 = vunpack.c.l.b16 %v4002
    %v5016 = vunpack.c.h.b16 %v4002
    %v5017 = vunpack.c.l.b16 %v4003
    %v5018 = vunpack.c.h.b16 %v4003
    %v5019 = vunpack.c.l.b16 %v4004
    %v5020 = vunpack.c.h.b16 %v4004
    %v5021 = vunpack.c.l.b16 %v4005
    %v5022 = vunpack.c.h.b16 %v4005
    %v5023 = vunpack.c.l.b16 %v4006
    %v5024 = vunpack.c.h.b16 %v4006
    %v5025 = vunpack.c.l.b16 %v4007
    %v5026 = vunpack.c.h.b16 %v4007
    %v5027 = vunpack.c.l.b16 %v4008
    %v5028 = vunpack.c.h.b16 %v4008
    %v5029 = vunpack.c.l.b16 %v4009
    %v5030 = vunpack.c.h.b16 %v4009
    %v5031 = vunpack.c.l.b16 %v4010
    %v5032 = vunpack.c.h.b16 %v4010
    %v5033 = vunpack.c.l.b16 %v4011
    %v5034 = vunpack.c.h.b16 %v4011
    %v5035 = vunpack.c.l.b16 %v4012
    %v5036 = vunpack.c.h.b16 %v4012
    %v5037 = vunpack.c.l.b16 %v4013
    %v5038 = vunpack.c.h.b16 %v4013
    %v5039 = vunpack.c.l.b16 %v4014
    %v5040 = vunpack.c.h.b16 %v4014
    %v5041 = vunpack.c.l.b16 %v4015
    %v5042 = vunpack.c.h.b16 %v4015
    %v5043 = vunpack.c.l.b16 %v4016
    %v5044 = vunpack.c.h.b16 %v4016
    %v5045 = vunpack.c.l.b16 %v4017
    %v5046 = vunpack.c.h.b16 %v4017
    %v5047 = vunpack.c.l.b16 %v4018
    %v5048 = vunpack.c.h.b16 %v4018
    %v5049 = vunpack.c.l.b16 %v4019
    %v5050 = vunpack.c.h.b16 %v4019
    %v5051 = vunpack.c.l.b16 %v4020
    %v5052 = vunpack.c.h.b16 %v4020
    %v5053 = vunpack.c.l.b16 %v4021
    %v5054 = vunpack.c.h.b16 %v4021
    %v5055 = vunpack.c.l.b16 %v4022
    %v5056 = vunpack.c.h.b16 %v4022
    %v5057 = vunpack.c.l.b16 %v4023
    %v5058 = vunpack.c.h.b16 %v4023
    %v5059 = vunpack.c.l.b16 %v4024
    %v5060 = vunpack.c.h.b16 %v4024
    %v5061 = vunpack.c.l.b16 %v4025
    %v5062 = vunpack.c.h.b16 %v4025
    %v5063 = vunpack.c.l.b16 %v4026
    %v5064 = vunpack.c.h.b16 %v4026
    %v5065 = vunpack.c.l.b16 %v4027
    %v5066 = vunpack.c.h.b16 %v4027
    %v5067 = vunpack.c.l.b16 %v4028
    %v5068 = vunpack.c.h.b16 %v4028
    %v5069 = vunpack.c.l.b16 %v4029
    %v5070 = vunpack.c.h.b16 %v4029
    %v5071 = vunpack.c.l.b16 %v4030
    %v5072 = vunpack.c.h.b16 %v4030
    %v5073 = vunpack.c.l.b16 %v4031
    %v5074 = vunpack.c.h.b16 %v4031
    %v5075 = vunpack.c.l.b16 %v4032
    %v5076 = vunpack.c.h.b16 %v4032
    %v5077 = vunpack.c.l.b16 %v4033
    %v5078 = vunpack.c.h.b16 %v4033
    %v5079 = vunpack.c.l.b16 %v4034
    %v5080 = vunpack.c.h.b16 %v4034
    %v5081 = vunpack.c.l.b16 %v4035
    %v5082 = vunpack.c.h.b16 %v4035
    %v5083 = vunpack.c.l.b16 %v4036
    %v5084 = vunpack.c.h.b16 %v4036
    %v5085 = vunpack.c.l.b16 %v4037
    %v5086 = vunpack.c.h.b16 %v4037
    %v5087 = vunpack.c.l.b16 %v4038
    %v5088 = vunpack.c.h.b16 %v4038
    %v5089 = vunpack.c.l.b16 %v4039
    %v5090 = vunpack.c.h.b16 %v4039
    %v5091 = vunpack.c.l.b16 %v4040
    %v5092 = vunpack.c.h.b16 %v4040
    %v5093 = vunpack.c.l.b16 %v4041
    %v5094 = vunpack.c.h.b16 %v4041
    %v5095 = vunpack.c.l.b16 %v4042
    %v5096 = vunpack.c.h.b16 %v4042
    %v5097 = vunpack.c.l.b16 %v4043
    %v5098 = vunpack.c.h.b16 %v4043
    %v5099 = vunpack.c.l.b16 %v4044
    %v5100 = vunpack.c.h.b16 %v4044
    %v5101 = vunpack.c.l.b16 %v4045
    %v5102 = vunpack.c.h.b16 %v4045
    %v5103 = vunpack.c.l.b16 %v4046
    %v5104 = vunpack.c.h.b16 %v4046
    %v5105 = vunpack.c.l.b16 %v4047
    %v5106 = vunpack.c.h.b16 %v4047
    %v5107 = vunpack.c.l.b16 %v4048
    %v5108 = vunpack.c.h.b16 %v4048
    %v5109 = vunpack.c.l.b16 %v4049
    %v5110 = vunpack.c.h.b16 %v4049
    %v5111 = vunpack.c.l.b16 %v4050
    %v5112 = vunpack.c.h.b16 %v4050
    %v5113 = vunpack.c.l.b16 %v4051
    %v5114 = vunpack.c.h.b16 %v4051
    %v5115 = vunpack.c.l.b16 %v4052
    %v5116 = vunpack.c.h.b16 %v4052
    %v5117 = vunpack.c.l.b16 %v4053
    %v5118 = vunpack.c.h.b16 %v4053
    %v5119 = vunpack.c.l.b16 %v4054
    %v5120 = vunpack.c.h.b16 %v4054
    %v5121 = vunpack.c.l.b16 %v4055
    %v5122 = vunpack.c.h.b16 %v4055
    %v5123 = vunpack.c.l.b16 %v4056
    %v5124 = vunpack.c.h.b16 %v4056
    %v5125 = vunpack.c.l.b16 %v4057
    %v5126 = vunpack.c.h.b16 %v4057
    %v5127 = vunpack.c.l.b16 %v4058
    %v5128 = vunpack.c.h.b16 %v4058
    %v5129 = vunpack.c.l.b16 %v4059
    %v5130 = vunpack.c.h.b16 %v4059
    %v5131 = vunpack.c.l.b16 %v4060
    %v5132 = vunpack.c.h.b16 %v4060
    %v5133 = vunpack.c.l.b16 %v4061
    %v5134 = vunpack.c.h.b16 %v4061
    %v5135 = vunpack.c.l.b16 %v4062
    %v5136 = vunpack.c.h.b16 %v4062
    %v5137 = vunpack.c.l.b16 %v4063
    %v5138 = vunpack.c.h.b16 %v4063
    %v5139 = vunpack.c.l.b16 %v4064
    %v5140 = vunpack.c.h.b16 %v4064
    %v5141 = vunpack.c.l.b16 %v4065
    %v5142 = vunpack.c.h.b16 %v4065
    %v5143 = vunpack.c.l.b16 %v4066
    %v5144 = vunpack.c.h.b16 %v4066
    %v5145 = vunpack.c.l.b16 %v4067
    %v5146 = vunpack.c.h.b16 %v4067
    %v5147 = vunpack.c.l.b16 %v4068
    %v5148 = vunpack.c.h.b16 %v4068
    %v5149 = vunpack.c.l.b16 %v4069
    %v5150 = vunpack.c.h.b16 %v4069
    %v5151 = vunpack.c.l.b16 %v4070
    %v5152 = vunpack.c.h.b16 %v4070
    %v5153 = vunpack.c.l.b16 %v4071
    %v5154 = vunpack.c.h.b16 %v4071
    %v5155 = vunpack.c.l.b16 %v4072
    %v5156 = vunpack.c.h.b16 %v4072
    %v5157 = vunpack.c.l.b16 %v4073
    %v5158 = vunpack.c.h.b16 %v4073
    %v5159 = vunpack.c.l.b16 %v4074
    %v5160 = vunpack.c.h.b16 %v4074
    %v5161 = vunpack.c.l.b16 %v4075
    %v5162 = vunpack.c.h.b16 %v4075
    %v5163 = vunpack.c.l.b16 %v4076
    %v5164 = vunpack.c.h.b16 %v4076
    %v5165 = vunpack.c.l.b16 %v4077
    %v5166 = vunpack.c.h.b16 %v4077
    %v5167 = vunpack.c.l.b16 %v4078
    %v5168 = vunpack.c.h.b16 %v4078
    %v5169 = vunpack.c.l.b16 %v4079
    %v5170 = vunpack.c.h.b16 %v4079
    %v5171 = vunpack.c.l.b16 %v4080
    %v5172 = vunpack.c.h.b16 %v4080
    %v5173 = vunpack.c.l.b16 %v4081
    %v5174 = vunpack.c.h.b16 %v4081
    %v5175 = vunpack.c.l.b16 %v4082
    %v5176 = vunpack.c.h.b16 %v4082
    %v5177 = vunpack.c.l.b16 %v4083
    %v5178 = vunpack.c.h.b16 %v4083
    %v5179 = vunpack.c.l.b16 %v4084
    %v5180 = vunpack.c.h.b16 %v4084
    %v5181 = vunpack.c.l.b16 %v4085
    %v5182 = vunpack.c.h.b16 %v4085
    %v5183 = vunpack.c.l.b16 %v4086
    %v5184 = vunpack.c.h.b16 %v4086
    %v5185 = vunpack.c.l.b16 %v4087
    %v5186 = vunpack.c.h.b16 %v4087
    %v5187 = vunpack.c.l.b16 %v4088
    %v5188 = vunpack.c.h.b16 %v4088
    %v5189 = vunpack.c.l.b16 %v4089
    %v5190 = vunpack.c.h.b16 %v4089
    %v5191 = vunpack.c.l.b16 %v4090
    %v5192 = vunpack.c.h.b16 %v4090
    %v5193 = vunpack.c.l.b16 %v4091
    %v5194 = vunpack.c.h.b16 %v4091
    %v5195 = vunpack.c.l.b16 %v4092
    %v5196 = vunpack.c.h.b16 %v4092
    %v5197 = vunpack.c.l.b16 %v4093
    %v5198 = vunpack.c.h.b16 %v4093
    %v5199 = vunpack.c.l.b16 %v4094
    %v5200 = vunpack.c.h.b16 %v4094
    %v5201 = vunpack.c.l.b16 %v4095
    %v5202 = vunpack.c.h.b16 %v4095
    %v5203 = vunpack.c.l.b16 %v4096
    %v5204 = vunpack.c.h.b16 %v4096
    %v5205 = vunpack.c.l.b16 %v4097
    %v5206 = vunpack.c.h.b16 %v4097
    %v5207 = vunpack.c.l.b16 %v4098
    %v5208 = vunpack.c.h.b16 %v4098
    %v5209 = vunpack.c.l.b16 %v4099
    %v5210 = vunpack.c.h.b16 %v4099
    %v5211 = vunpack.c.l.b16 %v4100
    %v5212 = vunpack.c.h.b16 %v4100
    %v5213 = vunpack.c.l.b16 %v4101
    %v5214 = vunpack.c.h.b16 %v4101
    %v5215 = vunpack.c.l.b16 %v4102
    %v5216 = vunpack.c.h.b16 %v4102
    %v5217 = vunpack.c.l.b16 %v4103
    %v5218 = vunpack.c.h.b16 %v4103
    %v5219 = vunpack.c.l.b16 %v4104
    %v5220 = vunpack.c.h.b16 %v4104
    %v5221 = vunpack.c.l.b16 %v4105
    %v5222 = vunpack.c.h.b16 %v4105
    %v5223 = vunpack.c.l.b16 %v4106
    %v5224 = vunpack.c.h.b16 %v4106
    %v5225 = vunpack.c.l.b16 %v4107
    %v5226 = vunpack.c.h.b16 %v4107
    %v5227 = vunpack.c.l.b16 %v4108
    %v5228 = vunpack.c.h.b16 %v4108
    %v5229 = vunpack.c.l.b16 %v4109
    %v5230 = vunpack.c.h.b16 %v4109
    %v5231 = vunpack.c.l.b16 %v4110
    %v5232 = vunpack.c.h.b16 %v4110
    %v5233 = vunpack.c.l.b16 %v4111
    %v5234 = vunpack.c.h.b16 %v4111
    %v5235 = vunpack.c.l.b16 %v4112
    %v5236 = vunpack.c.h.b16 %v4112
    %v5237 = vunpack.c.l.b16 %v4113
    %v5238 = vunpack.c.h.b16 %v4113
    %v5239 = vunpack.c.l.b16 %v4114
    %v5240 = vunpack.c.h.b16 %v4114
    %v5241 = vunpack.c.l.b16 %v4115
    %v5242 = vunpack.c.h.b16 %v4115
    %v5243 = vunpack.c.l.b16 %v4116
    %v5244 = vunpack.c.h.b16 %v4116
    %v5245 = vunpack.c.l.b16 %v4117
    %v5246 = vunpack.c.h.b16 %v4117
    %v5247 = vunpack.c.l.b16 %v4118
    %v5248 = vunpack.c.h.b16 %v4118
    %v5249 = vunpack.c.l.b16 %v4119
    %v5250 = vunpack.c.h.b16 %v4119
    %v5251 = vunpack.c.l.b16 %v4120
    %v5252 = vunpack.c.h.b16 %v4120
    %v5253 = vunpack.c.l.b16 %v4121
    %v5254 = vunpack.c.h.b16 %v4121
    %v5255 = vunpack.c.l.b16 %v4122
    %v5256 = vunpack.c.h.b16 %v4122
    %v5257 = vunpack.c.l.b16 %v4123
    %v5258 = vunpack.c.h.b16 %v4123
    %v5259 = vunpack.c.l.b16 %v4124
    %v5260 = vunpack.c.h.b16 %v4124
    %v5261 = vunpack.c.l.b16 %v4125
    %v5262 = vunpack.c.h.b16 %v4125
    %v5263 = vunpack.c.l.b16 %v4126
    %v5264 = vunpack.c.h.b16 %v4126
    %v5265 = vunpack.c.l.b16 %v4127
    %v5266 = vunpack.c.h.b16 %v4127
    %v5267 = vunpack.c.l.b16 %v4128
    %v5268 = vunpack.c.h.b16 %v4128
    %v5269 = vunpack.c.l.b16 %v4129
    %v5270 = vunpack.c.h.b16 %v4129
    %v5271 = vunpack.c.l.b16 %v4130
    %v5272 = vunpack.c.h.b16 %v4130
    %v5273 = vunpack.c.l.b16 %v4131
    %v5274 = vunpack.c.h.b16 %v4131
    %v5275 = vunpack.c.l.b16 %v4132
    %v5276 = vunpack.c.h.b16 %v4132
    %v5277 = vunpack.c.l.b16 %v4133
    %v5278 = vunpack.c.h.b16 %v4133
    %v5279 = vunpack.c.l.b16 %v4134
    %v5280 = vunpack.c.h.b16 %v4134
    %v5281 = vunpack.c.l.b16 %v4135
    %v5282 = vunpack.c.h.b16 %v4135
    %v5283 = vunpack.c.l.b16 %v4136
    %v5284 = vunpack.c.h.b16 %v4136
    %v5285 = vunpack.c.l.b16 %v4137
    %v5286 = vunpack.c.h.b16 %v4137
    %v5287 = vunpack.c.l.b16 %v4138
    %v5288 = vunpack.c.h.b16 %v4138
    %v5289 = vunpack.c.l.b16 %v4139
    %v5290 = vunpack.c.h.b16 %v4139
    %v5291 = vunpack.c.l.b16 %v4140
    %v5292 = vunpack.c.h.b16 %v4140
    %v5293 = vunpack.c.l.b16 %v4141
    %v5294 = vunpack.c.h.b16 %v4141
    %v5295 = vunpack.c.l.b16 %v4142
    %v5296 = vunpack.c.h.b16 %v4142
    %v5297 = vunpack.c.l.b16 %v4143
    %v5298 = vunpack.c.h.b16 %v4143
    %v5299 = vunpack.c.l.b16 %v4144
    %v5300 = vunpack.c.h.b16 %v4144
    %v5301 = vunpack.c.l.b16 %v4145
    %v5302 = vunpack.c.h.b16 %v4145
    %v5303 = vunpack.c.l.b16 %v4146
    %v5304 = vunpack.c.h.b16 %v4146
    %v5305 = vunpack.c.l.b16 %v4147
    %v5306 = vunpack.c.h.b16 %v4147
    %v5307 = vunpack.c.l.b16 %v4148
    %v5308 = vunpack.c.h.b16 %v4148
    %v5309 = vunpack.c.l.b16 %v4149
    %v5310 = vunpack.c.h.b16 %v4149
    %v5311 = vunpack.c.l.b16 %v4150
    %v5312 = vunpack.c.h.b16 %v4150
    %v5313 = vunpack.c.l.b16 %v4151
    %v5314 = vunpack.c.h.b16 %v4151
    %v5315 = vunpack.c.l.b16 %v4152
    %v5316 = vunpack.c.h.b16 %v4152
    %v5317 = vunpack.c.l.b16 %v4153
    %v5318 = vunpack.c.h.b16 %v4153
    %v5319 = vunpack.c.l.b16 %v4154
    %v5320 = vunpack.c.h.b16 %v4154
    %v5321 = vpack.c.b16 %v4559, %v4553
    %v5322 = vpack.c.b16 %v4560, %v4554
    %v5323 = vpack.c.b16 %v4561, %v4555
    %v5324 = vpack.c.b16 %v4562, %v4556
    %v5325 = vpack.c.b16 %v4563, %v4557
    %v5326 = vpack.c.b16 %v4564, %v4558
    %v5327 = vpack.c.b16 %v4571, %v4565
    %v5328 = vpack.c.b16 %v4572, %v4566
    %v5329 = vpack.c.b16 %v4573, %v4567
    %v5330 = vpack.c.b16 %v4574, %v4568
    %v5331 = vpack.c.b16 %v4575, %v4569
    %v5332 = vpack.c.b16 %v4576, %v4570
    %v5333 = vpack.c.b16 %v4583, %v4577
    %v5334 = vpack.c.b16 %v4584, %v4578
    %v5335 = vpack.c.b16 %v4585, %v4579
    %v5336 = vpack.c.b16 %v4586, %v4580
    %v5337 = vpack.c.b16 %v4587, %v4581
    %v5338 = vpack.c.b16 %v4588, %v4582
    %v5339 = vpack.c.b16 %v4595, %v4589
    %v5340 = vpack.c.b16 %v4596, %v4590
    %v5341 = vpack.c.b16 %v4597, %v4591
    %v5342 = vpack.c.b16 %v4598, %v4592
    %v5343 = vpack.c.b16 %v4599, %v4593
    %v5344 = vpack.c.b16 %v4600, %v4594
    %v5345 = vpack.c.b16 %v4607, %v4601
    %v5346 = vpack.c.b16 %v4608, %v4602
    %v5347 = vpack.c.b16 %v4609, %v4603
    %v5348 = vpack.c.b16 %v4610, %v4604
    %v5349 = vpack.c.b16 %v4611, %v4605
    %v5350 = vpack.c.b16 %v4612, %v4606
    %v5351 = vpack.c.b16 %v4619, %v4613
    %v5352 = vpack.c.b16 %v4620, %v4614
    %v5353 = vpack.c.b16 %v4621, %v4615
    %v5354 = vpack.c.b16 %v4622, %v4616
    %v5355 = vpack.c.b16 %v4623, %v4617
    %v5356 = vpack.c.b16 %v4624, %v4618
    %v5357 = vpack.c.b16 %v4631, %v4625
    %v5358 = vpack.c.b16 %v4632, %v4626
    %v5359 = vpack.c.b16 %v4633, %v4627
    %v5360 = vpack.c.b16 %v4634, %v4628
    %v5361 = vpack.c.b16 %v4635, %v4629
    %v5362 = vpack.c.b16 %v4636, %v4630
    %v5363 = vpack.c.b16 %v4643, %v4637
    %v5364 = vpack.c.b16 %v4644, %v4638
    %v5365 = vpack.c.b16 %v4645, %v4639
    %v5366 = vpack.c.b16 %v4646, %v4640
    %v5367 = vpack.c.b16 %v4647, %v4641
    %v5368 = vpack.c.b16 %v4648, %v4642
    %v5369 = vpack.c.b16 %v4655, %v4649
    %v5370 = vpack.c.b16 %v4656, %v4650
    %v5371 = vpack.c.b16 %v4657, %v4651
    %v5372 = vpack.c.b16 %v4658, %v4652
    %v5373 = vpack.c.b16 %v4659, %v4653
    %v5374 = vpack.c.b16 %v4660, %v4654
    %v5375 = vpack.c.b16 %v4667, %v4661
    %v5376 = vpack.c.b16 %v4668, %v4662
    %v5377 = vpack.c.b16 %v4669, %v4663
    %v5378 = vpack.c.b16 %v4670, %v4664
    %v5379 = vpack.c.b16 %v4671, %v4665
    %v5380 = vpack.c.b16 %v4672, %v4666
    %v5381 = vpack.c.b16 %v4679, %v4673
    %v5382 = vpack.c.b16 %v4680, %v4674
    %v5383 = vpack.c.b16 %v4681, %v4675
    %v5384 = vpack.c.b16 %v4682, %v4676
    %v5385 = vpack.c.b16 %v4683, %v4677
    %v5386 = vpack.c.b16 %v4684, %v4678
    %v5387 = vpack.c.b16 %v4691, %v4685
    %v5388 = vpack.c.b16 %v4692, %v4686
    %v5389 = vpack.c.b16 %v4693, %v4687
    %v5390 = vpack.c.b16 %v4694, %v4688
    %v5391 = vpack.c.b16 %v4695, %v4689
    %v5392 = vpack.c.b16 %v4696, %v4690
    %v5393 = vpack.c.b16 %v4703, %v4697
    %v5394 = vpack.c.b16 %v4704, %v4698
    %v5395 = vpack.c.b16 %v4705, %v4699
    %v5396 = vpack.c.b16 %v4706, %v4700
    %v5397 = vpack.c.b16 %v4707, %v4701
    %v5398 = vpack.c.b16 %v4708, %v4702
    %v5399 = vpack.c.b16 %v4715, %v4709
    %v5400 = vpack.c.b16 %v4716, %v4710
    %v5401 = vpack.c.b16 %v4717, %v4711
    %v5402 = vpack.c.b16 %v4718, %v4712
    %v5403 = vpack.c.b16 %v4719, %v4713
    %v5404 = vpack.c.b16 %v4720, %v4714
    %v5405 = vpack.c.b16 %v4727, %v4721
    %v5406 = vpack.c.b16 %v4728, %v4722
    %v5407 = vpack.c.b16 %v4729, %v4723
    %v5408 = vpack.c.b16 %v4730, %v4724
    %v5409 = vpack.c.b16 %v4731, %v4725
    %v5410 = vpack.c.b16 %v4732, %v4726
    %v5411 = vpack.c.b16 %v4739, %v4733
    %v5412 = vpack.c.b16 %v4740, %v4734
    %v5413 = vpack.c.b16 %v4741, %v4735
    %v5414 = vpack.c.b16 %v4742, %v4736
    %v5415 = vpack.c.b16 %v4743, %v4737
    %v5416 = vpack.c.b16 %v4744, %v4738
    %v5417 = vpack.c.b16 %v4751, %v4745
    %v5418 = vpack.c.b16 %v4752, %v4746
    %v5419 = vpack.c.b16 %v4753, %v4747
    %v5420 = vpack.c.b16 %v4754, %v4748
    %v5421 = vpack.c.b16 %v4755, %v4749
    %v5422 = vpack.c.b16 %v4756, %v4750
    %v5423 = vpack.c.b16 %v4763, %v4757
    %v5424 = vpack.c.b16 %v4764, %v4758
    %v5425 = vpack.c.b16 %v4765, %v4759
    %v5426 = vpack.c.b16 %v4766, %v4760
    %v5427 = vpack.c.b16 %v4767, %v4761
    %v5428 = vpack.c.b16 %v4768, %v4762
    %v5429 = vpack.c.b16 %v4775, %v4769
    %v5430 = vpack.c.b16 %v4776, %v4770
    %v5431 = vpack.c.b16 %v4777, %v4771
    %v5432 = vpack.c.b16 %v4778, %v4772
    %v5433 = vpack.c.b16 %v4779, %v4773
    %v5434 = vpack.c.b16 %v4780, %v4774
    %v5435 = vpack.c.b16 %v4787, %v4781
    %v5436 = vpack.c.b16 %v4788, %v4782
    %v5437 = vpack.c.b16 %v4789, %v4783
    %v5438 = vpack.c.b16 %v4790, %v4784
    %v5439 = vpack.c.b16 %v4791, %v4785
    %v5440 = vpack.c.b16 %v4792, %v4786
    %v5441 = vpack.c.b16 %v4799, %v4793
    %v5442 = vpack.c.b16 %v4800, %v4794
    %v5443 = vpack.c.b16 %v4801, %v4795
    %v5444 = vpack.c.b16 %v4802, %v4796
    %v5445 = vpack.c.b16 %v4803, %v4797
    %v5446 = vpack.c.b16 %v4804, %v4798
    %v5447 = vpack.c.b16 %v4811, %v4805
    %v5448 = vpack.c.b16 %v4812, %v4806
    %v5449 = vpack.c.b16 %v4813, %v4807
    %v5450 = vpack.c.b16 %v4814, %v4808
    %v5451 = vpack.c.b16 %v4815, %v4809
    %v5452 = vpack.c.b16 %v4816, %v4810
    %v5453 = vpack.c.b16 %v4823, %v4817
    %v5454 = vpack.c.b16 %v4824, %v4818
    %v5455 = vpack.c.b16 %v4825, %v4819
    %v5456 = vpack.c.b16 %v4826, %v4820
    %v5457 = vpack.c.b16 %v4827, %v4821
    %v5458 = vpack.c.b16 %v4828, %v4822
    %v5459 = vpack.c.b16 %v4835, %v4829
    %v5460 = vpack.c.b16 %v4836, %v4830
    %v5461 = vpack.c.b16 %v4837, %v4831
    %v5462 = vpack.c.b16 %v4838, %v4832
    %v5463 = vpack.c.b16 %v4839, %v4833
    %v5464 = vpack.c.b16 %v4840, %v4834
    %v5465 = vpack.c.b16 %v4847, %v4841
    %v5466 = vpack.c.b16 %v4848, %v4842
    %v5467 = vpack.c.b16 %v4849, %v4843
    %v5468 = vpack.c.b16 %v4850, %v4844
    %v5469 = vpack.c.b16 %v4851, %v4845
    %v5470 = vpack.c.b16 %v4852, %v4846
    %v5471 = vpack.c.b16 %v4859, %v4853
    %v5472 = vpack.c.b16 %v4860, %v4854
    %v5473 = vpack.c.b16 %v4861, %v4855
    %v5474 = vpack.c.b16 %v4862, %v4856
    %v5475 = vpack.c.b16 %v4863, %v4857
    %v5476 = vpack.c.b16 %v4864, %v4858
    %v5477 = vpack.c.b16 %v4871, %v4865
    %v5478 = vpack.c.b16 %v4872, %v4866
    %v5479 = vpack.c.b16 %v4873, %v4867
    %v5480 = vpack.c.b16 %v4874, %v4868
    %v5481 = vpack.c.b16 %v4875, %v4869
    %v5482 = vpack.c.b16 %v4876, %v4870
    %v5483 = vpack.c.b16 %v4883, %v4877
    %v5484 = vpack.c.b16 %v4884, %v4878
    %v5485 = vpack.c.b16 %v4885, %v4879
    %v5486 = vpack.c.b16 %v4886, %v4880
    %v5487 = vpack.c.b16 %v4887, %v4881
    %v5488 = vpack.c.b16 %v4888, %v4882
    %v5489 = vpack.c.b16 %v4895, %v4889
    %v5490 = vpack.c.b16 %v4896, %v4890
    %v5491 = vpack.c.b16 %v4897, %v4891
    %v5492 = vpack.c.b16 %v4898, %v4892
    %v5493 = vpack.c.b16 %v4899, %v4893
    %v5494 = vpack.c.b16 %v4900, %v4894
    %v5495 = vpack.c.b16 %v4907, %v4901
    %v5496 = vpack.c.b16 %v4908, %v4902
    %v5497 = vpack.c.b16 %v4909, %v4903
    %v5498 = vpack.c.b16 %v4910, %v4904
    %v5499 = vpack.c.b16 %v4911, %v4905
    %v5500 = vpack.c.b16 %v4912, %v4906
    %v5501 = vpack.c.b16 %v4919, %v4913
    %v5502 = vpack.c.b16 %v4920, %v4914
    %v5503 = vpack.c.b16 %v4921, %v4915
    %v5504 = vpack.c.b16 %v4922, %v4916
    %v5505 = vpack.c.b16 %v4923, %v4917
    %v5506 = vpack.c.b16 %v4924, %v4918
    %v5507 = vpack.c.b16 %v4931, %v4925
    %v5508 = vpack.c.b16 %v4932, %v4926
    %v5509 = vpack.c.b16 %v4933, %v4927
    %v5510 = vpack.c.b16 %v4934, %v4928
    %v5511 = vpack.c.b16 %v4935, %v4929
    %v5512 = vpack.c.b16 %v4936, %v4930
    %v5513 = vpack.c.b16 %v4943, %v4937
    %v5514 = vpack.c.b16 %v4944, %v4938
    %v5515 = vpack.c.b16 %v4945, %v4939
    %v5516 = vpack.c.b16 %v4946, %v4940
    %v5517 = vpack.c.b16 %v4947, %v4941
    %v5518 = vpack.c.b16 %v4948, %v4942
    %v5519 = vpack.c.b16 %v4955, %v4949
    %v5520 = vpack.c.b16 %v4956, %v4950
    %v5521 = vpack.c.b16 %v4957, %v4951
    %v5522 = vpack.c.b16 %v4958, %v4952
    %v5523 = vpack.c.b16 %v4959, %v4953
    %v5524 = vpack.c.b16 %v4960, %v4954
    %v5525 = vpack.c.b16 %v4967, %v4961
    %v5526 = vpack.c.b16 %v4968, %v4962
    %v5527 = vpack.c.b16 %v4969, %v4963
    %v5528 = vpack.c.b16 %v4970, %v4964
    %v5529 = vpack.c.b16 %v4971, %v4965
    %v5530 = vpack.c.b16 %v4972, %v4966
    %v5531 = vpack.c.b16 %v4979, %v4973
    %v5532 = vpack.c.b16 %v4980, %v4974
    %v5533 = vpack.c.b16 %v4981, %v4975
    %v5534 = vpack.c.b16 %v4982, %v4976
    %v5535 = vpack.c.b16 %v4983, %v4977
    %v5536 = vpack.c.b16 %v4984, %v4978
    %v5537 = vpack.c.b16 %v4991, %v4985
    %v5538 = vpack.c.b16 %v4992, %v4986
    %v5539 = vpack.c.b16 %v4993, %v4987
    %v5540 = vpack.c.b16 %v4994, %v4988
    %v5541 = vpack.c.b16 %v4995, %v4989
    %v5542 = vpack.c.b16 %v4996, %v4990
    %v5543 = vpack.c.b16 %v5003, %v4997
    %v5544 = vpack.c.b16 %v5004, %v4998
    %v5545 = vpack.c.b16 %v5005, %v4999
    %v5546 = vpack.c.b16 %v5006, %v5000
    %v5547 = vpack.c.b16 %v5007, %v5001
    %v5548 = vpack.c.b16 %v5008, %v5002
    %v5549 = vpack.c.b16 %v5015, %v5009
    %v5550 = vpack.c.b16 %v5016, %v5010
    %v5551 = vpack.c.b16 %v5017, %v5011
    %v5552 = vpack.c.b16 %v5018, %v5012
    %v5553 = vpack.c.b16 %v5019, %v5013
    %v5554 = vpack.c.b16 %v5020, %v5014
    %v5555 = vpack.c.b16 %v5027, %v5021
    %v5556 = vpack.c.b16 %v5028, %v5022
    %v5557 = vpack.c.b16 %v5029, %v5023
    %v5558 = vpack.c.b16 %v5030, %v5024
    %v5559 = vpack.c.b16 %v5031, %v5025
    %v5560 = vpack.c.b16 %v5032, %v5026
    %v5561 = vpack.c.b16 %v5039, %v5033
    %v5562 = vpack.c.b16 %v5040, %v5034
    %v5563 = vpack.c.b16 %v5041, %v5035
    %v5564 = vpack.c.b16 %v5042, %v5036
    %v5565 = vpack.c.b16 %v5043, %v5037
    %v5566 = vpack.c.b16 %v5044, %v5038
    %v5567 = vpack.c.b16 %v5051, %v5045
    %v5568 = vpack.c.b16 %v5052, %v5046
    %v5569 = vpack.c.b16 %v5053, %v5047
    %v5570 = vpack.c.b16 %v5054, %v5048
    %v5571 = vpack.c.b16 %v5055, %v5049
    %v5572 = vpack.c.b16 %v5056, %v5050
    %v5573 = vpack.c.b16 %v5063, %v5057
    %v5574 = vpack.c.b16 %v5064, %v5058
    %v5575 = vpack.c.b16 %v5065, %v5059
    %v5576 = vpack.c.b16 %v5066, %v5060
    %v5577 = vpack.c.b16 %v5067, %v5061
    %v5578 = vpack.c.b16 %v5068, %v5062
    %v5579 = vpack.c.b16 %v5075, %v5069
    %v5580 = vpack.c.b16 %v5076, %v5070
    %v5581 = vpack.c.b16 %v5077, %v5071
    %v5582 = vpack.c.b16 %v5078, %v5072
    %v5583 = vpack.c.b16 %v5079, %v5073
    %v5584 = vpack.c.b16 %v5080, %v5074
    %v5585 = vpack.c.b16 %v5087, %v5081
    %v5586 = vpack.c.b16 %v5088, %v5082
    %v5587 = vpack.c.b16 %v5089, %v5083
    %v5588 = vpack.c.b16 %v5090, %v5084
    %v5589 = vpack.c.b16 %v5091, %v5085
    %v5590 = vpack.c.b16 %v5092, %v5086
    %v5591 = vpack.c.b16 %v5099, %v5093
    %v5592 = vpack.c.b16 %v5100, %v5094
    %v5593 = vpack.c.b16 %v5101, %v5095
    %v5594 = vpack.c.b16 %v5102, %v5096
    %v5595 = vpack.c.b16 %v5103, %v5097
    %v5596 = vpack.c.b16 %v5104, %v5098
    %v5597 = vpack.c.b16 %v5111, %v5105
    %v5598 = vpack.c.b16 %v5112, %v5106
    %v5599 = vpack.c.b16 %v5113, %v5107
    %v5600 = vpack.c.b16 %v5114, %v5108
    %v5601 = vpack.c.b16 %v5115, %v5109
    %v5602 = vpack.c.b16 %v5116, %v5110
    %v5603 = vpack.c.b16 %v5123, %v5117
    %v5604 = vpack.c.b16 %v5124, %v5118
    %v5605 = vpack.c.b16 %v5125, %v5119
    %v5606 = vpack.c.b16 %v5126, %v5120
    %v5607 = vpack.c.b16 %v5127, %v5121
    %v5608 = vpack.c.b16 %v5128, %v5122
    %v5609 = vpack.c.b16 %v5135, %v5129
    %v5610 = vpack.c.b16 %v5136, %v5130
    %v5611 = vpack.c.b16 %v5137, %v5131
    %v5612 = vpack.c.b16 %v5138, %v5132
    %v5613 = vpack.c.b16 %v5139, %v5133
    %v5614 = vpack.c.b16 %v5140, %v5134
    %v5615 = vpack.c.b16 %v5147, %v5141
    %v5616 = vpack.c.b16 %v5148, %v5142
    %v5617 = vpack.c.b16 %v5149, %v5143
    %v5618 = vpack.c.b16 %v5150, %v5144
    %v5619 = vpack.c.b16 %v5151, %v5145
    %v5620 = vpack.c.b16 %v5152, %v5146
    %v5621 = vpack.c.b16 %v5159, %v5153
    %v5622 = vpack.c.b16 %v5160, %v5154
    %v5623 = vpack.c.b16 %v5161, %v5155
    %v5624 = vpack.c.b16 %v5162, %v5156
    %v5625 = vpack.c.b16 %v5163, %v5157
    %v5626 = vpack.c.b16 %v5164, %v5158
    %v5627 = vpack.c.b16 %v5171, %v5165
    %v5628 = vpack.c.b16 %v5172, %v5166
    %v5629 = vpack.c.b16 %v5173, %v5167
    %v5630 = vpack.c.b16 %v5174, %v5168
    %v5631 = vpack.c.b16 %v5175, %v5169
    %v5632 = vpack.c.b16 %v5176, %v5170
    %v5633 = vpack.c.b16 %v5183, %v5177
    %v5634 = vpack.c.b16 %v5184, %v5178
    %v5635 = vpack.c.b16 %v5185, %v5179
    %v5636 = vpack.c.b16 %v5186, %v5180
    %v5637 = vpack.c.b16 %v5187, %v5181
    %v5638 = vpack.c.b16 %v5188, %v5182
    %v5639 = vpack.c.b16 %v5195, %v5189
    %v5640 = vpack.c.b16 %v5196, %v5190
    %v5641 = vpack.c.b16 %v5197, %v5191
    %v5642 = vpack.c.b16 %v5198, %v5192
    %v5643 = vpack.c.b16 %v5199, %v5193
    %v5644 = vpack.c.b16 %v5200, %v5194
    %v5645 = vpack.c.b16 %v5207, %v5201
    %v5646 = vpack.c.b16 %v5208, %v5202
    %v5647 = vpack.c.b16 %v5209, %v5203
    %v5648 = vpack.c.b16 %v5210, %v5204
    %v5649 = vpack.c.b16 %v5211, %v5205
    %v5650 = vpack.c.b16 %v5212, %v5206
    %v5651 = vpack.c.b16 %v5219, %v5213
    %v5652 = vpack.c.b16 %v5220, %v5214
    %v5653 = vpack.c.b16 %v5221, %v5215
    %v5654 = vpack.c.b16 %v5222, %v5216
    %v5655 = vpack.c.b16 %v5223, %v5217
    %v5656 = vpack.c.b16 %v5224, %v5218
    %v5657 = vpack.c.b16 %v5231, %v5225
    %v5658 = vpack.c.b16 %v5232, %v5226
    %v5659 = vpack.c.b16 %v5233, %v5227
    %v5660 = vpack.c.b16 %v5234, %v5228
    %v5661 = vpack.c.b16 %v5235, %v5229
    %v5662 = vpack.c.b16 %v5236, %v5230
    %v5663 = vpack.c.b16 %v5243, %v5237
    %v5664 = vpack.c.b16 %v5244, %v5238
    %v5665 = vpack.c.b16 %v5245, %v5239
    %v5666 = vpack.c.b16 %v5246, %v5240
    %v5667 = vpack.c.b16 %v5247, %v5241
    %v5668 = vpack.c.b16 %v5248, %v5242
    %v5669 = vpack.c.b16 %v5255, %v5249
    %v5670 = vpack.c.b16 %v5256, %v5250
    %v5671 = vpack.c.b16 %v5257, %v5251
    %v5672 = vpack.c.b16 %v5258, %v5252
    %v5673 = vpack.c.b16 %v5259, %v5253
    %v5674 = vpack.c.b16 %v5260, %v5254
    %v5675 = vpack.c.b16 %v5267, %v5261
    %v5676 = vpack.c.b16 %v5268, %v5262
    %v5677 = vpack.c.b16 %v5269, %v5263
    %v5678 = vpack.c.b16 %v5270, %v5264
    %v5679 = vpack.c.b16 %v5271, %v5265
    %v5680 = vpack.c.b16 %v5272, %v5266
    %v5681 = vpack.c.b16 %v5279, %v5273
    %v5682 = vpack.c.b16 %v5280, %v5274
    %v5683 = vpack.c.b16 %v5281, %v5275
    %v5684 = vpack.c.b16 %v5282, %v5276
    %v5685 = vpack.c.b16 %v5283, %v5277
    %v5686 = vpack.c.b16 %v5284, %v5278
    %v5687 = vpack.c.b16 %v5291, %v5285
    %v5688 = vpack.c.b16 %v5292, %v5286
    %v5689 = vpack.c.b16 %v5293, %v5287
    %v5690 = vpack.c.b16 %v5294, %v5288
    %v5691 = vpack.c.b16 %v5295, %v5289
    %v5692 = vpack.c.b16 %v5296, %v5290
    %v5693 = vpack.c.b16 %v5303, %v5297
    %v5694 = vpack.c.b16 %v5304, %v5298
    %v5695 = vpack.c.b16 %v5305, %v5299
    %v5696 = vpack.c.b16 %v5306, %v5300
    %v5697 = vpack.c.b16 %v5307, %v5301
    %v5698 = vpack.c.b16 %v5308, %v5302
    %v5699 = vpack.c.b16 %v5315, %v5309
    %v5700 = vpack.c.b16 %v5316, %v5310
    %v5701 = vpack.c.b16 %v5317, %v5311
    %v5702 = vpack.c.b16 %v5318, %v5312
    %v5703 = vpack.c.b16 %v5319, %v5313
    %v5704 = vpack.c.b16 %v5320, %v5314
    %6089 = vmatpush.bf16.msra.mxu0 %v5363
    %6090 = vmatpush.bf16.msra.mxu0 %v5357
    %6091 = vmatpush.bf16.msra.mxu0 %v5351
    %6092 = vmatpush.bf16.msra.mxu0 %v5345
    %6093 = vmatpush.bf16.msra.mxu0 %v5339
    %6094 = vmatpush.bf16.msra.mxu0 %v5333
    %6095 = vmatpush.bf16.msra.mxu0 %v5327
    %6096 = vmatpush.bf16.msra.mxu0 %v5321
    %6097 = vmatmul.bf16.gmra.mxu0 %v3763
    %v6098 = vpop.f32.mrf.mxu0
    %v6099 = vadd.f32 %v4157, %v6098
    %v6100 = vpop.f32.mrf.mxu0
    %6101 = vdwg.mxu0
    %6102 = vmatpush.bf16.msra.mxu0 %v5411
    %6103 = vmatpush.bf16.msra.mxu0 %v5405
    %6104 = vmatpush.bf16.msra.mxu0 %v5399
    %6105 = vmatpush.bf16.msra.mxu0 %v5393
    %6106 = vmatpush.bf16.msra.mxu0 %v5387
    %6107 = vmatpush.bf16.msra.mxu0 %v5381
    %6108 = vmatpush.bf16.msra.mxu0 %v5375
    %6109 = vmatpush.bf16.msra.mxu0 %v5369
    %6110 = vmatmul.bf16.gmra.mxu0 %v3764
    %v6111 = vpop.f32.mrf.mxu0
    %v6112 = vadd.f32 %v6099, %v6111
    %v6113 = vpop.f32.mrf.mxu0
    %6114 = vdwg.mxu0
    %6115 = vmatpush.bf16.msra.mxu0 %v5459
    %6116 = vmatpush.bf16.msra.mxu0 %v5453
    %6117 = vmatpush.bf16.msra.mxu0 %v5447
    %6118 = vmatpush.bf16.msra.mxu0 %v5441
    %6119 = vmatpush.bf16.msra.mxu0 %v5435
    %6120 = vmatpush.bf16.msra.mxu0 %v5429
    %6121 = vmatpush.bf16.msra.mxu0 %v5423
    %6122 = vmatpush.bf16.msra.mxu0 %v5417
    %6123 = vmatmul.bf16.gmra.mxu0 %v3765
    %v6124 = vpop.f32.mrf.mxu0
    %v6125 = vadd.f32 %v6112, %v6124
    %v6126 = vpop.f32.mrf.mxu0
    %6127 = vdwg.mxu0
    %6128 = vmatpush.bf16.msra.mxu0 %v5507
    %6129 = vmatpush.bf16.msra.mxu0 %v5501
    %6130 = vmatpush.bf16.msra.mxu0 %v5495
    %6131 = vmatpush.bf16.msra.mxu0 %v5489
    %6132 = vmatpush.bf16.msra.mxu0 %v5483
    %6133 = vmatpush.bf16.msra.mxu0 %v5477
    %6134 = vmatpush.bf16.msra.mxu0 %v5471
    %6135 = vmatpush.bf16.msra.mxu0 %v5465
    %6136 = vmatmul.bf16.gmra.mxu0 %v3766
    %v6137 = vpop.f32.mrf.mxu0
    %v6138 = vadd.f32 %v6125, %v6137
    %v6139 = vpop.f32.mrf.mxu0
    %6140 = vdwg.mxu0
    %6141 = vmatpush.bf16.msra.mxu0 %v5555
    %6142 = vmatpush.bf16.msra.mxu0 %v5549
    %6143 = vmatpush.bf16.msra.mxu0 %v5543
    %6144 = vmatpush.bf16.msra.mxu0 %v5537
    %6145 = vmatpush.bf16.msra.mxu0 %v5531
    %6146 = vmatpush.bf16.msra.mxu0 %v5525
    %6147 = vmatpush.bf16.msra.mxu0 %v5519
    %6148 = vmatpush.bf16.msra.mxu0 %v5513
    %6149 = vmatmul.bf16.gmra.mxu0 %v3767
    %v6150 = vpop.f32.mrf.mxu0
    %v6151 = vadd.f32 %v6138, %v6150
    %v6152 = vpop.f32.mrf.mxu0
    %6153 = vdwg.mxu0
    %6154 = vmatpush.bf16.msra.mxu0 %v5603
    %6155 = vmatpush.bf16.msra.mxu0 %v5597
    %6156 = vmatpush.bf16.msra.mxu0 %v5591
    %6157 = vmatpush.bf16.msra.mxu0 %v5585
    %6158 = vmatpush.bf16.msra.mxu0 %v5579
    %6159 = vmatpush.bf16.msra.mxu0 %v5573
    %6160 = vmatpush.bf16.msra.mxu0 %v5567
    %6161 = vmatpush.bf16.msra.mxu0 %v5561
    %6162 = vmatmul.bf16.gmra.mxu0 %v3768
    %v6163 = vpop.f32.mrf.mxu0
    %v6164 = vadd.f32 %v6151, %v6163
    %v6165 = vpop.f32.mrf.mxu0
    %6166 = vdwg.mxu0
    %6167 = vmatpush.bf16.msra.mxu0 %v5651
    %6168 = vmatpush.bf16.msra.mxu0 %v5645
    %6169 = vmatpush.bf16.msra.mxu0 %v5639
    %6170 = vmatpush.bf16.msra.mxu0 %v5633
    %6171 = vmatpush.bf16.msra.mxu0 %v5627
    %6172 = vmatpush.bf16.msra.mxu0 %v5621
    %6173 = vmatpush.bf16.msra.mxu0 %v5615
    %6174 = vmatpush.bf16.msra.mxu0 %v5609
    %6175 = vmatmul.bf16.gmra.mxu0 %v3769
    %v6176 = vpop.f32.mrf.mxu0
    %v6177 = vadd.f32 %v6164, %v6176
    %v6178 = vpop.f32.mrf.mxu0
    %6179 = vdwg.mxu0
    %6180 = vmatpush.bf16.msra.mxu0 %v5699
    %6181 = vmatpush.bf16.msra.mxu0 %v5693
    %6182 = vmatpush.bf16.msra.mxu0 %v5687
    %6183 = vmatpush.bf16.msra.mxu0 %v5681
    %6184 = vmatpush.bf16.msra.mxu0 %v5675
    %6185 = vmatpush.bf16.msra.mxu0 %v5669
    %6186 = vmatpush.bf16.msra.mxu0 %v5663
    %6187 = vmatpush.bf16.msra.mxu0 %v5657
    %6188 = vmatmul.bf16.gmra.mxu0 %v3770
    %v6189 = vpop.f32.mrf.mxu0
    %v6190 = vadd.f32 %v6177, %v6189
    %v6191 = vpop.f32.mrf.mxu0
    %6192 = vdwg.mxu0
    %6193 = vmatpush.bf16.msra.mxu0 %v5364
    %6194 = vmatpush.bf16.msra.mxu0 %v5358
    %6195 = vmatpush.bf16.msra.mxu0 %v5352
    %6196 = vmatpush.bf16.msra.mxu0 %v5346
    %6197 = vmatpush.bf16.msra.mxu0 %v5340
    %6198 = vmatpush.bf16.msra.mxu0 %v5334
    %6199 = vmatpush.bf16.msra.mxu0 %v5328
    %6200 = vmatpush.bf16.msra.mxu0 %v5322
    %6201 = vmatmul.bf16.gmra.mxu0 %v3763
    %v6202 = vpop.f32.mrf.mxu0
    %v6203 = vadd.f32 %v4158, %v6202
    %v6204 = vpop.f32.mrf.mxu0
    %6205 = vdwg.mxu0
    %6206 = vmatpush.bf16.msra.mxu0 %v5412
    %6207 = vmatpush.bf16.msra.mxu0 %v5406
    %6208 = vmatpush.bf16.msra.mxu0 %v5400
    %6209 = vmatpush.bf16.msra.mxu0 %v5394
    %6210 = vmatpush.bf16.msra.mxu0 %v5388
    %6211 = vmatpush.bf16.msra.mxu0 %v5382
    %6212 = vmatpush.bf16.msra.mxu0 %v5376
    %6213 = vmatpush.bf16.msra.mxu0 %v5370
    %6214 = vmatmul.bf16.gmra.mxu0 %v3764
    %v6215 = vpop.f32.mrf.mxu0
    %v6216 = vadd.f32 %v6203, %v6215
    %v6217 = vpop.f32.mrf.mxu0
    %6218 = vdwg.mxu0
    %6219 = vmatpush.bf16.msra.mxu0 %v5460
    %6220 = vmatpush.bf16.msra.mxu0 %v5454
    %6221 = vmatpush.bf16.msra.mxu0 %v5448
    %6222 = vmatpush.bf16.msra.mxu0 %v5442
    %6223 = vmatpush.bf16.msra.mxu0 %v5436
    %6224 = vmatpush.bf16.msra.mxu0 %v5430
    %6225 = vmatpush.bf16.msra.mxu0 %v5424
    %6226 = vmatpush.bf16.msra.mxu0 %v5418
    %6227 = vmatmul.bf16.gmra.mxu0 %v3765
    %v6228 = vpop.f32.mrf.mxu0
    %v6229 = vadd.f32 %v6216, %v6228
    %v6230 = vpop.f32.mrf.mxu0
    %6231 = vdwg.mxu0
    %6232 = vmatpush.bf16.msra.mxu0 %v5508
    %6233 = vmatpush.bf16.msra.mxu0 %v5502
    %6234 = vmatpush.bf16.msra.mxu0 %v5496
    %6235 = vmatpush.bf16.msra.mxu0 %v5490
    %6236 = vmatpush.bf16.msra.mxu0 %v5484
    %6237 = vmatpush.bf16.msra.mxu0 %v5478
    %6238 = vmatpush.bf16.msra.mxu0 %v5472
    %6239 = vmatpush.bf16.msra.mxu0 %v5466
    %6240 = vmatmul.bf16.gmra.mxu0 %v3766
    %v6241 = vpop.f32.mrf.mxu0
    %v6242 = vadd.f32 %v6229, %v6241
    %v6243 = vpop.f32.mrf.mxu0
    %6244 = vdwg.mxu0
    %6245 = vmatpush.bf16.msra.mxu0 %v5556
    %6246 = vmatpush.bf16.msra.mxu0 %v5550
    %6247 = vmatpush.bf16.msra.mxu0 %v5544
    %6248 = vmatpush.bf16.msra.mxu0 %v5538
    %6249 = vmatpush.bf16.msra.mxu0 %v5532
    %6250 = vmatpush.bf16.msra.mxu0 %v5526
    %6251 = vmatpush.bf16.msra.mxu0 %v5520
    %6252 = vmatpush.bf16.msra.mxu0 %v5514
    %6253 = vmatmul.bf16.gmra.mxu0 %v3767
    %v6254 = vpop.f32.mrf.mxu0
    %v6255 = vadd.f32 %v6242, %v6254
    %v6256 = vpop.f32.mrf.mxu0
    %6257 = vdwg.mxu0
    %6258 = vmatpush.bf16.msra.mxu0 %v5604
    %6259 = vmatpush.bf16.msra.mxu0 %v5598
    %6260 = vmatpush.bf16.msra.mxu0 %v5592
    %6261 = vmatpush.bf16.msra.mxu0 %v5586
    %6262 = vmatpush.bf16.msra.mxu0 %v5580
    %6263 = vmatpush.bf16.msra.mxu0 %v5574
    %6264 = vmatpush.bf16.msra.mxu0 %v5568
    %6265 = vmatpush.bf16.msra.mxu0 %v5562
    %6266 = vmatmul.bf16.gmra.mxu0 %v3768
    %v6267 = vpop.f32.mrf.mxu0
    %v6268 = vadd.f32 %v6255, %v6267
    %v6269 = vpop.f32.mrf.mxu0
    %6270 = vdwg.mxu0
    %6271 = vmatpush.bf16.msra.mxu0 %v5652
    %6272 = vmatpush.bf16.msra.mxu0 %v5646
    %6273 = vmatpush.bf16.msra.mxu0 %v5640
    %6274 = vmatpush.bf16.msra.mxu0 %v5634
    %6275 = vmatpush.bf16.msra.mxu0 %v5628
    %6276 = vmatpush.bf16.msra.mxu0 %v5622
    %6277 = vmatpush.bf16.msra.mxu0 %v5616
    %6278 = vmatpush.bf16.msra.mxu0 %v5610
    %6279 = vmatmul.bf16.gmra.mxu0 %v3769
    %v6280 = vpop.f32.mrf.mxu0
    %v6281 = vadd.f32 %v6268, %v6280
    %v6282 = vpop.f32.mrf.mxu0
    %6283 = vdwg.mxu0
    %6284 = vmatpush.bf16.msra.mxu0 %v5700
    %6285 = vmatpush.bf16.msra.mxu0 %v5694
    %6286 = vmatpush.bf16.msra.mxu0 %v5688
    %6287 = vmatpush.bf16.msra.mxu0 %v5682
    %6288 = vmatpush.bf16.msra.mxu0 %v5676
    %6289 = vmatpush.bf16.msra.mxu0 %v5670
    %6290 = vmatpush.bf16.msra.mxu0 %v5664
    %6291 = vmatpush.bf16.msra.mxu0 %v5658
    %6292 = vmatmul.bf16.gmra.mxu0 %v3770
    %v6293 = vpop.f32.mrf.mxu0
    %v6294 = vadd.f32 %v6281, %v6293
    %v6295 = vpop.f32.mrf.mxu0
    %6296 = vdwg.mxu0
    %6297 = vmatpush.bf16.msra.mxu0 %v5365
    %6298 = vmatpush.bf16.msra.mxu0 %v5359
    %6299 = vmatpush.bf16.msra.mxu0 %v5353
    %6300 = vmatpush.bf16.msra.mxu0 %v5347
    %6301 = vmatpush.bf16.msra.mxu0 %v5341
    %6302 = vmatpush.bf16.msra.mxu0 %v5335
    %6303 = vmatpush.bf16.msra.mxu0 %v5329
    %6304 = vmatpush.bf16.msra.mxu0 %v5323
    %6305 = vmatmul.bf16.gmra.mxu0 %v3763
    %v6306 = vpop.f32.mrf.mxu0
    %v6307 = vadd.f32 %v4159, %v6306
    %v6308 = vpop.f32.mrf.mxu0
    %6309 = vdwg.mxu0
    %6310 = vmatpush.bf16.msra.mxu0 %v5413
    %6311 = vmatpush.bf16.msra.mxu0 %v5407
    %6312 = vmatpush.bf16.msra.mxu0 %v5401
    %6313 = vmatpush.bf16.msra.mxu0 %v5395
    %6314 = vmatpush.bf16.msra.mxu0 %v5389
    %6315 = vmatpush.bf16.msra.mxu0 %v5383
    %6316 = vmatpush.bf16.msra.mxu0 %v5377
    %6317 = vmatpush.bf16.msra.mxu0 %v5371
    %6318 = vmatmul.bf16.gmra.mxu0 %v3764
    %v6319 = vpop.f32.mrf.mxu0
    %v6320 = vadd.f32 %v6307, %v6319
    %v6321 = vpop.f32.mrf.mxu0
    %6322 = vdwg.mxu0
    %6323 = vmatpush.bf16.msra.mxu0 %v5461
    %6324 = vmatpush.bf16.msra.mxu0 %v5455
    %6325 = vmatpush.bf16.msra.mxu0 %v5449
    %6326 = vmatpush.bf16.msra.mxu0 %v5443
    %6327 = vmatpush.bf16.msra.mxu0 %v5437
    %6328 = vmatpush.bf16.msra.mxu0 %v5431
    %6329 = vmatpush.bf16.msra.mxu0 %v5425
    %6330 = vmatpush.bf16.msra.mxu0 %v5419
    %6331 = vmatmul.bf16.gmra.mxu0 %v3765
    %v6332 = vpop.f32.mrf.mxu0
    %v6333 = vadd.f32 %v6320, %v6332
    %v6334 = vpop.f32.mrf.mxu0
    %6335 = vdwg.mxu0
    %6336 = vmatpush.bf16.msra.mxu0 %v5509
    %6337 = vmatpush.bf16.msra.mxu0 %v5503
    %6338 = vmatpush.bf16.msra.mxu0 %v5497
    %6339 = vmatpush.bf16.msra.mxu0 %v5491
    %6340 = vmatpush.bf16.msra.mxu0 %v5485
    %6341 = vmatpush.bf16.msra.mxu0 %v5479
    %6342 = vmatpush.bf16.msra.mxu0 %v5473
    %6343 = vmatpush.bf16.msra.mxu0 %v5467
    %6344 = vmatmul.bf16.gmra.mxu0 %v3766
    %v6345 = vpop.f32.mrf.mxu0
    %v6346 = vadd.f32 %v6333, %v6345
    %v6347 = vpop.f32.mrf.mxu0
    %6348 = vdwg.mxu0
    %6349 = vmatpush.bf16.msra.mxu0 %v5557
    %6350 = vmatpush.bf16.msra.mxu0 %v5551
    %6351 = vmatpush.bf16.msra.mxu0 %v5545
    %6352 = vmatpush.bf16.msra.mxu0 %v5539
    %6353 = vmatpush.bf16.msra.mxu0 %v5533
    %6354 = vmatpush.bf16.msra.mxu0 %v5527
    %6355 = vmatpush.bf16.msra.mxu0 %v5521
    %6356 = vmatpush.bf16.msra.mxu0 %v5515
    %6357 = vmatmul.bf16.gmra.mxu0 %v3767
    %v6358 = vpop.f32.mrf.mxu0
    %v6359 = vadd.f32 %v6346, %v6358
    %v6360 = vpop.f32.mrf.mxu0
    %6361 = vdwg.mxu0
    %6362 = vmatpush.bf16.msra.mxu0 %v5605
    %6363 = vmatpush.bf16.msra.mxu0 %v5599
    %6364 = vmatpush.bf16.msra.mxu0 %v5593
    %6365 = vmatpush.bf16.msra.mxu0 %v5587
    %6366 = vmatpush.bf16.msra.mxu0 %v5581
    %6367 = vmatpush.bf16.msra.mxu0 %v5575
    %6368 = vmatpush.bf16.msra.mxu0 %v5569
    %6369 = vmatpush.bf16.msra.mxu0 %v5563
    %6370 = vmatmul.bf16.gmra.mxu0 %v3768
    %v6371 = vpop.f32.mrf.mxu0
    %v6372 = vadd.f32 %v6359, %v6371
    %v6373 = vpop.f32.mrf.mxu0
    %6374 = vdwg.mxu0
    %6375 = vmatpush.bf16.msra.mxu0 %v5653
    %6376 = vmatpush.bf16.msra.mxu0 %v5647
    %6377 = vmatpush.bf16.msra.mxu0 %v5641
    %6378 = vmatpush.bf16.msra.mxu0 %v5635
    %6379 = vmatpush.bf16.msra.mxu0 %v5629
    %6380 = vmatpush.bf16.msra.mxu0 %v5623
    %6381 = vmatpush.bf16.msra.mxu0 %v5617
    %6382 = vmatpush.bf16.msra.mxu0 %v5611
    %6383 = vmatmul.bf16.gmra.mxu0 %v3769
    %v6384 = vpop.f32.mrf.mxu0
    %v6385 = vadd.f32 %v6372, %v6384
    %v6386 = vpop.f32.mrf.mxu0
    %6387 = vdwg.mxu0
    %6388 = vmatpush.bf16.msra.mxu0 %v5701
    %6389 = vmatpush.bf16.msra.mxu0 %v5695
    %6390 = vmatpush.bf16.msra.mxu0 %v5689
    %6391 = vmatpush.bf16.msra.mxu0 %v5683
    %6392 = vmatpush.bf16.msra.mxu0 %v5677
    %6393 = vmatpush.bf16.msra.mxu0 %v5671
    %6394 = vmatpush.bf16.msra.mxu0 %v5665
    %6395 = vmatpush.bf16.msra.mxu0 %v5659
    %6396 = vmatmul.bf16.gmra.mxu0 %v3770
    %v6397 = vpop.f32.mrf.mxu0
    %v6398 = vadd.f32 %v6385, %v6397
    %v6399 = vpop.f32.mrf.mxu0
    %6400 = vdwg.mxu0
    %6401 = vmatpush.bf16.msra.mxu0 %v5366
    %6402 = vmatpush.bf16.msra.mxu0 %v5360
    %6403 = vmatpush.bf16.msra.mxu0 %v5354
    %6404 = vmatpush.bf16.msra.mxu0 %v5348
    %6405 = vmatpush.bf16.msra.mxu0 %v5342
    %6406 = vmatpush.bf16.msra.mxu0 %v5336
    %6407 = vmatpush.bf16.msra.mxu0 %v5330
    %6408 = vmatpush.bf16.msra.mxu0 %v5324
    %6409 = vmatmul.bf16.gmra.mxu0 %v3763
    %v6410 = vpop.f32.mrf.mxu0
    %v6411 = vadd.f32 %v4160, %v6410
    %v6412 = vpop.f32.mrf.mxu0
    %6413 = vdwg.mxu0
    %6414 = vmatpush.bf16.msra.mxu0 %v5414
    %6415 = vmatpush.bf16.msra.mxu0 %v5408
    %6416 = vmatpush.bf16.msra.mxu0 %v5402
    %6417 = vmatpush.bf16.msra.mxu0 %v5396
    %6418 = vmatpush.bf16.msra.mxu0 %v5390
    %6419 = vmatpush.bf16.msra.mxu0 %v5384
    %6420 = vmatpush.bf16.msra.mxu0 %v5378
    %6421 = vmatpush.bf16.msra.mxu0 %v5372
    %6422 = vmatmul.bf16.gmra.mxu0 %v3764
    %v6423 = vpop.f32.mrf.mxu0
    %v6424 = vadd.f32 %v6411, %v6423
    %v6425 = vpop.f32.mrf.mxu0
    %6426 = vdwg.mxu0
    %6427 = vmatpush.bf16.msra.mxu0 %v5462
    %6428 = vmatpush.bf16.msra.mxu0 %v5456
    %6429 = vmatpush.bf16.msra.mxu0 %v5450
    %6430 = vmatpush.bf16.msra.mxu0 %v5444
    %6431 = vmatpush.bf16.msra.mxu0 %v5438
    %6432 = vmatpush.bf16.msra.mxu0 %v5432
    %6433 = vmatpush.bf16.msra.mxu0 %v5426
    %6434 = vmatpush.bf16.msra.mxu0 %v5420
    %6435 = vmatmul.bf16.gmra.mxu0 %v3765
    %v6436 = vpop.f32.mrf.mxu0
    %v6437 = vadd.f32 %v6424, %v6436
    %v6438 = vpop.f32.mrf.mxu0
    %6439 = vdwg.mxu0
    %6440 = vmatpush.bf16.msra.mxu0 %v5510
    %6441 = vmatpush.bf16.msra.mxu0 %v5504
    %6442 = vmatpush.bf16.msra.mxu0 %v5498
    %6443 = vmatpush.bf16.msra.mxu0 %v5492
    %6444 = vmatpush.bf16.msra.mxu0 %v5486
    %6445 = vmatpush.bf16.msra.mxu0 %v5480
    %6446 = vmatpush.bf16.msra.mxu0 %v5474
    %6447 = vmatpush.bf16.msra.mxu0 %v5468
    %6448 = vmatmul.bf16.gmra.mxu0 %v3766
    %v6449 = vpop.f32.mrf.mxu0
    %v6450 = vadd.f32 %v6437, %v6449
    %v6451 = vpop.f32.mrf.mxu0
    %6452 = vdwg.mxu0
    %6453 = vmatpush.bf16.msra.mxu0 %v5558
    %6454 = vmatpush.bf16.msra.mxu0 %v5552
    %6455 = vmatpush.bf16.msra.mxu0 %v5546
    %6456 = vmatpush.bf16.msra.mxu0 %v5540
    %6457 = vmatpush.bf16.msra.mxu0 %v5534
    %6458 = vmatpush.bf16.msra.mxu0 %v5528
    %6459 = vmatpush.bf16.msra.mxu0 %v5522
    %6460 = vmatpush.bf16.msra.mxu0 %v5516
    %6461 = vmatmul.bf16.gmra.mxu0 %v3767
    %v6462 = vpop.f32.mrf.mxu0
    %v6463 = vadd.f32 %v6450, %v6462
    %v6464 = vpop.f32.mrf.mxu0
    %6465 = vdwg.mxu0
    %6466 = vmatpush.bf16.msra.mxu0 %v5606
    %6467 = vmatpush.bf16.msra.mxu0 %v5600
    %6468 = vmatpush.bf16.msra.mxu0 %v5594
    %6469 = vmatpush.bf16.msra.mxu0 %v5588
    %6470 = vmatpush.bf16.msra.mxu0 %v5582
    %6471 = vmatpush.bf16.msra.mxu0 %v5576
    %6472 = vmatpush.bf16.msra.mxu0 %v5570
    %6473 = vmatpush.bf16.msra.mxu0 %v5564
    %6474 = vmatmul.bf16.gmra.mxu0 %v3768
    %v6475 = vpop.f32.mrf.mxu0
    %v6476 = vadd.f32 %v6463, %v6475
    %v6477 = vpop.f32.mrf.mxu0
    %6478 = vdwg.mxu0
    %6479 = vmatpush.bf16.msra.mxu0 %v5654
    %6480 = vmatpush.bf16.msra.mxu0 %v5648
    %6481 = vmatpush.bf16.msra.mxu0 %v5642
    %6482 = vmatpush.bf16.msra.mxu0 %v5636
    %6483 = vmatpush.bf16.msra.mxu0 %v5630
    %6484 = vmatpush.bf16.msra.mxu0 %v5624
    %6485 = vmatpush.bf16.msra.mxu0 %v5618
    %6486 = vmatpush.bf16.msra.mxu0 %v5612
    %6487 = vmatmul.bf16.gmra.mxu0 %v3769
    %v6488 = vpop.f32.mrf.mxu0
    %v6489 = vadd.f32 %v6476, %v6488
    %v6490 = vpop.f32.mrf.mxu0
    %6491 = vdwg.mxu0
    %6492 = vmatpush.bf16.msra.mxu0 %v5702
    %6493 = vmatpush.bf16.msra.mxu0 %v5696
    %6494 = vmatpush.bf16.msra.mxu0 %v5690
    %6495 = vmatpush.bf16.msra.mxu0 %v5684
    %6496 = vmatpush.bf16.msra.mxu0 %v5678
    %6497 = vmatpush.bf16.msra.mxu0 %v5672
    %6498 = vmatpush.bf16.msra.mxu0 %v5666
    %6499 = vmatpush.bf16.msra.mxu0 %v5660
    %6500 = vmatmul.bf16.gmra.mxu0 %v3770
    %v6501 = vpop.f32.mrf.mxu0
    %v6502 = vadd.f32 %v6489, %v6501
    %v6503 = vpop.f32.mrf.mxu0
    %6504 = vdwg.mxu0
    %6505 = vmatpush.bf16.msra.mxu0 %v5367
    %6506 = vmatpush.bf16.msra.mxu0 %v5361
    %6507 = vmatpush.bf16.msra.mxu0 %v5355
    %6508 = vmatpush.bf16.msra.mxu0 %v5349
    %6509 = vmatpush.bf16.msra.mxu0 %v5343
    %6510 = vmatpush.bf16.msra.mxu0 %v5337
    %6511 = vmatpush.bf16.msra.mxu0 %v5331
    %6512 = vmatpush.bf16.msra.mxu0 %v5325
    %6513 = vmatmul.bf16.gmra.mxu0 %v3763
    %v6514 = vpop.f32.mrf.mxu0
    %v6515 = vadd.f32 %v4161, %v6514
    %v6516 = vpop.f32.mrf.mxu0
    %6517 = vdwg.mxu0
    %6518 = vmatpush.bf16.msra.mxu0 %v5415
    %6519 = vmatpush.bf16.msra.mxu0 %v5409
    %6520 = vmatpush.bf16.msra.mxu0 %v5403
    %6521 = vmatpush.bf16.msra.mxu0 %v5397
    %6522 = vmatpush.bf16.msra.mxu0 %v5391
    %6523 = vmatpush.bf16.msra.mxu0 %v5385
    %6524 = vmatpush.bf16.msra.mxu0 %v5379
    %6525 = vmatpush.bf16.msra.mxu0 %v5373
    %6526 = vmatmul.bf16.gmra.mxu0 %v3764
    %v6527 = vpop.f32.mrf.mxu0
    %v6528 = vadd.f32 %v6515, %v6527
    %v6529 = vpop.f32.mrf.mxu0
    %6530 = vdwg.mxu0
    %6531 = vmatpush.bf16.msra.mxu0 %v5463
    %6532 = vmatpush.bf16.msra.mxu0 %v5457
    %6533 = vmatpush.bf16.msra.mxu0 %v5451
    %6534 = vmatpush.bf16.msra.mxu0 %v5445
    %6535 = vmatpush.bf16.msra.mxu0 %v5439
    %6536 = vmatpush.bf16.msra.mxu0 %v5433
    %6537 = vmatpush.bf16.msra.mxu0 %v5427
    %6538 = vmatpush.bf16.msra.mxu0 %v5421
    %6539 = vmatmul.bf16.gmra.mxu0 %v3765
    %v6540 = vpop.f32.mrf.mxu0
    %v6541 = vadd.f32 %v6528, %v6540
    %v6542 = vpop.f32.mrf.mxu0
    %6543 = vdwg.mxu0
    %6544 = vmatpush.bf16.msra.mxu0 %v5511
    %6545 = vmatpush.bf16.msra.mxu0 %v5505
    %6546 = vmatpush.bf16.msra.mxu0 %v5499
    %6547 = vmatpush.bf16.msra.mxu0 %v5493
    %6548 = vmatpush.bf16.msra.mxu0 %v5487
    %6549 = vmatpush.bf16.msra.mxu0 %v5481
    %6550 = vmatpush.bf16.msra.mxu0 %v5475
    %6551 = vmatpush.bf16.msra.mxu0 %v5469
    %6552 = vmatmul.bf16.gmra.mxu0 %v3766
    %v6553 = vpop.f32.mrf.mxu0
    %v6554 = vadd.f32 %v6541, %v6553
    %v6555 = vpop.f32.mrf.mxu0
    %6556 = vdwg.mxu0
    %6557 = vmatpush.bf16.msra.mxu0 %v5559
    %6558 = vmatpush.bf16.msra.mxu0 %v5553
    %6559 = vmatpush.bf16.msra.mxu0 %v5547
    %6560 = vmatpush.bf16.msra.mxu0 %v5541
    %6561 = vmatpush.bf16.msra.mxu0 %v5535
    %6562 = vmatpush.bf16.msra.mxu0 %v5529
    %6563 = vmatpush.bf16.msra.mxu0 %v5523
    %6564 = vmatpush.bf16.msra.mxu0 %v5517
    %6565 = vmatmul.bf16.gmra.mxu0 %v3767
    %v6566 = vpop.f32.mrf.mxu0
    %v6567 = vadd.f32 %v6554, %v6566
    %v6568 = vpop.f32.mrf.mxu0
    %6569 = vdwg.mxu0
    %6570 = vmatpush.bf16.msra.mxu0 %v5607
    %6571 = vmatpush.bf16.msra.mxu0 %v5601
    %6572 = vmatpush.bf16.msra.mxu0 %v5595
    %6573 = vmatpush.bf16.msra.mxu0 %v5589
    %6574 = vmatpush.bf16.msra.mxu0 %v5583
    %6575 = vmatpush.bf16.msra.mxu0 %v5577
    %6576 = vmatpush.bf16.msra.mxu0 %v5571
    %6577 = vmatpush.bf16.msra.mxu0 %v5565
    %6578 = vmatmul.bf16.gmra.mxu0 %v3768
    %v6579 = vpop.f32.mrf.mxu0
    %v6580 = vadd.f32 %v6567, %v6579
    %v6581 = vpop.f32.mrf.mxu0
    %6582 = vdwg.mxu0
    %6583 = vmatpush.bf16.msra.mxu0 %v5655
    %6584 = vmatpush.bf16.msra.mxu0 %v5649
    %6585 = vmatpush.bf16.msra.mxu0 %v5643
    %6586 = vmatpush.bf16.msra.mxu0 %v5637
    %6587 = vmatpush.bf16.msra.mxu0 %v5631
    %6588 = vmatpush.bf16.msra.mxu0 %v5625
    %6589 = vmatpush.bf16.msra.mxu0 %v5619
    %6590 = vmatpush.bf16.msra.mxu0 %v5613
    %6591 = vmatmul.bf16.gmra.mxu0 %v3769
    %v6592 = vpop.f32.mrf.mxu0
    %v6593 = vadd.f32 %v6580, %v6592
    %v6594 = vpop.f32.mrf.mxu0
    %6595 = vdwg.mxu0
    %6596 = vmatpush.bf16.msra.mxu0 %v5703
    %6597 = vmatpush.bf16.msra.mxu0 %v5697
    %6598 = vmatpush.bf16.msra.mxu0 %v5691
    %6599 = vmatpush.bf16.msra.mxu0 %v5685
    %6600 = vmatpush.bf16.msra.mxu0 %v5679
    %6601 = vmatpush.bf16.msra.mxu0 %v5673
    %6602 = vmatpush.bf16.msra.mxu0 %v5667
    %6603 = vmatpush.bf16.msra.mxu0 %v5661
    %6604 = vmatmul.bf16.gmra.mxu0 %v3770
    %v6605 = vpop.f32.mrf.mxu0
    %v6606 = vadd.f32 %v6593, %v6605
    %v6607 = vpop.f32.mrf.mxu0
    %6608 = vdwg.mxu0
    %6609 = vmatpush.bf16.msra.mxu0 %v5368
    %6610 = vmatpush.bf16.msra.mxu0 %v5362
    %6611 = vmatpush.bf16.msra.mxu0 %v5356
    %6612 = vmatpush.bf16.msra.mxu0 %v5350
    %6613 = vmatpush.bf16.msra.mxu0 %v5344
    %6614 = vmatpush.bf16.msra.mxu0 %v5338
    %6615 = vmatpush.bf16.msra.mxu0 %v5332
    %6616 = vmatpush.bf16.msra.mxu0 %v5326
    %6617 = vmatmul.bf16.gmra.mxu0 %v3763
    %v6618 = vpop.f32.mrf.mxu0
    %v6619 = vadd.f32 %v4162, %v6618
    %v6620 = vpop.f32.mrf.mxu0
    %6621 = vdwg.mxu0
    %6622 = vmatpush.bf16.msra.mxu0 %v5416
    %6623 = vmatpush.bf16.msra.mxu0 %v5410
    %6624 = vmatpush.bf16.msra.mxu0 %v5404
    %6625 = vmatpush.bf16.msra.mxu0 %v5398
    %6626 = vmatpush.bf16.msra.mxu0 %v5392
    %6627 = vmatpush.bf16.msra.mxu0 %v5386
    %6628 = vmatpush.bf16.msra.mxu0 %v5380
    %6629 = vmatpush.bf16.msra.mxu0 %v5374
    %6630 = vmatmul.bf16.gmra.mxu0 %v3764
    %v6631 = vpop.f32.mrf.mxu0
    %v6632 = vadd.f32 %v6619, %v6631
    %v6633 = vpop.f32.mrf.mxu0
    %6634 = vdwg.mxu0
    %6635 = vmatpush.bf16.msra.mxu0 %v5464
    %6636 = vmatpush.bf16.msra.mxu0 %v5458
    %6637 = vmatpush.bf16.msra.mxu0 %v5452
    %6638 = vmatpush.bf16.msra.mxu0 %v5446
    %6639 = vmatpush.bf16.msra.mxu0 %v5440
    %6640 = vmatpush.bf16.msra.mxu0 %v5434
    %6641 = vmatpush.bf16.msra.mxu0 %v5428
    %6642 = vmatpush.bf16.msra.mxu0 %v5422
    %6643 = vmatmul.bf16.gmra.mxu0 %v3765
    %v6644 = vpop.f32.mrf.mxu0
    %v6645 = vadd.f32 %v6632, %v6644
    %v6646 = vpop.f32.mrf.mxu0
    %6647 = vdwg.mxu0
    %6648 = vmatpush.bf16.msra.mxu0 %v5512
    %6649 = vmatpush.bf16.msra.mxu0 %v5506
    %6650 = vmatpush.bf16.msra.mxu0 %v5500
    %6651 = vmatpush.bf16.msra.mxu0 %v5494
    %6652 = vmatpush.bf16.msra.mxu0 %v5488
    %6653 = vmatpush.bf16.msra.mxu0 %v5482
    %6654 = vmatpush.bf16.msra.mxu0 %v5476
    %6655 = vmatpush.bf16.msra.mxu0 %v5470
    %6656 = vmatmul.bf16.gmra.mxu0 %v3766
    %v6657 = vpop.f32.mrf.mxu0
    %v6658 = vadd.f32 %v6645, %v6657
    %v6659 = vpop.f32.mrf.mxu0
    %6660 = vdwg.mxu0
    %6661 = vmatpush.bf16.msra.mxu0 %v5560
    %6662 = vmatpush.bf16.msra.mxu0 %v5554
    %6663 = vmatpush.bf16.msra.mxu0 %v5548
    %6664 = vmatpush.bf16.msra.mxu0 %v5542
    %6665 = vmatpush.bf16.msra.mxu0 %v5536
    %6666 = vmatpush.bf16.msra.mxu0 %v5530
    %6667 = vmatpush.bf16.msra.mxu0 %v5524
    %6668 = vmatpush.bf16.msra.mxu0 %v5518
    %6669 = vmatmul.bf16.gmra.mxu0 %v3767
    %v6670 = vpop.f32.mrf.mxu0
    %v6671 = vadd.f32 %v6658, %v6670
    %v6672 = vpop.f32.mrf.mxu0
    %6673 = vdwg.mxu0
    %6674 = vmatpush.bf16.msra.mxu0 %v5608
    %6675 = vmatpush.bf16.msra.mxu0 %v5602
    %6676 = vmatpush.bf16.msra.mxu0 %v5596
    %6677 = vmatpush.bf16.msra.mxu0 %v5590
    %6678 = vmatpush.bf16.msra.mxu0 %v5584
    %6679 = vmatpush.bf16.msra.mxu0 %v5578
    %6680 = vmatpush.bf16.msra.mxu0 %v5572
    %6681 = vmatpush.bf16.msra.mxu0 %v5566
    %6682 = vmatmul.bf16.gmra.mxu0 %v3768
    %v6683 = vpop.f32.mrf.mxu0
    %v6684 = vadd.f32 %v6671, %v6683
    %v6685 = vpop.f32.mrf.mxu0
    %6686 = vdwg.mxu0
    %6687 = vmatpush.bf16.msra.mxu0 %v5656
    %6688 = vmatpush.bf16.msra.mxu0 %v5650
    %6689 = vmatpush.bf16.msra.mxu0 %v5644
    %6690 = vmatpush.bf16.msra.mxu0 %v5638
    %6691 = vmatpush.bf16.msra.mxu0 %v5632
    %6692 = vmatpush.bf16.msra.mxu0 %v5626
    %6693 = vmatpush.bf16.msra.mxu0 %v5620
    %6694 = vmatpush.bf16.msra.mxu0 %v5614
    %6695 = vmatmul.bf16.gmra.mxu0 %v3769
    %v6696 = vpop.f32.mrf.mxu0
    %v6697 = vadd.f32 %v6684, %v6696
    %v6698 = vpop.f32.mrf.mxu0
    %6699 = vdwg.mxu0
    %6700 = vmatpush.bf16.msra.mxu0 %v5704
    %6701 = vmatpush.bf16.msra.mxu0 %v5698
    %6702 = vmatpush.bf16.msra.mxu0 %v5692
    %6703 = vmatpush.bf16.msra.mxu0 %v5686
    %6704 = vmatpush.bf16.msra.mxu0 %v5680
    %6705 = vmatpush.bf16.msra.mxu0 %v5674
    %6706 = vmatpush.bf16.msra.mxu0 %v5668
    %6707 = vmatpush.bf16.msra.mxu0 %v5662
    %6708 = vmatmul.bf16.gmra.mxu0 %v3770
    %v6709 = vpop.f32.mrf.mxu0
    %v6710 = vadd.f32 %v6697, %v6709
    %v6711 = vpop.f32.mrf.mxu0
    %6712 = vdwg.mxu0
    %v6713 = vsub.f32 0.0, %v6190
    %v6714 = vsub.f32 0.0, %v6294
    %v6715 = vsub.f32 0.0, %v6398
    %v6716 = vsub.f32 0.0, %v6502
    %v6717 = vsub.f32 0.0, %v6606
    %v6718 = vsub.f32 0.0, %v6710
    %v6719 = vmul.f32 %v6713, 1.442695
    %v6720 = vpow.pop %v6719
    %v6721 = vmul.f32 %v6714, 1.442695
    %v6722 = vpow.pop %v6721
    %v6723 = vmul.f32 %v6715, 1.442695
    %v6724 = vpow.pop %v6723
    %v6725 = vmul.f32 %v6716, 1.442695
    %v6726 = vpow.pop %v6725
    %v6727 = vmul.f32 %v6717, 1.442695
    %v6728 = vpow.pop %v6727
    %v6729 = vmul.f32 %v6718, 1.442695
    %v6730 = vpow.pop %v6729
    %v6731 = vadd.f32 %v6720, 1.0
    %v6732 = vadd.f32 %v6722, 1.0
    %v6733 = vadd.f32 %v6724, 1.0
    %v6734 = vadd.f32 %v6726, 1.0
    %v6735 = vadd.f32 %v6728, 1.0
    %v6736 = vadd.f32 %v6730, 1.0
    %v6737 = vrcp.pop %v6731
    %v6738 = vmul.f32 %v6731, %v6737
    %v6739 = vsub.f32 1.0, %v6738
    %v6740 = vmul.f32 %v6737, %v6739
    %v6741 = vadd.f32 %v6737, %v6740
    %vm6742 = vweird.f32 %v6731
    %vm6743 = vweird.f32 %v6737
    %vm6744 = vmor %vm6742, %vm6743
    %v6745 = vsel %vm6744, %v6737, %v6741
    %v6746 = vand.u32 2147483647, %v6731
    %vm6747 = vcmp.eq.f32.partialorder %v6746, 8.507059e+37
    %v6748 = vand.u32 %v6731, 2147483648
    %v6749 = vor.u32 1.1754944e-38, %v6748
    %v6750 = vsel %vm6747, %v6749, %v6745
    %v6751 = vmul.f32 1.0, %v6750
    %v6752 = vrcp.pop %v6732
    %v6753 = vmul.f32 %v6732, %v6752
    %v6754 = vsub.f32 1.0, %v6753
    %v6755 = vmul.f32 %v6752, %v6754
    %v6756 = vadd.f32 %v6752, %v6755
    %vm6757 = vweird.f32 %v6732
    %vm6758 = vweird.f32 %v6752
    %vm6759 = vmor %vm6757, %vm6758
    %v6760 = vsel %vm6759, %v6752, %v6756
    %v6761 = vand.u32 2147483647, %v6732
    %vm6762 = vcmp.eq.f32.partialorder %v6761, 8.507059e+37
    %v6763 = vand.u32 %v6732, 2147483648
    %v6764 = vor.u32 1.1754944e-38, %v6763
    %v6765 = vsel %vm6762, %v6764, %v6760
    %v6766 = vmul.f32 1.0, %v6765
    %v6767 = vrcp.pop %v6733
    %v6768 = vmul.f32 %v6733, %v6767
    %v6769 = vsub.f32 1.0, %v6768
    %v6770 = vmul.f32 %v6767, %v6769
    %v6771 = vadd.f32 %v6767, %v6770
    %vm6772 = vweird.f32 %v6733
    %vm6773 = vweird.f32 %v6767
    %vm6774 = vmor %vm6772, %vm6773
    %v6775 = vsel %vm6774, %v6767, %v6771
    %v6776 = vand.u32 2147483647, %v6733
    %vm6777 = vcmp.eq.f32.partialorder %v6776, 8.507059e+37
    %v6778 = vand.u32 %v6733, 2147483648
    %v6779 = vor.u32 1.1754944e-38, %v6778
    %v6780 = vsel %vm6777, %v6779, %v6775
    %v6781 = vmul.f32 1.0, %v6780
    %v6782 = vrcp.pop %v6734
    %v6783 = vmul.f32 %v6734, %v6782
    %v6784 = vsub.f32 1.0, %v6783
    %v6785 = vmul.f32 %v6782, %v6784
    %v6786 = vadd.f32 %v6782, %v6785
    %vm6787 = vweird.f32 %v6734
    %vm6788 = vweird.f32 %v6782
    %vm6789 = vmor %vm6787, %vm6788
    %v6790 = vsel %vm6789, %v6782, %v6786
    %v6791 = vand.u32 2147483647, %v6734
    %vm6792 = vcmp.eq.f32.partialorder %v6791, 8.507059e+37
    %v6793 = vand.u32 %v6734, 2147483648
    %v6794 = vor.u32 1.1754944e-38, %v6793
    %v6795 = vsel %vm6792, %v6794, %v6790
    %v6796 = vmul.f32 1.0, %v6795
    %v6797 = vrcp.pop %v6735
    %v6798 = vmul.f32 %v6735, %v6797
    %v6799 = vsub.f32 1.0, %v6798
    %v6800 = vmul.f32 %v6797, %v6799
    %v6801 = vadd.f32 %v6797, %v6800
    %vm6802 = vweird.f32 %v6735
    %vm6803 = vweird.f32 %v6797
    %vm6804 = vmor %vm6802, %vm6803
    %v6805 = vsel %vm6804, %v6797, %v6801
    %v6806 = vand.u32 2147483647, %v6735
    %vm6807 = vcmp.eq.f32.partialorder %v6806, 8.507059e+37
    %v6808 = vand.u32 %v6735, 2147483648
    %v6809 = vor.u32 1.1754944e-38, %v6808
    %v6810 = vsel %vm6807, %v6809, %v6805
    %v6811 = vmul.f32 1.0, %v6810
    %v6812 = vrcp.pop %v6736
    %v6813 = vmul.f32 %v6736, %v6812
    %v6814 = vsub.f32 1.0, %v6813
    %v6815 = vmul.f32 %v6812, %v6814
    %v6816 = vadd.f32 %v6812, %v6815
    %vm6817 = vweird.f32 %v6736
    %vm6818 = vweird.f32 %v6812
    %vm6819 = vmor %vm6817, %vm6818
    %v6820 = vsel %vm6819, %v6812, %v6816
    %v6821 = vand.u32 2147483647, %v6736
    %vm6822 = vcmp.eq.f32.partialorder %v6821, 8.507059e+37
    %v6823 = vand.u32 %v6736, 2147483648
    %v6824 = vor.u32 1.1754944e-38, %v6823
    %v6825 = vsel %vm6822, %v6824, %v6820
    %v6826 = vmul.f32 1.0, %v6825
    %v6827 = vpack.c.bf16 %v6751, %v6751
    %v6828 = vpack.c.bf16 %v6766, %v6766
    %v6829 = vpack.c.bf16 %v6781, %v6781
    %v6830 = vpack.c.bf16 %v6796, %v6796
    %v6831 = vpack.c.bf16 %v6811, %v6811
    %v6832 = vpack.c.bf16 %v6826, %v6826
    %v6833 = vld [vmem:[#allocation11] sm:$0xff]
    %v6834 = vld [vmem:[#allocation11 + $0x8] sm:$0xff]
    %v6835 = vld [vmem:[#allocation11 + $0x10] sm:$0xff]
    %v6836 = vld [vmem:[#allocation11 + $0x18] sm:$0xff]
    %v6837 = vld [vmem:[#allocation11 + $0x20] sm:$0xff]
    %v6838 = vld [vmem:[#allocation11 + $0x28] sm:$0xff]
    %v6839 = vld [vmem:[#allocation11 + $0x30] sm:$0xff]
    %v6840 = vld [vmem:[#allocation11 + $0x38] sm:$0xff]
    %v6841 = vld [vmem:[#allocation11 + $0x40] sm:$0xff]
    %v6842 = vld [vmem:[#allocation11 + $0x48] sm:$0xff]
    %v6843 = vld [vmem:[#allocation11 + $0x50] sm:$0xff]
    %v6844 = vld [vmem:[#allocation11 + $0x58] sm:$0xff]
    %v6845 = vld [vmem:[#allocation11 + $0x60] sm:$0xff]
    %v6846 = vld [vmem:[#allocation11 + $0x68] sm:$0xff]
    %v6847 = vld [vmem:[#allocation11 + $0x70] sm:$0xff]
    %v6848 = vld [vmem:[#allocation11 + $0x78] sm:$0xff]
    %v6849 = vld [vmem:[#allocation11 + $0x80] sm:$0xff]
    %v6850 = vld [vmem:[#allocation11 + $0x88] sm:$0xff]
    %v6851 = vld [vmem:[#allocation11 + $0x90] sm:$0xff]
    %v6852 = vld [vmem:[#allocation11 + $0x98] sm:$0xff]
    %v6853 = vld [vmem:[#allocation11 + $0xa0] sm:$0xff]
    %v6854 = vld [vmem:[#allocation11 + $0xa8] sm:$0xff]
    %v6855 = vld [vmem:[#allocation11 + $0xb0] sm:$0xff]
    %v6856 = vld [vmem:[#allocation11 + $0xb8] sm:$0xff]
    %v6857 = vld [vmem:[#allocation11 + $0xc0] sm:$0xff]
    %v6858 = vld [vmem:[#allocation11 + $0xc8] sm:$0xff]
    %v6859 = vld [vmem:[#allocation11 + $0xd0] sm:$0xff]
    %v6860 = vld [vmem:[#allocation11 + $0xd8] sm:$0xff]
    %v6861 = vld [vmem:[#allocation11 + $0xe0] sm:$0xff]
    %v6862 = vld [vmem:[#allocation11 + $0xe8] sm:$0xff]
    %v6863 = vld [vmem:[#allocation11 + $0xf0] sm:$0xff]
    %v6864 = vld [vmem:[#allocation11 + $0xf8] sm:$0xff]
    %v6865 = vld [vmem:[#allocation11 + $0x100] sm:$0xff]
    %v6866 = vld [vmem:[#allocation11 + $0x108] sm:$0xff]
    %v6867 = vld [vmem:[#allocation11 + $0x110] sm:$0xff]
    %v6868 = vld [vmem:[#allocation11 + $0x118] sm:$0xff]
    %v6869 = vld [vmem:[#allocation11 + $0x120] sm:$0xff]
    %v6870 = vld [vmem:[#allocation11 + $0x128] sm:$0xff]
    %v6871 = vld [vmem:[#allocation11 + $0x130] sm:$0xff]
    %v6872 = vld [vmem:[#allocation11 + $0x138] sm:$0xff]
    %v6873 = vld [vmem:[#allocation11 + $0x140] sm:$0xff]
    %v6874 = vld [vmem:[#allocation11 + $0x148] sm:$0xff]
    %v6875 = vld [vmem:[#allocation11 + $0x150] sm:$0xff]
    %v6876 = vld [vmem:[#allocation11 + $0x158] sm:$0xff]
    %v6877 = vld [vmem:[#allocation11 + $0x160] sm:$0xff]
    %v6878 = vld [vmem:[#allocation11 + $0x168] sm:$0xff]
    %v6879 = vld [vmem:[#allocation11 + $0x170] sm:$0xff]
    %v6880 = vld [vmem:[#allocation11 + $0x178] sm:$0xff]
    %v6881 = vld [vmem:[#allocation11 + $0x180] sm:$0xff]
    %v6882 = vld [vmem:[#allocation11 + $0x188] sm:$0xff]
    %v6883 = vld [vmem:[#allocation11 + $0x190] sm:$0xff]
    %v6884 = vld [vmem:[#allocation11 + $0x198] sm:$0xff]
    %v6885 = vld [vmem:[#allocation11 + $0x1a0] sm:$0xff]
    %v6886 = vld [vmem:[#allocation11 + $0x1a8] sm:$0xff]
    %v6887 = vld [vmem:[#allocation11 + $0x1b0] sm:$0xff]
    %v6888 = vld [vmem:[#allocation11 + $0x1b8] sm:$0xff]
    %v6889 = vld [vmem:[#allocation11 + $0x1c0] sm:$0xff]
    %v6890 = vld [vmem:[#allocation11 + $0x1c8] sm:$0xff]
    %v6891 = vld [vmem:[#allocation11 + $0x1d0] sm:$0xff]
    %v6892 = vld [vmem:[#allocation11 + $0x1d8] sm:$0xff]
    %v6893 = vld [vmem:[#allocation11 + $0x1e0] sm:$0xff]
    %v6894 = vld [vmem:[#allocation11 + $0x1e8] sm:$0xff]
    %v6895 = vld [vmem:[#allocation11 + $0x1f0] sm:$0xff]
    %v6896 = vld [vmem:[#allocation11 + $0x1f8] sm:$0xff]
    %v6897 = vld [vmem:[#allocation11 + $0x200] sm:$0xff]
    %v6898 = vld [vmem:[#allocation11 + $0x208] sm:$0xff]
    %v6899 = vld [vmem:[#allocation11 + $0x210] sm:$0xff]
    %v6900 = vld [vmem:[#allocation11 + $0x218] sm:$0xff]
    %v6901 = vld [vmem:[#allocation11 + $0x220] sm:$0xff]
    %v6902 = vld [vmem:[#allocation11 + $0x228] sm:$0xff]
    %v6903 = vld [vmem:[#allocation11 + $0x230] sm:$0xff]
    %v6904 = vld [vmem:[#allocation11 + $0x238] sm:$0xff]
    %v6905 = vld [vmem:[#allocation11 + $0x240] sm:$0xff]
    %v6906 = vld [vmem:[#allocation11 + $0x248] sm:$0xff]
    %v6907 = vld [vmem:[#allocation11 + $0x250] sm:$0xff]
    %v6908 = vld [vmem:[#allocation11 + $0x258] sm:$0xff]
    %v6909 = vld [vmem:[#allocation11 + $0x260] sm:$0xff]
    %v6910 = vld [vmem:[#allocation11 + $0x268] sm:$0xff]
    %v6911 = vld [vmem:[#allocation11 + $0x270] sm:$0xff]
    %v6912 = vld [vmem:[#allocation11 + $0x278] sm:$0xff]
    %v6913 = vld [vmem:[#allocation11 + $0x280] sm:$0xff]
    %v6914 = vld [vmem:[#allocation11 + $0x288] sm:$0xff]
    %v6915 = vld [vmem:[#allocation11 + $0x290] sm:$0xff]
    %v6916 = vld [vmem:[#allocation11 + $0x298] sm:$0xff]
    %v6917 = vld [vmem:[#allocation11 + $0x2a0] sm:$0xff]
    %v6918 = vld [vmem:[#allocation11 + $0x2a8] sm:$0xff]
    %v6919 = vld [vmem:[#allocation11 + $0x2b0] sm:$0xff]
    %v6920 = vld [vmem:[#allocation11 + $0x2b8] sm:$0xff]
    %v6921 = vld [vmem:[#allocation11 + $0x2c0] sm:$0xff]
    %v6922 = vld [vmem:[#allocation11 + $0x2c8] sm:$0xff]
    %v6923 = vld [vmem:[#allocation11 + $0x2d0] sm:$0xff]
    %v6924 = vld [vmem:[#allocation11 + $0x2d8] sm:$0xff]
    %v6925 = vld [vmem:[#allocation11 + $0x2e0] sm:$0xff]
    %v6926 = vld [vmem:[#allocation11 + $0x2e8] sm:$0xff]
    %v6927 = vld [vmem:[#allocation11 + $0x2f0] sm:$0xff]
    %v6928 = vld [vmem:[#allocation11 + $0x2f8] sm:$0xff]
    %v6929 = vld [vmem:[#allocation11 + $0x300] sm:$0xff]
    %v6930 = vld [vmem:[#allocation11 + $0x308] sm:$0xff]
    %v6931 = vld [vmem:[#allocation11 + $0x310] sm:$0xff]
    %v6932 = vld [vmem:[#allocation11 + $0x318] sm:$0xff]
    %v6933 = vld [vmem:[#allocation11 + $0x320] sm:$0xff]
    %v6934 = vld [vmem:[#allocation11 + $0x328] sm:$0xff]
    %v6935 = vld [vmem:[#allocation11 + $0x330] sm:$0xff]
    %v6936 = vld [vmem:[#allocation11 + $0x338] sm:$0xff]
    %v6937 = vld [vmem:[#allocation11 + $0x340] sm:$0xff]
    %v6938 = vld [vmem:[#allocation11 + $0x348] sm:$0xff]
    %v6939 = vld [vmem:[#allocation11 + $0x350] sm:$0xff]
    %v6940 = vld [vmem:[#allocation11 + $0x358] sm:$0xff]
    %v6941 = vld [vmem:[#allocation11 + $0x360] sm:$0xff]
    %v6942 = vld [vmem:[#allocation11 + $0x368] sm:$0xff]
    %v6943 = vld [vmem:[#allocation11 + $0x370] sm:$0xff]
    %v6944 = vld [vmem:[#allocation11 + $0x378] sm:$0xff]
    %v6945 = vld [vmem:[#allocation11 + $0x380] sm:$0xff]
    %v6946 = vld [vmem:[#allocation11 + $0x388] sm:$0xff]
    %v6947 = vld [vmem:[#allocation11 + $0x390] sm:$0xff]
    %v6948 = vld [vmem:[#allocation11 + $0x398] sm:$0xff]
    %v6949 = vld [vmem:[#allocation11 + $0x3a0] sm:$0xff]
    %v6950 = vld [vmem:[#allocation11 + $0x3a8] sm:$0xff]
    %v6951 = vld [vmem:[#allocation11 + $0x3b0] sm:$0xff]
    %v6952 = vld [vmem:[#allocation11 + $0x3b8] sm:$0xff]
    %v6953 = vld [vmem:[#allocation11 + $0x3c0] sm:$0xff]
    %v6954 = vld [vmem:[#allocation11 + $0x3c8] sm:$0xff]
    %v6955 = vld [vmem:[#allocation11 + $0x3d0] sm:$0xff]
    %v6956 = vld [vmem:[#allocation11 + $0x3d8] sm:$0xff]
    %v6957 = vld [vmem:[#allocation11 + $0x3e0] sm:$0xff]
    %v6958 = vld [vmem:[#allocation11 + $0x3e8] sm:$0xff]
    %v6959 = vld [vmem:[#allocation11 + $0x3f0] sm:$0xff]
    %v6960 = vld [vmem:[#allocation11 + $0x3f8] sm:$0xff]
    %v6961 = vld [vmem:[#allocation11 + $0x400] sm:$0xff]
    %v6962 = vld [vmem:[#allocation11 + $0x408] sm:$0xff]
    %v6963 = vld [vmem:[#allocation11 + $0x410] sm:$0xff]
    %v6964 = vld [vmem:[#allocation11 + $0x418] sm:$0xff]
    %v6965 = vld [vmem:[#allocation11 + $0x420] sm:$0xff]
    %v6966 = vld [vmem:[#allocation11 + $0x428] sm:$0xff]
    %v6967 = vld [vmem:[#allocation11 + $0x430] sm:$0xff]
    %v6968 = vld [vmem:[#allocation11 + $0x438] sm:$0xff]
    %v6969 = vld [vmem:[#allocation11 + $0x440] sm:$0xff]
    %v6970 = vld [vmem:[#allocation11 + $0x448] sm:$0xff]
    %v6971 = vld [vmem:[#allocation11 + $0x450] sm:$0xff]
    %v6972 = vld [vmem:[#allocation11 + $0x458] sm:$0xff]
    %v6973 = vld [vmem:[#allocation11 + $0x460] sm:$0xff]
    %v6974 = vld [vmem:[#allocation11 + $0x468] sm:$0xff]
    %v6975 = vld [vmem:[#allocation11 + $0x470] sm:$0xff]
    %v6976 = vld [vmem:[#allocation11 + $0x478] sm:$0xff]
    %v6977 = vld [vmem:[#allocation11 + $0x480] sm:$0xff]
    %v6978 = vld [vmem:[#allocation11 + $0x488] sm:$0xff]
    %v6979 = vld [vmem:[#allocation11 + $0x490] sm:$0xff]
    %v6980 = vld [vmem:[#allocation11 + $0x498] sm:$0xff]
    %v6981 = vld [vmem:[#allocation11 + $0x4a0] sm:$0xff]
    %v6982 = vld [vmem:[#allocation11 + $0x4a8] sm:$0xff]
    %v6983 = vld [vmem:[#allocation11 + $0x4b0] sm:$0xff]
    %v6984 = vld [vmem:[#allocation11 + $0x4b8] sm:$0xff]
    %v6985 = vld [vmem:[#allocation11 + $0x4c0] sm:$0xff]
    %v6986 = vld [vmem:[#allocation11 + $0x4c8] sm:$0xff]
    %v6987 = vld [vmem:[#allocation11 + $0x4d0] sm:$0xff]
    %v6988 = vld [vmem:[#allocation11 + $0x4d8] sm:$0xff]
    %v6989 = vld [vmem:[#allocation11 + $0x4e0] sm:$0xff]
    %v6990 = vld [vmem:[#allocation11 + $0x4e8] sm:$0xff]
    %v6991 = vld [vmem:[#allocation11 + $0x4f0] sm:$0xff]
    %v6992 = vld [vmem:[#allocation11 + $0x4f8] sm:$0xff]
    %v6993 = vld [vmem:[#allocation11 + $0x500] sm:$0xff]
    %v6994 = vld [vmem:[#allocation11 + $0x508] sm:$0xff]
    %v6995 = vld [vmem:[#allocation11 + $0x510] sm:$0xff]
    %v6996 = vld [vmem:[#allocation11 + $0x518] sm:$0xff]
    %v6997 = vld [vmem:[#allocation11 + $0x520] sm:$0xff]
    %v6998 = vld [vmem:[#allocation11 + $0x528] sm:$0xff]
    %v6999 = vld [vmem:[#allocation11 + $0x530] sm:$0xff]
    %v7000 = vld [vmem:[#allocation11 + $0x538] sm:$0xff]
    %v7001 = vld [vmem:[#allocation11 + $0x540] sm:$0xff]
    %v7002 = vld [vmem:[#allocation11 + $0x548] sm:$0xff]
    %v7003 = vld [vmem:[#allocation11 + $0x550] sm:$0xff]
    %v7004 = vld [vmem:[#allocation11 + $0x558] sm:$0xff]
    %v7005 = vld [vmem:[#allocation11 + $0x560] sm:$0xff]
    %v7006 = vld [vmem:[#allocation11 + $0x568] sm:$0xff]
    %v7007 = vld [vmem:[#allocation11 + $0x570] sm:$0xff]
    %v7008 = vld [vmem:[#allocation11 + $0x578] sm:$0xff]
    %v7009 = vld [vmem:[#allocation11 + $0x580] sm:$0xff]
    %v7010 = vld [vmem:[#allocation11 + $0x588] sm:$0xff]
    %v7011 = vld [vmem:[#allocation11 + $0x590] sm:$0xff]
    %v7012 = vld [vmem:[#allocation11 + $0x598] sm:$0xff]
    %v7013 = vld [vmem:[#allocation11 + $0x5a0] sm:$0xff]
    %v7014 = vld [vmem:[#allocation11 + $0x5a8] sm:$0xff]
    %v7015 = vld [vmem:[#allocation11 + $0x5b0] sm:$0xff]
    %v7016 = vld [vmem:[#allocation11 + $0x5b8] sm:$0xff]
    %v7017 = vld [vmem:[#allocation11 + $0x5c0] sm:$0xff]
    %v7018 = vld [vmem:[#allocation11 + $0x5c8] sm:$0xff]
    %v7019 = vld [vmem:[#allocation11 + $0x5d0] sm:$0xff]
    %v7020 = vld [vmem:[#allocation11 + $0x5d8] sm:$0xff]
    %v7021 = vld [vmem:[#allocation11 + $0x5e0] sm:$0xff]
    %v7022 = vld [vmem:[#allocation11 + $0x5e8] sm:$0xff]
    %v7023 = vld [vmem:[#allocation11 + $0x5f0] sm:$0xff]
    %v7024 = vld [vmem:[#allocation11 + $0x5f8] sm:$0xff]
    %v7025 = vld [vmem:[#allocation13] sm:$0xf]
    %v7027 = vperm.slane %v7025, 0
    %v7028 = vperm.slane %v7025, 1
    %v7029 = vperm.slane %v7025, 2
    %v7030 = vperm.slane %v7025, 3
    %v7227 = vunpack.c.l.b16 %v6833
    %v7228 = vunpack.c.h.b16 %v6833
    %v7229 = vunpack.c.l.b16 %v6834
    %v7230 = vunpack.c.h.b16 %v6834
    %v7231 = vunpack.c.l.b16 %v6835
    %v7232 = vunpack.c.h.b16 %v6835
    %v7233 = vunpack.c.l.b16 %v6836
    %v7234 = vunpack.c.h.b16 %v6836
    %v7235 = vunpack.c.l.b16 %v6837
    %v7236 = vunpack.c.h.b16 %v6837
    %v7237 = vunpack.c.l.b16 %v6838
    %v7238 = vunpack.c.h.b16 %v6838
    %v7239 = vunpack.c.l.b16 %v6839
    %v7240 = vunpack.c.h.b16 %v6839
    %v7241 = vunpack.c.l.b16 %v6840
    %v7242 = vunpack.c.h.b16 %v6840
    %v7243 = vunpack.c.l.b16 %v6841
    %v7244 = vunpack.c.h.b16 %v6841
    %v7245 = vunpack.c.l.b16 %v6842
    %v7246 = vunpack.c.h.b16 %v6842
    %v7247 = vunpack.c.l.b16 %v6843
    %v7248 = vunpack.c.h.b16 %v6843
    %v7249 = vunpack.c.l.b16 %v6844
    %v7250 = vunpack.c.h.b16 %v6844
    %v7251 = vunpack.c.l.b16 %v6845
    %v7252 = vunpack.c.h.b16 %v6845
    %v7253 = vunpack.c.l.b16 %v6846
    %v7254 = vunpack.c.h.b16 %v6846
    %v7255 = vunpack.c.l.b16 %v6847
    %v7256 = vunpack.c.h.b16 %v6847
    %v7257 = vunpack.c.l.b16 %v6848
    %v7258 = vunpack.c.h.b16 %v6848
    %v7259 = vunpack.c.l.b16 %v6849
    %v7260 = vunpack.c.h.b16 %v6849
    %v7261 = vunpack.c.l.b16 %v6850
    %v7262 = vunpack.c.h.b16 %v6850
    %v7263 = vunpack.c.l.b16 %v6851
    %v7264 = vunpack.c.h.b16 %v6851
    %v7265 = vunpack.c.l.b16 %v6852
    %v7266 = vunpack.c.h.b16 %v6852
    %v7267 = vunpack.c.l.b16 %v6853
    %v7268 = vunpack.c.h.b16 %v6853
    %v7269 = vunpack.c.l.b16 %v6854
    %v7270 = vunpack.c.h.b16 %v6854
    %v7271 = vunpack.c.l.b16 %v6855
    %v7272 = vunpack.c.h.b16 %v6855
    %v7273 = vunpack.c.l.b16 %v6856
    %v7274 = vunpack.c.h.b16 %v6856
    %v7275 = vunpack.c.l.b16 %v6857
    %v7276 = vunpack.c.h.b16 %v6857
    %v7277 = vunpack.c.l.b16 %v6858
    %v7278 = vunpack.c.h.b16 %v6858
    %v7279 = vunpack.c.l.b16 %v6859
    %v7280 = vunpack.c.h.b16 %v6859
    %v7281 = vunpack.c.l.b16 %v6860
    %v7282 = vunpack.c.h.b16 %v6860
    %v7283 = vunpack.c.l.b16 %v6861
    %v7284 = vunpack.c.h.b16 %v6861
    %v7285 = vunpack.c.l.b16 %v6862
    %v7286 = vunpack.c.h.b16 %v6862
    %v7287 = vunpack.c.l.b16 %v6863
    %v7288 = vunpack.c.h.b16 %v6863
    %v7289 = vunpack.c.l.b16 %v6864
    %v7290 = vunpack.c.h.b16 %v6864
    %v7291 = vunpack.c.l.b16 %v6865
    %v7292 = vunpack.c.h.b16 %v6865
    %v7293 = vunpack.c.l.b16 %v6866
    %v7294 = vunpack.c.h.b16 %v6866
    %v7295 = vunpack.c.l.b16 %v6867
    %v7296 = vunpack.c.h.b16 %v6867
    %v7297 = vunpack.c.l.b16 %v6868
    %v7298 = vunpack.c.h.b16 %v6868
    %v7299 = vunpack.c.l.b16 %v6869
    %v7300 = vunpack.c.h.b16 %v6869
    %v7301 = vunpack.c.l.b16 %v6870
    %v7302 = vunpack.c.h.b16 %v6870
    %v7303 = vunpack.c.l.b16 %v6871
    %v7304 = vunpack.c.h.b16 %v6871
    %v7305 = vunpack.c.l.b16 %v6872
    %v7306 = vunpack.c.h.b16 %v6872
    %v7307 = vunpack.c.l.b16 %v6873
    %v7308 = vunpack.c.h.b16 %v6873
    %v7309 = vunpack.c.l.b16 %v6874
    %v7310 = vunpack.c.h.b16 %v6874
    %v7311 = vunpack.c.l.b16 %v6875
    %v7312 = vunpack.c.h.b16 %v6875
    %v7313 = vunpack.c.l.b16 %v6876
    %v7314 = vunpack.c.h.b16 %v6876
    %v7315 = vunpack.c.l.b16 %v6877
    %v7316 = vunpack.c.h.b16 %v6877
    %v7317 = vunpack.c.l.b16 %v6878
    %v7318 = vunpack.c.h.b16 %v6878
    %v7319 = vunpack.c.l.b16 %v6879
    %v7320 = vunpack.c.h.b16 %v6879
    %v7321 = vunpack.c.l.b16 %v6880
    %v7322 = vunpack.c.h.b16 %v6880
    %v7323 = vunpack.c.l.b16 %v6881
    %v7324 = vunpack.c.h.b16 %v6881
    %v7325 = vunpack.c.l.b16 %v6882
    %v7326 = vunpack.c.h.b16 %v6882
    %v7327 = vunpack.c.l.b16 %v6883
    %v7328 = vunpack.c.h.b16 %v6883
    %v7329 = vunpack.c.l.b16 %v6884
    %v7330 = vunpack.c.h.b16 %v6884
    %v7331 = vunpack.c.l.b16 %v6885
    %v7332 = vunpack.c.h.b16 %v6885
    %v7333 = vunpack.c.l.b16 %v6886
    %v7334 = vunpack.c.h.b16 %v6886
    %v7335 = vunpack.c.l.b16 %v6887
    %v7336 = vunpack.c.h.b16 %v6887
    %v7337 = vunpack.c.l.b16 %v6888
    %v7338 = vunpack.c.h.b16 %v6888
    %v7339 = vunpack.c.l.b16 %v6889
    %v7340 = vunpack.c.h.b16 %v6889
    %v7341 = vunpack.c.l.b16 %v6890
    %v7342 = vunpack.c.h.b16 %v6890
    %v7343 = vunpack.c.l.b16 %v6891
    %v7344 = vunpack.c.h.b16 %v6891
    %v7345 = vunpack.c.l.b16 %v6892
    %v7346 = vunpack.c.h.b16 %v6892
    %v7347 = vunpack.c.l.b16 %v6893
    %v7348 = vunpack.c.h.b16 %v6893
    %v7349 = vunpack.c.l.b16 %v6894
    %v7350 = vunpack.c.h.b16 %v6894
    %v7351 = vunpack.c.l.b16 %v6895
    %v7352 = vunpack.c.h.b16 %v6895
    %v7353 = vunpack.c.l.b16 %v6896
    %v7354 = vunpack.c.h.b16 %v6896
    %v7355 = vunpack.c.l.b16 %v6897
    %v7356 = vunpack.c.h.b16 %v6897
    %v7357 = vunpack.c.l.b16 %v6898
    %v7358 = vunpack.c.h.b16 %v6898
    %v7359 = vunpack.c.l.b16 %v6899
    %v7360 = vunpack.c.h.b16 %v6899
    %v7361 = vunpack.c.l.b16 %v6900
    %v7362 = vunpack.c.h.b16 %v6900
    %v7363 = vunpack.c.l.b16 %v6901
    %v7364 = vunpack.c.h.b16 %v6901
    %v7365 = vunpack.c.l.b16 %v6902
    %v7366 = vunpack.c.h.b16 %v6902
    %v7367 = vunpack.c.l.b16 %v6903
    %v7368 = vunpack.c.h.b16 %v6903
    %v7369 = vunpack.c.l.b16 %v6904
    %v7370 = vunpack.c.h.b16 %v6904
    %v7371 = vunpack.c.l.b16 %v6905
    %v7372 = vunpack.c.h.b16 %v6905
    %v7373 = vunpack.c.l.b16 %v6906
    %v7374 = vunpack.c.h.b16 %v6906
    %v7375 = vunpack.c.l.b16 %v6907
    %v7376 = vunpack.c.h.b16 %v6907
    %v7377 = vunpack.c.l.b16 %v6908
    %v7378 = vunpack.c.h.b16 %v6908
    %v7379 = vunpack.c.l.b16 %v6909
    %v7380 = vunpack.c.h.b16 %v6909
    %v7381 = vunpack.c.l.b16 %v6910
    %v7382 = vunpack.c.h.b16 %v6910
    %v7383 = vunpack.c.l.b16 %v6911
    %v7384 = vunpack.c.h.b16 %v6911
    %v7385 = vunpack.c.l.b16 %v6912
    %v7386 = vunpack.c.h.b16 %v6912
    %v7387 = vunpack.c.l.b16 %v6913
    %v7388 = vunpack.c.h.b16 %v6913
    %v7389 = vunpack.c.l.b16 %v6914
    %v7390 = vunpack.c.h.b16 %v6914
    %v7391 = vunpack.c.l.b16 %v6915
    %v7392 = vunpack.c.h.b16 %v6915
    %v7393 = vunpack.c.l.b16 %v6916
    %v7394 = vunpack.c.h.b16 %v6916
    %v7395 = vunpack.c.l.b16 %v6917
    %v7396 = vunpack.c.h.b16 %v6917
    %v7397 = vunpack.c.l.b16 %v6918
    %v7398 = vunpack.c.h.b16 %v6918
    %v7399 = vunpack.c.l.b16 %v6919
    %v7400 = vunpack.c.h.b16 %v6919
    %v7401 = vunpack.c.l.b16 %v6920
    %v7402 = vunpack.c.h.b16 %v6920
    %v7403 = vunpack.c.l.b16 %v6921
    %v7404 = vunpack.c.h.b16 %v6921
    %v7405 = vunpack.c.l.b16 %v6922
    %v7406 = vunpack.c.h.b16 %v6922
    %v7407 = vunpack.c.l.b16 %v6923
    %v7408 = vunpack.c.h.b16 %v6923
    %v7409 = vunpack.c.l.b16 %v6924
    %v7410 = vunpack.c.h.b16 %v6924
    %v7411 = vunpack.c.l.b16 %v6925
    %v7412 = vunpack.c.h.b16 %v6925
    %v7413 = vunpack.c.l.b16 %v6926
    %v7414 = vunpack.c.h.b16 %v6926
    %v7415 = vunpack.c.l.b16 %v6927
    %v7416 = vunpack.c.h.b16 %v6927
    %v7417 = vunpack.c.l.b16 %v6928
    %v7418 = vunpack.c.h.b16 %v6928
    %v7419 = vunpack.c.l.b16 %v6929
    %v7420 = vunpack.c.h.b16 %v6929
    %v7421 = vunpack.c.l.b16 %v6930
    %v7422 = vunpack.c.h.b16 %v6930
    %v7423 = vunpack.c.l.b16 %v6931
    %v7424 = vunpack.c.h.b16 %v6931
    %v7425 = vunpack.c.l.b16 %v6932
    %v7426 = vunpack.c.h.b16 %v6932
    %v7427 = vunpack.c.l.b16 %v6933
    %v7428 = vunpack.c.h.b16 %v6933
    %v7429 = vunpack.c.l.b16 %v6934
    %v7430 = vunpack.c.h.b16 %v6934
    %v7431 = vunpack.c.l.b16 %v6935
    %v7432 = vunpack.c.h.b16 %v6935
    %v7433 = vunpack.c.l.b16 %v6936
    %v7434 = vunpack.c.h.b16 %v6936
    %v7435 = vunpack.c.l.b16 %v6937
    %v7436 = vunpack.c.h.b16 %v6937
    %v7437 = vunpack.c.l.b16 %v6938
    %v7438 = vunpack.c.h.b16 %v6938
    %v7439 = vunpack.c.l.b16 %v6939
    %v7440 = vunpack.c.h.b16 %v6939
    %v7441 = vunpack.c.l.b16 %v6940
    %v7442 = vunpack.c.h.b16 %v6940
    %v7443 = vunpack.c.l.b16 %v6941
    %v7444 = vunpack.c.h.b16 %v6941
    %v7445 = vunpack.c.l.b16 %v6942
    %v7446 = vunpack.c.h.b16 %v6942
    %v7447 = vunpack.c.l.b16 %v6943
    %v7448 = vunpack.c.h.b16 %v6943
    %v7449 = vunpack.c.l.b16 %v6944
    %v7450 = vunpack.c.h.b16 %v6944
    %v7451 = vunpack.c.l.b16 %v6945
    %v7452 = vunpack.c.h.b16 %v6945
    %v7453 = vunpack.c.l.b16 %v6946
    %v7454 = vunpack.c.h.b16 %v6946
    %v7455 = vunpack.c.l.b16 %v6947
    %v7456 = vunpack.c.h.b16 %v6947
    %v7457 = vunpack.c.l.b16 %v6948
    %v7458 = vunpack.c.h.b16 %v6948
    %v7459 = vunpack.c.l.b16 %v6949
    %v7460 = vunpack.c.h.b16 %v6949
    %v7461 = vunpack.c.l.b16 %v6950
    %v7462 = vunpack.c.h.b16 %v6950
    %v7463 = vunpack.c.l.b16 %v6951
    %v7464 = vunpack.c.h.b16 %v6951
    %v7465 = vunpack.c.l.b16 %v6952
    %v7466 = vunpack.c.h.b16 %v6952
    %v7467 = vunpack.c.l.b16 %v6953
    %v7468 = vunpack.c.h.b16 %v6953
    %v7469 = vunpack.c.l.b16 %v6954
    %v7470 = vunpack.c.h.b16 %v6954
    %v7471 = vunpack.c.l.b16 %v6955
    %v7472 = vunpack.c.h.b16 %v6955
    %v7473 = vunpack.c.l.b16 %v6956
    %v7474 = vunpack.c.h.b16 %v6956
    %v7475 = vunpack.c.l.b16 %v6957
    %v7476 = vunpack.c.h.b16 %v6957
    %v7477 = vunpack.c.l.b16 %v6958
    %v7478 = vunpack.c.h.b16 %v6958
    %v7479 = vunpack.c.l.b16 %v6959
    %v7480 = vunpack.c.h.b16 %v6959
    %v7481 = vunpack.c.l.b16 %v6960
    %v7482 = vunpack.c.h.b16 %v6960
    %v7483 = vunpack.c.l.b16 %v6961
    %v7484 = vunpack.c.h.b16 %v6961
    %v7485 = vunpack.c.l.b16 %v6962
    %v7486 = vunpack.c.h.b16 %v6962
    %v7487 = vunpack.c.l.b16 %v6963
    %v7488 = vunpack.c.h.b16 %v6963
    %v7489 = vunpack.c.l.b16 %v6964
    %v7490 = vunpack.c.h.b16 %v6964
    %v7491 = vunpack.c.l.b16 %v6965
    %v7492 = vunpack.c.h.b16 %v6965
    %v7493 = vunpack.c.l.b16 %v6966
    %v7494 = vunpack.c.h.b16 %v6966
    %v7495 = vunpack.c.l.b16 %v6967
    %v7496 = vunpack.c.h.b16 %v6967
    %v7497 = vunpack.c.l.b16 %v6968
    %v7498 = vunpack.c.h.b16 %v6968
    %v7499 = vunpack.c.l.b16 %v6969
    %v7500 = vunpack.c.h.b16 %v6969
    %v7501 = vunpack.c.l.b16 %v6970
    %v7502 = vunpack.c.h.b16 %v6970
    %v7503 = vunpack.c.l.b16 %v6971
    %v7504 = vunpack.c.h.b16 %v6971
    %v7505 = vunpack.c.l.b16 %v6972
    %v7506 = vunpack.c.h.b16 %v6972
    %v7507 = vunpack.c.l.b16 %v6973
    %v7508 = vunpack.c.h.b16 %v6973
    %v7509 = vunpack.c.l.b16 %v6974
    %v7510 = vunpack.c.h.b16 %v6974
    %v7511 = vunpack.c.l.b16 %v6975
    %v7512 = vunpack.c.h.b16 %v6975
    %v7513 = vunpack.c.l.b16 %v6976
    %v7514 = vunpack.c.h.b16 %v6976
    %v7515 = vunpack.c.l.b16 %v6977
    %v7516 = vunpack.c.h.b16 %v6977
    %v7517 = vunpack.c.l.b16 %v6978
    %v7518 = vunpack.c.h.b16 %v6978
    %v7519 = vunpack.c.l.b16 %v6979
    %v7520 = vunpack.c.h.b16 %v6979
    %v7521 = vunpack.c.l.b16 %v6980
    %v7522 = vunpack.c.h.b16 %v6980
    %v7523 = vunpack.c.l.b16 %v6981
    %v7524 = vunpack.c.h.b16 %v6981
    %v7525 = vunpack.c.l.b16 %v6982
    %v7526 = vunpack.c.h.b16 %v6982
    %v7527 = vunpack.c.l.b16 %v6983
    %v7528 = vunpack.c.h.b16 %v6983
    %v7529 = vunpack.c.l.b16 %v6984
    %v7530 = vunpack.c.h.b16 %v6984
    %v7531 = vunpack.c.l.b16 %v6985
    %v7532 = vunpack.c.h.b16 %v6985
    %v7533 = vunpack.c.l.b16 %v6986
    %v7534 = vunpack.c.h.b16 %v6986
    %v7535 = vunpack.c.l.b16 %v6987
    %v7536 = vunpack.c.h.b16 %v6987
    %v7537 = vunpack.c.l.b16 %v6988
    %v7538 = vunpack.c.h.b16 %v6988
    %v7539 = vunpack.c.l.b16 %v6989
    %v7540 = vunpack.c.h.b16 %v6989
    %v7541 = vunpack.c.l.b16 %v6990
    %v7542 = vunpack.c.h.b16 %v6990
    %v7543 = vunpack.c.l.b16 %v6991
    %v7544 = vunpack.c.h.b16 %v6991
    %v7545 = vunpack.c.l.b16 %v6992
    %v7546 = vunpack.c.h.b16 %v6992
    %v7547 = vunpack.c.l.b16 %v6993
    %v7548 = vunpack.c.h.b16 %v6993
    %v7549 = vunpack.c.l.b16 %v6994
    %v7550 = vunpack.c.h.b16 %v6994
    %v7551 = vunpack.c.l.b16 %v6995
    %v7552 = vunpack.c.h.b16 %v6995
    %v7553 = vunpack.c.l.b16 %v6996
    %v7554 = vunpack.c.h.b16 %v6996
    %v7555 = vunpack.c.l.b16 %v6997
    %v7556 = vunpack.c.h.b16 %v6997
    %v7557 = vunpack.c.l.b16 %v6998
    %v7558 = vunpack.c.h.b16 %v6998
    %v7559 = vunpack.c.l.b16 %v6999
    %v7560 = vunpack.c.h.b16 %v6999
    %v7561 = vunpack.c.l.b16 %v7000
    %v7562 = vunpack.c.h.b16 %v7000
    %v7563 = vunpack.c.l.b16 %v7001
    %v7564 = vunpack.c.h.b16 %v7001
    %v7565 = vunpack.c.l.b16 %v7002
    %v7566 = vunpack.c.h.b16 %v7002
    %v7567 = vunpack.c.l.b16 %v7003
    %v7568 = vunpack.c.h.b16 %v7003
    %v7569 = vunpack.c.l.b16 %v7004
    %v7570 = vunpack.c.h.b16 %v7004
    %v7571 = vunpack.c.l.b16 %v7005
    %v7572 = vunpack.c.h.b16 %v7005
    %v7573 = vunpack.c.l.b16 %v7006
    %v7574 = vunpack.c.h.b16 %v7006
    %v7575 = vunpack.c.l.b16 %v7007
    %v7576 = vunpack.c.h.b16 %v7007
    %v7577 = vunpack.c.l.b16 %v7008
    %v7578 = vunpack.c.h.b16 %v7008
    %v7579 = vunpack.c.l.b16 %v7009
    %v7580 = vunpack.c.h.b16 %v7009
    %v7581 = vunpack.c.l.b16 %v7010
    %v7582 = vunpack.c.h.b16 %v7010
    %v7583 = vunpack.c.l.b16 %v7011
    %v7584 = vunpack.c.h.b16 %v7011
    %v7585 = vunpack.c.l.b16 %v7012
    %v7586 = vunpack.c.h.b16 %v7012
    %v7587 = vunpack.c.l.b16 %v7013
    %v7588 = vunpack.c.h.b16 %v7013
    %v7589 = vunpack.c.l.b16 %v7014
    %v7590 = vunpack.c.h.b16 %v7014
    %v7591 = vunpack.c.l.b16 %v7015
    %v7592 = vunpack.c.h.b16 %v7015
    %v7593 = vunpack.c.l.b16 %v7016
    %v7594 = vunpack.c.h.b16 %v7016
    %v7595 = vunpack.c.l.b16 %v7017
    %v7596 = vunpack.c.h.b16 %v7017
    %v7597 = vunpack.c.l.b16 %v7018
    %v7598 = vunpack.c.h.b16 %v7018
    %v7599 = vunpack.c.l.b16 %v7019
    %v7600 = vunpack.c.h.b16 %v7019
    %v7601 = vunpack.c.l.b16 %v7020
    %v7602 = vunpack.c.h.b16 %v7020
    %v7603 = vunpack.c.l.b16 %v7021
    %v7604 = vunpack.c.h.b16 %v7021
    %v7605 = vunpack.c.l.b16 %v7022
    %v7606 = vunpack.c.h.b16 %v7022
    %v7607 = vunpack.c.l.b16 %v7023
    %v7608 = vunpack.c.h.b16 %v7023
    %v7609 = vunpack.c.l.b16 %v7024
    %v7610 = vunpack.c.h.b16 %v7024
    %v7611 = vpack.c.b16 %v7231, %v7227
    %v7612 = vpack.c.b16 %v7232, %v7228
    %v7613 = vpack.c.b16 %v7233, %v7229
    %v7614 = vpack.c.b16 %v7234, %v7230
    %v7615 = vpack.c.b16 %v7239, %v7235
    %v7616 = vpack.c.b16 %v7240, %v7236
    %v7617 = vpack.c.b16 %v7241, %v7237
    %v7618 = vpack.c.b16 %v7242, %v7238
    %v7619 = vpack.c.b16 %v7247, %v7243
    %v7620 = vpack.c.b16 %v7248, %v7244
    %v7621 = vpack.c.b16 %v7249, %v7245
    %v7622 = vpack.c.b16 %v7250, %v7246
    %v7623 = vpack.c.b16 %v7255, %v7251
    %v7624 = vpack.c.b16 %v7256, %v7252
    %v7625 = vpack.c.b16 %v7257, %v7253
    %v7626 = vpack.c.b16 %v7258, %v7254
    %v7627 = vpack.c.b16 %v7263, %v7259
    %v7628 = vpack.c.b16 %v7264, %v7260
    %v7629 = vpack.c.b16 %v7265, %v7261
    %v7630 = vpack.c.b16 %v7266, %v7262
    %v7631 = vpack.c.b16 %v7271, %v7267
    %v7632 = vpack.c.b16 %v7272, %v7268
    %v7633 = vpack.c.b16 %v7273, %v7269
    %v7634 = vpack.c.b16 %v7274, %v7270
    %v7635 = vpack.c.b16 %v7279, %v7275
    %v7636 = vpack.c.b16 %v7280, %v7276
    %v7637 = vpack.c.b16 %v7281, %v7277
    %v7638 = vpack.c.b16 %v7282, %v7278
    %v7639 = vpack.c.b16 %v7287, %v7283
    %v7640 = vpack.c.b16 %v7288, %v7284
    %v7641 = vpack.c.b16 %v7289, %v7285
    %v7642 = vpack.c.b16 %v7290, %v7286
    %v7643 = vpack.c.b16 %v7295, %v7291
    %v7644 = vpack.c.b16 %v7296, %v7292
    %v7645 = vpack.c.b16 %v7297, %v7293
    %v7646 = vpack.c.b16 %v7298, %v7294
    %v7647 = vpack.c.b16 %v7303, %v7299
    %v7648 = vpack.c.b16 %v7304, %v7300
    %v7649 = vpack.c.b16 %v7305, %v7301
    %v7650 = vpack.c.b16 %v7306, %v7302
    %v7651 = vpack.c.b16 %v7311, %v7307
    %v7652 = vpack.c.b16 %v7312, %v7308
    %v7653 = vpack.c.b16 %v7313, %v7309
    %v7654 = vpack.c.b16 %v7314, %v7310
    %v7655 = vpack.c.b16 %v7319, %v7315
    %v7656 = vpack.c.b16 %v7320, %v7316
    %v7657 = vpack.c.b16 %v7321, %v7317
    %v7658 = vpack.c.b16 %v7322, %v7318
    %v7659 = vpack.c.b16 %v7327, %v7323
    %v7660 = vpack.c.b16 %v7328, %v7324
    %v7661 = vpack.c.b16 %v7329, %v7325
    %v7662 = vpack.c.b16 %v7330, %v7326
    %v7663 = vpack.c.b16 %v7335, %v7331
    %v7664 = vpack.c.b16 %v7336, %v7332
    %v7665 = vpack.c.b16 %v7337, %v7333
    %v7666 = vpack.c.b16 %v7338, %v7334
    %v7667 = vpack.c.b16 %v7343, %v7339
    %v7668 = vpack.c.b16 %v7344, %v7340
    %v7669 = vpack.c.b16 %v7345, %v7341
    %v7670 = vpack.c.b16 %v7346, %v7342
    %v7671 = vpack.c.b16 %v7351, %v7347
    %v7672 = vpack.c.b16 %v7352, %v7348
    %v7673 = vpack.c.b16 %v7353, %v7349
    %v7674 = vpack.c.b16 %v7354, %v7350
    %v7675 = vpack.c.b16 %v7359, %v7355
    %v7676 = vpack.c.b16 %v7360, %v7356
    %v7677 = vpack.c.b16 %v7361, %v7357
    %v7678 = vpack.c.b16 %v7362, %v7358
    %v7679 = vpack.c.b16 %v7367, %v7363
    %v7680 = vpack.c.b16 %v7368, %v7364
    %v7681 = vpack.c.b16 %v7369, %v7365
    %v7682 = vpack.c.b16 %v7370, %v7366
    %v7683 = vpack.c.b16 %v7375, %v7371
    %v7684 = vpack.c.b16 %v7376, %v7372
    %v7685 = vpack.c.b16 %v7377, %v7373
    %v7686 = vpack.c.b16 %v7378, %v7374
    %v7687 = vpack.c.b16 %v7383, %v7379
    %v7688 = vpack.c.b16 %v7384, %v7380
    %v7689 = vpack.c.b16 %v7385, %v7381
    %v7690 = vpack.c.b16 %v7386, %v7382
    %v7691 = vpack.c.b16 %v7391, %v7387
    %v7692 = vpack.c.b16 %v7392, %v7388
    %v7693 = vpack.c.b16 %v7393, %v7389
    %v7694 = vpack.c.b16 %v7394, %v7390
    %v7695 = vpack.c.b16 %v7399, %v7395
    %v7696 = vpack.c.b16 %v7400, %v7396
    %v7697 = vpack.c.b16 %v7401, %v7397
    %v7698 = vpack.c.b16 %v7402, %v7398
    %v7699 = vpack.c.b16 %v7407, %v7403
    %v7700 = vpack.c.b16 %v7408, %v7404
    %v7701 = vpack.c.b16 %v7409, %v7405
    %v7702 = vpack.c.b16 %v7410, %v7406
    %v7703 = vpack.c.b16 %v7415, %v7411
    %v7704 = vpack.c.b16 %v7416, %v7412
    %v7705 = vpack.c.b16 %v7417, %v7413
    %v7706 = vpack.c.b16 %v7418, %v7414
    %v7707 = vpack.c.b16 %v7423, %v7419
    %v7708 = vpack.c.b16 %v7424, %v7420
    %v7709 = vpack.c.b16 %v7425, %v7421
    %v7710 = vpack.c.b16 %v7426, %v7422
    %v7711 = vpack.c.b16 %v7431, %v7427
    %v7712 = vpack.c.b16 %v7432, %v7428
    %v7713 = vpack.c.b16 %v7433, %v7429
    %v7714 = vpack.c.b16 %v7434, %v7430
    %v7715 = vpack.c.b16 %v7439, %v7435
    %v7716 = vpack.c.b16 %v7440, %v7436
    %v7717 = vpack.c.b16 %v7441, %v7437
    %v7718 = vpack.c.b16 %v7442, %v7438
    %v7719 = vpack.c.b16 %v7447, %v7443
    %v7720 = vpack.c.b16 %v7448, %v7444
    %v7721 = vpack.c.b16 %v7449, %v7445
    %v7722 = vpack.c.b16 %v7450, %v7446
    %v7723 = vpack.c.b16 %v7455, %v7451
    %v7724 = vpack.c.b16 %v7456, %v7452
    %v7725 = vpack.c.b16 %v7457, %v7453
    %v7726 = vpack.c.b16 %v7458, %v7454
    %v7727 = vpack.c.b16 %v7463, %v7459
    %v7728 = vpack.c.b16 %v7464, %v7460
    %v7729 = vpack.c.b16 %v7465, %v7461
    %v7730 = vpack.c.b16 %v7466, %v7462
    %v7731 = vpack.c.b16 %v7471, %v7467
    %v7732 = vpack.c.b16 %v7472, %v7468
    %v7733 = vpack.c.b16 %v7473, %v7469
    %v7734 = vpack.c.b16 %v7474, %v7470
    %v7735 = vpack.c.b16 %v7479, %v7475
    %v7736 = vpack.c.b16 %v7480, %v7476
    %v7737 = vpack.c.b16 %v7481, %v7477
    %v7738 = vpack.c.b16 %v7482, %v7478
    %v7739 = vpack.c.b16 %v7487, %v7483
    %v7740 = vpack.c.b16 %v7488, %v7484
    %v7741 = vpack.c.b16 %v7489, %v7485
    %v7742 = vpack.c.b16 %v7490, %v7486
    %v7743 = vpack.c.b16 %v7495, %v7491
    %v7744 = vpack.c.b16 %v7496, %v7492
    %v7745 = vpack.c.b16 %v7497, %v7493
    %v7746 = vpack.c.b16 %v7498, %v7494
    %v7747 = vpack.c.b16 %v7503, %v7499
    %v7748 = vpack.c.b16 %v7504, %v7500
    %v7749 = vpack.c.b16 %v7505, %v7501
    %v7750 = vpack.c.b16 %v7506, %v7502
    %v7751 = vpack.c.b16 %v7511, %v7507
    %v7752 = vpack.c.b16 %v7512, %v7508
    %v7753 = vpack.c.b16 %v7513, %v7509
    %v7754 = vpack.c.b16 %v7514, %v7510
    %v7755 = vpack.c.b16 %v7519, %v7515
    %v7756 = vpack.c.b16 %v7520, %v7516
    %v7757 = vpack.c.b16 %v7521, %v7517
    %v7758 = vpack.c.b16 %v7522, %v7518
    %v7759 = vpack.c.b16 %v7527, %v7523
    %v7760 = vpack.c.b16 %v7528, %v7524
    %v7761 = vpack.c.b16 %v7529, %v7525
    %v7762 = vpack.c.b16 %v7530, %v7526
    %v7763 = vpack.c.b16 %v7535, %v7531
    %v7764 = vpack.c.b16 %v7536, %v7532
    %v7765 = vpack.c.b16 %v7537, %v7533
    %v7766 = vpack.c.b16 %v7538, %v7534
    %v7767 = vpack.c.b16 %v7543, %v7539
    %v7768 = vpack.c.b16 %v7544, %v7540
    %v7769 = vpack.c.b16 %v7545, %v7541
    %v7770 = vpack.c.b16 %v7546, %v7542
    %v7771 = vpack.c.b16 %v7551, %v7547
    %v7772 = vpack.c.b16 %v7552, %v7548
    %v7773 = vpack.c.b16 %v7553, %v7549
    %v7774 = vpack.c.b16 %v7554, %v7550
    %v7775 = vpack.c.b16 %v7559, %v7555
    %v7776 = vpack.c.b16 %v7560, %v7556
    %v7777 = vpack.c.b16 %v7561, %v7557
    %v7778 = vpack.c.b16 %v7562, %v7558
    %v7779 = vpack.c.b16 %v7567, %v7563
    %v7780 = vpack.c.b16 %v7568, %v7564
    %v7781 = vpack.c.b16 %v7569, %v7565
    %v7782 = vpack.c.b16 %v7570, %v7566
    %v7783 = vpack.c.b16 %v7575, %v7571
    %v7784 = vpack.c.b16 %v7576, %v7572
    %v7785 = vpack.c.b16 %v7577, %v7573
    %v7786 = vpack.c.b16 %v7578, %v7574
    %v7787 = vpack.c.b16 %v7583, %v7579
    %v7788 = vpack.c.b16 %v7584, %v7580
    %v7789 = vpack.c.b16 %v7585, %v7581
    %v7790 = vpack.c.b16 %v7586, %v7582
    %v7791 = vpack.c.b16 %v7591, %v7587
    %v7792 = vpack.c.b16 %v7592, %v7588
    %v7793 = vpack.c.b16 %v7593, %v7589
    %v7794 = vpack.c.b16 %v7594, %v7590
    %v7795 = vpack.c.b16 %v7599, %v7595
    %v7796 = vpack.c.b16 %v7600, %v7596
    %v7797 = vpack.c.b16 %v7601, %v7597
    %v7798 = vpack.c.b16 %v7602, %v7598
    %v7799 = vpack.c.b16 %v7607, %v7603
    %v7800 = vpack.c.b16 %v7608, %v7604
    %v7801 = vpack.c.b16 %v7609, %v7605
    %v7802 = vpack.c.b16 %v7610, %v7606
    %7995 = vmatpush.bf16.msra.mxu0 %v7639
    %7996 = vmatpush.bf16.msra.mxu0 %v7635
    %7997 = vmatpush.bf16.msra.mxu0 %v7631
    %7998 = vmatpush.bf16.msra.mxu0 %v7627
    %7999 = vmatpush.bf16.msra.mxu0 %v7623
    %8000 = vmatpush.bf16.msra.mxu0 %v7619
    %8001 = vmatpush.bf16.msra.mxu0 %v7615
    %8002 = vmatpush.bf16.msra.mxu0 %v7611
    %8003 = vmatmul.bf16.gmra.mxu0 %v6827
    %v8004 = vpop.f32.mrf.mxu0
    %v8005 = vadd.f32 %v7027, %v8004
    %v8006 = vpop.f32.mrf.mxu0
    %8007 = vdwg.mxu0
    %8008 = vmatpush.bf16.msra.mxu0 %v7671
    %8009 = vmatpush.bf16.msra.mxu0 %v7667
    %8010 = vmatpush.bf16.msra.mxu0 %v7663
    %8011 = vmatpush.bf16.msra.mxu0 %v7659
    %8012 = vmatpush.bf16.msra.mxu0 %v7655
    %8013 = vmatpush.bf16.msra.mxu0 %v7651
    %8014 = vmatpush.bf16.msra.mxu0 %v7647
    %8015 = vmatpush.bf16.msra.mxu0 %v7643
    %8016 = vmatmul.bf16.gmra.mxu0 %v6828
    %v8017 = vpop.f32.mrf.mxu0
    %v8018 = vadd.f32 %v8005, %v8017
    %v8019 = vpop.f32.mrf.mxu0
    %8020 = vdwg.mxu0
    %8021 = vmatpush.bf16.msra.mxu0 %v7703
    %8022 = vmatpush.bf16.msra.mxu0 %v7699
    %8023 = vmatpush.bf16.msra.mxu0 %v7695
    %8024 = vmatpush.bf16.msra.mxu0 %v7691
    %8025 = vmatpush.bf16.msra.mxu0 %v7687
    %8026 = vmatpush.bf16.msra.mxu0 %v7683
    %8027 = vmatpush.bf16.msra.mxu0 %v7679
    %8028 = vmatpush.bf16.msra.mxu0 %v7675
    %8029 = vmatmul.bf16.gmra.mxu0 %v6829
    %v8030 = vpop.f32.mrf.mxu0
    %v8031 = vadd.f32 %v8018, %v8030
    %v8032 = vpop.f32.mrf.mxu0
    %8033 = vdwg.mxu0
    %8034 = vmatpush.bf16.msra.mxu0 %v7735
    %8035 = vmatpush.bf16.msra.mxu0 %v7731
    %8036 = vmatpush.bf16.msra.mxu0 %v7727
    %8037 = vmatpush.bf16.msra.mxu0 %v7723
    %8038 = vmatpush.bf16.msra.mxu0 %v7719
    %8039 = vmatpush.bf16.msra.mxu0 %v7715
    %8040 = vmatpush.bf16.msra.mxu0 %v7711
    %8041 = vmatpush.bf16.msra.mxu0 %v7707
    %8042 = vmatmul.bf16.gmra.mxu0 %v6830
    %v8043 = vpop.f32.mrf.mxu0
    %v8044 = vadd.f32 %v8031, %v8043
    %v8045 = vpop.f32.mrf.mxu0
    %8046 = vdwg.mxu0
    %8047 = vmatpush.bf16.msra.mxu0 %v7767
    %8048 = vmatpush.bf16.msra.mxu0 %v7763
    %8049 = vmatpush.bf16.msra.mxu0 %v7759
    %8050 = vmatpush.bf16.msra.mxu0 %v7755
    %8051 = vmatpush.bf16.msra.mxu0 %v7751
    %8052 = vmatpush.bf16.msra.mxu0 %v7747
    %8053 = vmatpush.bf16.msra.mxu0 %v7743
    %8054 = vmatpush.bf16.msra.mxu0 %v7739
    %8055 = vmatmul.bf16.gmra.mxu0 %v6831
    %v8056 = vpop.f32.mrf.mxu0
    %v8057 = vadd.f32 %v8044, %v8056
    %v8058 = vpop.f32.mrf.mxu0
    %8059 = vdwg.mxu0
    %8060 = vmatpush.bf16.msra.mxu0 %v7799
    %8061 = vmatpush.bf16.msra.mxu0 %v7795
    %8062 = vmatpush.bf16.msra.mxu0 %v7791
    %8063 = vmatpush.bf16.msra.mxu0 %v7787
    %8064 = vmatpush.bf16.msra.mxu0 %v7783
    %8065 = vmatpush.bf16.msra.mxu0 %v7779
    %8066 = vmatpush.bf16.msra.mxu0 %v7775
    %8067 = vmatpush.bf16.msra.mxu0 %v7771
    %8068 = vmatmul.bf16.gmra.mxu0 %v6832
    %v8069 = vpop.f32.mrf.mxu0
    %v8070 = vadd.f32 %v8057, %v8069
    %v8071 = vpop.f32.mrf.mxu0
    %8072 = vdwg.mxu0
    %8073 = vmatpush.bf16.msra.mxu0 %v7640
    %8074 = vmatpush.bf16.msra.mxu0 %v7636
    %8075 = vmatpush.bf16.msra.mxu0 %v7632
    %8076 = vmatpush.bf16.msra.mxu0 %v7628
    %8077 = vmatpush.bf16.msra.mxu0 %v7624
    %8078 = vmatpush.bf16.msra.mxu0 %v7620
    %8079 = vmatpush.bf16.msra.mxu0 %v7616
    %8080 = vmatpush.bf16.msra.mxu0 %v7612
    %8081 = vmatmul.bf16.gmra.mxu0 %v6827
    %v8082 = vpop.f32.mrf.mxu0
    %v8083 = vadd.f32 %v7028, %v8082
    %v8084 = vpop.f32.mrf.mxu0
    %8085 = vdwg.mxu0
    %8086 = vmatpush.bf16.msra.mxu0 %v7672
    %8087 = vmatpush.bf16.msra.mxu0 %v7668
    %8088 = vmatpush.bf16.msra.mxu0 %v7664
    %8089 = vmatpush.bf16.msra.mxu0 %v7660
    %8090 = vmatpush.bf16.msra.mxu0 %v7656
    %8091 = vmatpush.bf16.msra.mxu0 %v7652
    %8092 = vmatpush.bf16.msra.mxu0 %v7648
    %8093 = vmatpush.bf16.msra.mxu0 %v7644
    %8094 = vmatmul.bf16.gmra.mxu0 %v6828
    %v8095 = vpop.f32.mrf.mxu0
    %v8096 = vadd.f32 %v8083, %v8095
    %v8097 = vpop.f32.mrf.mxu0
    %8098 = vdwg.mxu0
    %8099 = vmatpush.bf16.msra.mxu0 %v7704
    %8100 = vmatpush.bf16.msra.mxu0 %v7700
    %8101 = vmatpush.bf16.msra.mxu0 %v7696
    %8102 = vmatpush.bf16.msra.mxu0 %v7692
    %8103 = vmatpush.bf16.msra.mxu0 %v7688
    %8104 = vmatpush.bf16.msra.mxu0 %v7684
    %8105 = vmatpush.bf16.msra.mxu0 %v7680
    %8106 = vmatpush.bf16.msra.mxu0 %v7676
    %8107 = vmatmul.bf16.gmra.mxu0 %v6829
    %v8108 = vpop.f32.mrf.mxu0
    %v8109 = vadd.f32 %v8096, %v8108
    %v8110 = vpop.f32.mrf.mxu0
    %8111 = vdwg.mxu0
    %8112 = vmatpush.bf16.msra.mxu0 %v7736
    %8113 = vmatpush.bf16.msra.mxu0 %v7732
    %8114 = vmatpush.bf16.msra.mxu0 %v7728
    %8115 = vmatpush.bf16.msra.mxu0 %v7724
    %8116 = vmatpush.bf16.msra.mxu0 %v7720
    %8117 = vmatpush.bf16.msra.mxu0 %v7716
    %8118 = vmatpush.bf16.msra.mxu0 %v7712
    %8119 = vmatpush.bf16.msra.mxu0 %v7708
    %8120 = vmatmul.bf16.gmra.mxu0 %v6830
    %v8121 = vpop.f32.mrf.mxu0
    %v8122 = vadd.f32 %v8109, %v8121
    %v8123 = vpop.f32.mrf.mxu0
    %8124 = vdwg.mxu0
    %8125 = vmatpush.bf16.msra.mxu0 %v7768
    %8126 = vmatpush.bf16.msra.mxu0 %v7764
    %8127 = vmatpush.bf16.msra.mxu0 %v7760
    %8128 = vmatpush.bf16.msra.mxu0 %v7756
    %8129 = vmatpush.bf16.msra.mxu0 %v7752
    %8130 = vmatpush.bf16.msra.mxu0 %v7748
    %8131 = vmatpush.bf16.msra.mxu0 %v7744
    %8132 = vmatpush.bf16.msra.mxu0 %v7740
    %8133 = vmatmul.bf16.gmra.mxu0 %v6831
    %v8134 = vpop.f32.mrf.mxu0
    %v8135 = vadd.f32 %v8122, %v8134
    %v8136 = vpop.f32.mrf.mxu0
    %8137 = vdwg.mxu0
    %8138 = vmatpush.bf16.msra.mxu0 %v7800
    %8139 = vmatpush.bf16.msra.mxu0 %v7796
    %8140 = vmatpush.bf16.msra.mxu0 %v7792
    %8141 = vmatpush.bf16.msra.mxu0 %v7788
    %8142 = vmatpush.bf16.msra.mxu0 %v7784
    %8143 = vmatpush.bf16.msra.mxu0 %v7780
    %8144 = vmatpush.bf16.msra.mxu0 %v7776
    %8145 = vmatpush.bf16.msra.mxu0 %v7772
    %8146 = vmatmul.bf16.gmra.mxu0 %v6832
    %v8147 = vpop.f32.mrf.mxu0
    %v8148 = vadd.f32 %v8135, %v8147
    %v8149 = vpop.f32.mrf.mxu0
    %8150 = vdwg.mxu0
    %8151 = vmatpush.bf16.msra.mxu0 %v7641
    %8152 = vmatpush.bf16.msra.mxu0 %v7637
    %8153 = vmatpush.bf16.msra.mxu0 %v7633
    %8154 = vmatpush.bf16.msra.mxu0 %v7629
    %8155 = vmatpush.bf16.msra.mxu0 %v7625
    %8156 = vmatpush.bf16.msra.mxu0 %v7621
    %8157 = vmatpush.bf16.msra.mxu0 %v7617
    %8158 = vmatpush.bf16.msra.mxu0 %v7613
    %8159 = vmatmul.bf16.gmra.mxu0 %v6827
    %v8160 = vpop.f32.mrf.mxu0
    %v8161 = vadd.f32 %v7029, %v8160
    %v8162 = vpop.f32.mrf.mxu0
    %8163 = vdwg.mxu0
    %8164 = vmatpush.bf16.msra.mxu0 %v7673
    %8165 = vmatpush.bf16.msra.mxu0 %v7669
    %8166 = vmatpush.bf16.msra.mxu0 %v7665
    %8167 = vmatpush.bf16.msra.mxu0 %v7661
    %8168 = vmatpush.bf16.msra.mxu0 %v7657
    %8169 = vmatpush.bf16.msra.mxu0 %v7653
    %8170 = vmatpush.bf16.msra.mxu0 %v7649
    %8171 = vmatpush.bf16.msra.mxu0 %v7645
    %8172 = vmatmul.bf16.gmra.mxu0 %v6828
    %v8173 = vpop.f32.mrf.mxu0
    %v8174 = vadd.f32 %v8161, %v8173
    %v8175 = vpop.f32.mrf.mxu0
    %8176 = vdwg.mxu0
    %8177 = vmatpush.bf16.msra.mxu0 %v7705
    %8178 = vmatpush.bf16.msra.mxu0 %v7701
    %8179 = vmatpush.bf16.msra.mxu0 %v7697
    %8180 = vmatpush.bf16.msra.mxu0 %v7693
    %8181 = vmatpush.bf16.msra.mxu0 %v7689
    %8182 = vmatpush.bf16.msra.mxu0 %v7685
    %8183 = vmatpush.bf16.msra.mxu0 %v7681
    %8184 = vmatpush.bf16.msra.mxu0 %v7677
    %8185 = vmatmul.bf16.gmra.mxu0 %v6829
    %v8186 = vpop.f32.mrf.mxu0
    %v8187 = vadd.f32 %v8174, %v8186
    %v8188 = vpop.f32.mrf.mxu0
    %8189 = vdwg.mxu0
    %8190 = vmatpush.bf16.msra.mxu0 %v7737
    %8191 = vmatpush.bf16.msra.mxu0 %v7733
    %8192 = vmatpush.bf16.msra.mxu0 %v7729
    %8193 = vmatpush.bf16.msra.mxu0 %v7725
    %8194 = vmatpush.bf16.msra.mxu0 %v7721
    %8195 = vmatpush.bf16.msra.mxu0 %v7717
    %8196 = vmatpush.bf16.msra.mxu0 %v7713
    %8197 = vmatpush.bf16.msra.mxu0 %v7709
    %8198 = vmatmul.bf16.gmra.mxu0 %v6830
    %v8199 = vpop.f32.mrf.mxu0
    %v8200 = vadd.f32 %v8187, %v8199
    %v8201 = vpop.f32.mrf.mxu0
    %8202 = vdwg.mxu0
    %8203 = vmatpush.bf16.msra.mxu0 %v7769
    %8204 = vmatpush.bf16.msra.mxu0 %v7765
    %8205 = vmatpush.bf16.msra.mxu0 %v7761
    %8206 = vmatpush.bf16.msra.mxu0 %v7757
    %8207 = vmatpush.bf16.msra.mxu0 %v7753
    %8208 = vmatpush.bf16.msra.mxu0 %v7749
    %8209 = vmatpush.bf16.msra.mxu0 %v7745
    %8210 = vmatpush.bf16.msra.mxu0 %v7741
    %8211 = vmatmul.bf16.gmra.mxu0 %v6831
    %v8212 = vpop.f32.mrf.mxu0
    %v8213 = vadd.f32 %v8200, %v8212
    %v8214 = vpop.f32.mrf.mxu0
    %8215 = vdwg.mxu0
    %8216 = vmatpush.bf16.msra.mxu0 %v7801
    %8217 = vmatpush.bf16.msra.mxu0 %v7797
    %8218 = vmatpush.bf16.msra.mxu0 %v7793
    %8219 = vmatpush.bf16.msra.mxu0 %v7789
    %8220 = vmatpush.bf16.msra.mxu0 %v7785
    %8221 = vmatpush.bf16.msra.mxu0 %v7781
    %8222 = vmatpush.bf16.msra.mxu0 %v7777
    %8223 = vmatpush.bf16.msra.mxu0 %v7773
    %8224 = vmatmul.bf16.gmra.mxu0 %v6832
    %v8225 = vpop.f32.mrf.mxu0
    %v8226 = vadd.f32 %v8213, %v8225
    %v8227 = vpop.f32.mrf.mxu0
    %8228 = vdwg.mxu0
    %8229 = vmatpush.bf16.msra.mxu0 %v7642
    %8230 = vmatpush.bf16.msra.mxu0 %v7638
    %8231 = vmatpush.bf16.msra.mxu0 %v7634
    %8232 = vmatpush.bf16.msra.mxu0 %v7630
    %8233 = vmatpush.bf16.msra.mxu0 %v7626
    %8234 = vmatpush.bf16.msra.mxu0 %v7622
    %8235 = vmatpush.bf16.msra.mxu0 %v7618
    %8236 = vmatpush.bf16.msra.mxu0 %v7614
    %8237 = vmatmul.bf16.gmra.mxu0 %v6827
    %v8238 = vpop.f32.mrf.mxu0
    %v8239 = vadd.f32 %v7030, %v8238
    %v8240 = vpop.f32.mrf.mxu0
    %8241 = vdwg.mxu0
    %8242 = vmatpush.bf16.msra.mxu0 %v7674
    %8243 = vmatpush.bf16.msra.mxu0 %v7670
    %8244 = vmatpush.bf16.msra.mxu0 %v7666
    %8245 = vmatpush.bf16.msra.mxu0 %v7662
    %8246 = vmatpush.bf16.msra.mxu0 %v7658
    %8247 = vmatpush.bf16.msra.mxu0 %v7654
    %8248 = vmatpush.bf16.msra.mxu0 %v7650
    %8249 = vmatpush.bf16.msra.mxu0 %v7646
    %8250 = vmatmul.bf16.gmra.mxu0 %v6828
    %v8251 = vpop.f32.mrf.mxu0
    %v8252 = vadd.f32 %v8239, %v8251
    %v8253 = vpop.f32.mrf.mxu0
    %8254 = vdwg.mxu0
    %8255 = vmatpush.bf16.msra.mxu0 %v7706
    %8256 = vmatpush.bf16.msra.mxu0 %v7702
    %8257 = vmatpush.bf16.msra.mxu0 %v7698
    %8258 = vmatpush.bf16.msra.mxu0 %v7694
    %8259 = vmatpush.bf16.msra.mxu0 %v7690
    %8260 = vmatpush.bf16.msra.mxu0 %v7686
    %8261 = vmatpush.bf16.msra.mxu0 %v7682
    %8262 = vmatpush.bf16.msra.mxu0 %v7678
    %8263 = vmatmul.bf16.gmra.mxu0 %v6829
    %v8264 = vpop.f32.mrf.mxu0
    %v8265 = vadd.f32 %v8252, %v8264
    %v8266 = vpop.f32.mrf.mxu0
    %8267 = vdwg.mxu0
    %8268 = vmatpush.bf16.msra.mxu0 %v7738
    %8269 = vmatpush.bf16.msra.mxu0 %v7734
    %8270 = vmatpush.bf16.msra.mxu0 %v7730
    %8271 = vmatpush.bf16.msra.mxu0 %v7726
    %8272 = vmatpush.bf16.msra.mxu0 %v7722
    %8273 = vmatpush.bf16.msra.mxu0 %v7718
    %8274 = vmatpush.bf16.msra.mxu0 %v7714
    %8275 = vmatpush.bf16.msra.mxu0 %v7710
    %8276 = vmatmul.bf16.gmra.mxu0 %v6830
    %v8277 = vpop.f32.mrf.mxu0
    %v8278 = vadd.f32 %v8265, %v8277
    %v8279 = vpop.f32.mrf.mxu0
    %8280 = vdwg.mxu0
    %8281 = vmatpush.bf16.msra.mxu0 %v7770
    %8282 = vmatpush.bf16.msra.mxu0 %v7766
    %8283 = vmatpush.bf16.msra.mxu0 %v7762
    %8284 = vmatpush.bf16.msra.mxu0 %v7758
    %8285 = vmatpush.bf16.msra.mxu0 %v7754
    %8286 = vmatpush.bf16.msra.mxu0 %v7750
    %8287 = vmatpush.bf16.msra.mxu0 %v7746
    %8288 = vmatpush.bf16.msra.mxu0 %v7742
    %8289 = vmatmul.bf16.gmra.mxu0 %v6831
    %v8290 = vpop.f32.mrf.mxu0
    %v8291 = vadd.f32 %v8278, %v8290
    %v8292 = vpop.f32.mrf.mxu0
    %8293 = vdwg.mxu0
    %8294 = vmatpush.bf16.msra.mxu0 %v7802
    %8295 = vmatpush.bf16.msra.mxu0 %v7798
    %8296 = vmatpush.bf16.msra.mxu0 %v7794
    %8297 = vmatpush.bf16.msra.mxu0 %v7790
    %8298 = vmatpush.bf16.msra.mxu0 %v7786
    %8299 = vmatpush.bf16.msra.mxu0 %v7782
    %8300 = vmatpush.bf16.msra.mxu0 %v7778
    %8301 = vmatpush.bf16.msra.mxu0 %v7774
    %8302 = vmatmul.bf16.gmra.mxu0 %v6832
    %v8303 = vpop.f32.mrf.mxu0
    %v8304 = vadd.f32 %v8291, %v8303
    %v8305 = vpop.f32.mrf.mxu0
    %8306 = vdwg.mxu0
    %v8307 = vsub.f32 0.0, %v8070
    %v8308 = vsub.f32 0.0, %v8148
    %v8309 = vsub.f32 0.0, %v8226
    %v8310 = vsub.f32 0.0, %v8304
    %v8311 = vmul.f32 %v8307, 1.442695
    %v8312 = vpow.pop %v8311
    %v8313 = vmul.f32 %v8308, 1.442695
    %v8314 = vpow.pop %v8313
    %v8315 = vmul.f32 %v8309, 1.442695
    %v8316 = vpow.pop %v8315
    %v8317 = vmul.f32 %v8310, 1.442695
    %v8318 = vpow.pop %v8317
    %v8319 = vadd.f32 %v8312, 1.0
    %v8320 = vadd.f32 %v8314, 1.0
    %v8321 = vadd.f32 %v8316, 1.0
    %v8322 = vadd.f32 %v8318, 1.0
    %v8323 = vrcp.pop %v8319
    %v8324 = vmul.f32 %v8319, %v8323
    %v8325 = vsub.f32 1.0, %v8324
    %v8326 = vmul.f32 %v8323, %v8325
    %v8327 = vadd.f32 %v8323, %v8326
    %vm8328 = vweird.f32 %v8319
    %vm8329 = vweird.f32 %v8323
    %vm8330 = vmor %vm8328, %vm8329
    %v8331 = vsel %vm8330, %v8323, %v8327
    %v8332 = vand.u32 2147483647, %v8319
    %vm8333 = vcmp.eq.f32.partialorder %v8332, 8.507059e+37
    %v8334 = vand.u32 %v8319, 2147483648
    %v8335 = vor.u32 1.1754944e-38, %v8334
    %v8336 = vsel %vm8333, %v8335, %v8331
    %v8337 = vmul.f32 1.0, %v8336
    %v8338 = vrcp.pop %v8320
    %v8339 = vmul.f32 %v8320, %v8338
    %v8340 = vsub.f32 1.0, %v8339
    %v8341 = vmul.f32 %v8338, %v8340
    %v8342 = vadd.f32 %v8338, %v8341
    %vm8343 = vweird.f32 %v8320
    %vm8344 = vweird.f32 %v8338
    %vm8345 = vmor %vm8343, %vm8344
    %v8346 = vsel %vm8345, %v8338, %v8342
    %v8347 = vand.u32 2147483647, %v8320
    %vm8348 = vcmp.eq.f32.partialorder %v8347, 8.507059e+37
    %v8349 = vand.u32 %v8320, 2147483648
    %v8350 = vor.u32 1.1754944e-38, %v8349
    %v8351 = vsel %vm8348, %v8350, %v8346
    %v8352 = vmul.f32 1.0, %v8351
    %v8353 = vrcp.pop %v8321
    %v8354 = vmul.f32 %v8321, %v8353
    %v8355 = vsub.f32 1.0, %v8354
    %v8356 = vmul.f32 %v8353, %v8355
    %v8357 = vadd.f32 %v8353, %v8356
    %vm8358 = vweird.f32 %v8321
    %vm8359 = vweird.f32 %v8353
    %vm8360 = vmor %vm8358, %vm8359
    %v8361 = vsel %vm8360, %v8353, %v8357
    %v8362 = vand.u32 2147483647, %v8321
    %vm8363 = vcmp.eq.f32.partialorder %v8362, 8.507059e+37
    %v8364 = vand.u32 %v8321, 2147483648
    %v8365 = vor.u32 1.1754944e-38, %v8364
    %v8366 = vsel %vm8363, %v8365, %v8361
    %v8367 = vmul.f32 1.0, %v8366
    %v8368 = vrcp.pop %v8322
    %v8369 = vmul.f32 %v8322, %v8368
    %v8370 = vsub.f32 1.0, %v8369
    %v8371 = vmul.f32 %v8368, %v8370
    %v8372 = vadd.f32 %v8368, %v8371
    %vm8373 = vweird.f32 %v8322
    %vm8374 = vweird.f32 %v8368
    %vm8375 = vmor %vm8373, %vm8374
    %v8376 = vsel %vm8375, %v8368, %v8372
    %v8377 = vand.u32 2147483647, %v8322
    %vm8378 = vcmp.eq.f32.partialorder %v8377, 8.507059e+37
    %v8379 = vand.u32 %v8322, 2147483648
    %v8380 = vor.u32 1.1754944e-38, %v8379
    %v8381 = vsel %vm8378, %v8380, %v8376
    %v8382 = vmul.f32 1.0, %v8381
    %v8383 = vpack.c.bf16 %v8337, %v8337
    %v8384 = vpack.c.bf16 %v8352, %v8352
    %v8385 = vpack.c.bf16 %v8367, %v8367
    %v8386 = vpack.c.bf16 %v8382, %v8382
    %v8387 = vld [vmem:[#allocation14] sm:$0xf]
    %v8388 = vld [vmem:[#allocation14 + $0x4] sm:$0xf]
    %v8389 = vld [vmem:[#allocation14 + $0x8] sm:$0xf]
    %v8390 = vld [vmem:[#allocation14 + $0xc] sm:$0xf]
    %v8391 = vld [vmem:[#allocation14 + $0x10] sm:$0xf]
    %v8392 = vld [vmem:[#allocation14 + $0x14] sm:$0xf]
    %v8393 = vld [vmem:[#allocation14 + $0x18] sm:$0xf]
    %v8394 = vld [vmem:[#allocation14 + $0x1c] sm:$0xf]
    %v8395 = vld [vmem:[#allocation14 + $0x20] sm:$0xf]
    %v8396 = vld [vmem:[#allocation14 + $0x24] sm:$0xf]
    %v8397 = vld [vmem:[#allocation14 + $0x28] sm:$0xf]
    %v8398 = vld [vmem:[#allocation14 + $0x2c] sm:$0xf]
    %v8399 = vld [vmem:[#allocation14 + $0x30] sm:$0xf]
    %v8400 = vld [vmem:[#allocation14 + $0x34] sm:$0xf]
    %v8401 = vld [vmem:[#allocation14 + $0x38] sm:$0xf]
    %v8402 = vld [vmem:[#allocation14 + $0x3c] sm:$0xf]
    %v8403 = vld [vmem:[#allocation14 + $0x40] sm:$0xf]
    %v8404 = vld [vmem:[#allocation14 + $0x44] sm:$0xf]
    %v8405 = vld [vmem:[#allocation14 + $0x48] sm:$0xf]
    %v8406 = vld [vmem:[#allocation14 + $0x4c] sm:$0xf]
    %v8407 = vld [vmem:[#allocation14 + $0x50] sm:$0xf]
    %v8408 = vld [vmem:[#allocation14 + $0x54] sm:$0xf]
    %v8409 = vld [vmem:[#allocation14 + $0x58] sm:$0xf]
    %v8410 = vld [vmem:[#allocation14 + $0x5c] sm:$0xf]
    %v8411 = vld [vmem:[#allocation14 + $0x60] sm:$0xf]
    %v8412 = vld [vmem:[#allocation14 + $0x64] sm:$0xf]
    %v8413 = vld [vmem:[#allocation14 + $0x68] sm:$0xf]
    %v8414 = vld [vmem:[#allocation14 + $0x6c] sm:$0xf]
    %v8415 = vld [vmem:[#allocation14 + $0x70] sm:$0xf]
    %v8416 = vld [vmem:[#allocation14 + $0x74] sm:$0xf]
    %v8417 = vld [vmem:[#allocation14 + $0x78] sm:$0xf]
    %v8418 = vld [vmem:[#allocation14 + $0x7c] sm:$0xf]
    %v8419 = vld [vmem:[#allocation14 + $0x80] sm:$0xf]
    %v8420 = vld [vmem:[#allocation14 + $0x84] sm:$0xf]
    %v8421 = vld [vmem:[#allocation14 + $0x88] sm:$0xf]
    %v8422 = vld [vmem:[#allocation14 + $0x8c] sm:$0xf]
    %v8423 = vld [vmem:[#allocation14 + $0x90] sm:$0xf]
    %v8424 = vld [vmem:[#allocation14 + $0x94] sm:$0xf]
    %v8425 = vld [vmem:[#allocation14 + $0x98] sm:$0xf]
    %v8426 = vld [vmem:[#allocation14 + $0x9c] sm:$0xf]
    %v8427 = vld [vmem:[#allocation14 + $0xa0] sm:$0xf]
    %v8428 = vld [vmem:[#allocation14 + $0xa4] sm:$0xf]
    %v8429 = vld [vmem:[#allocation14 + $0xa8] sm:$0xf]
    %v8430 = vld [vmem:[#allocation14 + $0xac] sm:$0xf]
    %v8431 = vld [vmem:[#allocation14 + $0xb0] sm:$0xf]
    %v8432 = vld [vmem:[#allocation14 + $0xb4] sm:$0xf]
    %v8433 = vld [vmem:[#allocation14 + $0xb8] sm:$0xf]
    %v8434 = vld [vmem:[#allocation14 + $0xbc] sm:$0xf]
    %v8435 = vld [vmem:[#allocation14 + $0xc0] sm:$0xf]
    %v8436 = vld [vmem:[#allocation14 + $0xc4] sm:$0xf]
    %v8437 = vld [vmem:[#allocation14 + $0xc8] sm:$0xf]
    %v8438 = vld [vmem:[#allocation14 + $0xcc] sm:$0xf]
    %v8439 = vld [vmem:[#allocation14 + $0xd0] sm:$0xf]
    %v8440 = vld [vmem:[#allocation14 + $0xd4] sm:$0xf]
    %v8441 = vld [vmem:[#allocation14 + $0xd8] sm:$0xf]
    %v8442 = vld [vmem:[#allocation14 + $0xdc] sm:$0xf]
    %v8443 = vld [vmem:[#allocation14 + $0xe0] sm:$0xf]
    %v8444 = vld [vmem:[#allocation14 + $0xe4] sm:$0xf]
    %v8445 = vld [vmem:[#allocation14 + $0xe8] sm:$0xf]
    %v8446 = vld [vmem:[#allocation14 + $0xec] sm:$0xf]
    %v8447 = vld [vmem:[#allocation14 + $0xf0] sm:$0xf]
    %v8448 = vld [vmem:[#allocation14 + $0xf4] sm:$0xf]
    %v8449 = vld [vmem:[#allocation14 + $0xf8] sm:$0xf]
    %v8450 = vld [vmem:[#allocation14 + $0xfc] sm:$0xf]
    %v8451 = vld [vmem:[#allocation16] sm:$0x1]
    %v8453 = vperm.slane %v8451, 0
    %v8519 = vunpack.c.l.b16 %v8387
    %v8520 = vunpack.c.l.b16 %v8388
    %v8521 = vunpack.c.l.b16 %v8389
    %v8522 = vunpack.c.l.b16 %v8390
    %v8523 = vunpack.c.l.b16 %v8391
    %v8524 = vunpack.c.l.b16 %v8392
    %v8525 = vunpack.c.l.b16 %v8393
    %v8526 = vunpack.c.l.b16 %v8394
    %v8527 = vunpack.c.l.b16 %v8395
    %v8528 = vunpack.c.l.b16 %v8396
    %v8529 = vunpack.c.l.b16 %v8397
    %v8530 = vunpack.c.l.b16 %v8398
    %v8531 = vunpack.c.l.b16 %v8399
    %v8532 = vunpack.c.l.b16 %v8400
    %v8533 = vunpack.c.l.b16 %v8401
    %v8534 = vunpack.c.l.b16 %v8402
    %v8535 = vunpack.c.l.b16 %v8403
    %v8536 = vunpack.c.l.b16 %v8404
    %v8537 = vunpack.c.l.b16 %v8405
    %v8538 = vunpack.c.l.b16 %v8406
    %v8539 = vunpack.c.l.b16 %v8407
    %v8540 = vunpack.c.l.b16 %v8408
    %v8541 = vunpack.c.l.b16 %v8409
    %v8542 = vunpack.c.l.b16 %v8410
    %v8543 = vunpack.c.l.b16 %v8411
    %v8544 = vunpack.c.l.b16 %v8412
    %v8545 = vunpack.c.l.b16 %v8413
    %v8546 = vunpack.c.l.b16 %v8414
    %v8547 = vunpack.c.l.b16 %v8415
    %v8548 = vunpack.c.l.b16 %v8416
    %v8549 = vunpack.c.l.b16 %v8417
    %v8550 = vunpack.c.l.b16 %v8418
    %v8551 = vunpack.c.l.b16 %v8419
    %v8552 = vunpack.c.l.b16 %v8420
    %v8553 = vunpack.c.l.b16 %v8421
    %v8554 = vunpack.c.l.b16 %v8422
    %v8555 = vunpack.c.l.b16 %v8423
    %v8556 = vunpack.c.l.b16 %v8424
    %v8557 = vunpack.c.l.b16 %v8425
    %v8558 = vunpack.c.l.b16 %v8426
    %v8559 = vunpack.c.l.b16 %v8427
    %v8560 = vunpack.c.l.b16 %v8428
    %v8561 = vunpack.c.l.b16 %v8429
    %v8562 = vunpack.c.l.b16 %v8430
    %v8563 = vunpack.c.l.b16 %v8431
    %v8564 = vunpack.c.l.b16 %v8432
    %v8565 = vunpack.c.l.b16 %v8433
    %v8566 = vunpack.c.l.b16 %v8434
    %v8567 = vunpack.c.l.b16 %v8435
    %v8568 = vunpack.c.l.b16 %v8436
    %v8569 = vunpack.c.l.b16 %v8437
    %v8570 = vunpack.c.l.b16 %v8438
    %v8571 = vunpack.c.l.b16 %v8439
    %v8572 = vunpack.c.l.b16 %v8440
    %v8573 = vunpack.c.l.b16 %v8441
    %v8574 = vunpack.c.l.b16 %v8442
    %v8575 = vunpack.c.l.b16 %v8443
    %v8576 = vunpack.c.l.b16 %v8444
    %v8577 = vunpack.c.l.b16 %v8445
    %v8578 = vunpack.c.l.b16 %v8446
    %v8579 = vunpack.c.l.b16 %v8447
    %v8580 = vunpack.c.l.b16 %v8448
    %v8581 = vunpack.c.l.b16 %v8449
    %v8582 = vunpack.c.l.b16 %v8450
    %v8583 = vpack.c.b16 %v8520, %v8519
    %v8584 = vpack.c.b16 %v8522, %v8521
    %v8585 = vpack.c.b16 %v8524, %v8523
    %v8586 = vpack.c.b16 %v8526, %v8525
    %v8587 = vpack.c.b16 %v8528, %v8527
    %v8588 = vpack.c.b16 %v8530, %v8529
    %v8589 = vpack.c.b16 %v8532, %v8531
    %v8590 = vpack.c.b16 %v8534, %v8533
    %v8591 = vpack.c.b16 %v8536, %v8535
    %v8592 = vpack.c.b16 %v8538, %v8537
    %v8593 = vpack.c.b16 %v8540, %v8539
    %v8594 = vpack.c.b16 %v8542, %v8541
    %v8595 = vpack.c.b16 %v8544, %v8543
    %v8596 = vpack.c.b16 %v8546, %v8545
    %v8597 = vpack.c.b16 %v8548, %v8547
    %v8598 = vpack.c.b16 %v8550, %v8549
    %v8599 = vpack.c.b16 %v8552, %v8551
    %v8600 = vpack.c.b16 %v8554, %v8553
    %v8601 = vpack.c.b16 %v8556, %v8555
    %v8602 = vpack.c.b16 %v8558, %v8557
    %v8603 = vpack.c.b16 %v8560, %v8559
    %v8604 = vpack.c.b16 %v8562, %v8561
    %v8605 = vpack.c.b16 %v8564, %v8563
    %v8606 = vpack.c.b16 %v8566, %v8565
    %v8607 = vpack.c.b16 %v8568, %v8567
    %v8608 = vpack.c.b16 %v8570, %v8569
    %v8609 = vpack.c.b16 %v8572, %v8571
    %v8610 = vpack.c.b16 %v8574, %v8573
    %v8611 = vpack.c.b16 %v8576, %v8575
    %v8612 = vpack.c.b16 %v8578, %v8577
    %v8613 = vpack.c.b16 %v8580, %v8579
    %v8614 = vpack.c.b16 %v8582, %v8581
    %8647 = vmatpush.bf16.msra.mxu0 %v8590
    %8648 = vmatpush.bf16.msra.mxu0 %v8589
    %8649 = vmatpush.bf16.msra.mxu0 %v8588
    %8650 = vmatpush.bf16.msra.mxu0 %v8587
    %8651 = vmatpush.bf16.msra.mxu0 %v8586
    %8652 = vmatpush.bf16.msra.mxu0 %v8585
    %8653 = vmatpush.bf16.msra.mxu0 %v8584
    %8654 = vmatpush.bf16.msra.mxu0 %v8583
    %8655 = vmatmul.bf16.gmra.mxu0 %v8383
    %v8656 = vpop.f32.mrf.mxu0
    %v8657 = vadd.f32 %v8453, %v8656
    %v8658 = vpop.f32.mrf.mxu0
    %8659 = vdwg.mxu0
    %8660 = vmatpush.bf16.msra.mxu0 %v8598
    %8661 = vmatpush.bf16.msra.mxu0 %v8597
    %8662 = vmatpush.bf16.msra.mxu0 %v8596
    %8663 = vmatpush.bf16.msra.mxu0 %v8595
    %8664 = vmatpush.bf16.msra.mxu0 %v8594
    %8665 = vmatpush.bf16.msra.mxu0 %v8593
    %8666 = vmatpush.bf16.msra.mxu0 %v8592
    %8667 = vmatpush.bf16.msra.mxu0 %v8591
    %8668 = vmatmul.bf16.gmra.mxu0 %v8384
    %v8669 = vpop.f32.mrf.mxu0
    %v8670 = vadd.f32 %v8657, %v8669
    %v8671 = vpop.f32.mrf.mxu0
    %8672 = vdwg.mxu0
    %8673 = vmatpush.bf16.msra.mxu0 %v8606
    %8674 = vmatpush.bf16.msra.mxu0 %v8605
    %8675 = vmatpush.bf16.msra.mxu0 %v8604
    %8676 = vmatpush.bf16.msra.mxu0 %v8603
    %8677 = vmatpush.bf16.msra.mxu0 %v8602
    %8678 = vmatpush.bf16.msra.mxu0 %v8601
    %8679 = vmatpush.bf16.msra.mxu0 %v8600
    %8680 = vmatpush.bf16.msra.mxu0 %v8599
    %8681 = vmatmul.bf16.gmra.mxu0 %v8385
    %v8682 = vpop.f32.mrf.mxu0
    %v8683 = vadd.f32 %v8670, %v8682
    %v8684 = vpop.f32.mrf.mxu0
    %8685 = vdwg.mxu0
    %8686 = vmatpush.bf16.msra.mxu0 %v8614
    %8687 = vmatpush.bf16.msra.mxu0 %v8613
    %8688 = vmatpush.bf16.msra.mxu0 %v8612
    %8689 = vmatpush.bf16.msra.mxu0 %v8611
    %8690 = vmatpush.bf16.msra.mxu0 %v8610
    %8691 = vmatpush.bf16.msra.mxu0 %v8609
    %8692 = vmatpush.bf16.msra.mxu0 %v8608
    %8693 = vmatpush.bf16.msra.mxu0 %v8607
    %8694 = vmatmul.bf16.gmra.mxu0 %v8386
    %v8695 = vpop.f32.mrf.mxu0
    %v8696 = vadd.f32 %v8683, %v8695
    %v8697 = vpop.f32.mrf.mxu0
    %8698 = vdwg.mxu0
    %8699 = vst [vmem:[#allocation17] sm:$0xff] %v8696
    // Predicated region
    $region74: #{tpu_custom_call.1} parent=1 // pred_check
      _
    $region75: #{tpu_custom_call.1} parent=1 // pred_check_branch
      %8701 = sbr.rel (0) target = $region77
    $region76: #{tpu_custom_call.1} parent=1 // pred_region
      %8703 = vsyncadd [#allocation4], 0
      %s8705 = sshll.u32 [#allocation17], 4
      %s8706 = int_to_ptr.vmem [resolvable:$true] %s8705
      %s8707 = sshll.u32 %s9, 4
      %s8708 = int_to_ptr.hbm [resolvable:$true] %s8707
      %8710 = dma.vmem_to_hbm [thread:$0]  %s8706, 128, %s8708, [#allocation4]
    $region77: #{tpu_custom_call.1} parent=1 // pred_fallthru
      _
    // Predicated region
    $region78: #{tpu_custom_call.1} parent=1 // pred_check
      _
    $region79: #{tpu_custom_call.1} parent=1 // pred_check_branch
      %8712 = sbr.rel (0) target = $region81
    $region80: #{tpu_custom_call.1} parent=1 // pred_region
      %8714 = dma.done [#allocation4], 128
    $region81: #{tpu_custom_call.1} parent=1 // pred_fallthru
      _
    %8715 = vsyncpa [#allocation3], 1
    %8716 = vsyncpa [#allocation6], 1
    %8717 = vsyncpa [#allocation9], 1
    %8718 = vsyncpa [#allocation12], 1
    %8719 = vsyncpa [#allocation15], 1
    %8720 = vsyncpa [#allocation4], 1

</llo_original>
